<compile_context>
chip_gen: v7x
topology: tpu7x:2x2x1
jax: 0.10.0
libtpu: 0.0.40
codegen_flags: <defaults>
</compile_context>

<pallas_src>
import functools

import jax
import jax.numpy as jnp
import numpy as np
from jax import lax
from jax.experimental import pallas as pl
from jax.experimental.pallas import tpu as pltpu


# ----------------------------- config ---------------------------------------
class Cfg:
    vocab_size = 32
    max_seq_len = 64          # positional-encoding table size
    d_model = 32              # encoder_dim == decoder_dim
    n_head = 2
    d_k = 16
    d_v = 16
    d_ff = 64                 # FFT conv filter size
    fft_kernel = 3
    n_enc_layers = 1
    n_dec_layers = 1
    pred_filter = 64          # variance-predictor conv filter size
    pred_kernel = 3
    n_bins = 8                # pitch / energy quantization bins
    num_mels = 16


# ----------------------------- in-kernel helpers ------------------------------
def _bf16_dot(a, b):
    """MXU matmul: bf16 operands, f32 accumulation."""
    return jnp.dot(a.astype(jnp.bfloat16), b.astype(jnp.bfloat16),
                   preferred_element_type=jnp.float32)


def _bf16_dot_tt(a, b):
    """a @ b.T without an explicit transpose (contract last dims of both)."""
    return lax.dot_general(a.astype(jnp.bfloat16), b.astype(jnp.bfloat16),
                           (((1,), (1,)), ((), ())),
                           preferred_element_type=jnp.float32)


def _layernorm(x, g, b, eps=1e-5):
    mean = jnp.mean(x, axis=-1, keepdims=True)
    var = jnp.mean(jnp.square(x - mean), axis=-1, keepdims=True)
    return (x - mean) * lax.rsqrt(var + eps) * g + b


def _edge_masks(T):
    """(T,1) masks: 0 at row 0 / row T-1 respectively, 1 elsewhere.

    Used to zero the wrapped-around row produced by pltpu.roll so the 'same'
    zero-padding semantics of Conv1d(k=3) hold at the sequence edges."""
    rows = lax.broadcasted_iota(jnp.int32, (T, 1), 0)
    not_first = (rows != 0).astype(jnp.float32)
    not_last = (rows != T - 1).astype(jnp.float32)
    return not_first, not_last


def _conv3(x, not_first, not_last, w_ref, bias):
    """'same' Conv1d, kernel=3, zero padded.  w_ref: (3, Cin, Cout) tap weights.

    Neighbour rows are produced by an XLU sublane roll (free relative to the
    MXU/VALU slots) with the wrapped edge row zeroed; the 3 taps are then
    accumulated with bf16 MXU matmuls."""
    T = x.shape[0]
    x_prev = pltpu.roll(x, shift=1, axis=0) * not_first        # x[t-1], 0 at t=0
    x_next = pltpu.roll(x, shift=T - 1, axis=0) * not_last     # x[t+1], 0 at t=T-1
    acc = _bf16_dot(x_prev, w_ref[0])
    acc = acc + _bf16_dot(x, w_ref[1])
    acc = acc + _bf16_dot(x_next, w_ref[2])
    return acc + bias


# ----------------------------- fused FFT block body ---------------------------
def _fft_block_body(x_ref, keypad_ref, nonpad_ref,
                    wqkv_ref, bqkv_ref, wo_ref, bo_ref, ln1g_ref, ln1b_ref,
                    w1_ref, b1_ref, w2_ref, b2_ref, ln2g_ref, ln2b_ref,
                    *, n_head, d_k, d_v):
    x = x_ref[...]                         # (T, D) f32
    keypad = keypad_ref[...]               # (1, T)  1.0 where key is a pad token
    nonpad = nonpad_ref[...]               # (T, 1)  1.0 where query is real
    T, D = x.shape

    # ---- multi-head self-attention: Q|K|V fused into one matmul -------------
    # The 1/sqrt(d_k) scale is pre-folded into the Q columns of wqkv at init.
    qkv = _bf16_dot(x, wqkv_ref[...]) + bqkv_ref[...]        # (T, 3*H*d_k)
    q_off, k_off, v_off = 0, n_head * d_k, 2 * n_head * d_k

    # key-pad mask as an additive bias, broadcast ONCE (hoisted out of head loop)
    bias = jnp.broadcast_to(keypad * (-1e9), (T, T))

    ctxs = []
    for h in range(n_head):                                  # unrolled, H small
        q = qkv[:, q_off + h * d_k: q_off + (h + 1) * d_k]
        k = qkv[:, k_off + h * d_k: k_off + (h + 1) * d_k]
        v = qkv[:, v_off + h * d_v: v_off + (h + 1) * d_v]
        s = _bf16_dot_tt(q, k) + bias                        # (T, T) f32
        m = jnp.max(s, axis=-1, keepdims=True)
        e = jnp.exp(s - m)
        p = e * pl.reciprocal(jnp.sum(e, axis=-1, keepdims=True), approx=True)
        ctxs.append(_bf16_dot(p, v))                         # (T, d_v)
    # single output projection on the concatenated heads (== concat @ Wo)
    ctx = jnp.concatenate(ctxs, axis=-1)                     # (T, H*d_v)
    attn_out = _bf16_dot(ctx, wo_ref[...]) + bo_ref[...]

    # residual + LayerNorm, non-pad mask fused into the same kernel
    # TODO(synk): dropout omitted for a deterministic forward pass.
    h1 = _layernorm(attn_out + x, ln1g_ref[...], ln1b_ref[...]) * nonpad

    # ---- position-wise FFN: two 'same' Conv1d(k=3), neighbours via roll -----
    not_first, not_last = _edge_masks(T)
    f = jnp.maximum(_conv3(h1, not_first, not_last, w1_ref, b1_ref[...]), 0.0)
    f = _conv3(f, not_first, not_last, w2_ref, b2_ref[...])
    h2 = _layernorm(f + h1, ln2g_ref[...], ln2b_ref[...]) * nonpad
    return h2


def _fft_block_kernel(x_ref, keypad_ref, nonpad_ref,
                      wqkv_ref, bqkv_ref, wo_ref, bo_ref, ln1g_ref, ln1b_ref,
                      w1_ref, b1_ref, w2_ref, b2_ref, ln2g_ref, ln2b_ref,
                      o_ref, *, n_head, d_k, d_v):
    o_ref[...] = _fft_block_body(
        x_ref, keypad_ref, nonpad_ref, wqkv_ref, bqkv_ref, wo_ref, bo_ref,
        ln1g_ref, ln1b_ref, w1_ref, b1_ref, w2_ref, b2_ref, ln2g_ref, ln2b_ref,
        n_head=n_head, d_k=d_k, d_v=d_v)


def _fft_block_mel_kernel(x_ref, keypad_ref, nonpad_ref, melkeep_ref,
                          wqkv_ref, bqkv_ref, wo_ref, bo_ref, ln1g_ref, ln1b_ref,
                          w1_ref, b1_ref, w2_ref, b2_ref, ln2g_ref, ln2b_ref,
                          wmel_ref, bmel_ref, o_ref, *, n_head, d_k, d_v):
    """Last decoder FFT block with mel_linear + mask_tensor fused in."""
    h2 = _fft_block_body(
        x_ref, keypad_ref, nonpad_ref, wqkv_ref, bqkv_ref, wo_ref, bo_ref,
        ln1g_ref, ln1b_ref, w1_ref, b1_ref, w2_ref, b2_ref, ln2g_ref, ln2b_ref,
        n_head=n_head, d_k=d_k, d_v=d_v)
    # TODO(synk): at production num_mels (80) pad the mel lane dim to 128 for an
    # unmasked store; kept at the module's native width here.
    o_ref[...] = (_bf16_dot(h2, wmel_ref[...]) + bmel_ref[...]) * melkeep_ref[...]


def _fft_in_specs(T, D, H, dk, dv, F, kk):
    # NOTE: the constant-index weight specs below could be single-buffered with
    # pipeline_mode=pl.Buffered(1) when scaling to production dims (VMEM on v7x).
    bcast2 = lambda shape: pl.BlockSpec(shape, lambda b: (0, 0))
    bcast3 = lambda shape: pl.BlockSpec(shape, lambda b: (0, 0, 0))
    return [
        pl.BlockSpec((None, T, D), lambda b: (b, 0, 0)),    # x
        pl.BlockSpec((None, 1, T), lambda b: (b, 0, 0)),    # key-pad row
        pl.BlockSpec((None, T, 1), lambda b: (b, 0, 0)),    # non-pad mask
        bcast2((D, 2 * H * dk + H * dv)), bcast2((1, 2 * H * dk + H * dv)),
        bcast2((H * dv, D)), bcast2((1, D)),
        bcast2((1, D)), bcast2((1, D)),
        bcast3((kk, D, F)), bcast2((1, F)),
        bcast3((kk, F, D)), bcast2((1, D)),
        bcast2((1, D)), bcast2((1, D)),
    ]


def fused_fft_block(x, keypad, nonpad, p):
    B, T, D = x.shape
    H, dk, dv = Cfg.n_head, Cfg.d_k, Cfg.d_v
    F, kk = Cfg.d_ff, Cfg.fft_kernel
    kernel = functools.partial(_fft_block_kernel, n_head=H, d_k=dk, d_v=dv)
    attn, ffn = p['attn'], p['ffn']
    return pl.pallas_call(
        kernel,
        out_shape=jax.ShapeDtypeStruct((B, T, D), jnp.float32),
        grid=(B,),
        in_specs=_fft_in_specs(T, D, H, dk, dv, F, kk),
        out_specs=pl.BlockSpec((None, T, D), lambda b: (b, 0, 0)),
        compiler_params=pltpu.CompilerParams(
            dimension_semantics=("parallel",)),
    )(x, keypad, nonpad,
      attn['wqkv'], attn['bqkv'], attn['wo'], attn['bo'],
      attn['ln_g'], attn['ln_b'],
      ffn['w1'], ffn['b1'], ffn['w2'], ffn['b2'],
      ffn['ln_g'], ffn['ln_b'])


def fused_fft_block_mel(x, keypad, nonpad, melkeep_col, p, mel_w, mel_b):
    """FFT block fused with mel_linear + mask_tensor (last decoder layer)."""
    B, T, D = x.shape
    H, dk, dv = Cfg.n_head, Cfg.d_k, Cfg.d_v
    F, kk = Cfg.d_ff, Cfg.fft_kernel
    N = mel_w.shape[1]
    specs = _fft_in_specs(T, D, H, dk, dv, F, kk)
    specs.insert(3, pl.BlockSpec((None, T, 1), lambda b: (b, 0, 0)))   # melkeep
    specs.append(pl.BlockSpec((D, N), lambda b: (0, 0)))               # mel_w
    specs.append(pl.BlockSpec((1, N), lambda b: (0, 0)))               # mel_b
    kernel = functools.partial(_fft_block_mel_kernel, n_head=H, d_k=dk, d_v=dv)
    attn, ffn = p['attn'], p['ffn']
    return pl.pallas_call(
        kernel,
        out_shape=jax.ShapeDtypeStruct((B, T, N), jnp.float32),
        grid=(B,),
        in_specs=specs,
        out_specs=pl.BlockSpec((None, T, N), lambda b: (b, 0, 0)),
        compiler_params=pltpu.CompilerParams(
            dimension_semantics=("parallel",)),
    )(x, keypad, nonpad, melkeep_col,
      attn['wqkv'], attn['bqkv'], attn['wo'], attn['bo'],
      attn['ln_g'], attn['ln_b'],
      ffn['w1'], ffn['b1'], ffn['w2'], ffn['b2'],
      ffn['ln_g'], ffn['ln_b'],
      mel_w, mel_b)


# ----------------------------- fused variance predictor -----------------------
def _var_pred_kernel(x_ref, keep_ref,
                     w1_ref, b1_ref, ln1g_ref, ln1b_ref,
                     w2_ref, b2_ref, ln2g_ref, ln2b_ref,
                     wl_ref, bl_ref, o_ref):
    x = x_ref[...]                               # (T, D)
    T = x.shape[0]
    not_first, not_last = _edge_masks(T)
    # TODO(synk): dropout omitted for a deterministic forward pass.
    h = jnp.maximum(_conv3(x, not_first, not_last, w1_ref, b1_ref[...]), 0.0)
    h = _layernorm(h, ln1g_ref[...], ln1b_ref[...])
    h = jnp.maximum(_conv3(h, not_first, not_last, w2_ref, b2_ref[...]), 0.0)
    h = _layernorm(h, ln2g_ref[...], ln2b_ref[...])
    # final (F -> 1) head stored LANE-DENSE as a (1, T) row: contract F of
    # wl (1, F) against F of h (T, F); output mask fused into the store.
    out_row = _bf16_dot_tt(wl_ref[...], h) + bl_ref[...]     # (1, T)
    o_ref[...] = out_row * keep_ref[...]


def variance_predictor(x, keep_row, p):
    """x: (B,T,D), keep_row: (B,1,T) keep-mask applied to the prediction."""
    B, T, D = x.shape
    F, kk = Cfg.pred_filter, Cfg.pred_kernel
    out = pl.pallas_call(
        _var_pred_kernel,
        out_shape=jax.ShapeDtypeStruct((B, 1, T), jnp.float32),
        grid=(B,),
        in_specs=[
            pl.BlockSpec((None, T, D), lambda b: (b, 0, 0)),
            pl.BlockSpec((None, 1, T), lambda b: (b, 0, 0)),
            pl.BlockSpec((kk, D, F), lambda b: (0, 0, 0)),
            pl.BlockSpec((1, F), lambda b: (0, 0)),
            pl.BlockSpec((1, F), lambda b: (0, 0)),
            pl.BlockSpec((1, F), lambda b: (0, 0)),
            pl.BlockSpec((kk, F, F), lambda b: (0, 0, 0)),
            pl.BlockSpec((1, F), lambda b: (0, 0)),
            pl.BlockSpec((1, F), lambda b: (0, 0)),
            pl.BlockSpec((1, F), lambda b: (0, 0)),
            pl.BlockSpec((1, F), lambda b: (0, 0)),      # wl stored as (1, F)
            pl.BlockSpec((1, 1), lambda b: (0, 0)),
        ],
        out_specs=pl.BlockSpec((None, 1, T), lambda b: (b, 0, 0)),
        compiler_params=pltpu.CompilerParams(
            dimension_semantics=("parallel",)),
    )(x, keep_row, p['w1'], p['b1'], p['ln1_g'], p['ln1_b'],
      p['w2'], p['b2'], p['ln2_g'], p['ln2_b'], p['wl'], p['bl'])
    return out[:, 0, :]                          # (B, T)


# ----------------------------- model glue -------------------------------------
def encoder(params, src_seq, src_pos):
    keypad = (src_seq == 0).astype(jnp.float32)[:, None, :]     # (B,1,T)
    nonpad = (src_seq != 0).astype(jnp.float32)[..., None]      # (B,T,1)
    x = params['word_emb'][src_seq] + params['pos_enc'][src_pos]
    for lp in params['layers']:
        x = fused_fft_block(x, keypad, nonpad, lp)
    return x


def decoder_with_mel(params, x, mel_pos, melkeep_col, mel_w, mel_b):
    keypad = (mel_pos == 0).astype(jnp.float32)[:, None, :]
    nonpad = (mel_pos != 0).astype(jnp.float32)[..., None]
    x = x + params['pos_enc'][mel_pos]
    layers = params['layers']
    for lp in layers[:-1]:
        x = fused_fft_block(x, keypad, nonpad, lp)
    # last decoder layer fused with mel_linear + mask_tensor
    return fused_fft_block_mel(x, keypad, nonpad, melkeep_col,
                               layers[-1], mel_w, mel_b)


def length_regulator(x, durations, mel_max_length):
    B, T, D = x.shape
    cum = jnp.cumsum(durations.astype(jnp.int32), axis=1)                 # (B,T)
    frames = jnp.arange(mel_max_length)
    idx = jnp.sum(cum[:, None, :] <= frames[None, :, None], axis=-1)      # (B,M)
    valid = (frames[None, :] < cum[:, -1][:, None]).astype(jnp.float32)
    idx = jnp.clip(idx, 0, T - 1)
    gathered = jnp.take_along_axis(
        x, jnp.broadcast_to(idx[..., None], (B, mel_max_length, D)), axis=1)
    return gathered * valid[..., None]


def mel_keep_masks(mel_pos, mel_max_length):
    """mask_tensor keep-mask: 1.0 for frames < max(mel_pos) per batch.
    Returned both as a (B,1,M) row (lane-dense predictor outputs) and a
    (B,M,1) column (mel output masking)."""
    lengths = jnp.max(mel_pos, axis=-1)                                   # (B,)
    ids = jnp.arange(mel_max_length)
    keep = (ids[None, :] < lengths[:, None]).astype(jnp.float32)          # (B,M)
    return keep[:, None, :], keep[:, :, None]


def variance_adaptor(params, enc_output, length_target, pitch_target,
                     energy_target, mel_max_length, mel_keep_row):
    B, T, _ = enc_output.shape
    ones_keep = jnp.ones((B, 1, T), jnp.float32)      # dur_pred is NOT masked
    dur_pred = variance_predictor(enc_output, ones_keep, params['duration'])
    lr = length_regulator(enc_output, length_target, mel_max_length)
    # mask_tensor on pitch/energy predictions is fused into the predictor store
    pitch_pred = variance_predictor(lr, mel_keep_row, params['pitch'])
    pitch_idx = jnp.sum(
        pitch_target[..., None] > params['pitch_bins'][None, None, :], axis=-1)
    lr = lr + params['pitch_emb'][pitch_idx]
    energy_pred = variance_predictor(lr, mel_keep_row, params['energy'])
    energy_idx = jnp.sum(
        energy_target[..., None] > params['energy_bins'][None, None, :], axis=-1)
    lr = lr + params['energy_emb'][energy_idx]
    return lr, dur_pred, pitch_pred, energy_pred


def fastspeech2_forward(params, src_seq, src_pos, mel_pos, length_target,
                        pitch_target, energy_target, *, mel_max_length):
    # training-branch semantics of FastSpeech2.forward
    enc_output = encoder(params['encoder'], src_seq, src_pos)
    keep_row, keep_col = mel_keep_masks(mel_pos, mel_max_length)
    lr_output, dur_pred, pitch_pred, energy_pred = variance_adaptor(
        params['va'], enc_output, length_target, pitch_target, energy_target,
        mel_max_length, keep_row)
    output = decoder_with_mel(params['decoder'], lr_output, mel_pos, keep_col,
                              params['mel_w'], params['mel_b'])
    return output, dur_pred, pitch_pred, energy_pred


# ----------------------------- parameter init --------------------------------
def sinusoid_table(n_pos, d):
    pos = np.arange(n_pos)[:, None].astype(np.float64)
    i = np.arange(d)[None, :].astype(np.float64)
    angle = pos / np.power(10000.0, 2.0 * (i // 2) / d)
    table = np.zeros((n_pos, d), np.float32)
    table[:, 0::2] = np.sin(angle[:, 0::2])
    table[:, 1::2] = np.cos(angle[:, 1::2])
    table[0, :] = 0.0            # padding_idx = 0
    return jnp.asarray(table)


class Init:
    def __init__(self, key):
        self.key = key

    def n(self, shape, scale=0.1):
        self.key, sub = jax.random.split(self.key)
        return jax.random.normal(sub, shape, jnp.float32) * scale


def init_attn(ini, D, H, dk, dv):
    # Wq|Wk|Wv pre-fused along the output dim for a single QKV matmul.
    # The 1/sqrt(d_k) softmax scale is folded into the Q columns (weight prep).
    qkv_out = 2 * H * dk + H * dv
    scale = 1.0 / float(np.sqrt(dk))
    wqkv = ini.n((D, qkv_out))
    wqkv = wqkv.at[:, :H * dk].multiply(scale)
    bqkv = jnp.zeros((1, qkv_out))
    bqkv = bqkv.at[:, :H * dk].multiply(scale)
    return dict(
        wqkv=wqkv, bqkv=bqkv,
        wo=ini.n((H * dv, D)), bo=jnp.zeros((1, D)),
        ln_g=jnp.ones((1, D)), ln_b=jnp.zeros((1, D)))


def init_ffn(ini, D, dff, k):
    # conv weights stored as (tap, Cin, Cout) == transpose of PyTorch (Cout,Cin,k)
    return dict(
        w1=ini.n((k, D, dff)), b1=jnp.zeros((1, dff)),
        w2=ini.n((k, dff, D)), b2=jnp.zeros((1, D)),
        ln_g=jnp.ones((1, D)), ln_b=jnp.zeros((1, D)))


def init_fft_layer(ini):
    return dict(attn=init_attn(ini, Cfg.d_model, Cfg.n_head, Cfg.d_k, Cfg.d_v),
                ffn=init_ffn(ini, Cfg.d_model, Cfg.d_ff, Cfg.fft_kernel))


def init_predictor(ini):
    D, F, k = Cfg.d_model, Cfg.pred_filter, Cfg.pred_kernel
    return dict(
        w1=ini.n((k, D, F)), b1=jnp.zeros((1, F)),
        ln1_g=jnp.ones((1, F)), ln1_b=jnp.zeros((1, F)),
        w2=ini.n((k, F, F)), b2=jnp.zeros((1, F)),
        ln2_g=jnp.ones((1, F)), ln2_b=jnp.zeros((1, F)),
        wl=ini.n((1, F)), bl=jnp.zeros((1, 1)))     # (1,F) for lane-dense head


def init_params(key):
    ini = Init(key)
    word_emb = ini.n((Cfg.vocab_size, Cfg.d_model))
    word_emb = word_emb.at[0].set(0.0)                    # padding_idx = 0
    pos_table = sinusoid_table(Cfg.max_seq_len + 1, Cfg.d_model)
    enc = dict(word_emb=word_emb, pos_enc=pos_table,
               layers=[init_fft_layer(ini) for _ in range(Cfg.n_enc_layers)])
    dec = dict(pos_enc=pos_table,
               layers=[init_fft_layer(ini) for _ in range(Cfg.n_dec_layers)])
    va = dict(duration=init_predictor(ini),
              pitch=init_predictor(ini),
              energy=init_predictor(ini),
              pitch_bins=jnp.linspace(0.0, 1.0, Cfg.n_bins - 1),
              energy_bins=jnp.linspace(0.0, 1.0, Cfg.n_bins - 1),
              pitch_emb=ini.n((Cfg.n_bins, Cfg.d_model)),
              energy_emb=ini.n((Cfg.n_bins, Cfg.d_model)))
    return dict(encoder=enc, decoder=dec, va=va,
                mel_w=Init(jax.random.PRNGKey(123)).n((Cfg.d_model, Cfg.num_mels)),
                mel_b=jnp.zeros((1, Cfg.num_mels)))


# ----------------------------- main ------------------------------------------
if __name__ == "__main__":
    B, T_SRC, MEL_MAX = 2, 8, 16

    params = init_params(jax.random.PRNGKey(0))

    # deterministic small inputs (batch 1 has 2 padded source tokens)
    src_seq = jnp.array([[5, 9, 3, 7, 2, 11, 4, 6],
                         [8, 2, 10, 5, 3, 6, 0, 0]], dtype=jnp.int32)
    src_pos = jnp.array([[1, 2, 3, 4, 5, 6, 7, 8],
                         [1, 2, 3, 4, 5, 6, 0, 0]], dtype=jnp.int32)
    length_target = jnp.array([[2] * 8,
                               [2] * 6 + [0, 0]], dtype=jnp.int32)   # sums 16 / 12
    mel_pos = jnp.array([[i + 1 for i in range(MEL_MAX)],
                         [(i + 1) if i < 12 else 0 for i in range(MEL_MAX)]],
                        dtype=jnp.int32)
    pitch_target = jax.random.uniform(jax.random.PRNGKey(1), (B, MEL_MAX))
    energy_target = jax.random.uniform(jax.random.PRNGKey(2), (B, MEL_MAX))

    fwd = jax.jit(functools.partial(fastspeech2_forward, mel_max_length=MEL_MAX))
    mel_out, dur_pred, pitch_pred, energy_pred = fwd(
        params, src_seq, src_pos, mel_pos, length_target, pitch_target,
        energy_target)

    jax.block_until_ready((mel_out, dur_pred, pitch_pred, energy_pred))

    assert mel_out.shape == (B, MEL_MAX, Cfg.num_mels)
    assert dur_pred.shape == (B, T_SRC)
    assert pitch_pred.shape == (B, MEL_MAX)
    assert energy_pred.shape == (B, MEL_MAX)
    assert bool(jnp.all(jnp.isfinite(mel_out)))
    # padded mel frames of batch 1 (frames 12..15) must be zeroed by the fused mask
    assert float(jnp.max(jnp.abs(mel_out[1, 12:, :]))) == 0.0
    assert float(jnp.max(jnp.abs(pitch_pred[1, 12:]))) == 0.0

    print("KERNEL_OK")
</pallas_src>

<mosaic_0001>
module attributes {stable_mosaic.version = 11 : i64} {
  func.func @_fft_block_kernel(%arg0: i32, %arg1: memref<1x8x32xf32, #tpu.memory_space<vmem>>, %arg2: memref<1x1x8xf32, #tpu.memory_space<vmem>>, %arg3: memref<1x8x1xf32, #tpu.memory_space<vmem>>, %arg4: memref<32x96xf32, #tpu.memory_space<vmem>>, %arg5: memref<1x96xf32, #tpu.memory_space<vmem>>, %arg6: memref<32x32xf32, #tpu.memory_space<vmem>>, %arg7: memref<1x32xf32, #tpu.memory_space<vmem>>, %arg8: memref<1x32xf32, #tpu.memory_space<vmem>>, %arg9: memref<1x32xf32, #tpu.memory_space<vmem>>, %arg10: memref<3x32x64xf32, #tpu.memory_space<vmem>>, %arg11: memref<1x64xf32, #tpu.memory_space<vmem>>, %arg12: memref<3x64x32xf32, #tpu.memory_space<vmem>>, %arg13: memref<1x32xf32, #tpu.memory_space<vmem>>, %arg14: memref<1x32xf32, #tpu.memory_space<vmem>>, %arg15: memref<1x32xf32, #tpu.memory_space<vmem>>, %arg16: memref<1x8x32xf32, #tpu.memory_space<vmem>>) attributes {dimension_semantics = [#tpu.dimension_semantics<parallel>], iteration_bounds = array<i64: 2>, scalar_prefetch = 0 : i64, scratch_operands = 0 : i64, tpu.core_type = #tpu.core_type<tc>, window_params = [{transform_indices = @transform_0, window_bounds = array<i64: 1, 8, 32>}, {transform_indices = @transform_1, window_bounds = array<i64: 1, 1, 8>}, {transform_indices = @transform_2, window_bounds = array<i64: 1, 8, 1>}, {pipeline_mode = #tpu.pipeline_mode<synchronous>, transform_indices = @transform_3, window_bounds = array<i64: 32, 96>}, {pipeline_mode = #tpu.pipeline_mode<synchronous>, transform_indices = @transform_4, window_bounds = array<i64: 1, 96>}, {pipeline_mode = #tpu.pipeline_mode<synchronous>, transform_indices = @transform_5, window_bounds = array<i64: 32, 32>}, {pipeline_mode = #tpu.pipeline_mode<synchronous>, transform_indices = @transform_6, window_bounds = array<i64: 1, 32>}, {pipeline_mode = #tpu.pipeline_mode<synchronous>, transform_indices = @transform_7, window_bounds = array<i64: 1, 32>}, {pipeline_mode = #tpu.pipeline_mode<synchronous>, transform_indices = @transform_8, window_bounds = array<i64: 1, 32>}, {pipeline_mode = #tpu.pipeline_mode<synchronous>, transform_indices = @transform_9, window_bounds = array<i64: 3, 32, 64>}, {pipeline_mode = #tpu.pipeline_mode<synchronous>, transform_indices = @transform_10, window_bounds = array<i64: 1, 64>}, {pipeline_mode = #tpu.pipeline_mode<synchronous>, transform_indices = @transform_11, window_bounds = array<i64: 3, 64, 32>}, {pipeline_mode = #tpu.pipeline_mode<synchronous>, transform_indices = @transform_12, window_bounds = array<i64: 1, 32>}, {pipeline_mode = #tpu.pipeline_mode<synchronous>, transform_indices = @transform_13, window_bounds = array<i64: 1, 32>}, {pipeline_mode = #tpu.pipeline_mode<synchronous>, transform_indices = @transform_14, window_bounds = array<i64: 1, 32>}, {transform_indices = @transform_15, window_bounds = array<i64: 1, 8, 32>}]} {
    %c0 = arith.constant 0 : index
    %c0_0 = arith.constant 0 : index
    %c0_1 = arith.constant 0 : index
    %0 = vector.load %arg1[%c0, %c0_0, %c0_1] : memref<1x8x32xf32, #tpu.memory_space<vmem>>, vector<1x8x32xf32>
    %1 = vector.shape_cast %0 : vector<1x8x32xf32> to vector<8x32xf32>
    %c0_2 = arith.constant 0 : index
    %c0_3 = arith.constant 0 : index
    %c0_4 = arith.constant 0 : index
    %2 = vector.load %arg2[%c0_2, %c0_3, %c0_4] : memref<1x1x8xf32, #tpu.memory_space<vmem>>, vector<1x1x8xf32>
    %3 = vector.shape_cast %2 : vector<1x1x8xf32> to vector<1x8xf32>
    %c0_5 = arith.constant 0 : index
    %c0_6 = arith.constant 0 : index
    %c0_7 = arith.constant 0 : index
    %4 = vector.load %arg3[%c0_5, %c0_6, %c0_7] : memref<1x8x1xf32, #tpu.memory_space<vmem>>, vector<1x8x1xf32>
    %5 = vector.shape_cast %4 : vector<1x8x1xf32> to vector<8x1xf32>
    %c0_8 = arith.constant 0 : index
    %c0_9 = arith.constant 0 : index
    %6 = vector.load %arg4[%c0_8, %c0_9] : memref<32x96xf32, #tpu.memory_space<vmem>>, vector<32x96xf32>
    %7 = arith.truncf %1 : vector<8x32xf32> to vector<8x32xbf16>
    %8 = arith.truncf %6 : vector<32x96xf32> to vector<32x96xbf16>
    %cst = arith.constant dense<0.000000e+00> : vector<8x96xf32>
    %9 = tpu.matmul %7, %8, %cst {dimension_numbers = #tpu.dot_dimension_numbers<[1], [0], [0], [1], [0, 0, 1, 1], [], []>} : vector<8x32xbf16>, vector<32x96xbf16>, vector<8x96xf32> -> vector<8x96xf32>
    %c0_10 = arith.constant 0 : index
    %c0_11 = arith.constant 0 : index
    %10 = vector.load %arg5[%c0_10, %c0_11] : memref<1x96xf32, #tpu.memory_space<vmem>>, vector<1x96xf32>
    %11 = vector.broadcast %10 : vector<1x96xf32> to vector<8x96xf32>
    %12 = arith.addf %9, %11 : vector<8x96xf32>
    %cst_12 = arith.constant -1.000000e+09 : f32
    %13 = vector.broadcast %cst_12 : f32 to vector<1x8xf32>
    %14 = arith.mulf %3, %13 : vector<1x8xf32>
    %15 = vector.shape_cast %14 : vector<1x8xf32> to vector<1x8xf32>
    %16 = vector.broadcast %15 : vector<1x8xf32> to vector<8x8xf32>
    %17 = vector.extract_strided_slice %12 {offsets = [0, 0], sizes = [8, 16], strides = [1, 1]} : vector<8x96xf32> to vector<8x16xf32>
    %18 = vector.extract_strided_slice %12 {offsets = [0, 32], sizes = [8, 16], strides = [1, 1]} : vector<8x96xf32> to vector<8x16xf32>
    %19 = vector.extract_strided_slice %12 {offsets = [0, 64], sizes = [8, 16], strides = [1, 1]} : vector<8x96xf32> to vector<8x16xf32>
    %20 = arith.truncf %17 : vector<8x16xf32> to vector<8x16xbf16>
    %21 = arith.truncf %18 : vector<8x16xf32> to vector<8x16xbf16>
    %cst_13 = arith.constant dense<0.000000e+00> : vector<8x8xf32>
    %22 = tpu.matmul %20, %21, %cst_13 {dimension_numbers = #tpu.dot_dimension_numbers<[1], [1], [0], [0], [0, 0, 1, 0], [], []>} : vector<8x16xbf16>, vector<8x16xbf16>, vector<8x8xf32> -> vector<8x8xf32>
    %23 = arith.addf %22, %16 : vector<8x8xf32>
    %cst_14 = arith.constant dense<0xFF800000> : vector<8xf32>
    %24 = vector.multi_reduction <maximumf>, %23, %cst_14 [1] : vector<8x8xf32> to vector<8xf32>
    %25 = vector.shape_cast %24 : vector<8xf32> to vector<8x1xf32>
    %26 = vector.broadcast %25 : vector<8x1xf32> to vector<8x8xf32>
    %27 = arith.subf %23, %26 : vector<8x8xf32>
    %28 = math.exp %27 : vector<8x8xf32>
    %cst_15 = arith.constant dense<0.000000e+00> : vector<8xf32>
    %29 = vector.multi_reduction <add>, %28, %cst_15 [1] : vector<8x8xf32> to vector<8xf32>
    %30 = vector.shape_cast %29 : vector<8xf32> to vector<8x1xf32>
    %31 = tpu.reciprocal %30 {approx = true} : vector<8x1xf32> -> vector<8x1xf32>
    %32 = vector.broadcast %31 : vector<8x1xf32> to vector<8x8xf32>
    %33 = arith.mulf %28, %32 : vector<8x8xf32>
    %34 = arith.truncf %33 : vector<8x8xf32> to vector<8x8xbf16>
    %35 = arith.truncf %19 : vector<8x16xf32> to vector<8x16xbf16>
    %cst_16 = arith.constant dense<0.000000e+00> : vector<8x16xf32>
    %36 = tpu.matmul %34, %35, %cst_16 {dimension_numbers = #tpu.dot_dimension_numbers<[1], [0], [0], [1], [0, 0, 1, 1], [], []>} : vector<8x8xbf16>, vector<8x16xbf16>, vector<8x16xf32> -> vector<8x16xf32>
    %37 = vector.extract_strided_slice %12 {offsets = [0, 16], sizes = [8, 16], strides = [1, 1]} : vector<8x96xf32> to vector<8x16xf32>
    %38 = vector.extract_strided_slice %12 {offsets = [0, 48], sizes = [8, 16], strides = [1, 1]} : vector<8x96xf32> to vector<8x16xf32>
    %39 = vector.extract_strided_slice %12 {offsets = [0, 80], sizes = [8, 16], strides = [1, 1]} : vector<8x96xf32> to vector<8x16xf32>
    %40 = arith.truncf %37 : vector<8x16xf32> to vector<8x16xbf16>
    %41 = arith.truncf %38 : vector<8x16xf32> to vector<8x16xbf16>
    %cst_17 = arith.constant dense<0.000000e+00> : vector<8x8xf32>
    %42 = tpu.matmul %40, %41, %cst_17 {dimension_numbers = #tpu.dot_dimension_numbers<[1], [1], [0], [0], [0, 0, 1, 0], [], []>} : vector<8x16xbf16>, vector<8x16xbf16>, vector<8x8xf32> -> vector<8x8xf32>
    %43 = arith.addf %42, %16 : vector<8x8xf32>
    %cst_18 = arith.constant dense<0xFF800000> : vector<8xf32>
    %44 = vector.multi_reduction <maximumf>, %43, %cst_18 [1] : vector<8x8xf32> to vector<8xf32>
    %45 = vector.shape_cast %44 : vector<8xf32> to vector<8x1xf32>
    %46 = vector.broadcast %45 : vector<8x1xf32> to vector<8x8xf32>
    %47 = arith.subf %43, %46 : vector<8x8xf32>
    %48 = math.exp %47 : vector<8x8xf32>
    %cst_19 = arith.constant dense<0.000000e+00> : vector<8xf32>
    %49 = vector.multi_reduction <add>, %48, %cst_19 [1] : vector<8x8xf32> to vector<8xf32>
    %50 = vector.shape_cast %49 : vector<8xf32> to vector<8x1xf32>
    %51 = tpu.reciprocal %50 {approx = true} : vector<8x1xf32> -> vector<8x1xf32>
    %52 = vector.broadcast %51 : vector<8x1xf32> to vector<8x8xf32>
    %53 = arith.mulf %48, %52 : vector<8x8xf32>
    %54 = arith.truncf %53 : vector<8x8xf32> to vector<8x8xbf16>
    %55 = arith.truncf %39 : vector<8x16xf32> to vector<8x16xbf16>
    %cst_20 = arith.constant dense<0.000000e+00> : vector<8x16xf32>
    %56 = tpu.matmul %54, %55, %cst_20 {dimension_numbers = #tpu.dot_dimension_numbers<[1], [0], [0], [1], [0, 0, 1, 1], [], []>} : vector<8x8xbf16>, vector<8x16xbf16>, vector<8x16xf32> -> vector<8x16xf32>
    %57 = tpu.concatenate %36, %56 in 1 : vector<8x16xf32>, vector<8x16xf32> -> vector<8x32xf32>
    %c0_21 = arith.constant 0 : index
    %c0_22 = arith.constant 0 : index
    %58 = vector.load %arg6[%c0_21, %c0_22] : memref<32x32xf32, #tpu.memory_space<vmem>>, vector<32x32xf32>
    %59 = arith.truncf %57 : vector<8x32xf32> to vector<8x32xbf16>
    %60 = arith.truncf %58 : vector<32x32xf32> to vector<32x32xbf16>
    %cst_23 = arith.constant dense<0.000000e+00> : vector<8x32xf32>
    %61 = tpu.matmul %59, %60, %cst_23 {dimension_numbers = #tpu.dot_dimension_numbers<[1], [0], [0], [1], [0, 0, 1, 1], [], []>} : vector<8x32xbf16>, vector<32x32xbf16>, vector<8x32xf32> -> vector<8x32xf32>
    %c0_24 = arith.constant 0 : index
    %c0_25 = arith.constant 0 : index
    %62 = vector.load %arg7[%c0_24, %c0_25] : memref<1x32xf32, #tpu.memory_space<vmem>>, vector<1x32xf32>
    %63 = vector.broadcast %62 : vector<1x32xf32> to vector<8x32xf32>
    %64 = arith.addf %61, %63 : vector<8x32xf32>
    %65 = arith.addf %64, %1 : vector<8x32xf32>
    %c0_26 = arith.constant 0 : index
    %c0_27 = arith.constant 0 : index
    %66 = vector.load %arg8[%c0_26, %c0_27] : memref<1x32xf32, #tpu.memory_space<vmem>>, vector<1x32xf32>
    %c0_28 = arith.constant 0 : index
    %c0_29 = arith.constant 0 : index
    %67 = vector.load %arg9[%c0_28, %c0_29] : memref<1x32xf32, #tpu.memory_space<vmem>>, vector<1x32xf32>
    %cst_30 = arith.constant dense<0.000000e+00> : vector<8xf32>
    %68 = vector.multi_reduction <add>, %65, %cst_30 [1] : vector<8x32xf32> to vector<8xf32>
    %69 = vector.shape_cast %68 : vector<8xf32> to vector<8x1xf32>
    %cst_31 = arith.constant 3.200000e+01 : f32
    %70 = vector.broadcast %cst_31 : f32 to vector<8x1xf32>
    %71 = arith.divf %69, %70 : vector<8x1xf32>
    %72 = vector.broadcast %71 : vector<8x1xf32> to vector<8x32xf32>
    %73 = arith.subf %65, %72 : vector<8x32xf32>
    %74 = arith.mulf %73, %73 : vector<8x32xf32>
    %cst_32 = arith.constant dense<0.000000e+00> : vector<8xf32>
    %75 = vector.multi_reduction <add>, %74, %cst_32 [1] : vector<8x32xf32> to vector<8xf32>
    %76 = vector.shape_cast %75 : vector<8xf32> to vector<8x1xf32>
    %cst_33 = arith.constant 3.200000e+01 : f32
    %77 = vector.broadcast %cst_33 : f32 to vector<8x1xf32>
    %78 = arith.divf %76, %77 : vector<8x1xf32>
    %79 = vector.broadcast %71 : vector<8x1xf32> to vector<8x32xf32>
    %80 = arith.subf %65, %79 : vector<8x32xf32>
    %cst_34 = arith.constant 9.99999974E-6 : f32
    %81 = vector.broadcast %cst_34 : f32 to vector<8x1xf32>
    %82 = arith.addf %78, %81 : vector<8x1xf32>
    %83 = math.rsqrt %82 : vector<8x1xf32>
    %84 = vector.broadcast %83 : vector<8x1xf32> to vector<8x32xf32>
    %85 = arith.mulf %80, %84 : vector<8x32xf32>
    %86 = vector.broadcast %66 : vector<1x32xf32> to vector<8x32xf32>
    %87 = arith.mulf %85, %86 : vector<8x32xf32>
    %88 = vector.broadcast %67 : vector<1x32xf32> to vector<8x32xf32>
    %89 = arith.addf %87, %88 : vector<8x32xf32>
    %90 = vector.broadcast %5 : vector<8x1xf32> to vector<8x32xf32>
    %91 = arith.mulf %89, %90 : vector<8x32xf32>
    %92 = tpu.iota {dimensions = array<i32: 0>} : vector<8x1xi32>
    %c0_i32 = arith.constant 0 : i32
    %93 = vector.broadcast %c0_i32 : i32 to vector<8x1xi32>
    %94 = arith.cmpi ne, %92, %93 : vector<8x1xi32>
    %95 = arith.extui %94 : vector<8x1xi1> to vector<8x1xi32>
    %96 = arith.sitofp %95 : vector<8x1xi32> to vector<8x1xf32>
    %c7_i32 = arith.constant 7 : i32
    %97 = vector.broadcast %c7_i32 : i32 to vector<8x1xi32>
    %98 = arith.cmpi ne, %92, %97 : vector<8x1xi32>
    %99 = arith.extui %98 : vector<8x1xi1> to vector<8x1xi32>
    %100 = arith.sitofp %99 : vector<8x1xi32> to vector<8x1xf32>
    %c0_35 = arith.constant 0 : index
    %c0_36 = arith.constant 0 : index
    %101 = vector.load %arg11[%c0_35, %c0_36] : memref<1x64xf32, #tpu.memory_space<vmem>>, vector<1x64xf32>
    %c1_i32 = arith.constant 1 : i32
    %102 = tpu.dynamic_rotate %91 by %c1_i32 dim 0 : vector<8x32xf32>, i32 -> vector<8x32xf32>
    %103 = vector.broadcast %96 : vector<8x1xf32> to vector<8x32xf32>
    %104 = arith.mulf %102, %103 : vector<8x32xf32>
    %c7_i32_37 = arith.constant 7 : i32
    %105 = tpu.dynamic_rotate %91 by %c7_i32_37 dim 0 : vector<8x32xf32>, i32 -> vector<8x32xf32>
    %106 = vector.broadcast %100 : vector<8x1xf32> to vector<8x32xf32>
    %107 = arith.mulf %105, %106 : vector<8x32xf32>
    %c0_38 = arith.constant 0 : index
    %c0_39 = arith.constant 0 : index
    %c0_40 = arith.constant 0 : index
    %108 = vector.load %arg10[%c0_38, %c0_39, %c0_40] : memref<3x32x64xf32, #tpu.memory_space<vmem>>, vector<1x32x64xf32>
    %109 = vector.shape_cast %108 : vector<1x32x64xf32> to vector<32x64xf32>
    %110 = arith.truncf %104 : vector<8x32xf32> to vector<8x32xbf16>
    %111 = arith.truncf %109 : vector<32x64xf32> to vector<32x64xbf16>
    %cst_41 = arith.constant dense<0.000000e+00> : vector<8x64xf32>
    %112 = tpu.matmul %110, %111, %cst_41 {dimension_numbers = #tpu.dot_dimension_numbers<[1], [0], [0], [1], [0, 0, 1, 1], [], []>} : vector<8x32xbf16>, vector<32x64xbf16>, vector<8x64xf32> -> vector<8x64xf32>
    %c1 = arith.constant 1 : index
    %c0_42 = arith.constant 0 : index
    %c0_43 = arith.constant 0 : index
    %113 = vector.load %arg10[%c1, %c0_42, %c0_43] : memref<3x32x64xf32, #tpu.memory_space<vmem>>, vector<1x32x64xf32>
    %114 = vector.shape_cast %113 : vector<1x32x64xf32> to vector<32x64xf32>
    %115 = arith.truncf %91 : vector<8x32xf32> to vector<8x32xbf16>
    %116 = arith.truncf %114 : vector<32x64xf32> to vector<32x64xbf16>
    %cst_44 = arith.constant dense<0.000000e+00> : vector<8x64xf32>
    %117 = tpu.matmul %115, %116, %cst_44 {dimension_numbers = #tpu.dot_dimension_numbers<[1], [0], [0], [1], [0, 0, 1, 1], [], []>} : vector<8x32xbf16>, vector<32x64xbf16>, vector<8x64xf32> -> vector<8x64xf32>
    %118 = arith.addf %112, %117 : vector<8x64xf32>
    %c2 = arith.constant 2 : index
    %c0_45 = arith.constant 0 : index
    %c0_46 = arith.constant 0 : index
    %119 = vector.load %arg10[%c2, %c0_45, %c0_46] : memref<3x32x64xf32, #tpu.memory_space<vmem>>, vector<1x32x64xf32>
    %120 = vector.shape_cast %119 : vector<1x32x64xf32> to vector<32x64xf32>
    %121 = arith.truncf %107 : vector<8x32xf32> to vector<8x32xbf16>
    %122 = arith.truncf %120 : vector<32x64xf32> to vector<32x64xbf16>
    %cst_47 = arith.constant dense<0.000000e+00> : vector<8x64xf32>
    %123 = tpu.matmul %121, %122, %cst_47 {dimension_numbers = #tpu.dot_dimension_numbers<[1], [0], [0], [1], [0, 0, 1, 1], [], []>} : vector<8x32xbf16>, vector<32x64xbf16>, vector<8x64xf32> -> vector<8x64xf32>
    %124 = arith.addf %118, %123 : vector<8x64xf32>
    %125 = vector.broadcast %101 : vector<1x64xf32> to vector<8x64xf32>
    %126 = arith.addf %124, %125 : vector<8x64xf32>
    %cst_48 = arith.constant 0.000000e+00 : f32
    %127 = vector.broadcast %cst_48 : f32 to vector<8x64xf32>
    %128 = arith.maximumf %126, %127 : vector<8x64xf32>
    %c0_49 = arith.constant 0 : index
    %c0_50 = arith.constant 0 : index
    %129 = vector.load %arg13[%c0_49, %c0_50] : memref<1x32xf32, #tpu.memory_space<vmem>>, vector<1x32xf32>
    %c1_i32_51 = arith.constant 1 : i32
    %130 = tpu.dynamic_rotate %128 by %c1_i32_51 dim 0 : vector<8x64xf32>, i32 -> vector<8x64xf32>
    %131 = vector.broadcast %96 : vector<8x1xf32> to vector<8x64xf32>
    %132 = arith.mulf %130, %131 : vector<8x64xf32>
    %c7_i32_52 = arith.constant 7 : i32
    %133 = tpu.dynamic_rotate %128 by %c7_i32_52 dim 0 : vector<8x64xf32>, i32 -> vector<8x64xf32>
    %134 = vector.broadcast %100 : vector<8x1xf32> to vector<8x64xf32>
    %135 = arith.mulf %133, %134 : vector<8x64xf32>
    %c0_53 = arith.constant 0 : index
    %c0_54 = arith.constant 0 : index
    %c0_55 = arith.constant 0 : index
    %136 = vector.load %arg12[%c0_53, %c0_54, %c0_55] : memref<3x64x32xf32, #tpu.memory_space<vmem>>, vector<1x64x32xf32>
    %137 = vector.shape_cast %136 : vector<1x64x32xf32> to vector<64x32xf32>
    %138 = arith.truncf %132 : vector<8x64xf32> to vector<8x64xbf16>
    %139 = arith.truncf %137 : vector<64x32xf32> to vector<64x32xbf16>
    %cst_56 = arith.constant dense<0.000000e+00> : vector<8x32xf32>
    %140 = tpu.matmul %138, %139, %cst_56 {dimension_numbers = #tpu.dot_dimension_numbers<[1], [0], [0], [1], [0, 0, 1, 1], [], []>} : vector<8x64xbf16>, vector<64x32xbf16>, vector<8x32xf32> -> vector<8x32xf32>
    %c1_57 = arith.constant 1 : index
    %c0_58 = arith.constant 0 : index
    %c0_59 = arith.constant 0 : index
    %141 = vector.load %arg12[%c1_57, %c0_58, %c0_59] : memref<3x64x32xf32, #tpu.memory_space<vmem>>, vector<1x64x32xf32>
    %142 = vector.shape_cast %141 : vector<1x64x32xf32> to vector<64x32xf32>
    %143 = arith.truncf %128 : vector<8x64xf32> to vector<8x64xbf16>
    %144 = arith.truncf %142 : vector<64x32xf32> to vector<64x32xbf16>
    %cst_60 = arith.constant dense<0.000000e+00> : vector<8x32xf32>
    %145 = tpu.matmul %143, %144, %cst_60 {dimension_numbers = #tpu.dot_dimension_numbers<[1], [0], [0], [1], [0, 0, 1, 1], [], []>} : vector<8x64xbf16>, vector<64x32xbf16>, vector<8x32xf32> -> vector<8x32xf32>
    %146 = arith.addf %140, %145 : vector<8x32xf32>
    %c2_61 = arith.constant 2 : index
    %c0_62 = arith.constant 0 : index
    %c0_63 = arith.constant 0 : index
    %147 = vector.load %arg12[%c2_61, %c0_62, %c0_63] : memref<3x64x32xf32, #tpu.memory_space<vmem>>, vector<1x64x32xf32>
    %148 = vector.shape_cast %147 : vector<1x64x32xf32> to vector<64x32xf32>
    %149 = arith.truncf %135 : vector<8x64xf32> to vector<8x64xbf16>
    %150 = arith.truncf %148 : vector<64x32xf32> to vector<64x32xbf16>
    %cst_64 = arith.constant dense<0.000000e+00> : vector<8x32xf32>
    %151 = tpu.matmul %149, %150, %cst_64 {dimension_numbers = #tpu.dot_dimension_numbers<[1], [0], [0], [1], [0, 0, 1, 1], [], []>} : vector<8x64xbf16>, vector<64x32xbf16>, vector<8x32xf32> -> vector<8x32xf32>
    %152 = arith.addf %146, %151 : vector<8x32xf32>
    %153 = vector.broadcast %129 : vector<1x32xf32> to vector<8x32xf32>
    %154 = arith.addf %152, %153 : vector<8x32xf32>
    %155 = arith.addf %154, %91 : vector<8x32xf32>
    %c0_65 = arith.constant 0 : index
    %c0_66 = arith.constant 0 : index
    %156 = vector.load %arg14[%c0_65, %c0_66] : memref<1x32xf32, #tpu.memory_space<vmem>>, vector<1x32xf32>
    %c0_67 = arith.constant 0 : index
    %c0_68 = arith.constant 0 : index
    %157 = vector.load %arg15[%c0_67, %c0_68] : memref<1x32xf32, #tpu.memory_space<vmem>>, vector<1x32xf32>
    %cst_69 = arith.constant dense<0.000000e+00> : vector<8xf32>
    %158 = vector.multi_reduction <add>, %155, %cst_69 [1] : vector<8x32xf32> to vector<8xf32>
    %159 = vector.shape_cast %158 : vector<8xf32> to vector<8x1xf32>
    %cst_70 = arith.constant 3.200000e+01 : f32
    %160 = vector.broadcast %cst_70 : f32 to vector<8x1xf32>
    %161 = arith.divf %159, %160 : vector<8x1xf32>
    %162 = vector.broadcast %161 : vector<8x1xf32> to vector<8x32xf32>
    %163 = arith.subf %155, %162 : vector<8x32xf32>
    %164 = arith.mulf %163, %163 : vector<8x32xf32>
    %cst_71 = arith.constant dense<0.000000e+00> : vector<8xf32>
    %165 = vector.multi_reduction <add>, %164, %cst_71 [1] : vector<8x32xf32> to vector<8xf32>
    %166 = vector.shape_cast %165 : vector<8xf32> to vector<8x1xf32>
    %cst_72 = arith.constant 3.200000e+01 : f32
    %167 = vector.broadcast %cst_72 : f32 to vector<8x1xf32>
    %168 = arith.divf %166, %167 : vector<8x1xf32>
    %169 = vector.broadcast %161 : vector<8x1xf32> to vector<8x32xf32>
    %170 = arith.subf %155, %169 : vector<8x32xf32>
    %cst_73 = arith.constant 9.99999974E-6 : f32
    %171 = vector.broadcast %cst_73 : f32 to vector<8x1xf32>
    %172 = arith.addf %168, %171 : vector<8x1xf32>
    %173 = math.rsqrt %172 : vector<8x1xf32>
    %174 = vector.broadcast %173 : vector<8x1xf32> to vector<8x32xf32>
    %175 = arith.mulf %170, %174 : vector<8x32xf32>
    %176 = vector.broadcast %156 : vector<1x32xf32> to vector<8x32xf32>
    %177 = arith.mulf %175, %176 : vector<8x32xf32>
    %178 = vector.broadcast %157 : vector<1x32xf32> to vector<8x32xf32>
    %179 = arith.addf %177, %178 : vector<8x32xf32>
    %180 = vector.broadcast %5 : vector<8x1xf32> to vector<8x32xf32>
    %181 = arith.mulf %179, %180 : vector<8x32xf32>
    %c0_74 = arith.constant 0 : index
    %c0_75 = arith.constant 0 : index
    %c0_76 = arith.constant 0 : index
    %182 = vector.load %arg16[%c0_74, %c0_75, %c0_76] : memref<1x8x32xf32, #tpu.memory_space<vmem>>, vector<1x8x32xf32>
    %183 = vector.shape_cast %182 : vector<1x8x32xf32> to vector<8x32xf32>
    %184 = vector.shape_cast %181 : vector<8x32xf32> to vector<1x8x32xf32>
    tpu.vector_store %arg16[%c0_74, %c0_75, %c0_76], %184 {strides = array<i32>} : memref<1x8x32xf32, #tpu.memory_space<vmem>>, vector<1x8x32xf32>,
    return
  }
  func.func @transform_0(%arg0: i32) -> (i32, i32, i32) {
    %c0_i32 = arith.constant 0 : i32
    %c0_i32_0 = arith.constant 0 : i32
    %c0_i32_1 = arith.constant 0 : i32
    return %arg0, %c0_i32, %c0_i32_0 : i32, i32, i32
  }
  func.func @transform_1(%arg0: i32) -> (i32, i32, i32) {
    %c0_i32 = arith.constant 0 : i32
    %c0_i32_0 = arith.constant 0 : i32
    %c0_i32_1 = arith.constant 0 : i32
    return %arg0, %c0_i32, %c0_i32_0 : i32, i32, i32
  }
  func.func @transform_2(%arg0: i32) -> (i32, i32, i32) {
    %c0_i32 = arith.constant 0 : i32
    %c0_i32_0 = arith.constant 0 : i32
    %c0_i32_1 = arith.constant 0 : i32
    return %arg0, %c0_i32, %c0_i32_0 : i32, i32, i32
  }
  func.func @transform_3(%arg0: i32) -> (i32, i32) {
    %c0_i32 = arith.constant 0 : i32
    %c0_i32_0 = arith.constant 0 : i32
    %c0_i32_1 = arith.constant 0 : i32
    return %c0_i32, %c0_i32_0 : i32, i32
  }
  func.func @transform_4(%arg0: i32) -> (i32, i32) {
    %c0_i32 = arith.constant 0 : i32
    %c0_i32_0 = arith.constant 0 : i32
    %c0_i32_1 = arith.constant 0 : i32
    return %c0_i32, %c0_i32_0 : i32, i32
  }
  func.func @transform_5(%arg0: i32) -> (i32, i32) {
    %c0_i32 = arith.constant 0 : i32
    %c0_i32_0 = arith.constant 0 : i32
    %c0_i32_1 = arith.constant 0 : i32
    return %c0_i32, %c0_i32_0 : i32, i32
  }
  func.func @transform_6(%arg0: i32) -> (i32, i32) {
    %c0_i32 = arith.constant 0 : i32
    %c0_i32_0 = arith.constant 0 : i32
    %c0_i32_1 = arith.constant 0 : i32
    return %c0_i32, %c0_i32_0 : i32, i32
  }
  func.func @transform_7(%arg0: i32) -> (i32, i32) {
    %c0_i32 = arith.constant 0 : i32
    %c0_i32_0 = arith.constant 0 : i32
    %c0_i32_1 = arith.constant 0 : i32
    return %c0_i32, %c0_i32_0 : i32, i32
  }
  func.func @transform_8(%arg0: i32) -> (i32, i32) {
    %c0_i32 = arith.constant 0 : i32
    %c0_i32_0 = arith.constant 0 : i32
    %c0_i32_1 = arith.constant 0 : i32
    return %c0_i32, %c0_i32_0 : i32, i32
  }
  func.func @transform_9(%arg0: i32) -> (i32, i32, i32) {
    %c0_i32 = arith.constant 0 : i32
    %c0_i32_0 = arith.constant 0 : i32
    %c0_i32_1 = arith.constant 0 : i32
    %c0_i32_2 = arith.constant 0 : i32
    return %c0_i32, %c0_i32_0, %c0_i32_1 : i32, i32, i32
  }
  func.func @transform_10(%arg0: i32) -> (i32, i32) {
    %c0_i32 = arith.constant 0 : i32
    %c0_i32_0 = arith.constant 0 : i32
    %c0_i32_1 = arith.constant 0 : i32
    return %c0_i32, %c0_i32_0 : i32, i32
  }
  func.func @transform_11(%arg0: i32) -> (i32, i32, i32) {
    %c0_i32 = arith.constant 0 : i32
    %c0_i32_0 = arith.constant 0 : i32
    %c0_i32_1 = arith.constant 0 : i32
    %c0_i32_2 = arith.constant 0 : i32
    return %c0_i32, %c0_i32_0, %c0_i32_1 : i32, i32, i32
  }
  func.func @transform_12(%arg0: i32) -> (i32, i32) {
    %c0_i32 = arith.constant 0 : i32
    %c0_i32_0 = arith.constant 0 : i32
    %c0_i32_1 = arith.constant 0 : i32
    return %c0_i32, %c0_i32_0 : i32, i32
  }
  func.func @transform_13(%arg0: i32) -> (i32, i32) {
    %c0_i32 = arith.constant 0 : i32
    %c0_i32_0 = arith.constant 0 : i32
    %c0_i32_1 = arith.constant 0 : i32
    return %c0_i32, %c0_i32_0 : i32, i32
  }
  func.func @transform_14(%arg0: i32) -> (i32, i32) {
    %c0_i32 = arith.constant 0 : i32
    %c0_i32_0 = arith.constant 0 : i32
    %c0_i32_1 = arith.constant 0 : i32
    return %c0_i32, %c0_i32_0 : i32, i32
  }
  func.func @transform_15(%arg0: i32) -> (i32, i32, i32) {
    %c0_i32 = arith.constant 0 : i32
    %c0_i32_0 = arith.constant 0 : i32
    %c0_i32_1 = arith.constant 0 : i32
    return %arg0, %c0_i32, %c0_i32_0 : i32, i32, i32
  }
}

module attributes {stable_mosaic.version = 11 : i64} {
  func.func @_fft_block_mel_kernel(%arg0: i32, %arg1: memref<1x16x32xf32, #tpu.memory_space<vmem>>, %arg2: memref<1x1x16xf32, #tpu.memory_space<vmem>>, %arg3: memref<1x16x1xf32, #tpu.memory_space<vmem>>, %arg4: memref<1x16x1xf32, #tpu.memory_space<vmem>>, %arg5: memref<32x96xf32, #tpu.memory_space<vmem>>, %arg6: memref<1x96xf32, #tpu.memory_space<vmem>>, %arg7: memref<32x32xf32, #tpu.memory_space<vmem>>, %arg8: memref<1x32xf32, #tpu.memory_space<vmem>>, %arg9: memref<1x32xf32, #tpu.memory_space<vmem>>, %arg10: memref<1x32xf32, #tpu.memory_space<vmem>>, %arg11: memref<3x32x64xf32, #tpu.memory_space<vmem>>, %arg12: memref<1x64xf32, #tpu.memory_space<vmem>>, %arg13: memref<3x64x32xf32, #tpu.memory_space<vmem>>, %arg14: memref<1x32xf32, #tpu.memory_space<vmem>>, %arg15: memref<1x32xf32, #tpu.memory_space<vmem>>, %arg16: memref<1x32xf32, #tpu.memory_space<vmem>>, %arg17: memref<32x16xf32, #tpu.memory_space<vmem>>, %arg18: memref<1x16xf32, #tpu.memory_space<vmem>>, %arg19: memref<1x16x16xf32, #tpu.memory_space<vmem>>) attributes {dimension_semantics = [#tpu.dimension_semantics<parallel>], iteration_bounds = array<i64: 2>, scalar_prefetch = 0 : i64, scratch_operands = 0 : i64, tpu.core_type = #tpu.core_type<tc>, window_params = [{transform_indices = @transform_0, window_bounds = array<i64: 1, 16, 32>}, {transform_indices = @transform_1, window_bounds = array<i64: 1, 1, 16>}, {transform_indices = @transform_2, window_bounds = array<i64: 1, 16, 1>}, {transform_indices = @transform_3, window_bounds = array<i64: 1, 16, 1>}, {pipeline_mode = #tpu.pipeline_mode<synchronous>, transform_indices = @transform_4, window_bounds = array<i64: 32, 96>}, {pipeline_mode = #tpu.pipeline_mode<synchronous>, transform_indices = @transform_5, window_bounds = array<i64: 1, 96>}, {pipeline_mode = #tpu.pipeline_mode<synchronous>, transform_indices = @transform_6, window_bounds = array<i64: 32, 32>}, {pipeline_mode = #tpu.pipeline_mode<synchronous>, transform_indices = @transform_7, window_bounds = array<i64: 1, 32>}, {pipeline_mode = #tpu.pipeline_mode<synchronous>, transform_indices = @transform_8, window_bounds = array<i64: 1, 32>}, {pipeline_mode = #tpu.pipeline_mode<synchronous>, transform_indices = @transform_9, window_bounds = array<i64: 1, 32>}, {pipeline_mode = #tpu.pipeline_mode<synchronous>, transform_indices = @transform_10, window_bounds = array<i64: 3, 32, 64>}, {pipeline_mode = #tpu.pipeline_mode<synchronous>, transform_indices = @transform_11, window_bounds = array<i64: 1, 64>}, {pipeline_mode = #tpu.pipeline_mode<synchronous>, transform_indices = @transform_12, window_bounds = array<i64: 3, 64, 32>}, {pipeline_mode = #tpu.pipeline_mode<synchronous>, transform_indices = @transform_13, window_bounds = array<i64: 1, 32>}, {pipeline_mode = #tpu.pipeline_mode<synchronous>, transform_indices = @transform_14, window_bounds = array<i64: 1, 32>}, {pipeline_mode = #tpu.pipeline_mode<synchronous>, transform_indices = @transform_15, window_bounds = array<i64: 1, 32>}, {pipeline_mode = #tpu.pipeline_mode<synchronous>, transform_indices = @transform_16, window_bounds = array<i64: 32, 16>}, {pipeline_mode = #tpu.pipeline_mode<synchronous>, transform_indices = @transform_17, window_bounds = array<i64: 1, 16>}, {transform_indices = @transform_18, window_bounds = array<i64: 1, 16, 16>}]} {
    %c0 = arith.constant 0 : index
    %c0_0 = arith.constant 0 : index
    %c0_1 = arith.constant 0 : index
    %0 = vector.load %arg1[%c0, %c0_0, %c0_1] : memref<1x16x32xf32, #tpu.memory_space<vmem>>, vector<1x16x32xf32>
    %1 = vector.shape_cast %0 : vector<1x16x32xf32> to vector<16x32xf32>
    %c0_2 = arith.constant 0 : index
    %c0_3 = arith.constant 0 : index
    %c0_4 = arith.constant 0 : index
    %2 = vector.load %arg2[%c0_2, %c0_3, %c0_4] : memref<1x1x16xf32, #tpu.memory_space<vmem>>, vector<1x1x16xf32>
    %3 = vector.shape_cast %2 : vector<1x1x16xf32> to vector<1x16xf32>
    %c0_5 = arith.constant 0 : index
    %c0_6 = arith.constant 0 : index
    %c0_7 = arith.constant 0 : index
    %4 = vector.load %arg3[%c0_5, %c0_6, %c0_7] : memref<1x16x1xf32, #tpu.memory_space<vmem>>, vector<1x16x1xf32>
    %5 = vector.shape_cast %4 : vector<1x16x1xf32> to vector<16x1xf32>
    %c0_8 = arith.constant 0 : index
    %c0_9 = arith.constant 0 : index
    %6 = vector.load %arg5[%c0_8, %c0_9] : memref<32x96xf32, #tpu.memory_space<vmem>>, vector<32x96xf32>
    %7 = arith.truncf %1 : vector<16x32xf32> to vector<16x32xbf16>
    %8 = arith.truncf %6 : vector<32x96xf32> to vector<32x96xbf16>
    %cst = arith.constant dense<0.000000e+00> : vector<16x96xf32>
    %9 = tpu.matmul %7, %8, %cst {dimension_numbers = #tpu.dot_dimension_numbers<[1], [0], [0], [1], [0, 0, 1, 1], [], []>} : vector<16x32xbf16>, vector<32x96xbf16>, vector<16x96xf32> -> vector<16x96xf32>
    %c0_10 = arith.constant 0 : index
    %c0_11 = arith.constant 0 : index
    %10 = vector.load %arg6[%c0_10, %c0_11] : memref<1x96xf32, #tpu.memory_space<vmem>>, vector<1x96xf32>
    %11 = vector.broadcast %10 : vector<1x96xf32> to vector<16x96xf32>
    %12 = arith.addf %9, %11 : vector<16x96xf32>
    %cst_12 = arith.constant -1.000000e+09 : f32
    %13 = vector.broadcast %cst_12 : f32 to vector<1x16xf32>
    %14 = arith.mulf %3, %13 : vector<1x16xf32>
    %15 = vector.shape_cast %14 : vector<1x16xf32> to vector<1x16xf32>
    %16 = vector.broadcast %15 : vector<1x16xf32> to vector<16x16xf32>
    %17 = vector.extract_strided_slice %12 {offsets = [0, 0], sizes = [16, 16], strides = [1, 1]} : vector<16x96xf32> to vector<16x16xf32>
    %18 = vector.extract_strided_slice %12 {offsets = [0, 32], sizes = [16, 16], strides = [1, 1]} : vector<16x96xf32> to vector<16x16xf32>
    %19 = vector.extract_strided_slice %12 {offsets = [0, 64], sizes = [16, 16], strides = [1, 1]} : vector<16x96xf32> to vector<16x16xf32>
    %20 = arith.truncf %17 : vector<16x16xf32> to vector<16x16xbf16>
    %21 = arith.truncf %18 : vector<16x16xf32> to vector<16x16xbf16>
    %cst_13 = arith.constant dense<0.000000e+00> : vector<16x16xf32>
    %22 = tpu.matmul %20, %21, %cst_13 {dimension_numbers = #tpu.dot_dimension_numbers<[1], [1], [0], [0], [0, 0, 1, 0], [], []>} : vector<16x16xbf16>, vector<16x16xbf16>, vector<16x16xf32> -> vector<16x16xf32>
    %23 = arith.addf %22, %16 : vector<16x16xf32>
    %cst_14 = arith.constant dense<0xFF800000> : vector<16xf32>
    %24 = vector.multi_reduction <maximumf>, %23, %cst_14 [1] : vector<16x16xf32> to vector<16xf32>
    %25 = vector.shape_cast %24 : vector<16xf32> to vector<16x1xf32>
    %26 = vector.broadcast %25 : vector<16x1xf32> to vector<16x16xf32>
    %27 = arith.subf %23, %26 : vector<16x16xf32>
    %28 = math.exp %27 : vector<16x16xf32>
    %cst_15 = arith.constant dense<0.000000e+00> : vector<16xf32>
    %29 = vector.multi_reduction <add>, %28, %cst_15 [1] : vector<16x16xf32> to vector<16xf32>
    %30 = vector.shape_cast %29 : vector<16xf32> to vector<16x1xf32>
    %31 = tpu.reciprocal %30 {approx = true} : vector<16x1xf32> -> vector<16x1xf32>
    %32 = vector.broadcast %31 : vector<16x1xf32> to vector<16x16xf32>
    %33 = arith.mulf %28, %32 : vector<16x16xf32>
    %34 = arith.truncf %33 : vector<16x16xf32> to vector<16x16xbf16>
    %35 = arith.truncf %19 : vector<16x16xf32> to vector<16x16xbf16>
    %cst_16 = arith.constant dense<0.000000e+00> : vector<16x16xf32>
    %36 = tpu.matmul %34, %35, %cst_16 {dimension_numbers = #tpu.dot_dimension_numbers<[1], [0], [0], [1], [0, 0, 1, 1], [], []>} : vector<16x16xbf16>, vector<16x16xbf16>, vector<16x16xf32> -> vector<16x16xf32>
    %37 = vector.extract_strided_slice %12 {offsets = [0, 16], sizes = [16, 16], strides = [1, 1]} : vector<16x96xf32> to vector<16x16xf32>
    %38 = vector.extract_strided_slice %12 {offsets = [0, 48], sizes = [16, 16], strides = [1, 1]} : vector<16x96xf32> to vector<16x16xf32>
    %39 = vector.extract_strided_slice %12 {offsets = [0, 80], sizes = [16, 16], strides = [1, 1]} : vector<16x96xf32> to vector<16x16xf32>
    %40 = arith.truncf %37 : vector<16x16xf32> to vector<16x16xbf16>
    %41 = arith.truncf %38 : vector<16x16xf32> to vector<16x16xbf16>
    %cst_17 = arith.constant dense<0.000000e+00> : vector<16x16xf32>
    %42 = tpu.matmul %40, %41, %cst_17 {dimension_numbers = #tpu.dot_dimension_numbers<[1], [1], [0], [0], [0, 0, 1, 0], [], []>} : vector<16x16xbf16>, vector<16x16xbf16>, vector<16x16xf32> -> vector<16x16xf32>
    %43 = arith.addf %42, %16 : vector<16x16xf32>
    %cst_18 = arith.constant dense<0xFF800000> : vector<16xf32>
    %44 = vector.multi_reduction <maximumf>, %43, %cst_18 [1] : vector<16x16xf32> to vector<16xf32>
    %45 = vector.shape_cast %44 : vector<16xf32> to vector<16x1xf32>
    %46 = vector.broadcast %45 : vector<16x1xf32> to vector<16x16xf32>
    %47 = arith.subf %43, %46 : vector<16x16xf32>
    %48 = math.exp %47 : vector<16x16xf32>
    %cst_19 = arith.constant dense<0.000000e+00> : vector<16xf32>
    %49 = vector.multi_reduction <add>, %48, %cst_19 [1] : vector<16x16xf32> to vector<16xf32>
    %50 = vector.shape_cast %49 : vector<16xf32> to vector<16x1xf32>
    %51 = tpu.reciprocal %50 {approx = true} : vector<16x1xf32> -> vector<16x1xf32>
    %52 = vector.broadcast %51 : vector<16x1xf32> to vector<16x16xf32>
    %53 = arith.mulf %48, %52 : vector<16x16xf32>
    %54 = arith.truncf %53 : vector<16x16xf32> to vector<16x16xbf16>
    %55 = arith.truncf %39 : vector<16x16xf32> to vector<16x16xbf16>
    %cst_20 = arith.constant dense<0.000000e+00> : vector<16x16xf32>
    %56 = tpu.matmul %54, %55, %cst_20 {dimension_numbers = #tpu.dot_dimension_numbers<[1], [0], [0], [1], [0, 0, 1, 1], [], []>} : vector<16x16xbf16>, vector<16x16xbf16>, vector<16x16xf32> -> vector<16x16xf32>
    %57 = tpu.concatenate %36, %56 in 1 : vector<16x16xf32>, vector<16x16xf32> -> vector<16x32xf32>
    %c0_21 = arith.constant 0 : index
    %c0_22 = arith.constant 0 : index
    %58 = vector.load %arg7[%c0_21, %c0_22] : memref<32x32xf32, #tpu.memory_space<vmem>>, vector<32x32xf32>
    %59 = arith.truncf %57 : vector<16x32xf32> to vector<16x32xbf16>
    %60 = arith.truncf %58 : vector<32x32xf32> to vector<32x32xbf16>
    %cst_23 = arith.constant dense<0.000000e+00> : vector<16x32xf32>
    %61 = tpu.matmul %59, %60, %cst_23 {dimension_numbers = #tpu.dot_dimension_numbers<[1], [0], [0], [1], [0, 0, 1, 1], [], []>} : vector<16x32xbf16>, vector<32x32xbf16>, vector<16x32xf32> -> vector<16x32xf32>
    %c0_24 = arith.constant 0 : index
    %c0_25 = arith.constant 0 : index
    %62 = vector.load %arg8[%c0_24, %c0_25] : memref<1x32xf32, #tpu.memory_space<vmem>>, vector<1x32xf32>
    %63 = vector.broadcast %62 : vector<1x32xf32> to vector<16x32xf32>
    %64 = arith.addf %61, %63 : vector<16x32xf32>
    %65 = arith.addf %64, %1 : vector<16x32xf32>
    %c0_26 = arith.constant 0 : index
    %c0_27 = arith.constant 0 : index
    %66 = vector.load %arg9[%c0_26, %c0_27] : memref<1x32xf32, #tpu.memory_space<vmem>>, vector<1x32xf32>
    %c0_28 = arith.constant 0 : index
    %c0_29 = arith.constant 0 : index
    %67 = vector.load %arg10[%c0_28, %c0_29] : memref<1x32xf32, #tpu.memory_space<vmem>>, vector<1x32xf32>
    %cst_30 = arith.constant dense<0.000000e+00> : vector<16xf32>
    %68 = vector.multi_reduction <add>, %65, %cst_30 [1] : vector<16x32xf32> to vector<16xf32>
    %69 = vector.shape_cast %68 : vector<16xf32> to vector<16x1xf32>
    %cst_31 = arith.constant 3.200000e+01 : f32
    %70 = vector.broadcast %cst_31 : f32 to vector<16x1xf32>
    %71 = arith.divf %69, %70 : vector<16x1xf32>
    %72 = vector.broadcast %71 : vector<16x1xf32> to vector<16x32xf32>
    %73 = arith.subf %65, %72 : vector<16x32xf32>
    %74 = arith.mulf %73, %73 : vector<16x32xf32>
    %cst_32 = arith.constant dense<0.000000e+00> : vector<16xf32>
    %75 = vector.multi_reduction <add>, %74, %cst_32 [1] : vector<16x32xf32> to vector<16xf32>
    %76 = vector.shape_cast %75 : vector<16xf32> to vector<16x1xf32>
    %cst_33 = arith.constant 3.200000e+01 : f32
    %77 = vector.broadcast %cst_33 : f32 to vector<16x1xf32>
    %78 = arith.divf %76, %77 : vector<16x1xf32>
    %79 = vector.broadcast %71 : vector<16x1xf32> to vector<16x32xf32>
    %80 = arith.subf %65, %79 : vector<16x32xf32>
    %cst_34 = arith.constant 9.99999974E-6 : f32
    %81 = vector.broadcast %cst_34 : f32 to vector<16x1xf32>
    %82 = arith.addf %78, %81 : vector<16x1xf32>
    %83 = math.rsqrt %82 : vector<16x1xf32>
    %84 = vector.broadcast %83 : vector<16x1xf32> to vector<16x32xf32>
    %85 = arith.mulf %80, %84 : vector<16x32xf32>
    %86 = vector.broadcast %66 : vector<1x32xf32> to vector<16x32xf32>
    %87 = arith.mulf %85, %86 : vector<16x32xf32>
    %88 = vector.broadcast %67 : vector<1x32xf32> to vector<16x32xf32>
    %89 = arith.addf %87, %88 : vector<16x32xf32>
    %90 = vector.broadcast %5 : vector<16x1xf32> to vector<16x32xf32>
    %91 = arith.mulf %89, %90 : vector<16x32xf32>
    %92 = tpu.iota {dimensions = array<i32: 0>} : vector<16x1xi32>
    %c0_i32 = arith.constant 0 : i32
    %93 = vector.broadcast %c0_i32 : i32 to vector<16x1xi32>
    %94 = arith.cmpi ne, %92, %93 : vector<16x1xi32>
    %95 = arith.extui %94 : vector<16x1xi1> to vector<16x1xi32>
    %96 = arith.sitofp %95 : vector<16x1xi32> to vector<16x1xf32>
    %c15_i32 = arith.constant 15 : i32
    %97 = vector.broadcast %c15_i32 : i32 to vector<16x1xi32>
    %98 = arith.cmpi ne, %92, %97 : vector<16x1xi32>
    %99 = arith.extui %98 : vector<16x1xi1> to vector<16x1xi32>
    %100 = arith.sitofp %99 : vector<16x1xi32> to vector<16x1xf32>
    %c0_35 = arith.constant 0 : index
    %c0_36 = arith.constant 0 : index
    %101 = vector.load %arg12[%c0_35, %c0_36] : memref<1x64xf32, #tpu.memory_space<vmem>>, vector<1x64xf32>
    %c1_i32 = arith.constant 1 : i32
    %102 = tpu.dynamic_rotate %91 by %c1_i32 dim 0 : vector<16x32xf32>, i32 -> vector<16x32xf32>
    %103 = vector.broadcast %96 : vector<16x1xf32> to vector<16x32xf32>
    %104 = arith.mulf %102, %103 : vector<16x32xf32>
    %c15_i32_37 = arith.constant 15 : i32
    %105 = tpu.dynamic_rotate %91 by %c15_i32_37 dim 0 : vector<16x32xf32>, i32 -> vector<16x32xf32>
    %106 = vector.broadcast %100 : vector<16x1xf32> to vector<16x32xf32>
    %107 = arith.mulf %105, %106 : vector<16x32xf32>
    %c0_38 = arith.constant 0 : index
    %c0_39 = arith.constant 0 : index
    %c0_40 = arith.constant 0 : index
    %108 = vector.load %arg11[%c0_38, %c0_39, %c0_40] : memref<3x32x64xf32, #tpu.memory_space<vmem>>, vector<1x32x64xf32>
    %109 = vector.shape_cast %108 : vector<1x32x64xf32> to vector<32x64xf32>
    %110 = arith.truncf %104 : vector<16x32xf32> to vector<16x32xbf16>
    %111 = arith.truncf %109 : vector<32x64xf32> to vector<32x64xbf16>
    %cst_41 = arith.constant dense<0.000000e+00> : vector<16x64xf32>
    %112 = tpu.matmul %110, %111, %cst_41 {dimension_numbers = #tpu.dot_dimension_numbers<[1], [0], [0], [1], [0, 0, 1, 1], [], []>} : vector<16x32xbf16>, vector<32x64xbf16>, vector<16x64xf32> -> vector<16x64xf32>
    %c1 = arith.constant 1 : index
    %c0_42 = arith.constant 0 : index
    %c0_43 = arith.constant 0 : index
    %113 = vector.load %arg11[%c1, %c0_42, %c0_43] : memref<3x32x64xf32, #tpu.memory_space<vmem>>, vector<1x32x64xf32>
    %114 = vector.shape_cast %113 : vector<1x32x64xf32> to vector<32x64xf32>
    %115 = arith.truncf %91 : vector<16x32xf32> to vector<16x32xbf16>
    %116 = arith.truncf %114 : vector<32x64xf32> to vector<32x64xbf16>
    %cst_44 = arith.constant dense<0.000000e+00> : vector<16x64xf32>
    %117 = tpu.matmul %115, %116, %cst_44 {dimension_numbers = #tpu.dot_dimension_numbers<[1], [0], [0], [1], [0, 0, 1, 1], [], []>} : vector<16x32xbf16>, vector<32x64xbf16>, vector<16x64xf32> -> vector<16x64xf32>
    %118 = arith.addf %112, %117 : vector<16x64xf32>
    %c2 = arith.constant 2 : index
    %c0_45 = arith.constant 0 : index
    %c0_46 = arith.constant 0 : index
    %119 = vector.load %arg11[%c2, %c0_45, %c0_46] : memref<3x32x64xf32, #tpu.memory_space<vmem>>, vector<1x32x64xf32>
    %120 = vector.shape_cast %119 : vector<1x32x64xf32> to vector<32x64xf32>
    %121 = arith.truncf %107 : vector<16x32xf32> to vector<16x32xbf16>
    %122 = arith.truncf %120 : vector<32x64xf32> to vector<32x64xbf16>
    %cst_47 = arith.constant dense<0.000000e+00> : vector<16x64xf32>
    %123 = tpu.matmul %121, %122, %cst_47 {dimension_numbers = #tpu.dot_dimension_numbers<[1], [0], [0], [1], [0, 0, 1, 1], [], []>} : vector<16x32xbf16>, vector<32x64xbf16>, vector<16x64xf32> -> vector<16x64xf32>
    %124 = arith.addf %118, %123 : vector<16x64xf32>
    %125 = vector.broadcast %101 : vector<1x64xf32> to vector<16x64xf32>
    %126 = arith.addf %124, %125 : vector<16x64xf32>
    %cst_48 = arith.constant 0.000000e+00 : f32
    %127 = vector.broadcast %cst_48 : f32 to vector<16x64xf32>
    %128 = arith.maximumf %126, %127 : vector<16x64xf32>
    %c0_49 = arith.constant 0 : index
    %c0_50 = arith.constant 0 : index
    %129 = vector.load %arg14[%c0_49, %c0_50] : memref<1x32xf32, #tpu.memory_space<vmem>>, vector<1x32xf32>
    %c1_i32_51 = arith.constant 1 : i32
    %130 = tpu.dynamic_rotate %128 by %c1_i32_51 dim 0 : vector<16x64xf32>, i32 -> vector<16x64xf32>
    %131 = vector.broadcast %96 : vector<16x1xf32> to vector<16x64xf32>
    %132 = arith.mulf %130, %131 : vector<16x64xf32>
    %c15_i32_52 = arith.constant 15 : i32
    %133 = tpu.dynamic_rotate %128 by %c15_i32_52 dim 0 : vector<16x64xf32>, i32 -> vector<16x64xf32>
    %134 = vector.broadcast %100 : vector<16x1xf32> to vector<16x64xf32>
    %135 = arith.mulf %133, %134 : vector<16x64xf32>
    %c0_53 = arith.constant 0 : index
    %c0_54 = arith.constant 0 : index
    %c0_55 = arith.constant 0 : index
    %136 = vector.load %arg13[%c0_53, %c0_54, %c0_55] : memref<3x64x32xf32, #tpu.memory_space<vmem>>, vector<1x64x32xf32>
    %137 = vector.shape_cast %136 : vector<1x64x32xf32> to vector<64x32xf32>
    %138 = arith.truncf %132 : vector<16x64xf32> to vector<16x64xbf16>
    %139 = arith.truncf %137 : vector<64x32xf32> to vector<64x32xbf16>
    %cst_56 = arith.constant dense<0.000000e+00> : vector<16x32xf32>
    %140 = tpu.matmul %138, %139, %cst_56 {dimension_numbers = #tpu.dot_dimension_numbers<[1], [0], [0], [1], [0, 0, 1, 1], [], []>} : vector<16x64xbf16>, vector<64x32xbf16>, vector<16x32xf32> -> vector<16x32xf32>
    %c1_57 = arith.constant 1 : index
    %c0_58 = arith.constant 0 : index
    %c0_59 = arith.constant 0 : index
    %141 = vector.load %arg13[%c1_57, %c0_58, %c0_59] : memref<3x64x32xf32, #tpu.memory_space<vmem>>, vector<1x64x32xf32>
    %142 = vector.shape_cast %141 : vector<1x64x32xf32> to vector<64x32xf32>
    %143 = arith.truncf %128 : vector<16x64xf32> to vector<16x64xbf16>
    %144 = arith.truncf %142 : vector<64x32xf32> to vector<64x32xbf16>
    %cst_60 = arith.constant dense<0.000000e+00> : vector<16x32xf32>
    %145 = tpu.matmul %143, %144, %cst_60 {dimension_numbers = #tpu.dot_dimension_numbers<[1], [0], [0], [1], [0, 0, 1, 1], [], []>} : vector<16x64xbf16>, vector<64x32xbf16>, vector<16x32xf32> -> vector<16x32xf32>
    %146 = arith.addf %140, %145 : vector<16x32xf32>
    %c2_61 = arith.constant 2 : index
    %c0_62 = arith.constant 0 : index
    %c0_63 = arith.constant 0 : index
    %147 = vector.load %arg13[%c2_61, %c0_62, %c0_63] : memref<3x64x32xf32, #tpu.memory_space<vmem>>, vector<1x64x32xf32>
    %148 = vector.shape_cast %147 : vector<1x64x32xf32> to vector<64x32xf32>
    %149 = arith.truncf %135 : vector<16x64xf32> to vector<16x64xbf16>
    %150 = arith.truncf %148 : vector<64x32xf32> to vector<64x32xbf16>
    %cst_64 = arith.constant dense<0.000000e+00> : vector<16x32xf32>
    %151 = tpu.matmul %149, %150, %cst_64 {dimension_numbers = #tpu.dot_dimension_numbers<[1], [0], [0], [1], [0, 0, 1, 1], [], []>} : vector<16x64xbf16>, vector<64x32xbf16>, vector<16x32xf32> -> vector<16x32xf32>
    %152 = arith.addf %146, %151 : vector<16x32xf32>
    %153 = vector.broadcast %129 : vector<1x32xf32> to vector<16x32xf32>
    %154 = arith.addf %152, %153 : vector<16x32xf32>
    %155 = arith.addf %154, %91 : vector<16x32xf32>
    %c0_65 = arith.constant 0 : index
    %c0_66 = arith.constant 0 : index
    %156 = vector.load %arg15[%c0_65, %c0_66] : memref<1x32xf32, #tpu.memory_space<vmem>>, vector<1x32xf32>
    %c0_67 = arith.constant 0 : index
    %c0_68 = arith.constant 0 : index
    %157 = vector.load %arg16[%c0_67, %c0_68] : memref<1x32xf32, #tpu.memory_space<vmem>>, vector<1x32xf32>
    %cst_69 = arith.constant dense<0.000000e+00> : vector<16xf32>
    %158 = vector.multi_reduction <add>, %155, %cst_69 [1] : vector<16x32xf32> to vector<16xf32>
    %159 = vector.shape_cast %158 : vector<16xf32> to vector<16x1xf32>
    %cst_70 = arith.constant 3.200000e+01 : f32
    %160 = vector.broadcast %cst_70 : f32 to vector<16x1xf32>
    %161 = arith.divf %159, %160 : vector<16x1xf32>
    %162 = vector.broadcast %161 : vector<16x1xf32> to vector<16x32xf32>
    %163 = arith.subf %155, %162 : vector<16x32xf32>
    %164 = arith.mulf %163, %163 : vector<16x32xf32>
    %cst_71 = arith.constant dense<0.000000e+00> : vector<16xf32>
    %165 = vector.multi_reduction <add>, %164, %cst_71 [1] : vector<16x32xf32> to vector<16xf32>
    %166 = vector.shape_cast %165 : vector<16xf32> to vector<16x1xf32>
    %cst_72 = arith.constant 3.200000e+01 : f32
    %167 = vector.broadcast %cst_72 : f32 to vector<16x1xf32>
    %168 = arith.divf %166, %167 : vector<16x1xf32>
    %169 = vector.broadcast %161 : vector<16x1xf32> to vector<16x32xf32>
    %170 = arith.subf %155, %169 : vector<16x32xf32>
    %cst_73 = arith.constant 9.99999974E-6 : f32
    %171 = vector.broadcast %cst_73 : f32 to vector<16x1xf32>
    %172 = arith.addf %168, %171 : vector<16x1xf32>
    %173 = math.rsqrt %172 : vector<16x1xf32>
    %174 = vector.broadcast %173 : vector<16x1xf32> to vector<16x32xf32>
    %175 = arith.mulf %170, %174 : vector<16x32xf32>
    %176 = vector.broadcast %156 : vector<1x32xf32> to vector<16x32xf32>
    %177 = arith.mulf %175, %176 : vector<16x32xf32>
    %178 = vector.broadcast %157 : vector<1x32xf32> to vector<16x32xf32>
    %179 = arith.addf %177, %178 : vector<16x32xf32>
    %180 = vector.broadcast %5 : vector<16x1xf32> to vector<16x32xf32>
    %181 = arith.mulf %179, %180 : vector<16x32xf32>
    %c0_74 = arith.constant 0 : index
    %c0_75 = arith.constant 0 : index
    %182 = vector.load %arg17[%c0_74, %c0_75] : memref<32x16xf32, #tpu.memory_space<vmem>>, vector<32x16xf32>
    %183 = arith.truncf %181 : vector<16x32xf32> to vector<16x32xbf16>
    %184 = arith.truncf %182 : vector<32x16xf32> to vector<32x16xbf16>
    %cst_76 = arith.constant dense<0.000000e+00> : vector<16x16xf32>
    %185 = tpu.matmul %183, %184, %cst_76 {dimension_numbers = #tpu.dot_dimension_numbers<[1], [0], [0], [1], [0, 0, 1, 1], [], []>} : vector<16x32xbf16>, vector<32x16xbf16>, vector<16x16xf32> -> vector<16x16xf32>
    %c0_77 = arith.constant 0 : index
    %c0_78 = arith.constant 0 : index
    %186 = vector.load %arg18[%c0_77, %c0_78] : memref<1x16xf32, #tpu.memory_space<vmem>>, vector<1x16xf32>
    %187 = vector.broadcast %186 : vector<1x16xf32> to vector<16x16xf32>
    %188 = arith.addf %185, %187 : vector<16x16xf32>
    %c0_79 = arith.constant 0 : index
    %c0_80 = arith.constant 0 : index
    %c0_81 = arith.constant 0 : index
    %189 = vector.load %arg4[%c0_79, %c0_80, %c0_81] : memref<1x16x1xf32, #tpu.memory_space<vmem>>, vector<1x16x1xf32>
    %190 = vector.shape_cast %189 : vector<1x16x1xf32> to vector<16x1xf32>
    %191 = vector.broadcast %190 : vector<16x1xf32> to vector<16x16xf32>
    %192 = arith.mulf %188, %191 : vector<16x16xf32>
    %c0_82 = arith.constant 0 : index
    %c0_83 = arith.constant 0 : index
    %c0_84 = arith.constant 0 : index
    %193 = vector.load %arg19[%c0_82, %c0_83, %c0_84] : memref<1x16x16xf32, #tpu.memory_space<vmem>>, vector<1x16x16xf32>
    %194 = vector.shape_cast %193 : vector<1x16x16xf32> to vector<16x16xf32>
    %195 = vector.shape_cast %192 : vector<16x16xf32> to vector<1x16x16xf32>
    tpu.vector_store %arg19[%c0_82, %c0_83, %c0_84], %195 {strides = array<i32>} : memref<1x16x16xf32, #tpu.memory_space<vmem>>, vector<1x16x16xf32>,
    return
  }
  func.func @transform_0(%arg0: i32) -> (i32, i32, i32) {
    %c0_i32 = arith.constant 0 : i32
    %c0_i32_0 = arith.constant 0 : i32
    %c0_i32_1 = arith.constant 0 : i32
    return %arg0, %c0_i32, %c0_i32_0 : i32, i32, i32
  }
  func.func @transform_1(%arg0: i32) -> (i32, i32, i32) {
    %c0_i32 = arith.constant 0 : i32
    %c0_i32_0 = arith.constant 0 : i32
    %c0_i32_1 = arith.constant 0 : i32
    return %arg0, %c0_i32, %c0_i32_0 : i32, i32, i32
  }
  func.func @transform_2(%arg0: i32) -> (i32, i32, i32) {
    %c0_i32 = arith.constant 0 : i32
    %c0_i32_0 = arith.constant 0 : i32
    %c0_i32_1 = arith.constant 0 : i32
    return %arg0, %c0_i32, %c0_i32_0 : i32, i32, i32
  }
  func.func @transform_3(%arg0: i32) -> (i32, i32, i32) {
    %c0_i32 = arith.constant 0 : i32
    %c0_i32_0 = arith.constant 0 : i32
    %c0_i32_1 = arith.constant 0 : i32
    return %arg0, %c0_i32, %c0_i32_0 : i32, i32, i32
  }
  func.func @transform_4(%arg0: i32) -> (i32, i32) {
    %c0_i32 = arith.constant 0 : i32
    %c0_i32_0 = arith.constant 0 : i32
    %c0_i32_1 = arith.constant 0 : i32
    return %c0_i32, %c0_i32_0 : i32, i32
  }
  func.func @transform_5(%arg0: i32) -> (i32, i32) {
    %c0_i32 = arith.constant 0 : i32
    %c0_i32_0 = arith.constant 0 : i32
    %c0_i32_1 = arith.constant 0 : i32
    return %c0_i32, %c0_i32_0 : i32, i32
  }
  func.func @transform_6(%arg0: i32) -> (i32, i32) {
    %c0_i32 = arith.constant 0 : i32
    %c0_i32_0 = arith.constant 0 : i32
    %c0_i32_1 = arith.constant 0 : i32
    return %c0_i32, %c0_i32_0 : i32, i32
  }
  func.func @transform_7(%arg0: i32) -> (i32, i32) {
    %c0_i32 = arith.constant 0 : i32
    %c0_i32_0 = arith.constant 0 : i32
    %c0_i32_1 = arith.constant 0 : i32
    return %c0_i32, %c0_i32_0 : i32, i32
  }
  func.func @transform_8(%arg0: i32) -> (i32, i32) {
    %c0_i32 = arith.constant 0 : i32
    %c0_i32_0 = arith.constant 0 : i32
    %c0_i32_1 = arith.constant 0 : i32
    return %c0_i32, %c0_i32_0 : i32, i32
  }
  func.func @transform_9(%arg0: i32) -> (i32, i32) {
    %c0_i32 = arith.constant 0 : i32
    %c0_i32_0 = arith.constant 0 : i32
    %c0_i32_1 = arith.constant 0 : i32
    return %c0_i32, %c0_i32_0 : i32, i32
  }
  func.func @transform_10(%arg0: i32) -> (i32, i32, i32) {
    %c0_i32 = arith.constant 0 : i32
    %c0_i32_0 = arith.constant 0 : i32
    %c0_i32_1 = arith.constant 0 : i32
    %c0_i32_2 = arith.constant 0 : i32
    return %c0_i32, %c0_i32_0, %c0_i32_1 : i32, i32, i32
  }
  func.func @transform_11(%arg0: i32) -> (i32, i32) {
    %c0_i32 = arith.constant 0 : i32
    %c0_i32_0 = arith.constant 0 : i32
    %c0_i32_1 = arith.constant 0 : i32
    return %c0_i32, %c0_i32_0 : i32, i32
  }
  func.func @transform_12(%arg0: i32) -> (i32, i32, i32) {
    %c0_i32 = arith.constant 0 : i32
    %c0_i32_0 = arith.constant 0 : i32
    %c0_i32_1 = arith.constant 0 : i32
    %c0_i32_2 = arith.constant 0 : i32
    return %c0_i32, %c0_i32_0, %c0_i32_1 : i32, i32, i32
  }
  func.func @transform_13(%arg0: i32) -> (i32, i32) {
    %c0_i32 = arith.constant 0 : i32
    %c0_i32_0 = arith.constant 0 : i32
    %c0_i32_1 = arith.constant 0 : i32
    return %c0_i32, %c0_i32_0 : i32, i32
  }
  func.func @transform_14(%arg0: i32) -> (i32, i32) {
    %c0_i32 = arith.constant 0 : i32
    %c0_i32_0 = arith.constant 0 : i32
    %c0_i32_1 = arith.constant 0 : i32
    return %c0_i32, %c0_i32_0 : i32, i32
  }
  func.func @transform_15(%arg0: i32) -> (i32, i32) {
    %c0_i32 = arith.constant 0 : i32
    %c0_i32_0 = arith.constant 0 : i32
    %c0_i32_1 = arith.constant 0 : i32
    return %c0_i32, %c0_i32_0 : i32, i32
  }
  func.func @transform_16(%arg0: i32) -> (i32, i32) {
    %c0_i32 = arith.constant 0 : i32
    %c0_i32_0 = arith.constant 0 : i32
    %c0_i32_1 = arith.constant 0 : i32
    return %c0_i32, %c0_i32_0 : i32, i32
  }
  func.func @transform_17(%arg0: i32) -> (i32, i32) {
    %c0_i32 = arith.constant 0 : i32
    %c0_i32_0 = arith.constant 0 : i32
    %c0_i32_1 = arith.constant 0 : i32
    return %c0_i32, %c0_i32_0 : i32, i32
  }
  func.func @transform_18(%arg0: i32) -> (i32, i32, i32) {
    %c0_i32 = arith.constant 0 : i32
    %c0_i32_0 = arith.constant 0 : i32
    %c0_i32_1 = arith.constant 0 : i32
    return %arg0, %c0_i32, %c0_i32_0 : i32, i32, i32
  }
}

module attributes {stable_mosaic.version = 11 : i64} {
  func.func @_var_pred_kernel(%arg0: i32, %arg1: memref<1x16x32xf32, #tpu.memory_space<vmem>>, %arg2: memref<1x1x16xf32, #tpu.memory_space<vmem>>, %arg3: memref<3x32x64xf32, #tpu.memory_space<vmem>>, %arg4: memref<1x64xf32, #tpu.memory_space<vmem>>, %arg5: memref<1x64xf32, #tpu.memory_space<vmem>>, %arg6: memref<1x64xf32, #tpu.memory_space<vmem>>, %arg7: memref<3x64x64xf32, #tpu.memory_space<vmem>>, %arg8: memref<1x64xf32, #tpu.memory_space<vmem>>, %arg9: memref<1x64xf32, #tpu.memory_space<vmem>>, %arg10: memref<1x64xf32, #tpu.memory_space<vmem>>, %arg11: memref<1x64xf32, #tpu.memory_space<vmem>>, %arg12: memref<1x1xf32, #tpu.memory_space<vmem>>, %arg13: memref<1x1x16xf32, #tpu.memory_space<vmem>>) attributes {dimension_semantics = [#tpu.dimension_semantics<parallel>], iteration_bounds = array<i64: 2>, scalar_prefetch = 0 : i64, scratch_operands = 0 : i64, tpu.core_type = #tpu.core_type<tc>, window_params = [{transform_indices = @transform_0, window_bounds = array<i64: 1, 16, 32>}, {transform_indices = @transform_1, window_bounds = array<i64: 1, 1, 16>}, {pipeline_mode = #tpu.pipeline_mode<synchronous>, transform_indices = @transform_2, window_bounds = array<i64: 3, 32, 64>}, {pipeline_mode = #tpu.pipeline_mode<synchronous>, transform_indices = @transform_3, window_bounds = array<i64: 1, 64>}, {pipeline_mode = #tpu.pipeline_mode<synchronous>, transform_indices = @transform_4, window_bounds = array<i64: 1, 64>}, {pipeline_mode = #tpu.pipeline_mode<synchronous>, transform_indices = @transform_5, window_bounds = array<i64: 1, 64>}, {pipeline_mode = #tpu.pipeline_mode<synchronous>, transform_indices = @transform_6, window_bounds = array<i64: 3, 64, 64>}, {pipeline_mode = #tpu.pipeline_mode<synchronous>, transform_indices = @transform_7, window_bounds = array<i64: 1, 64>}, {pipeline_mode = #tpu.pipeline_mode<synchronous>, transform_indices = @transform_8, window_bounds = array<i64: 1, 64>}, {pipeline_mode = #tpu.pipeline_mode<synchronous>, transform_indices = @transform_9, window_bounds = array<i64: 1, 64>}, {pipeline_mode = #tpu.pipeline_mode<synchronous>, transform_indices = @transform_10, window_bounds = array<i64: 1, 64>}, {pipeline_mode = #tpu.pipeline_mode<synchronous>, transform_indices = @transform_11, window_bounds = array<i64: 1, 1>}, {transform_indices = @transform_12, window_bounds = array<i64: 1, 1, 16>}]} {
    %c0 = arith.constant 0 : index
    %c0_0 = arith.constant 0 : index
    %c0_1 = arith.constant 0 : index
    %0 = vector.load %arg1[%c0, %c0_0, %c0_1] : memref<1x16x32xf32, #tpu.memory_space<vmem>>, vector<1x16x32xf32>
    %1 = vector.shape_cast %0 : vector<1x16x32xf32> to vector<16x32xf32>
    %2 = tpu.iota {dimensions = array<i32: 0>} : vector<16x1xi32>
    %c0_i32 = arith.constant 0 : i32
    %3 = vector.broadcast %c0_i32 : i32 to vector<16x1xi32>
    %4 = arith.cmpi ne, %2, %3 : vector<16x1xi32>
    %5 = arith.extui %4 : vector<16x1xi1> to vector<16x1xi32>
    %6 = arith.sitofp %5 : vector<16x1xi32> to vector<16x1xf32>
    %c15_i32 = arith.constant 15 : i32
    %7 = vector.broadcast %c15_i32 : i32 to vector<16x1xi32>
    %8 = arith.cmpi ne, %2, %7 : vector<16x1xi32>
    %9 = arith.extui %8 : vector<16x1xi1> to vector<16x1xi32>
    %10 = arith.sitofp %9 : vector<16x1xi32> to vector<16x1xf32>
    %c0_2 = arith.constant 0 : index
    %c0_3 = arith.constant 0 : index
    %11 = vector.load %arg4[%c0_2, %c0_3] : memref<1x64xf32, #tpu.memory_space<vmem>>, vector<1x64xf32>
    %c1_i32 = arith.constant 1 : i32
    %12 = tpu.dynamic_rotate %1 by %c1_i32 dim 0 : vector<16x32xf32>, i32 -> vector<16x32xf32>
    %13 = vector.broadcast %6 : vector<16x1xf32> to vector<16x32xf32>
    %14 = arith.mulf %12, %13 : vector<16x32xf32>
    %c15_i32_4 = arith.constant 15 : i32
    %15 = tpu.dynamic_rotate %1 by %c15_i32_4 dim 0 : vector<16x32xf32>, i32 -> vector<16x32xf32>
    %16 = vector.broadcast %10 : vector<16x1xf32> to vector<16x32xf32>
    %17 = arith.mulf %15, %16 : vector<16x32xf32>
    %c0_5 = arith.constant 0 : index
    %c0_6 = arith.constant 0 : index
    %c0_7 = arith.constant 0 : index
    %18 = vector.load %arg3[%c0_5, %c0_6, %c0_7] : memref<3x32x64xf32, #tpu.memory_space<vmem>>, vector<1x32x64xf32>
    %19 = vector.shape_cast %18 : vector<1x32x64xf32> to vector<32x64xf32>
    %20 = arith.truncf %14 : vector<16x32xf32> to vector<16x32xbf16>
    %21 = arith.truncf %19 : vector<32x64xf32> to vector<32x64xbf16>
    %cst = arith.constant dense<0.000000e+00> : vector<16x64xf32>
    %22 = tpu.matmul %20, %21, %cst {dimension_numbers = #tpu.dot_dimension_numbers<[1], [0], [0], [1], [0, 0, 1, 1], [], []>} : vector<16x32xbf16>, vector<32x64xbf16>, vector<16x64xf32> -> vector<16x64xf32>
    %c1 = arith.constant 1 : index
    %c0_8 = arith.constant 0 : index
    %c0_9 = arith.constant 0 : index
    %23 = vector.load %arg3[%c1, %c0_8, %c0_9] : memref<3x32x64xf32, #tpu.memory_space<vmem>>, vector<1x32x64xf32>
    %24 = vector.shape_cast %23 : vector<1x32x64xf32> to vector<32x64xf32>
    %25 = arith.truncf %1 : vector<16x32xf32> to vector<16x32xbf16>
    %26 = arith.truncf %24 : vector<32x64xf32> to vector<32x64xbf16>
    %cst_10 = arith.constant dense<0.000000e+00> : vector<16x64xf32>
    %27 = tpu.matmul %25, %26, %cst_10 {dimension_numbers = #tpu.dot_dimension_numbers<[1], [0], [0], [1], [0, 0, 1, 1], [], []>} : vector<16x32xbf16>, vector<32x64xbf16>, vector<16x64xf32> -> vector<16x64xf32>
    %28 = arith.addf %22, %27 : vector<16x64xf32>
    %c2 = arith.constant 2 : index
    %c0_11 = arith.constant 0 : index
    %c0_12 = arith.constant 0 : index
    %29 = vector.load %arg3[%c2, %c0_11, %c0_12] : memref<3x32x64xf32, #tpu.memory_space<vmem>>, vector<1x32x64xf32>
    %30 = vector.shape_cast %29 : vector<1x32x64xf32> to vector<32x64xf32>
    %31 = arith.truncf %17 : vector<16x32xf32> to vector<16x32xbf16>
    %32 = arith.truncf %30 : vector<32x64xf32> to vector<32x64xbf16>
    %cst_13 = arith.constant dense<0.000000e+00> : vector<16x64xf32>
    %33 = tpu.matmul %31, %32, %cst_13 {dimension_numbers = #tpu.dot_dimension_numbers<[1], [0], [0], [1], [0, 0, 1, 1], [], []>} : vector<16x32xbf16>, vector<32x64xbf16>, vector<16x64xf32> -> vector<16x64xf32>
    %34 = arith.addf %28, %33 : vector<16x64xf32>
    %35 = vector.broadcast %11 : vector<1x64xf32> to vector<16x64xf32>
    %36 = arith.addf %34, %35 : vector<16x64xf32>
    %cst_14 = arith.constant 0.000000e+00 : f32
    %37 = vector.broadcast %cst_14 : f32 to vector<16x64xf32>
    %38 = arith.maximumf %36, %37 : vector<16x64xf32>
    %c0_15 = arith.constant 0 : index
    %c0_16 = arith.constant 0 : index
    %39 = vector.load %arg5[%c0_15, %c0_16] : memref<1x64xf32, #tpu.memory_space<vmem>>, vector<1x64xf32>
    %c0_17 = arith.constant 0 : index
    %c0_18 = arith.constant 0 : index
    %40 = vector.load %arg6[%c0_17, %c0_18] : memref<1x64xf32, #tpu.memory_space<vmem>>, vector<1x64xf32>
    %cst_19 = arith.constant dense<0.000000e+00> : vector<16xf32>
    %41 = vector.multi_reduction <add>, %38, %cst_19 [1] : vector<16x64xf32> to vector<16xf32>
    %42 = vector.shape_cast %41 : vector<16xf32> to vector<16x1xf32>
    %cst_20 = arith.constant 6.400000e+01 : f32
    %43 = vector.broadcast %cst_20 : f32 to vector<16x1xf32>
    %44 = arith.divf %42, %43 : vector<16x1xf32>
    %45 = vector.broadcast %44 : vector<16x1xf32> to vector<16x64xf32>
    %46 = arith.subf %38, %45 : vector<16x64xf32>
    %47 = arith.mulf %46, %46 : vector<16x64xf32>
    %cst_21 = arith.constant dense<0.000000e+00> : vector<16xf32>
    %48 = vector.multi_reduction <add>, %47, %cst_21 [1] : vector<16x64xf32> to vector<16xf32>
    %49 = vector.shape_cast %48 : vector<16xf32> to vector<16x1xf32>
    %cst_22 = arith.constant 6.400000e+01 : f32
    %50 = vector.broadcast %cst_22 : f32 to vector<16x1xf32>
    %51 = arith.divf %49, %50 : vector<16x1xf32>
    %52 = vector.broadcast %44 : vector<16x1xf32> to vector<16x64xf32>
    %53 = arith.subf %38, %52 : vector<16x64xf32>
    %cst_23 = arith.constant 9.99999974E-6 : f32
    %54 = vector.broadcast %cst_23 : f32 to vector<16x1xf32>
    %55 = arith.addf %51, %54 : vector<16x1xf32>
    %56 = math.rsqrt %55 : vector<16x1xf32>
    %57 = vector.broadcast %56 : vector<16x1xf32> to vector<16x64xf32>
    %58 = arith.mulf %53, %57 : vector<16x64xf32>
    %59 = vector.broadcast %39 : vector<1x64xf32> to vector<16x64xf32>
    %60 = arith.mulf %58, %59 : vector<16x64xf32>
    %61 = vector.broadcast %40 : vector<1x64xf32> to vector<16x64xf32>
    %62 = arith.addf %60, %61 : vector<16x64xf32>
    %c0_24 = arith.constant 0 : index
    %c0_25 = arith.constant 0 : index
    %63 = vector.load %arg8[%c0_24, %c0_25] : memref<1x64xf32, #tpu.memory_space<vmem>>, vector<1x64xf32>
    %c1_i32_26 = arith.constant 1 : i32
    %64 = tpu.dynamic_rotate %62 by %c1_i32_26 dim 0 : vector<16x64xf32>, i32 -> vector<16x64xf32>
    %65 = vector.broadcast %6 : vector<16x1xf32> to vector<16x64xf32>
    %66 = arith.mulf %64, %65 : vector<16x64xf32>
    %c15_i32_27 = arith.constant 15 : i32
    %67 = tpu.dynamic_rotate %62 by %c15_i32_27 dim 0 : vector<16x64xf32>, i32 -> vector<16x64xf32>
    %68 = vector.broadcast %10 : vector<16x1xf32> to vector<16x64xf32>
    %69 = arith.mulf %67, %68 : vector<16x64xf32>
    %c0_28 = arith.constant 0 : index
    %c0_29 = arith.constant 0 : index
    %c0_30 = arith.constant 0 : index
    %70 = vector.load %arg7[%c0_28, %c0_29, %c0_30] : memref<3x64x64xf32, #tpu.memory_space<vmem>>, vector<1x64x64xf32>
    %71 = vector.shape_cast %70 : vector<1x64x64xf32> to vector<64x64xf32>
    %72 = arith.truncf %66 : vector<16x64xf32> to vector<16x64xbf16>
    %73 = arith.truncf %71 : vector<64x64xf32> to vector<64x64xbf16>
    %cst_31 = arith.constant dense<0.000000e+00> : vector<16x64xf32>
    %74 = tpu.matmul %72, %73, %cst_31 {dimension_numbers = #tpu.dot_dimension_numbers<[1], [0], [0], [1], [0, 0, 1, 1], [], []>} : vector<16x64xbf16>, vector<64x64xbf16>, vector<16x64xf32> -> vector<16x64xf32>
    %c1_32 = arith.constant 1 : index
    %c0_33 = arith.constant 0 : index
    %c0_34 = arith.constant 0 : index
    %75 = vector.load %arg7[%c1_32, %c0_33, %c0_34] : memref<3x64x64xf32, #tpu.memory_space<vmem>>, vector<1x64x64xf32>
    %76 = vector.shape_cast %75 : vector<1x64x64xf32> to vector<64x64xf32>
    %77 = arith.truncf %62 : vector<16x64xf32> to vector<16x64xbf16>
    %78 = arith.truncf %76 : vector<64x64xf32> to vector<64x64xbf16>
    %cst_35 = arith.constant dense<0.000000e+00> : vector<16x64xf32>
    %79 = tpu.matmul %77, %78, %cst_35 {dimension_numbers = #tpu.dot_dimension_numbers<[1], [0], [0], [1], [0, 0, 1, 1], [], []>} : vector<16x64xbf16>, vector<64x64xbf16>, vector<16x64xf32> -> vector<16x64xf32>
    %80 = arith.addf %74, %79 : vector<16x64xf32>
    %c2_36 = arith.constant 2 : index
    %c0_37 = arith.constant 0 : index
    %c0_38 = arith.constant 0 : index
    %81 = vector.load %arg7[%c2_36, %c0_37, %c0_38] : memref<3x64x64xf32, #tpu.memory_space<vmem>>, vector<1x64x64xf32>
    %82 = vector.shape_cast %81 : vector<1x64x64xf32> to vector<64x64xf32>
    %83 = arith.truncf %69 : vector<16x64xf32> to vector<16x64xbf16>
    %84 = arith.truncf %82 : vector<64x64xf32> to vector<64x64xbf16>
    %cst_39 = arith.constant dense<0.000000e+00> : vector<16x64xf32>
    %85 = tpu.matmul %83, %84, %cst_39 {dimension_numbers = #tpu.dot_dimension_numbers<[1], [0], [0], [1], [0, 0, 1, 1], [], []>} : vector<16x64xbf16>, vector<64x64xbf16>, vector<16x64xf32> -> vector<16x64xf32>
    %86 = arith.addf %80, %85 : vector<16x64xf32>
    %87 = vector.broadcast %63 : vector<1x64xf32> to vector<16x64xf32>
    %88 = arith.addf %86, %87 : vector<16x64xf32>
    %cst_40 = arith.constant 0.000000e+00 : f32
    %89 = vector.broadcast %cst_40 : f32 to vector<16x64xf32>
    %90 = arith.maximumf %88, %89 : vector<16x64xf32>
    %c0_41 = arith.constant 0 : index
    %c0_42 = arith.constant 0 : index
    %91 = vector.load %arg9[%c0_41, %c0_42] : memref<1x64xf32, #tpu.memory_space<vmem>>, vector<1x64xf32>
    %c0_43 = arith.constant 0 : index
    %c0_44 = arith.constant 0 : index
    %92 = vector.load %arg10[%c0_43, %c0_44] : memref<1x64xf32, #tpu.memory_space<vmem>>, vector<1x64xf32>
    %cst_45 = arith.constant dense<0.000000e+00> : vector<16xf32>
    %93 = vector.multi_reduction <add>, %90, %cst_45 [1] : vector<16x64xf32> to vector<16xf32>
    %94 = vector.shape_cast %93 : vector<16xf32> to vector<16x1xf32>
    %cst_46 = arith.constant 6.400000e+01 : f32
    %95 = vector.broadcast %cst_46 : f32 to vector<16x1xf32>
    %96 = arith.divf %94, %95 : vector<16x1xf32>
    %97 = vector.broadcast %96 : vector<16x1xf32> to vector<16x64xf32>
    %98 = arith.subf %90, %97 : vector<16x64xf32>
    %99 = arith.mulf %98, %98 : vector<16x64xf32>
    %cst_47 = arith.constant dense<0.000000e+00> : vector<16xf32>
    %100 = vector.multi_reduction <add>, %99, %cst_47 [1] : vector<16x64xf32> to vector<16xf32>
    %101 = vector.shape_cast %100 : vector<16xf32> to vector<16x1xf32>
    %cst_48 = arith.constant 6.400000e+01 : f32
    %102 = vector.broadcast %cst_48 : f32 to vector<16x1xf32>
    %103 = arith.divf %101, %102 : vector<16x1xf32>
    %104 = vector.broadcast %96 : vector<16x1xf32> to vector<16x64xf32>
    %105 = arith.subf %90, %104 : vector<16x64xf32>
    %cst_49 = arith.constant 9.99999974E-6 : f32
    %106 = vector.broadcast %cst_49 : f32 to vector<16x1xf32>
    %107 = arith.addf %103, %106 : vector<16x1xf32>
    %108 = math.rsqrt %107 : vector<16x1xf32>
    %109 = vector.broadcast %108 : vector<16x1xf32> to vector<16x64xf32>
    %110 = arith.mulf %105, %109 : vector<16x64xf32>
    %111 = vector.broadcast %91 : vector<1x64xf32> to vector<16x64xf32>
    %112 = arith.mulf %110, %111 : vector<16x64xf32>
    %113 = vector.broadcast %92 : vector<1x64xf32> to vector<16x64xf32>
    %114 = arith.addf %112, %113 : vector<16x64xf32>
    %c0_50 = arith.constant 0 : index
    %c0_51 = arith.constant 0 : index
    %115 = vector.load %arg11[%c0_50, %c0_51] : memref<1x64xf32, #tpu.memory_space<vmem>>, vector<1x64xf32>
    %116 = arith.truncf %115 : vector<1x64xf32> to vector<1x64xbf16>
    %117 = arith.truncf %114 : vector<16x64xf32> to vector<16x64xbf16>
    %cst_52 = arith.constant dense<0.000000e+00> : vector<1x16xf32>
    %118 = tpu.matmul %116, %117, %cst_52 {dimension_numbers = #tpu.dot_dimension_numbers<[1], [1], [0], [0], [0, 0, 1, 0], [], []>} : vector<1x64xbf16>, vector<16x64xbf16>, vector<1x16xf32> -> vector<1x16xf32>
    %c0_53 = arith.constant 0 : index
    %c0_54 = arith.constant 0 : index
    %119 = vector.load %arg12[%c0_53, %c0_54] : memref<1x1xf32, #tpu.memory_space<vmem>>, vector<1x1xf32>
    %120 = vector.broadcast %119 : vector<1x1xf32> to vector<1x16xf32>
    %121 = arith.addf %118, %120 : vector<1x16xf32>
    %c0_55 = arith.constant 0 : index
    %c0_56 = arith.constant 0 : index
    %c0_57 = arith.constant 0 : index
    %122 = vector.load %arg2[%c0_55, %c0_56, %c0_57] : memref<1x1x16xf32, #tpu.memory_space<vmem>>, vector<1x1x16xf32>
    %123 = vector.shape_cast %122 : vector<1x1x16xf32> to vector<1x16xf32>
    %124 = arith.mulf %121, %123 : vector<1x16xf32>
    %c0_58 = arith.constant 0 : index
    %c0_59 = arith.constant 0 : index
    %c0_60 = arith.constant 0 : index
    %125 = vector.load %arg13[%c0_58, %c0_59, %c0_60] : memref<1x1x16xf32, #tpu.memory_space<vmem>>, vector<1x1x16xf32>
    %126 = vector.shape_cast %125 : vector<1x1x16xf32> to vector<1x16xf32>
    %127 = vector.shape_cast %124 : vector<1x16xf32> to vector<1x1x16xf32>
    tpu.vector_store %arg13[%c0_58, %c0_59, %c0_60], %127 {strides = array<i32>} : memref<1x1x16xf32, #tpu.memory_space<vmem>>, vector<1x1x16xf32>,
    return
  }
  func.func @transform_0(%arg0: i32) -> (i32, i32, i32) {
    %c0_i32 = arith.constant 0 : i32
    %c0_i32_0 = arith.constant 0 : i32
    %c0_i32_1 = arith.constant 0 : i32
    return %arg0, %c0_i32, %c0_i32_0 : i32, i32, i32
  }
  func.func @transform_1(%arg0: i32) -> (i32, i32, i32) {
    %c0_i32 = arith.constant 0 : i32
    %c0_i32_0 = arith.constant 0 : i32
    %c0_i32_1 = arith.constant 0 : i32
    return %arg0, %c0_i32, %c0_i32_0 : i32, i32, i32
  }
  func.func @transform_2(%arg0: i32) -> (i32, i32, i32) {
    %c0_i32 = arith.constant 0 : i32
    %c0_i32_0 = arith.constant 0 : i32
    %c0_i32_1 = arith.constant 0 : i32
    %c0_i32_2 = arith.constant 0 : i32
    return %c0_i32, %c0_i32_0, %c0_i32_1 : i32, i32, i32
  }
  func.func @transform_3(%arg0: i32) -> (i32, i32) {
    %c0_i32 = arith.constant 0 : i32
    %c0_i32_0 = arith.constant 0 : i32
    %c0_i32_1 = arith.constant 0 : i32
    return %c0_i32, %c0_i32_0 : i32, i32
  }
  func.func @transform_4(%arg0: i32) -> (i32, i32) {
    %c0_i32 = arith.constant 0 : i32
    %c0_i32_0 = arith.constant 0 : i32
    %c0_i32_1 = arith.constant 0 : i32
    return %c0_i32, %c0_i32_0 : i32, i32
  }
  func.func @transform_5(%arg0: i32) -> (i32, i32) {
    %c0_i32 = arith.constant 0 : i32
    %c0_i32_0 = arith.constant 0 : i32
    %c0_i32_1 = arith.constant 0 : i32
    return %c0_i32, %c0_i32_0 : i32, i32
  }
  func.func @transform_6(%arg0: i32) -> (i32, i32, i32) {
    %c0_i32 = arith.constant 0 : i32
    %c0_i32_0 = arith.constant 0 : i32
    %c0_i32_1 = arith.constant 0 : i32
    %c0_i32_2 = arith.constant 0 : i32
    return %c0_i32, %c0_i32_0, %c0_i32_1 : i32, i32, i32
  }
  func.func @transform_7(%arg0: i32) -> (i32, i32) {
    %c0_i32 = arith.constant 0 : i32
    %c0_i32_0 = arith.constant 0 : i32
    %c0_i32_1 = arith.constant 0 : i32
    return %c0_i32, %c0_i32_0 : i32, i32
  }
  func.func @transform_8(%arg0: i32) -> (i32, i32) {
    %c0_i32 = arith.constant 0 : i32
    %c0_i32_0 = arith.constant 0 : i32
    %c0_i32_1 = arith.constant 0 : i32
    return %c0_i32, %c0_i32_0 : i32, i32
  }
  func.func @transform_9(%arg0: i32) -> (i32, i32) {
    %c0_i32 = arith.constant 0 : i32
    %c0_i32_0 = arith.constant 0 : i32
    %c0_i32_1 = arith.constant 0 : i32
    return %c0_i32, %c0_i32_0 : i32, i32
  }
  func.func @transform_10(%arg0: i32) -> (i32, i32) {
    %c0_i32 = arith.constant 0 : i32
    %c0_i32_0 = arith.constant 0 : i32
    %c0_i32_1 = arith.constant 0 : i32
    return %c0_i32, %c0_i32_0 : i32, i32
  }
  func.func @transform_11(%arg0: i32) -> (i32, i32) {
    %c0_i32 = arith.constant 0 : i32
    %c0_i32_0 = arith.constant 0 : i32
    %c0_i32_1 = arith.constant 0 : i32
    return %c0_i32, %c0_i32_0 : i32, i32
  }
  func.func @transform_12(%arg0: i32) -> (i32, i32, i32) {
    %c0_i32 = arith.constant 0 : i32
    %c0_i32_0 = arith.constant 0 : i32
    %c0_i32_1 = arith.constant 0 : i32
    return %arg0, %c0_i32, %c0_i32_0 : i32, i32, i32
  }
}

module attributes {stable_mosaic.version = 11 : i64} {
  func.func @_var_pred_kernel(%arg0: i32, %arg1: memref<1x8x32xf32, #tpu.memory_space<vmem>>, %arg2: memref<1x1x8xf32, #tpu.memory_space<vmem>>, %arg3: memref<3x32x64xf32, #tpu.memory_space<vmem>>, %arg4: memref<1x64xf32, #tpu.memory_space<vmem>>, %arg5: memref<1x64xf32, #tpu.memory_space<vmem>>, %arg6: memref<1x64xf32, #tpu.memory_space<vmem>>, %arg7: memref<3x64x64xf32, #tpu.memory_space<vmem>>, %arg8: memref<1x64xf32, #tpu.memory_space<vmem>>, %arg9: memref<1x64xf32, #tpu.memory_space<vmem>>, %arg10: memref<1x64xf32, #tpu.memory_space<vmem>>, %arg11: memref<1x64xf32, #tpu.memory_space<vmem>>, %arg12: memref<1x1xf32, #tpu.memory_space<vmem>>, %arg13: memref<1x1x8xf32, #tpu.memory_space<vmem>>) attributes {dimension_semantics = [#tpu.dimension_semantics<parallel>], iteration_bounds = array<i64: 2>, scalar_prefetch = 0 : i64, scratch_operands = 0 : i64, tpu.core_type = #tpu.core_type<tc>, window_params = [{transform_indices = @transform_0, window_bounds = array<i64: 1, 8, 32>}, {transform_indices = @transform_1, window_bounds = array<i64: 1, 1, 8>}, {pipeline_mode = #tpu.pipeline_mode<synchronous>, transform_indices = @transform_2, window_bounds = array<i64: 3, 32, 64>}, {pipeline_mode = #tpu.pipeline_mode<synchronous>, transform_indices = @transform_3, window_bounds = array<i64: 1, 64>}, {pipeline_mode = #tpu.pipeline_mode<synchronous>, transform_indices = @transform_4, window_bounds = array<i64: 1, 64>}, {pipeline_mode = #tpu.pipeline_mode<synchronous>, transform_indices = @transform_5, window_bounds = array<i64: 1, 64>}, {pipeline_mode = #tpu.pipeline_mode<synchronous>, transform_indices = @transform_6, window_bounds = array<i64: 3, 64, 64>}, {pipeline_mode = #tpu.pipeline_mode<synchronous>, transform_indices = @transform_7, window_bounds = array<i64: 1, 64>}, {pipeline_mode = #tpu.pipeline_mode<synchronous>, transform_indices = @transform_8, window_bounds = array<i64: 1, 64>}, {pipeline_mode = #tpu.pipeline_mode<synchronous>, transform_indices = @transform_9, window_bounds = array<i64: 1, 64>}, {pipeline_mode = #tpu.pipeline_mode<synchronous>, transform_indices = @transform_10, window_bounds = array<i64: 1, 64>}, {pipeline_mode = #tpu.pipeline_mode<synchronous>, transform_indices = @transform_11, window_bounds = array<i64: 1, 1>}, {transform_indices = @transform_12, window_bounds = array<i64: 1, 1, 8>}]} {
    %c0 = arith.constant 0 : index
    %c0_0 = arith.constant 0 : index
    %c0_1 = arith.constant 0 : index
    %0 = vector.load %arg1[%c0, %c0_0, %c0_1] : memref<1x8x32xf32, #tpu.memory_space<vmem>>, vector<1x8x32xf32>
    %1 = vector.shape_cast %0 : vector<1x8x32xf32> to vector<8x32xf32>
    %2 = tpu.iota {dimensions = array<i32: 0>} : vector<8x1xi32>
    %c0_i32 = arith.constant 0 : i32
    %3 = vector.broadcast %c0_i32 : i32 to vector<8x1xi32>
    %4 = arith.cmpi ne, %2, %3 : vector<8x1xi32>
    %5 = arith.extui %4 : vector<8x1xi1> to vector<8x1xi32>
    %6 = arith.sitofp %5 : vector<8x1xi32> to vector<8x1xf32>
    %c7_i32 = arith.constant 7 : i32
    %7 = vector.broadcast %c7_i32 : i32 to vector<8x1xi32>
    %8 = arith.cmpi ne, %2, %7 : vector<8x1xi32>
    %9 = arith.extui %8 : vector<8x1xi1> to vector<8x1xi32>
    %10 = arith.sitofp %9 : vector<8x1xi32> to vector<8x1xf32>
    %c0_2 = arith.constant 0 : index
    %c0_3 = arith.constant 0 : index
    %11 = vector.load %arg4[%c0_2, %c0_3] : memref<1x64xf32, #tpu.memory_space<vmem>>, vector<1x64xf32>
    %c1_i32 = arith.constant 1 : i32
    %12 = tpu.dynamic_rotate %1 by %c1_i32 dim 0 : vector<8x32xf32>, i32 -> vector<8x32xf32>
    %13 = vector.broadcast %6 : vector<8x1xf32> to vector<8x32xf32>
    %14 = arith.mulf %12, %13 : vector<8x32xf32>
    %c7_i32_4 = arith.constant 7 : i32
    %15 = tpu.dynamic_rotate %1 by %c7_i32_4 dim 0 : vector<8x32xf32>, i32 -> vector<8x32xf32>
    %16 = vector.broadcast %10 : vector<8x1xf32> to vector<8x32xf32>
    %17 = arith.mulf %15, %16 : vector<8x32xf32>
    %c0_5 = arith.constant 0 : index
    %c0_6 = arith.constant 0 : index
    %c0_7 = arith.constant 0 : index
    %18 = vector.load %arg3[%c0_5, %c0_6, %c0_7] : memref<3x32x64xf32, #tpu.memory_space<vmem>>, vector<1x32x64xf32>
    %19 = vector.shape_cast %18 : vector<1x32x64xf32> to vector<32x64xf32>
    %20 = arith.truncf %14 : vector<8x32xf32> to vector<8x32xbf16>
    %21 = arith.truncf %19 : vector<32x64xf32> to vector<32x64xbf16>
    %cst = arith.constant dense<0.000000e+00> : vector<8x64xf32>
    %22 = tpu.matmul %20, %21, %cst {dimension_numbers = #tpu.dot_dimension_numbers<[1], [0], [0], [1], [0, 0, 1, 1], [], []>} : vector<8x32xbf16>, vector<32x64xbf16>, vector<8x64xf32> -> vector<8x64xf32>
    %c1 = arith.constant 1 : index
    %c0_8 = arith.constant 0 : index
    %c0_9 = arith.constant 0 : index
    %23 = vector.load %arg3[%c1, %c0_8, %c0_9] : memref<3x32x64xf32, #tpu.memory_space<vmem>>, vector<1x32x64xf32>
    %24 = vector.shape_cast %23 : vector<1x32x64xf32> to vector<32x64xf32>
    %25 = arith.truncf %1 : vector<8x32xf32> to vector<8x32xbf16>
    %26 = arith.truncf %24 : vector<32x64xf32> to vector<32x64xbf16>
    %cst_10 = arith.constant dense<0.000000e+00> : vector<8x64xf32>
    %27 = tpu.matmul %25, %26, %cst_10 {dimension_numbers = #tpu.dot_dimension_numbers<[1], [0], [0], [1], [0, 0, 1, 1], [], []>} : vector<8x32xbf16>, vector<32x64xbf16>, vector<8x64xf32> -> vector<8x64xf32>
    %28 = arith.addf %22, %27 : vector<8x64xf32>
    %c2 = arith.constant 2 : index
    %c0_11 = arith.constant 0 : index
    %c0_12 = arith.constant 0 : index
    %29 = vector.load %arg3[%c2, %c0_11, %c0_12] : memref<3x32x64xf32, #tpu.memory_space<vmem>>, vector<1x32x64xf32>
    %30 = vector.shape_cast %29 : vector<1x32x64xf32> to vector<32x64xf32>
    %31 = arith.truncf %17 : vector<8x32xf32> to vector<8x32xbf16>
    %32 = arith.truncf %30 : vector<32x64xf32> to vector<32x64xbf16>
    %cst_13 = arith.constant dense<0.000000e+00> : vector<8x64xf32>
    %33 = tpu.matmul %31, %32, %cst_13 {dimension_numbers = #tpu.dot_dimension_numbers<[1], [0], [0], [1], [0, 0, 1, 1], [], []>} : vector<8x32xbf16>, vector<32x64xbf16>, vector<8x64xf32> -> vector<8x64xf32>
    %34 = arith.addf %28, %33 : vector<8x64xf32>
    %35 = vector.broadcast %11 : vector<1x64xf32> to vector<8x64xf32>
    %36 = arith.addf %34, %35 : vector<8x64xf32>
    %cst_14 = arith.constant 0.000000e+00 : f32
    %37 = vector.broadcast %cst_14 : f32 to vector<8x64xf32>
    %38 = arith.maximumf %36, %37 : vector<8x64xf32>
    %c0_15 = arith.constant 0 : index
    %c0_16 = arith.constant 0 : index
    %39 = vector.load %arg5[%c0_15, %c0_16] : memref<1x64xf32, #tpu.memory_space<vmem>>, vector<1x64xf32>
    %c0_17 = arith.constant 0 : index
    %c0_18 = arith.constant 0 : index
    %40 = vector.load %arg6[%c0_17, %c0_18] : memref<1x64xf32, #tpu.memory_space<vmem>>, vector<1x64xf32>
    %cst_19 = arith.constant dense<0.000000e+00> : vector<8xf32>
    %41 = vector.multi_reduction <add>, %38, %cst_19 [1] : vector<8x64xf32> to vector<8xf32>
    %42 = vector.shape_cast %41 : vector<8xf32> to vector<8x1xf32>
    %cst_20 = arith.constant 6.400000e+01 : f32
    %43 = vector.broadcast %cst_20 : f32 to vector<8x1xf32>
    %44 = arith.divf %42, %43 : vector<8x1xf32>
    %45 = vector.broadcast %44 : vector<8x1xf32> to vector<8x64xf32>
    %46 = arith.subf %38, %45 : vector<8x64xf32>
    %47 = arith.mulf %46, %46 : vector<8x64xf32>
    %cst_21 = arith.constant dense<0.000000e+00> : vector<8xf32>
    %48 = vector.multi_reduction <add>, %47, %cst_21 [1] : vector<8x64xf32> to vector<8xf32>
    %49 = vector.shape_cast %48 : vector<8xf32> to vector<8x1xf32>
    %cst_22 = arith.constant 6.400000e+01 : f32
    %50 = vector.broadcast %cst_22 : f32 to vector<8x1xf32>
    %51 = arith.divf %49, %50 : vector<8x1xf32>
    %52 = vector.broadcast %44 : vector<8x1xf32> to vector<8x64xf32>
    %53 = arith.subf %38, %52 : vector<8x64xf32>
    %cst_23 = arith.constant 9.99999974E-6 : f32
    %54 = vector.broadcast %cst_23 : f32 to vector<8x1xf32>
    %55 = arith.addf %51, %54 : vector<8x1xf32>
    %56 = math.rsqrt %55 : vector<8x1xf32>
    %57 = vector.broadcast %56 : vector<8x1xf32> to vector<8x64xf32>
    %58 = arith.mulf %53, %57 : vector<8x64xf32>
    %59 = vector.broadcast %39 : vector<1x64xf32> to vector<8x64xf32>
    %60 = arith.mulf %58, %59 : vector<8x64xf32>
    %61 = vector.broadcast %40 : vector<1x64xf32> to vector<8x64xf32>
    %62 = arith.addf %60, %61 : vector<8x64xf32>
    %c0_24 = arith.constant 0 : index
    %c0_25 = arith.constant 0 : index
    %63 = vector.load %arg8[%c0_24, %c0_25] : memref<1x64xf32, #tpu.memory_space<vmem>>, vector<1x64xf32>
    %c1_i32_26 = arith.constant 1 : i32
    %64 = tpu.dynamic_rotate %62 by %c1_i32_26 dim 0 : vector<8x64xf32>, i32 -> vector<8x64xf32>
    %65 = vector.broadcast %6 : vector<8x1xf32> to vector<8x64xf32>
    %66 = arith.mulf %64, %65 : vector<8x64xf32>
    %c7_i32_27 = arith.constant 7 : i32
    %67 = tpu.dynamic_rotate %62 by %c7_i32_27 dim 0 : vector<8x64xf32>, i32 -> vector<8x64xf32>
    %68 = vector.broadcast %10 : vector<8x1xf32> to vector<8x64xf32>
    %69 = arith.mulf %67, %68 : vector<8x64xf32>
    %c0_28 = arith.constant 0 : index
    %c0_29 = arith.constant 0 : index
    %c0_30 = arith.constant 0 : index
    %70 = vector.load %arg7[%c0_28, %c0_29, %c0_30] : memref<3x64x64xf32, #tpu.memory_space<vmem>>, vector<1x64x64xf32>
    %71 = vector.shape_cast %70 : vector<1x64x64xf32> to vector<64x64xf32>
    %72 = arith.truncf %66 : vector<8x64xf32> to vector<8x64xbf16>
    %73 = arith.truncf %71 : vector<64x64xf32> to vector<64x64xbf16>
    %cst_31 = arith.constant dense<0.000000e+00> : vector<8x64xf32>
    %74 = tpu.matmul %72, %73, %cst_31 {dimension_numbers = #tpu.dot_dimension_numbers<[1], [0], [0], [1], [0, 0, 1, 1], [], []>} : vector<8x64xbf16>, vector<64x64xbf16>, vector<8x64xf32> -> vector<8x64xf32>
    %c1_32 = arith.constant 1 : index
    %c0_33 = arith.constant 0 : index
    %c0_34 = arith.constant 0 : index
    %75 = vector.load %arg7[%c1_32, %c0_33, %c0_34] : memref<3x64x64xf32, #tpu.memory_space<vmem>>, vector<1x64x64xf32>
    %76 = vector.shape_cast %75 : vector<1x64x64xf32> to vector<64x64xf32>
    %77 = arith.truncf %62 : vector<8x64xf32> to vector<8x64xbf16>
    %78 = arith.truncf %76 : vector<64x64xf32> to vector<64x64xbf16>
    %cst_35 = arith.constant dense<0.000000e+00> : vector<8x64xf32>
    %79 = tpu.matmul %77, %78, %cst_35 {dimension_numbers = #tpu.dot_dimension_numbers<[1], [0], [0], [1], [0, 0, 1, 1], [], []>} : vector<8x64xbf16>, vector<64x64xbf16>, vector<8x64xf32> -> vector<8x64xf32>
    %80 = arith.addf %74, %79 : vector<8x64xf32>
    %c2_36 = arith.constant 2 : index
    %c0_37 = arith.constant 0 : index
    %c0_38 = arith.constant 0 : index
    %81 = vector.load %arg7[%c2_36, %c0_37, %c0_38] : memref<3x64x64xf32, #tpu.memory_space<vmem>>, vector<1x64x64xf32>
    %82 = vector.shape_cast %81 : vector<1x64x64xf32> to vector<64x64xf32>
    %83 = arith.truncf %69 : vector<8x64xf32> to vector<8x64xbf16>
    %84 = arith.truncf %82 : vector<64x64xf32> to vector<64x64xbf16>
    %cst_39 = arith.constant dense<0.000000e+00> : vector<8x64xf32>
    %85 = tpu.matmul %83, %84, %cst_39 {dimension_numbers = #tpu.dot_dimension_numbers<[1], [0], [0], [1], [0, 0, 1, 1], [], []>} : vector<8x64xbf16>, vector<64x64xbf16>, vector<8x64xf32> -> vector<8x64xf32>
    %86 = arith.addf %80, %85 : vector<8x64xf32>
    %87 = vector.broadcast %63 : vector<1x64xf32> to vector<8x64xf32>
    %88 = arith.addf %86, %87 : vector<8x64xf32>
    %cst_40 = arith.constant 0.000000e+00 : f32
    %89 = vector.broadcast %cst_40 : f32 to vector<8x64xf32>
    %90 = arith.maximumf %88, %89 : vector<8x64xf32>
    %c0_41 = arith.constant 0 : index
    %c0_42 = arith.constant 0 : index
    %91 = vector.load %arg9[%c0_41, %c0_42] : memref<1x64xf32, #tpu.memory_space<vmem>>, vector<1x64xf32>
    %c0_43 = arith.constant 0 : index
    %c0_44 = arith.constant 0 : index
    %92 = vector.load %arg10[%c0_43, %c0_44] : memref<1x64xf32, #tpu.memory_space<vmem>>, vector<1x64xf32>
    %cst_45 = arith.constant dense<0.000000e+00> : vector<8xf32>
    %93 = vector.multi_reduction <add>, %90, %cst_45 [1] : vector<8x64xf32> to vector<8xf32>
    %94 = vector.shape_cast %93 : vector<8xf32> to vector<8x1xf32>
    %cst_46 = arith.constant 6.400000e+01 : f32
    %95 = vector.broadcast %cst_46 : f32 to vector<8x1xf32>
    %96 = arith.divf %94, %95 : vector<8x1xf32>
    %97 = vector.broadcast %96 : vector<8x1xf32> to vector<8x64xf32>
    %98 = arith.subf %90, %97 : vector<8x64xf32>
    %99 = arith.mulf %98, %98 : vector<8x64xf32>
    %cst_47 = arith.constant dense<0.000000e+00> : vector<8xf32>
    %100 = vector.multi_reduction <add>, %99, %cst_47 [1] : vector<8x64xf32> to vector<8xf32>
    %101 = vector.shape_cast %100 : vector<8xf32> to vector<8x1xf32>
    %cst_48 = arith.constant 6.400000e+01 : f32
    %102 = vector.broadcast %cst_48 : f32 to vector<8x1xf32>
    %103 = arith.divf %101, %102 : vector<8x1xf32>
    %104 = vector.broadcast %96 : vector<8x1xf32> to vector<8x64xf32>
    %105 = arith.subf %90, %104 : vector<8x64xf32>
    %cst_49 = arith.constant 9.99999974E-6 : f32
    %106 = vector.broadcast %cst_49 : f32 to vector<8x1xf32>
    %107 = arith.addf %103, %106 : vector<8x1xf32>
    %108 = math.rsqrt %107 : vector<8x1xf32>
    %109 = vector.broadcast %108 : vector<8x1xf32> to vector<8x64xf32>
    %110 = arith.mulf %105, %109 : vector<8x64xf32>
    %111 = vector.broadcast %91 : vector<1x64xf32> to vector<8x64xf32>
    %112 = arith.mulf %110, %111 : vector<8x64xf32>
    %113 = vector.broadcast %92 : vector<1x64xf32> to vector<8x64xf32>
    %114 = arith.addf %112, %113 : vector<8x64xf32>
    %c0_50 = arith.constant 0 : index
    %c0_51 = arith.constant 0 : index
    %115 = vector.load %arg11[%c0_50, %c0_51] : memref<1x64xf32, #tpu.memory_space<vmem>>, vector<1x64xf32>
    %116 = arith.truncf %115 : vector<1x64xf32> to vector<1x64xbf16>
    %117 = arith.truncf %114 : vector<8x64xf32> to vector<8x64xbf16>
    %cst_52 = arith.constant dense<0.000000e+00> : vector<1x8xf32>
    %118 = tpu.matmul %116, %117, %cst_52 {dimension_numbers = #tpu.dot_dimension_numbers<[1], [1], [0], [0], [0, 0, 1, 0], [], []>} : vector<1x64xbf16>, vector<8x64xbf16>, vector<1x8xf32> -> vector<1x8xf32>
    %c0_53 = arith.constant 0 : index
    %c0_54 = arith.constant 0 : index
    %119 = vector.load %arg12[%c0_53, %c0_54] : memref<1x1xf32, #tpu.memory_space<vmem>>, vector<1x1xf32>
    %120 = vector.broadcast %119 : vector<1x1xf32> to vector<1x8xf32>
    %121 = arith.addf %118, %120 : vector<1x8xf32>
    %c0_55 = arith.constant 0 : index
    %c0_56 = arith.constant 0 : index
    %c0_57 = arith.constant 0 : index
    %122 = vector.load %arg2[%c0_55, %c0_56, %c0_57] : memref<1x1x8xf32, #tpu.memory_space<vmem>>, vector<1x1x8xf32>
    %123 = vector.shape_cast %122 : vector<1x1x8xf32> to vector<1x8xf32>
    %124 = arith.mulf %121, %123 : vector<1x8xf32>
    %c0_58 = arith.constant 0 : index
    %c0_59 = arith.constant 0 : index
    %c0_60 = arith.constant 0 : index
    %125 = vector.load %arg13[%c0_58, %c0_59, %c0_60] : memref<1x1x8xf32, #tpu.memory_space<vmem>>, vector<1x1x8xf32>
    %126 = vector.shape_cast %125 : vector<1x1x8xf32> to vector<1x8xf32>
    %127 = vector.shape_cast %124 : vector<1x8xf32> to vector<1x1x8xf32>
    tpu.vector_store %arg13[%c0_58, %c0_59, %c0_60], %127 {strides = array<i32>} : memref<1x1x8xf32, #tpu.memory_space<vmem>>, vector<1x1x8xf32>,
    return
  }
  func.func @transform_0(%arg0: i32) -> (i32, i32, i32) {
    %c0_i32 = arith.constant 0 : i32
    %c0_i32_0 = arith.constant 0 : i32
    %c0_i32_1 = arith.constant 0 : i32
    return %arg0, %c0_i32, %c0_i32_0 : i32, i32, i32
  }
  func.func @transform_1(%arg0: i32) -> (i32, i32, i32) {
    %c0_i32 = arith.constant 0 : i32
    %c0_i32_0 = arith.constant 0 : i32
    %c0_i32_1 = arith.constant 0 : i32
    return %arg0, %c0_i32, %c0_i32_0 : i32, i32, i32
  }
  func.func @transform_2(%arg0: i32) -> (i32, i32, i32) {
    %c0_i32 = arith.constant 0 : i32
    %c0_i32_0 = arith.constant 0 : i32
    %c0_i32_1 = arith.constant 0 : i32
    %c0_i32_2 = arith.constant 0 : i32
    return %c0_i32, %c0_i32_0, %c0_i32_1 : i32, i32, i32
  }
  func.func @transform_3(%arg0: i32) -> (i32, i32) {
    %c0_i32 = arith.constant 0 : i32
    %c0_i32_0 = arith.constant 0 : i32
    %c0_i32_1 = arith.constant 0 : i32
    return %c0_i32, %c0_i32_0 : i32, i32
  }
  func.func @transform_4(%arg0: i32) -> (i32, i32) {
    %c0_i32 = arith.constant 0 : i32
    %c0_i32_0 = arith.constant 0 : i32
    %c0_i32_1 = arith.constant 0 : i32
    return %c0_i32, %c0_i32_0 : i32, i32
  }
  func.func @transform_5(%arg0: i32) -> (i32, i32) {
    %c0_i32 = arith.constant 0 : i32
    %c0_i32_0 = arith.constant 0 : i32
    %c0_i32_1 = arith.constant 0 : i32
    return %c0_i32, %c0_i32_0 : i32, i32
  }
  func.func @transform_6(%arg0: i32) -> (i32, i32, i32) {
    %c0_i32 = arith.constant 0 : i32
    %c0_i32_0 = arith.constant 0 : i32
    %c0_i32_1 = arith.constant 0 : i32
    %c0_i32_2 = arith.constant 0 : i32
    return %c0_i32, %c0_i32_0, %c0_i32_1 : i32, i32, i32
  }
  func.func @transform_7(%arg0: i32) -> (i32, i32) {
    %c0_i32 = arith.constant 0 : i32
    %c0_i32_0 = arith.constant 0 : i32
    %c0_i32_1 = arith.constant 0 : i32
    return %c0_i32, %c0_i32_0 : i32, i32
  }
  func.func @transform_8(%arg0: i32) -> (i32, i32) {
    %c0_i32 = arith.constant 0 : i32
    %c0_i32_0 = arith.constant 0 : i32
    %c0_i32_1 = arith.constant 0 : i32
    return %c0_i32, %c0_i32_0 : i32, i32
  }
  func.func @transform_9(%arg0: i32) -> (i32, i32) {
    %c0_i32 = arith.constant 0 : i32
    %c0_i32_0 = arith.constant 0 : i32
    %c0_i32_1 = arith.constant 0 : i32
    return %c0_i32, %c0_i32_0 : i32, i32
  }
  func.func @transform_10(%arg0: i32) -> (i32, i32) {
    %c0_i32 = arith.constant 0 : i32
    %c0_i32_0 = arith.constant 0 : i32
    %c0_i32_1 = arith.constant 0 : i32
    return %c0_i32, %c0_i32_0 : i32, i32
  }
  func.func @transform_11(%arg0: i32) -> (i32, i32) {
    %c0_i32 = arith.constant 0 : i32
    %c0_i32_0 = arith.constant 0 : i32
    %c0_i32_1 = arith.constant 0 : i32
    return %c0_i32, %c0_i32_0 : i32, i32
  }
  func.func @transform_12(%arg0: i32) -> (i32, i32, i32) {
    %c0_i32 = arith.constant 0 : i32
    %c0_i32_0 = arith.constant 0 : i32
    %c0_i32_1 = arith.constant 0 : i32
    return %arg0, %c0_i32, %c0_i32_0 : i32, i32, i32
  }
}

</mosaic_0001>

<llo_original>
// kernel: fastspeech2_forward.5
$region0: #{fastspeech2_forward.5}
  #allocation0 [shape = 'u32[]', space=smem, size = 0x4, offset = 0x4, fixed_abs, tag = 'smem constant byte address 0x4 - core index']
  #allocation1 [shape = 'u32[144,128]{1,0:T(1,128)}', space=vmem, size = 0x12000, scoped, tag = 'internal scratch']
  %s0 = inlined_call_operand.vmem [shape: f32[2,8,32], index: 0, kind: input, shape index: {}]
  %s1 = inlined_call_operand.vmem [shape: f32[2,1,8], index: 1, kind: input, shape index: {}]
  %s2 = inlined_call_operand.vmem [shape: f32[2,8,1], index: 2, kind: input, shape index: {}]
  %s3 = inlined_call_operand.vmem [shape: f32[32,96], index: 3, kind: input, shape index: {}]
  %s4 = inlined_call_operand.vmem [shape: f32[1,96], index: 4, kind: input, shape index: {}]
  %s5 = inlined_call_operand.vmem [shape: f32[32,32], index: 5, kind: input, shape index: {}]
  %s6 = inlined_call_operand.vmem [shape: f32[1,32], index: 6, kind: input, shape index: {}]
  %s7 = inlined_call_operand.vmem [shape: f32[1,32], index: 7, kind: input, shape index: {}]
  %s8 = inlined_call_operand.vmem [shape: f32[1,32], index: 8, kind: input, shape index: {}]
  %s9 = inlined_call_operand.vmem [shape: f32[3,32,64], index: 9, kind: input, shape index: {}]
  %s10 = inlined_call_operand.vmem [shape: f32[1,64], index: 10, kind: input, shape index: {}]
  %s11 = inlined_call_operand.vmem [shape: f32[3,64,32], index: 11, kind: input, shape index: {}]
  %s12 = inlined_call_operand.vmem [shape: f32[1,32], index: 12, kind: input, shape index: {}]
  %s13 = inlined_call_operand.vmem [shape: f32[1,32], index: 13, kind: input, shape index: {}]
  %s14 = inlined_call_operand.vmem [shape: f32[1,32], index: 14, kind: input, shape index: {}]
  %s15 = inlined_call_operand.vmem [shape: f32[2,8,32], index: 15, kind: output, shape index: {}]
  %s16 = sld [smem:[#allocation0]]
  $region93: #{fastspeech2_forward.5} parent=0
    _
  %s18 = ssub.s32 1, %s16
  %s19 = scalar_select 0, %s18, %s16
  loop: start=0, step=1, limit=4
  $region2: #{fastspeech2_forward.5} parent=0 // loop_pre_header
    _
  $region3: #{fastspeech2_forward.5} parent=0 // loop_header
    %s21 = sphi 0, %s25
    %p22 = scmp.ge.s32.totalorder %s21, 4
    %s31 = sphi 0, %s33
    %s34 = sphi 0, %s31
    %s35 = sphi 0, %s34
    %s51 = sphi 0, %s35
    %s57 = sphi 0, %s59
    %s60 = sphi 0, %s57
    %s61 = sphi 0, %s60
    %s77 = sphi 0, %s61
    %s83 = sphi 0, %s85
    %s86 = sphi 0, %s83
    %s87 = sphi 0, %s86
    %s103 = sphi 0, %s87
    %s107 = sphi 0, %s107
    %s109 = sphi 0, %s107
    %s110 = sphi 0, %s109
    %s124 = sphi 0, %s110
    %s128 = sphi 0, %s128
    %s130 = sphi 0, %s128
    %s131 = sphi 0, %s130
    %s145 = sphi 0, %s131
    %s149 = sphi 0, %s149
    %s151 = sphi 0, %s149
    %s152 = sphi 0, %s151
    %s166 = sphi 0, %s152
    %s170 = sphi 0, %s170
    %s172 = sphi 0, %s170
    %s173 = sphi 0, %s172
    %s187 = sphi 0, %s173
    %s191 = sphi 0, %s191
    %s193 = sphi 0, %s191
    %s194 = sphi 0, %s193
    %s208 = sphi 0, %s194
    %s212 = sphi 0, %s212
    %s214 = sphi 0, %s212
    %s215 = sphi 0, %s214
    %s229 = sphi 0, %s215
    %s233 = sphi 0, %s233
    %s235 = sphi 0, %s233
    %s236 = sphi 0, %s235
    %s250 = sphi 0, %s236
    %s254 = sphi 0, %s254
    %s256 = sphi 0, %s254
    %s257 = sphi 0, %s256
    %s271 = sphi 0, %s257
    %s275 = sphi 0, %s275
    %s277 = sphi 0, %s275
    %s278 = sphi 0, %s277
    %s292 = sphi 0, %s278
    %s296 = sphi 0, %s296
    %s298 = sphi 0, %s296
    %s299 = sphi 0, %s298
    %s313 = sphi 0, %s299
    %s317 = sphi 0, %s317
    %s319 = sphi 0, %s317
    %s320 = sphi 0, %s319
    %s334 = sphi 0, %s320
    %s338 = sphi 0, %s338
    %s340 = sphi 0, %s338
    %s341 = sphi 0, %s340
    %s355 = sphi 0, %s341
    %s361 = sphi 0, %s363
    %s364 = sphi 0, %s361
    %s365 = sphi 0, %s364
    %s381 = sphi 0, %s365
  $region4: #{fastspeech2_forward.5} parent=0 // loop_header_branch
    %24 = sbr.rel (%p22) target = $region8
  $region5: #{fastspeech2_forward.5} parent=0 // loop_body
    %s26 = ssub.s32 %s21, 1
    %s27 = ssub.s32 %s21, 2
    %s28 = sadd.s32 %s21, 1
    %s29 = ssub.s32 %s21, %s28
    %p30 = scmp.eq.s32.totalorder %s29, 0
    %s32 = sadd.s32 %s31, 1
    %s33 = scalar_select %p30, %s31, %s32
    %p36 = pneg %p30
    %p37 = scmp.eq.s32.totalorder %s21, 1
    %p38 = por %p36, %p37
    %p39 = scmp.ne.s32.totalorder %s31, %s34
    %p40 = scmp.eq.s32.totalorder %s21, 0
    %p41 = por %p39, %p40
    %p42 = scmp.ne.s32.totalorder %s31, %s34
    %p43 = scmp.eq.s32.totalorder %s26, 1
    %p44 = por %p42, %p43
    %p45 = scmp.ne.s32.totalorder %s34, %s35
    %p46 = scmp.eq.s32.totalorder %s26, 0
    %p47 = por %p45, %p46
    %p48 = scmp.ne.s32.totalorder %s34, %s35
    %p49 = scmp.eq.s32.totalorder %s27, 1
    %p50 = por %p48, %p49
    %p52 = scmp.ne.s32.totalorder %s35, %s51
    %p53 = scmp.eq.s32.totalorder %s27, 0
    %p54 = por %p52, %p53
    %s55 = ssub.s32 %s21, %s28
    %p56 = scmp.eq.s32.totalorder %s55, 0
    %s58 = sadd.s32 %s57, 1
    %s59 = scalar_select %p56, %s57, %s58
    %p62 = pneg %p56
    %p63 = scmp.eq.s32.totalorder %s21, 1
    %p64 = por %p62, %p63
    %p65 = scmp.ne.s32.totalorder %s57, %s60
    %p66 = scmp.eq.s32.totalorder %s21, 0
    %p67 = por %p65, %p66
    %p68 = scmp.ne.s32.totalorder %s57, %s60
    %p69 = scmp.eq.s32.totalorder %s26, 1
    %p70 = por %p68, %p69
    %p71 = scmp.ne.s32.totalorder %s60, %s61
    %p72 = scmp.eq.s32.totalorder %s26, 0
    %p73 = por %p71, %p72
    %p74 = scmp.ne.s32.totalorder %s60, %s61
    %p75 = scmp.eq.s32.totalorder %s27, 1
    %p76 = por %p74, %p75
    %p78 = scmp.ne.s32.totalorder %s61, %s77
    %p79 = scmp.eq.s32.totalorder %s27, 0
    %p80 = por %p78, %p79
    %s81 = ssub.s32 %s21, %s28
    %p82 = scmp.eq.s32.totalorder %s81, 0
    %s84 = sadd.s32 %s83, 1
    %s85 = scalar_select %p82, %s83, %s84
    %p88 = pneg %p82
    %p89 = scmp.eq.s32.totalorder %s21, 1
    %p90 = por %p88, %p89
    %p91 = scmp.ne.s32.totalorder %s83, %s86
    %p92 = scmp.eq.s32.totalorder %s21, 0
    %p93 = por %p91, %p92
    %p94 = scmp.ne.s32.totalorder %s83, %s86
    %p95 = scmp.eq.s32.totalorder %s26, 1
    %p96 = por %p94, %p95
    %p97 = scmp.ne.s32.totalorder %s86, %s87
    %p98 = scmp.eq.s32.totalorder %s26, 0
    %p99 = por %p97, %p98
    %p100 = scmp.ne.s32.totalorder %s86, %s87
    %p101 = scmp.eq.s32.totalorder %s27, 1
    %p102 = por %p100, %p101
    %p104 = scmp.ne.s32.totalorder %s87, %s103
    %p105 = scmp.eq.s32.totalorder %s27, 0
    %p106 = por %p104, %p105
    %s108 = sadd.s32 %s107, 1
    %p111 = scmp.eq.s32.totalorder %s21, 1
    %p112 = scmp.ne.s32.totalorder %s107, %s109
    %p113 = scmp.eq.s32.totalorder %s21, 0
    %p114 = por %p112, %p113
    %p115 = scmp.ne.s32.totalorder %s107, %s109
    %p116 = scmp.eq.s32.totalorder %s26, 1
    %p117 = por %p115, %p116
    %p118 = scmp.ne.s32.totalorder %s109, %s110
    %p119 = scmp.eq.s32.totalorder %s26, 0
    %p120 = por %p118, %p119
    %p121 = scmp.ne.s32.totalorder %s109, %s110
    %p122 = scmp.eq.s32.totalorder %s27, 1
    %p123 = por %p121, %p122
    %p125 = scmp.ne.s32.totalorder %s110, %s124
    %p126 = scmp.eq.s32.totalorder %s27, 0
    %p127 = por %p125, %p126
    %s129 = sadd.s32 %s128, 1
    %p132 = scmp.eq.s32.totalorder %s21, 1
    %p133 = scmp.ne.s32.totalorder %s128, %s130
    %p134 = scmp.eq.s32.totalorder %s21, 0
    %p135 = por %p133, %p134
    %p136 = scmp.ne.s32.totalorder %s128, %s130
    %p137 = scmp.eq.s32.totalorder %s26, 1
    %p138 = por %p136, %p137
    %p139 = scmp.ne.s32.totalorder %s130, %s131
    %p140 = scmp.eq.s32.totalorder %s26, 0
    %p141 = por %p139, %p140
    %p142 = scmp.ne.s32.totalorder %s130, %s131
    %p143 = scmp.eq.s32.totalorder %s27, 1
    %p144 = por %p142, %p143
    %p146 = scmp.ne.s32.totalorder %s131, %s145
    %p147 = scmp.eq.s32.totalorder %s27, 0
    %p148 = por %p146, %p147
    %s150 = sadd.s32 %s149, 1
    %p153 = scmp.eq.s32.totalorder %s21, 1
    %p154 = scmp.ne.s32.totalorder %s149, %s151
    %p155 = scmp.eq.s32.totalorder %s21, 0
    %p156 = por %p154, %p155
    %p157 = scmp.ne.s32.totalorder %s149, %s151
    %p158 = scmp.eq.s32.totalorder %s26, 1
    %p159 = por %p157, %p158
    %p160 = scmp.ne.s32.totalorder %s151, %s152
    %p161 = scmp.eq.s32.totalorder %s26, 0
    %p162 = por %p160, %p161
    %p163 = scmp.ne.s32.totalorder %s151, %s152
    %p164 = scmp.eq.s32.totalorder %s27, 1
    %p165 = por %p163, %p164
    %p167 = scmp.ne.s32.totalorder %s152, %s166
    %p168 = scmp.eq.s32.totalorder %s27, 0
    %p169 = por %p167, %p168
    %s171 = sadd.s32 %s170, 1
    %p174 = scmp.eq.s32.totalorder %s21, 1
    %p175 = scmp.ne.s32.totalorder %s170, %s172
    %p176 = scmp.eq.s32.totalorder %s21, 0
    %p177 = por %p175, %p176
    %p178 = scmp.ne.s32.totalorder %s170, %s172
    %p179 = scmp.eq.s32.totalorder %s26, 1
    %p180 = por %p178, %p179
    %p181 = scmp.ne.s32.totalorder %s172, %s173
    %p182 = scmp.eq.s32.totalorder %s26, 0
    %p183 = por %p181, %p182
    %p184 = scmp.ne.s32.totalorder %s172, %s173
    %p185 = scmp.eq.s32.totalorder %s27, 1
    %p186 = por %p184, %p185
    %p188 = scmp.ne.s32.totalorder %s173, %s187
    %p189 = scmp.eq.s32.totalorder %s27, 0
    %p190 = por %p188, %p189
    %s192 = sadd.s32 %s191, 1
    %p195 = scmp.eq.s32.totalorder %s21, 1
    %p196 = scmp.ne.s32.totalorder %s191, %s193
    %p197 = scmp.eq.s32.totalorder %s21, 0
    %p198 = por %p196, %p197
    %p199 = scmp.ne.s32.totalorder %s191, %s193
    %p200 = scmp.eq.s32.totalorder %s26, 1
    %p201 = por %p199, %p200
    %p202 = scmp.ne.s32.totalorder %s193, %s194
    %p203 = scmp.eq.s32.totalorder %s26, 0
    %p204 = por %p202, %p203
    %p205 = scmp.ne.s32.totalorder %s193, %s194
    %p206 = scmp.eq.s32.totalorder %s27, 1
    %p207 = por %p205, %p206
    %p209 = scmp.ne.s32.totalorder %s194, %s208
    %p210 = scmp.eq.s32.totalorder %s27, 0
    %p211 = por %p209, %p210
    %s213 = sadd.s32 %s212, 1
    %p216 = scmp.eq.s32.totalorder %s21, 1
    %p217 = scmp.ne.s32.totalorder %s212, %s214
    %p218 = scmp.eq.s32.totalorder %s21, 0
    %p219 = por %p217, %p218
    %p220 = scmp.ne.s32.totalorder %s212, %s214
    %p221 = scmp.eq.s32.totalorder %s26, 1
    %p222 = por %p220, %p221
    %p223 = scmp.ne.s32.totalorder %s214, %s215
    %p224 = scmp.eq.s32.totalorder %s26, 0
    %p225 = por %p223, %p224
    %p226 = scmp.ne.s32.totalorder %s214, %s215
    %p227 = scmp.eq.s32.totalorder %s27, 1
    %p228 = por %p226, %p227
    %p230 = scmp.ne.s32.totalorder %s215, %s229
    %p231 = scmp.eq.s32.totalorder %s27, 0
    %p232 = por %p230, %p231
    %s234 = sadd.s32 %s233, 1
    %p237 = scmp.eq.s32.totalorder %s21, 1
    %p238 = scmp.ne.s32.totalorder %s233, %s235
    %p239 = scmp.eq.s32.totalorder %s21, 0
    %p240 = por %p238, %p239
    %p241 = scmp.ne.s32.totalorder %s233, %s235
    %p242 = scmp.eq.s32.totalorder %s26, 1
    %p243 = por %p241, %p242
    %p244 = scmp.ne.s32.totalorder %s235, %s236
    %p245 = scmp.eq.s32.totalorder %s26, 0
    %p246 = por %p244, %p245
    %p247 = scmp.ne.s32.totalorder %s235, %s236
    %p248 = scmp.eq.s32.totalorder %s27, 1
    %p249 = por %p247, %p248
    %p251 = scmp.ne.s32.totalorder %s236, %s250
    %p252 = scmp.eq.s32.totalorder %s27, 0
    %p253 = por %p251, %p252
    %s255 = sadd.s32 %s254, 1
    %p258 = scmp.eq.s32.totalorder %s21, 1
    %p259 = scmp.ne.s32.totalorder %s254, %s256
    %p260 = scmp.eq.s32.totalorder %s21, 0
    %p261 = por %p259, %p260
    %p262 = scmp.ne.s32.totalorder %s254, %s256
    %p263 = scmp.eq.s32.totalorder %s26, 1
    %p264 = por %p262, %p263
    %p265 = scmp.ne.s32.totalorder %s256, %s257
    %p266 = scmp.eq.s32.totalorder %s26, 0
    %p267 = por %p265, %p266
    %p268 = scmp.ne.s32.totalorder %s256, %s257
    %p269 = scmp.eq.s32.totalorder %s27, 1
    %p270 = por %p268, %p269
    %p272 = scmp.ne.s32.totalorder %s257, %s271
    %p273 = scmp.eq.s32.totalorder %s27, 0
    %p274 = por %p272, %p273
    %s276 = sadd.s32 %s275, 1
    %p279 = scmp.eq.s32.totalorder %s21, 1
    %p280 = scmp.ne.s32.totalorder %s275, %s277
    %p281 = scmp.eq.s32.totalorder %s21, 0
    %p282 = por %p280, %p281
    %p283 = scmp.ne.s32.totalorder %s275, %s277
    %p284 = scmp.eq.s32.totalorder %s26, 1
    %p285 = por %p283, %p284
    %p286 = scmp.ne.s32.totalorder %s277, %s278
    %p287 = scmp.eq.s32.totalorder %s26, 0
    %p288 = por %p286, %p287
    %p289 = scmp.ne.s32.totalorder %s277, %s278
    %p290 = scmp.eq.s32.totalorder %s27, 1
    %p291 = por %p289, %p290
    %p293 = scmp.ne.s32.totalorder %s278, %s292
    %p294 = scmp.eq.s32.totalorder %s27, 0
    %p295 = por %p293, %p294
    %s297 = sadd.s32 %s296, 1
    %p300 = scmp.eq.s32.totalorder %s21, 1
    %p301 = scmp.ne.s32.totalorder %s296, %s298
    %p302 = scmp.eq.s32.totalorder %s21, 0
    %p303 = por %p301, %p302
    %p304 = scmp.ne.s32.totalorder %s296, %s298
    %p305 = scmp.eq.s32.totalorder %s26, 1
    %p306 = por %p304, %p305
    %p307 = scmp.ne.s32.totalorder %s298, %s299
    %p308 = scmp.eq.s32.totalorder %s26, 0
    %p309 = por %p307, %p308
    %p310 = scmp.ne.s32.totalorder %s298, %s299
    %p311 = scmp.eq.s32.totalorder %s27, 1
    %p312 = por %p310, %p311
    %p314 = scmp.ne.s32.totalorder %s299, %s313
    %p315 = scmp.eq.s32.totalorder %s27, 0
    %p316 = por %p314, %p315
    %s318 = sadd.s32 %s317, 1
    %p321 = scmp.eq.s32.totalorder %s21, 1
    %p322 = scmp.ne.s32.totalorder %s317, %s319
    %p323 = scmp.eq.s32.totalorder %s21, 0
    %p324 = por %p322, %p323
    %p325 = scmp.ne.s32.totalorder %s317, %s319
    %p326 = scmp.eq.s32.totalorder %s26, 1
    %p327 = por %p325, %p326
    %p328 = scmp.ne.s32.totalorder %s319, %s320
    %p329 = scmp.eq.s32.totalorder %s26, 0
    %p330 = por %p328, %p329
    %p331 = scmp.ne.s32.totalorder %s319, %s320
    %p332 = scmp.eq.s32.totalorder %s27, 1
    %p333 = por %p331, %p332
    %p335 = scmp.ne.s32.totalorder %s320, %s334
    %p336 = scmp.eq.s32.totalorder %s27, 0
    %p337 = por %p335, %p336
    %s339 = sadd.s32 %s338, 1
    %p342 = scmp.eq.s32.totalorder %s21, 1
    %p343 = scmp.ne.s32.totalorder %s338, %s340
    %p344 = scmp.eq.s32.totalorder %s21, 0
    %p345 = por %p343, %p344
    %p346 = scmp.ne.s32.totalorder %s338, %s340
    %p347 = scmp.eq.s32.totalorder %s26, 1
    %p348 = por %p346, %p347
    %p349 = scmp.ne.s32.totalorder %s340, %s341
    %p350 = scmp.eq.s32.totalorder %s26, 0
    %p351 = por %p349, %p350
    %p352 = scmp.ne.s32.totalorder %s340, %s341
    %p353 = scmp.eq.s32.totalorder %s27, 1
    %p354 = por %p352, %p353
    %p356 = scmp.ne.s32.totalorder %s341, %s355
    %p357 = scmp.eq.s32.totalorder %s27, 0
    %p358 = por %p356, %p357
    %s359 = ssub.s32 %s21, %s28
    %p360 = scmp.eq.s32.totalorder %s359, 0
    %s362 = sadd.s32 %s361, 1
    %s363 = scalar_select %p360, %s361, %s362
    %p366 = pneg %p360
    %p367 = scmp.eq.s32.totalorder %s21, 1
    %p368 = por %p366, %p367
    %p369 = scmp.ne.s32.totalorder %s361, %s364
    %p370 = scmp.eq.s32.totalorder %s21, 0
    %p371 = por %p369, %p370
    %p372 = scmp.ne.s32.totalorder %s361, %s364
    %p373 = scmp.eq.s32.totalorder %s26, 1
    %p374 = por %p372, %p373
    %p375 = scmp.ne.s32.totalorder %s364, %s365
    %p376 = scmp.eq.s32.totalorder %s26, 0
    %p377 = por %p375, %p376
    %p378 = scmp.ne.s32.totalorder %s364, %s365
    %p379 = scmp.eq.s32.totalorder %s27, 1
    %p380 = por %p378, %p379
    %p382 = scmp.ne.s32.totalorder %s365, %s381
    %p383 = scmp.eq.s32.totalorder %s27, 0
    %p384 = por %p382, %p383
    %p385 = scmp.le.s32.totalorder 1, %s21
    %p386 = scmp.lt.s32.totalorder %s21, 3
    %p387 = pnand %p385, %p386
    %p388 = pneg %p387
    // Predicated region
    $region9: #{fastspeech2_forward.5} parent=5 // pred_check
      _
    $region10: #{fastspeech2_forward.5} parent=5 // pred_check_branch
      %390 = sbr.rel (%p387) target = $region12
    $region11: #{fastspeech2_forward.5} parent=5 // pred_region
      %s391 = ssub.s32 %s21, 1
      // Predicated region
      $region13: #{fastspeech2_forward.5} parent=11 // pred_check
        %p392 = pneg %p120
      $region14: #{fastspeech2_forward.5} parent=11 // pred_check_branch
        %394 = sbr.rel (%p392) target = $region16
      $region15: #{fastspeech2_forward.5} parent=11 // pred_region
        _
      $region16: #{fastspeech2_forward.5} parent=11 // pred_fallthru
        _
      // Predicated region
      $region17: #{fastspeech2_forward.5} parent=11 // pred_check
        %p395 = pneg %p141
      $region18: #{fastspeech2_forward.5} parent=11 // pred_check_branch
        %397 = sbr.rel (%p395) target = $region20
      $region19: #{fastspeech2_forward.5} parent=11 // pred_region
        _
      $region20: #{fastspeech2_forward.5} parent=11 // pred_fallthru
        _
      // Predicated region
      $region21: #{fastspeech2_forward.5} parent=11 // pred_check
        %p398 = pneg %p162
      $region22: #{fastspeech2_forward.5} parent=11 // pred_check_branch
        %400 = sbr.rel (%p398) target = $region24
      $region23: #{fastspeech2_forward.5} parent=11 // pred_region
        _
      $region24: #{fastspeech2_forward.5} parent=11 // pred_fallthru
        _
      // Predicated region
      $region25: #{fastspeech2_forward.5} parent=11 // pred_check
        %p401 = pneg %p183
      $region26: #{fastspeech2_forward.5} parent=11 // pred_check_branch
        %403 = sbr.rel (%p401) target = $region28
      $region27: #{fastspeech2_forward.5} parent=11 // pred_region
        _
      $region28: #{fastspeech2_forward.5} parent=11 // pred_fallthru
        _
      // Predicated region
      $region29: #{fastspeech2_forward.5} parent=11 // pred_check
        %p404 = pneg %p204
      $region30: #{fastspeech2_forward.5} parent=11 // pred_check_branch
        %406 = sbr.rel (%p404) target = $region32
      $region31: #{fastspeech2_forward.5} parent=11 // pred_region
        _
      $region32: #{fastspeech2_forward.5} parent=11 // pred_fallthru
        _
      // Predicated region
      $region33: #{fastspeech2_forward.5} parent=11 // pred_check
        %p407 = pneg %p225
      $region34: #{fastspeech2_forward.5} parent=11 // pred_check_branch
        %409 = sbr.rel (%p407) target = $region36
      $region35: #{fastspeech2_forward.5} parent=11 // pred_region
        _
      $region36: #{fastspeech2_forward.5} parent=11 // pred_fallthru
        _
      // Predicated region
      $region37: #{fastspeech2_forward.5} parent=11 // pred_check
        %p410 = pneg %p246
      $region38: #{fastspeech2_forward.5} parent=11 // pred_check_branch
        %412 = sbr.rel (%p410) target = $region40
      $region39: #{fastspeech2_forward.5} parent=11 // pred_region
        _
      $region40: #{fastspeech2_forward.5} parent=11 // pred_fallthru
        _
      // Predicated region
      $region41: #{fastspeech2_forward.5} parent=11 // pred_check
        %p413 = pneg %p267
      $region42: #{fastspeech2_forward.5} parent=11 // pred_check_branch
        %415 = sbr.rel (%p413) target = $region44
      $region43: #{fastspeech2_forward.5} parent=11 // pred_region
        _
      $region44: #{fastspeech2_forward.5} parent=11 // pred_fallthru
        _
      // Predicated region
      $region45: #{fastspeech2_forward.5} parent=11 // pred_check
        %p416 = pneg %p288
      $region46: #{fastspeech2_forward.5} parent=11 // pred_check_branch
        %418 = sbr.rel (%p416) target = $region48
      $region47: #{fastspeech2_forward.5} parent=11 // pred_region
        _
      $region48: #{fastspeech2_forward.5} parent=11 // pred_fallthru
        _
      // Predicated region
      $region49: #{fastspeech2_forward.5} parent=11 // pred_check
        %p419 = pneg %p309
      $region50: #{fastspeech2_forward.5} parent=11 // pred_check_branch
        %421 = sbr.rel (%p419) target = $region52
      $region51: #{fastspeech2_forward.5} parent=11 // pred_region
        _
      $region52: #{fastspeech2_forward.5} parent=11 // pred_fallthru
        _
      // Predicated region
      $region53: #{fastspeech2_forward.5} parent=11 // pred_check
        %p422 = pneg %p330
      $region54: #{fastspeech2_forward.5} parent=11 // pred_check_branch
        %424 = sbr.rel (%p422) target = $region56
      $region55: #{fastspeech2_forward.5} parent=11 // pred_region
        _
      $region56: #{fastspeech2_forward.5} parent=11 // pred_fallthru
        _
      // Predicated region
      $region57: #{fastspeech2_forward.5} parent=11 // pred_check
        %p425 = pneg %p351
      $region58: #{fastspeech2_forward.5} parent=11 // pred_check_branch
        %427 = sbr.rel (%p425) target = $region60
      $region59: #{fastspeech2_forward.5} parent=11 // pred_region
        _
      $region60: #{fastspeech2_forward.5} parent=11 // pred_fallthru
        _
    $region12: #{fastspeech2_forward.5} parent=5 // pred_fallthru
      _
    %p428 = scmp.lt.s32.totalorder %s21, 2
    // Predicated region
    $region61: #{fastspeech2_forward.5} parent=5 // pred_check
      %p429 = pneg %p428
    $region62: #{fastspeech2_forward.5} parent=5 // pred_check_branch
      %431 = sbr.rel (%p429) target = $region64
    $region63: #{fastspeech2_forward.5} parent=5 // pred_region
      // Predicated region
      $region65: #{fastspeech2_forward.5} parent=63 // pred_check
        %p432 = pneg %p41
      $region66: #{fastspeech2_forward.5} parent=63 // pred_check_branch
        %434 = sbr.rel (%p432) target = $region68
      $region67: #{fastspeech2_forward.5} parent=63 // pred_region
        %p435 = scmp.lt.s32.totalorder %s21, 1
        %s436 = scalar_select %p435, %s21, 1
        %s437 = smul.addr %s436, 8
        %s438 = scalar_lea.vmem %s0, %s437
      $region68: #{fastspeech2_forward.5} parent=63 // pred_fallthru
        _
      // Predicated region
      $region69: #{fastspeech2_forward.5} parent=63 // pred_check
        %p439 = pneg %p67
      $region70: #{fastspeech2_forward.5} parent=63 // pred_check_branch
        %441 = sbr.rel (%p439) target = $region72
      $region71: #{fastspeech2_forward.5} parent=63 // pred_region
        %p442 = scmp.lt.s32.totalorder %s21, 1
        %s443 = scalar_select %p442, %s21, 1
        %s444 = scalar_lea.vmem %s1, %s443
      $region72: #{fastspeech2_forward.5} parent=63 // pred_fallthru
        _
      // Predicated region
      $region73: #{fastspeech2_forward.5} parent=63 // pred_check
        %p445 = pneg %p93
      $region74: #{fastspeech2_forward.5} parent=63 // pred_check_branch
        %447 = sbr.rel (%p445) target = $region76
      $region75: #{fastspeech2_forward.5} parent=63 // pred_region
        %p448 = scmp.lt.s32.totalorder %s21, 1
        %s449 = scalar_select %p448, %s21, 1
        %s450 = smul.addr %s449, 8
        %s451 = scalar_lea.vmem %s2, %s450
      $region76: #{fastspeech2_forward.5} parent=63 // pred_fallthru
        _
    $region64: #{fastspeech2_forward.5} parent=5 // pred_fallthru
      _
    %p452 = scmp.le.s32.totalorder 1, %s21
    %p453 = scmp.lt.s32.totalorder %s21, 3
    %p454 = pnand %p452, %p453
    %p455 = pneg %p454
    // Predicated region
    $region77: #{fastspeech2_forward.5} parent=5 // pred_check
      _
    $region78: #{fastspeech2_forward.5} parent=5 // pred_check_branch
      %457 = sbr.rel (%p454) target = $region80
    $region79: #{fastspeech2_forward.5} parent=5 // pred_region
      %s458 = ssub.s32 %s21, 1
      %p459 = scmp.lt.s32.totalorder %s26, 1
      %s460 = scalar_select %p459, %s26, 1
      %s461 = smul.addr %s460, 8
      %s462 = scalar_lea.vmem %s0, %s461
      %p463 = pneg %p47
      %p464 = pneg %p44
      %p465 = scmp.lt.s32.totalorder %s26, 1
      %s466 = scalar_select %p465, %s26, 1
      %s467 = scalar_lea.vmem %s1, %s466
      %p468 = pneg %p73
      %p469 = pneg %p70
      %p470 = scmp.lt.s32.totalorder %s26, 1
      %s471 = scalar_select %p470, %s26, 1
      %s472 = smul.addr %s471, 8
      %s473 = scalar_lea.vmem %s2, %s472
      %p474 = pneg %p99
      %p475 = pneg %p96
      %p476 = pneg %p120
      %p477 = pneg %p117
      %p478 = pneg %p141
      %p479 = pneg %p138
      %p480 = pneg %p162
      %p481 = pneg %p159
      %p482 = pneg %p183
      %p483 = pneg %p180
      %p484 = pneg %p204
      %p485 = pneg %p201
      %p486 = pneg %p225
      %p487 = pneg %p222
      %p488 = pneg %p246
      %p489 = pneg %p243
      %p490 = pneg %p267
      %p491 = pneg %p264
      %p492 = pneg %p288
      %p493 = pneg %p285
      %p494 = pneg %p309
      %p495 = pneg %p306
      %p496 = pneg %p330
      %p497 = pneg %p327
      %p498 = pneg %p351
      %p499 = pneg %p348
      %p500 = pneg %p377
      %p501 = pneg %p374
      %p502 = scmp.lt.s32.totalorder %s26, 1
      %s503 = scalar_select %p502, %s26, 1
      %s504 = smul.addr %s503, 8
      %s505 = scalar_lea.vmem %s15, %s504
      %p506 = scmp.lt.s32.totalorder %s26, 1
      %s507 = scalar_select %p506, %s26, 1
      %s508 = smul.addr %s507, 8
      %s509 = scalar_lea.vmem %s0, %s508
      %p510 = scmp.lt.s32.totalorder %s26, 1
      %s511 = scalar_select %p510, %s26, 1
      %s512 = scalar_lea.vmem %s1, %s511
      %p513 = scmp.lt.s32.totalorder %s26, 1
      %s514 = scalar_select %p513, %s26, 1
      %s515 = smul.addr %s514, 8
      %s516 = scalar_lea.vmem %s2, %s515
      %p517 = scmp.lt.s32.totalorder %s26, 1
      %s518 = scalar_select %p517, %s26, 1
      %s519 = smul.addr %s518, 8
      %s520 = scalar_lea.vmem %s15, %s519
      %v522 = vld [vmem:[%s509] sm:$0xff]
      %v523 = vld [vmem:[%s512] sm:$0x1]
      %v524 = vld [vmem:[%s516] sm:$0xff]
      %v525 = vld [vmem:[%s3] sm:$0xff]
      %v526 = vld [vmem:[%s3 + $0x8] sm:$0xff]
      %v527 = vld [vmem:[%s3 + $0x10] sm:$0xff]
      %v528 = vld [vmem:[%s3 + $0x18] sm:$0xff]
      %v529 = vpack.c.bf16 %v522, %v522
      %v530 = vpack.c.bf16 %v526, %v525
      %v531 = vpack.c.bf16 %v528, %v527
      %v532 = vld [vmem:[%s4] sm:$0x1]
      %v534 = vlaneseq
      %v535 = vshrl.u32 %v534, 7
      %v536 = vsub.s32 0, %v535
      %v537 = vrot.slane %v532, %v536
      %vm539 = vcmask 261120
      %v541 = vsel %vm539, %v529, 0
      %543 = vmatprep.subr.bf16.mxu0 0
      %544 = vmatpush1.bf16.msra.mxu0 %v530
      %545 = vmatprep.subr.bf16.mxu0 0
      %546 = vmatpush1.bf16.msra.mxu0 %v531
      %547 = vmatprep.subr.bf16.mxu0 0
      %548 = vmatpush1.bf16.msra.mxu0 0
      %549 = vmatprep.subr.bf16.mxu0 0
      %550 = vmatpush1.bf16.msra.mxu0 0
      %551 = vmatprep.subr.bf16.mxu0 0
      %552 = vmatpush1.bf16.msra.mxu0 0
      %553 = vmatprep.subr.bf16.mxu0 0
      %554 = vmatpush1.bf16.msra.mxu0 0
      %555 = vmatprep.subr.bf16.mxu0 0
      %556 = vmatpush1.bf16.msra.mxu0 0
      %557 = vmatprep.subr.bf16.mxu0 0
      %558 = vmatpush1.bf16.msra.mxu0 0
      %559 = vmatprep.subr.bf16.mxu0 0
      %560 = vmatpush1.bf16.msra.mxu0 0
      %561 = vmatprep.subr.bf16.mxu0 0
      %562 = vmatpush1.bf16.msra.mxu0 0
      %563 = vmatprep.subr.bf16.mxu0 0
      %564 = vmatpush1.bf16.msra.mxu0 0
      %565 = vmatprep.subr.bf16.mxu0 0
      %566 = vmatpush1.bf16.msra.mxu0 0
      %567 = vmatprep.subr.bf16.mxu0 0
      %568 = vmatpush1.bf16.msra.mxu0 0
      %569 = vmatprep.subr.bf16.mxu0 0
      %570 = vmatpush1.bf16.msra.mxu0 0
      %571 = vmatprep.subr.bf16.mxu0 0
      %572 = vmatpush1.bf16.msra.mxu0 0
      %573 = vmatprep.subr.bf16.mxu0 0
      %574 = vmatpush1.bf16.msra.mxu0 0
      %575 = vmatprep.mubr.bf16.mxu0 0
      %576 = vmatmul.mubr.bf16.gmra.mrb[0].mxu0 %v541
      %v577 = vpop.f32.mrb[0].mxu0
      %v578 = vadd.f32 %v537, %v577
      %v579 = vpop.f32.mrb[0].mxu0
      %v580 = vpop.f32.mrb[0].mxu0
      %v581 = vpop.f32.mrb[0].mxu0
      %582 = vdwg.mxu0
      %v583 = vmul.f32 %v523, -1e+09
      %v585 = vlaneseq
      %v586 = vshrl.u32 %v585, 7
      %v587 = vsub.s32 0, %v586
      %v588 = vrot.slane %v583, %v587
      %v590 = vpack.c.bf16 %v578, %v578
      %592 = vrot.lane.b32.xlu0 %v590, 96
      %v593 = vpop.permute.xlu0 %592
      %vm594 = vcmask 130048
      %v596 = vsel %vm594, %v590, 0
      %v599 = vsel %vm594, %v593, 0
      %601 = vmatprep.subr.bf16.mxu0 0
      %602 = vmatpush1.bf16.xpose.msra.mxu0 %v599
      %603 = vmatprep.subr.bf16.mxu0 0
      %604 = vmatpush1.bf16.xpose.msra.mxu0 0
      %605 = vmatprep.subr.bf16.mxu0 0
      %606 = vmatpush1.bf16.xpose.msra.mxu0 0
      %607 = vmatprep.subr.bf16.mxu0 0
      %608 = vmatpush1.bf16.xpose.msra.mxu0 0
      %609 = vmatprep.subr.bf16.mxu0 0
      %610 = vmatpush1.bf16.xpose.msra.mxu0 0
      %611 = vmatprep.subr.bf16.mxu0 0
      %612 = vmatpush1.bf16.xpose.msra.mxu0 0
      %613 = vmatprep.subr.bf16.mxu0 0
      %614 = vmatpush1.bf16.xpose.msra.mxu0 0
      %615 = vmatprep.subr.bf16.mxu0 0
      %616 = vmatpush1.bf16.xpose.msra.mxu0 0
      %617 = vmatprep.subr.bf16.mxu0 0
      %618 = vmatpush1.bf16.xpose.msra.mxu0 0
      %619 = vmatprep.subr.bf16.mxu0 0
      %620 = vmatpush1.bf16.xpose.msra.mxu0 0
      %621 = vmatprep.subr.bf16.mxu0 0
      %622 = vmatpush1.bf16.xpose.msra.mxu0 0
      %623 = vmatprep.subr.bf16.mxu0 0
      %624 = vmatpush1.bf16.xpose.msra.mxu0 0
      %625 = vmatprep.subr.bf16.mxu0 0
      %626 = vmatpush1.bf16.xpose.msra.mxu0 0
      %627 = vmatprep.subr.bf16.mxu0 0
      %628 = vmatpush1.bf16.xpose.msra.mxu0 0
      %629 = vmatprep.subr.bf16.mxu0 0
      %630 = vmatpush1.bf16.xpose.msra.mxu0 0
      %631 = vmatprep.subr.bf16.mxu0 0
      %632 = vmatpush1.bf16.xpose.msra.mxu0 0
      %633 = vmatprep.mubr.bf16.mxu0 0
      %634 = vmatmul.mubr.bf16.gmra.mrb[0].mxu0 %v596
      %v635 = vpop.f32.mrb[0].mxu0
      %v636 = vadd.f32 %v588, %v635
      %v637 = vpop.f32.mrb[0].mxu0
      %v638 = vpop.f32.mrb[0].mxu0
      %v639 = vpop.f32.mrb[0].mxu0
      %640 = vdwg.mxu0
      %vm641 = vcmask 64512
      %v642 = vsel %vm641, %v636, -inf
      %643 = vmax.xlane.f32.xlu0 %v642
      %v644 = vpop.xlane.xlu0 %643
      %v645 = vsub.f32 %v636, %v644
      %v646 = vmul.f32 %v645, 1.442695
      %v647 = vpow.pop %v646
      %v648 = vsel %vm641, %v647, 0.0
      %649 = vadd.xlane.f32.xlu0 %v648
      %v650 = vpop.xlane.xlu0 %649
      %v651 = vrcp.pop %v650
      %v652 = vmul.f32 %v647, %v651
      %v653 = vpack.c.bf16 %v652, %v652
      %654 = vrot.lane.b32.xlu0 %v590, 64
      %v655 = vpop.permute.xlu0 %654
      %v657 = vsel %vm641, %v653, 0
      %vm659 = vcmask 1043456
      %v661 = vsel %vm659, %v655, 0
      %663 = vmatprep.subr.bf16.mxu0 0
      %664 = vmatpush1.bf16.msra.mxu0 %v661
      %665 = vmatprep.subr.bf16.mxu0 0
      %666 = vmatpush1.bf16.msra.mxu0 0
      %667 = vmatprep.subr.bf16.mxu0 0
      %668 = vmatpush1.bf16.msra.mxu0 0
      %669 = vmatprep.subr.bf16.mxu0 0
      %670 = vmatpush1.bf16.msra.mxu0 0
      %671 = vmatprep.subr.bf16.mxu0 0
      %672 = vmatpush1.bf16.msra.mxu0 0
      %673 = vmatprep.subr.bf16.mxu0 0
      %674 = vmatpush1.bf16.msra.mxu0 0
      %675 = vmatprep.subr.bf16.mxu0 0
      %676 = vmatpush1.bf16.msra.mxu0 0
      %677 = vmatprep.subr.bf16.mxu0 0
      %678 = vmatpush1.bf16.msra.mxu0 0
      %679 = vmatprep.subr.bf16.mxu0 0
      %680 = vmatpush1.bf16.msra.mxu0 0
      %681 = vmatprep.subr.bf16.mxu0 0
      %682 = vmatpush1.bf16.msra.mxu0 0
      %683 = vmatprep.subr.bf16.mxu0 0
      %684 = vmatpush1.bf16.msra.mxu0 0
      %685 = vmatprep.subr.bf16.mxu0 0
      %686 = vmatpush1.bf16.msra.mxu0 0
      %687 = vmatprep.subr.bf16.mxu0 0
      %688 = vmatpush1.bf16.msra.mxu0 0
      %689 = vmatprep.subr.bf16.mxu0 0
      %690 = vmatpush1.bf16.msra.mxu0 0
      %691 = vmatprep.subr.bf16.mxu0 0
      %692 = vmatpush1.bf16.msra.mxu0 0
      %693 = vmatprep.subr.bf16.mxu0 0
      %694 = vmatpush1.bf16.msra.mxu0 0
      %695 = vmatprep.mubr.bf16.mxu0 0
      %696 = vmatmul.mubr.bf16.gmra.mrb[0].mxu0 %v657
      %v697 = vpop.f32.mrb[0].mxu0
      %v698 = vadd.f32 0.0, %v697
      %v699 = vpop.f32.mrb[0].mxu0
      %v700 = vpop.f32.mrb[0].mxu0
      %v701 = vpop.f32.mrb[0].mxu0
      %702 = vdwg.mxu0
      %703 = vrot.lane.b32.xlu0 %v590, 112
      %v704 = vpop.permute.xlu0 %703
      %705 = vrot.lane.b32.xlu0 %v590, 80
      %v706 = vpop.permute.xlu0 %705
      %v708 = vsel %vm594, %v704, 0
      %v711 = vsel %vm594, %v706, 0
      %713 = vmatprep.subr.bf16.mxu0 0
      %714 = vmatpush1.bf16.xpose.msra.mxu0 %v711
      %715 = vmatprep.subr.bf16.mxu0 0
      %716 = vmatpush1.bf16.xpose.msra.mxu0 0
      %717 = vmatprep.subr.bf16.mxu0 0
      %718 = vmatpush1.bf16.xpose.msra.mxu0 0
      %719 = vmatprep.subr.bf16.mxu0 0
      %720 = vmatpush1.bf16.xpose.msra.mxu0 0
      %721 = vmatprep.subr.bf16.mxu0 0
      %722 = vmatpush1.bf16.xpose.msra.mxu0 0
      %723 = vmatprep.subr.bf16.mxu0 0
      %724 = vmatpush1.bf16.xpose.msra.mxu0 0
      %725 = vmatprep.subr.bf16.mxu0 0
      %726 = vmatpush1.bf16.xpose.msra.mxu0 0
      %727 = vmatprep.subr.bf16.mxu0 0
      %728 = vmatpush1.bf16.xpose.msra.mxu0 0
      %729 = vmatprep.subr.bf16.mxu0 0
      %730 = vmatpush1.bf16.xpose.msra.mxu0 0
      %731 = vmatprep.subr.bf16.mxu0 0
      %732 = vmatpush1.bf16.xpose.msra.mxu0 0
      %733 = vmatprep.subr.bf16.mxu0 0
      %734 = vmatpush1.bf16.xpose.msra.mxu0 0
      %735 = vmatprep.subr.bf16.mxu0 0
      %736 = vmatpush1.bf16.xpose.msra.mxu0 0
      %737 = vmatprep.subr.bf16.mxu0 0
      %738 = vmatpush1.bf16.xpose.msra.mxu0 0
      %739 = vmatprep.subr.bf16.mxu0 0
      %740 = vmatpush1.bf16.xpose.msra.mxu0 0
      %741 = vmatprep.subr.bf16.mxu0 0
      %742 = vmatpush1.bf16.xpose.msra.mxu0 0
      %743 = vmatprep.subr.bf16.mxu0 0
      %744 = vmatpush1.bf16.xpose.msra.mxu0 0
      %745 = vmatprep.mubr.bf16.mxu0 0
      %746 = vmatmul.mubr.bf16.gmra.mrb[0].mxu0 %v708
      %v747 = vpop.f32.mrb[0].mxu0
      %v748 = vadd.f32 %v588, %v747
      %v749 = vpop.f32.mrb[0].mxu0
      %v750 = vpop.f32.mrb[0].mxu0
      %v751 = vpop.f32.mrb[0].mxu0
      %752 = vdwg.mxu0
      %v753 = vsel %vm641, %v748, -inf
      %754 = vmax.xlane.f32.xlu0 %v753
      %v755 = vpop.xlane.xlu0 %754
      %v756 = vsub.f32 %v748, %v755
      %v757 = vmul.f32 %v756, 1.442695
      %v758 = vpow.pop %v757
      %v759 = vsel %vm641, %v758, 0.0
      %760 = vadd.xlane.f32.xlu0 %v759
      %v761 = vpop.xlane.xlu0 %760
      %v762 = vrcp.pop %v761
      %v763 = vmul.f32 %v758, %v762
      %v764 = vpack.c.bf16 %v763, %v763
      %765 = vrot.lane.b32.xlu0 %v590, 48
      %v766 = vpop.permute.xlu0 %765
      %v768 = vsel %vm641, %v764, 0
      %v771 = vsel %vm659, %v766, 0
      %773 = vmatprep.subr.bf16.mxu0 0
      %774 = vmatpush1.bf16.msra.mxu0 %v771
      %775 = vmatprep.subr.bf16.mxu0 0
      %776 = vmatpush1.bf16.msra.mxu0 0
      %777 = vmatprep.subr.bf16.mxu0 0
      %778 = vmatpush1.bf16.msra.mxu0 0
      %779 = vmatprep.subr.bf16.mxu0 0
      %780 = vmatpush1.bf16.msra.mxu0 0
      %781 = vmatprep.subr.bf16.mxu0 0
      %782 = vmatpush1.bf16.msra.mxu0 0
      %783 = vmatprep.subr.bf16.mxu0 0
      %784 = vmatpush1.bf16.msra.mxu0 0
      %785 = vmatprep.subr.bf16.mxu0 0
      %786 = vmatpush1.bf16.msra.mxu0 0
      %787 = vmatprep.subr.bf16.mxu0 0
      %788 = vmatpush1.bf16.msra.mxu0 0
      %789 = vmatprep.subr.bf16.mxu0 0
      %790 = vmatpush1.bf16.msra.mxu0 0
      %791 = vmatprep.subr.bf16.mxu0 0
      %792 = vmatpush1.bf16.msra.mxu0 0
      %793 = vmatprep.subr.bf16.mxu0 0
      %794 = vmatpush1.bf16.msra.mxu0 0
      %795 = vmatprep.subr.bf16.mxu0 0
      %796 = vmatpush1.bf16.msra.mxu0 0
      %797 = vmatprep.subr.bf16.mxu0 0
      %798 = vmatpush1.bf16.msra.mxu0 0
      %799 = vmatprep.subr.bf16.mxu0 0
      %800 = vmatpush1.bf16.msra.mxu0 0
      %801 = vmatprep.subr.bf16.mxu0 0
      %802 = vmatpush1.bf16.msra.mxu0 0
      %803 = vmatprep.subr.bf16.mxu0 0
      %804 = vmatpush1.bf16.msra.mxu0 0
      %805 = vmatprep.mubr.bf16.mxu0 0
      %806 = vmatmul.mubr.bf16.gmra.mrb[0].mxu0 %v768
      %v807 = vpop.f32.mrb[0].mxu0
      %v808 = vadd.f32 0.0, %v807
      %v809 = vpop.f32.mrb[0].mxu0
      %v810 = vpop.f32.mrb[0].mxu0
      %v811 = vpop.f32.mrb[0].mxu0
      %812 = vdwg.mxu0
      %814 = vrot.lane.b32.xlu0 %v808, 16
      %v815 = vpop.permute.xlu0 %814
      %v817 = vsel %vm594, %v698, %v815
      %v818 = vld [vmem:[%s5] sm:$0xff]
      %v819 = vld [vmem:[%s5 + $0x8] sm:$0xff]
      %v820 = vld [vmem:[%s5 + $0x10] sm:$0xff]
      %v821 = vld [vmem:[%s5 + $0x18] sm:$0xff]
      %v822 = vpack.c.bf16 %v817, %v817
      %v823 = vpack.c.bf16 %v819, %v818
      %v824 = vpack.c.bf16 %v821, %v820
      %v825 = vld [vmem:[%s6] sm:$0x1]
      %v827 = vlaneseq
      %v828 = vshrl.u32 %v827, 7
      %v829 = vsub.s32 0, %v828
      %v830 = vrot.slane %v825, %v829
      %v833 = vsel %vm539, %v822, 0
      %835 = vmatprep.subr.bf16.mxu0 0
      %836 = vmatpush1.bf16.msra.mxu0 %v823
      %837 = vmatprep.subr.bf16.mxu0 0
      %838 = vmatpush1.bf16.msra.mxu0 %v824
      %839 = vmatprep.subr.bf16.mxu0 0
      %840 = vmatpush1.bf16.msra.mxu0 0
      %841 = vmatprep.subr.bf16.mxu0 0
      %842 = vmatpush1.bf16.msra.mxu0 0
      %843 = vmatprep.subr.bf16.mxu0 0
      %844 = vmatpush1.bf16.msra.mxu0 0
      %845 = vmatprep.subr.bf16.mxu0 0
      %846 = vmatpush1.bf16.msra.mxu0 0
      %847 = vmatprep.subr.bf16.mxu0 0
      %848 = vmatpush1.bf16.msra.mxu0 0
      %849 = vmatprep.subr.bf16.mxu0 0
      %850 = vmatpush1.bf16.msra.mxu0 0
      %851 = vmatprep.subr.bf16.mxu0 0
      %852 = vmatpush1.bf16.msra.mxu0 0
      %853 = vmatprep.subr.bf16.mxu0 0
      %854 = vmatpush1.bf16.msra.mxu0 0
      %855 = vmatprep.subr.bf16.mxu0 0
      %856 = vmatpush1.bf16.msra.mxu0 0
      %857 = vmatprep.subr.bf16.mxu0 0
      %858 = vmatpush1.bf16.msra.mxu0 0
      %859 = vmatprep.subr.bf16.mxu0 0
      %860 = vmatpush1.bf16.msra.mxu0 0
      %861 = vmatprep.subr.bf16.mxu0 0
      %862 = vmatpush1.bf16.msra.mxu0 0
      %863 = vmatprep.subr.bf16.mxu0 0
      %864 = vmatpush1.bf16.msra.mxu0 0
      %865 = vmatprep.subr.bf16.mxu0 0
      %866 = vmatpush1.bf16.msra.mxu0 0
      %867 = vmatprep.mubr.bf16.mxu0 0
      %868 = vmatmul.mubr.bf16.gmra.mrb[0].mxu0 %v833
      %v869 = vpop.f32.mrb[0].mxu0
      %v870 = vadd.f32 %v830, %v869
      %v871 = vpop.f32.mrb[0].mxu0
      %v872 = vpop.f32.mrb[0].mxu0
      %v873 = vpop.f32.mrb[0].mxu0
      %874 = vdwg.mxu0
      %v875 = vadd.f32 %v870, %v522
      %v876 = vld [vmem:[%s7] sm:$0x1]
      %v877 = vld [vmem:[%s8] sm:$0x1]
      %v878 = vsel %vm539, %v875, 0.0
      %879 = vadd.xlane.f32.xlu0 %v878
      %v880 = vpop.xlane.xlu0 %879
      %v881 = vrcp.pop 32.0
      %v882 = vmul.f32 %v880, %v881
      %v883 = vsub.f32 %v875, %v882
      %v884 = vmul.f32 %v883, %v883
      %v885 = vsel %vm539, %v884, 0.0
      %886 = vadd.xlane.f32.xlu0 %v885
      %v887 = vpop.xlane.xlu0 %886
      %v888 = vmul.f32 %v887, %v881
      %v889 = vadd.f32 %v888, 1e-05
      %v890 = vrsqrt.pop %v889
      %v891 = vmul.f32 %v883, %v890
      %v893 = vlaneseq
      %v894 = vshrl.u32 %v893, 7
      %v895 = vsub.s32 0, %v894
      %v896 = vrot.slane %v876, %v895
      %v898 = vmul.f32 %v891, %v896
      %v900 = vlaneseq
      %v901 = vshrl.u32 %v900, 7
      %v902 = vsub.s32 0, %v901
      %v903 = vrot.slane %v877, %v902
      %v905 = vadd.f32 %v898, %v903
      %907 = vset.pattern.permute.xlu0 0
      %908 = vperm.xlu0 %907, %v524
      %v909 = vpop.permute.xlu0 %908
      %v911 = vmul.f32 %v905, %v909
      %v912 = vlaneseq
      %v913 = vshrl.u32 %v912, 7
      %vm914 = vcmp.ne.s32.totalorder %v913, 0
      %v915 = vsel %vm914, 1, 0
      %v916 = vcvt.s32.f32 %v915
      %vm917 = vcmp.ne.s32.totalorder %v913, 7
      %v918 = vsel %vm917, 1, 0
      %v919 = vcvt.s32.f32 %v918
      %v920 = vld [vmem:[%s10] sm:$0x1]
      %v921 = vrot.slane %v911, 7
      %v922 = vmul.f32 %v921, %v916
      %v923 = vrot.slane %v911, 1
      %v924 = vmul.f32 %v923, %v919
      %v925 = vld [vmem:[%s9] sm:$0xff]
      %v926 = vld [vmem:[%s9 + $0x8] sm:$0xff]
      %v927 = vld [vmem:[%s9 + $0x10] sm:$0xff]
      %v928 = vld [vmem:[%s9 + $0x18] sm:$0xff]
      %v929 = vpack.c.bf16 %v922, %v922
      %v930 = vpack.c.bf16 %v926, %v925
      %v931 = vpack.c.bf16 %v928, %v927
      %s932 = scalar_lea.vmem %s9, 32
      %v933 = vld [vmem:[%s932] sm:$0xff]
      %v934 = vld [vmem:[%s932 + $0x8] sm:$0xff]
      %v935 = vld [vmem:[%s932 + $0x10] sm:$0xff]
      %v936 = vld [vmem:[%s932 + $0x18] sm:$0xff]
      %v937 = vpack.c.bf16 %v911, %v911
      %v938 = vpack.c.bf16 %v934, %v933
      %v939 = vpack.c.bf16 %v936, %v935
      %v941 = vsel %vm539, %v937, 0
      %943 = vmatprep.subr.bf16.mxu0 0
      %944 = vmatpush1.bf16.msra.mxu0 %v938
      %945 = vmatprep.subr.bf16.mxu0 0
      %946 = vmatpush1.bf16.msra.mxu0 %v939
      %947 = vmatprep.subr.bf16.mxu0 0
      %948 = vmatpush1.bf16.msra.mxu0 0
      %949 = vmatprep.subr.bf16.mxu0 0
      %950 = vmatpush1.bf16.msra.mxu0 0
      %951 = vmatprep.subr.bf16.mxu0 0
      %952 = vmatpush1.bf16.msra.mxu0 0
      %953 = vmatprep.subr.bf16.mxu0 0
      %954 = vmatpush1.bf16.msra.mxu0 0
      %955 = vmatprep.subr.bf16.mxu0 0
      %956 = vmatpush1.bf16.msra.mxu0 0
      %957 = vmatprep.subr.bf16.mxu0 0
      %958 = vmatpush1.bf16.msra.mxu0 0
      %959 = vmatprep.subr.bf16.mxu0 0
      %960 = vmatpush1.bf16.msra.mxu0 0
      %961 = vmatprep.subr.bf16.mxu0 0
      %962 = vmatpush1.bf16.msra.mxu0 0
      %963 = vmatprep.subr.bf16.mxu0 0
      %964 = vmatpush1.bf16.msra.mxu0 0
      %965 = vmatprep.subr.bf16.mxu0 0
      %966 = vmatpush1.bf16.msra.mxu0 0
      %967 = vmatprep.subr.bf16.mxu0 0
      %968 = vmatpush1.bf16.msra.mxu0 0
      %969 = vmatprep.subr.bf16.mxu0 0
      %970 = vmatpush1.bf16.msra.mxu0 0
      %971 = vmatprep.subr.bf16.mxu0 0
      %972 = vmatpush1.bf16.msra.mxu0 0
      %973 = vmatprep.subr.bf16.mxu0 0
      %974 = vmatpush1.bf16.msra.mxu0 0
      %975 = vmatprep.mubr.bf16.mxu0 0
      %976 = vmatmul.mubr.bf16.gmra.mrb[0].mxu0 %v941
      %v977 = vpop.f32.mrb[0].mxu0
      %v978 = vadd.f32 0.0, %v977
      %v979 = vpop.f32.mrb[0].mxu0
      %v980 = vpop.f32.mrb[0].mxu0
      %v981 = vpop.f32.mrb[0].mxu0
      %982 = vdwg.mxu0
      %v984 = vsel %vm539, %v929, 0
      %986 = vmatprep.subr.bf16.mxu0 0
      %987 = vmatpush1.bf16.msra.mxu0 %v930
      %988 = vmatprep.subr.bf16.mxu0 0
      %989 = vmatpush1.bf16.msra.mxu0 %v931
      %990 = vmatprep.subr.bf16.mxu0 0
      %991 = vmatpush1.bf16.msra.mxu0 0
      %992 = vmatprep.subr.bf16.mxu0 0
      %993 = vmatpush1.bf16.msra.mxu0 0
      %994 = vmatprep.subr.bf16.mxu0 0
      %995 = vmatpush1.bf16.msra.mxu0 0
      %996 = vmatprep.subr.bf16.mxu0 0
      %997 = vmatpush1.bf16.msra.mxu0 0
      %998 = vmatprep.subr.bf16.mxu0 0
      %999 = vmatpush1.bf16.msra.mxu0 0
      %1000 = vmatprep.subr.bf16.mxu0 0
      %1001 = vmatpush1.bf16.msra.mxu0 0
      %1002 = vmatprep.subr.bf16.mxu0 0
      %1003 = vmatpush1.bf16.msra.mxu0 0
      %1004 = vmatprep.subr.bf16.mxu0 0
      %1005 = vmatpush1.bf16.msra.mxu0 0
      %1006 = vmatprep.subr.bf16.mxu0 0
      %1007 = vmatpush1.bf16.msra.mxu0 0
      %1008 = vmatprep.subr.bf16.mxu0 0
      %1009 = vmatpush1.bf16.msra.mxu0 0
      %1010 = vmatprep.subr.bf16.mxu0 0
      %1011 = vmatpush1.bf16.msra.mxu0 0
      %1012 = vmatprep.subr.bf16.mxu0 0
      %1013 = vmatpush1.bf16.msra.mxu0 0
      %1014 = vmatprep.subr.bf16.mxu0 0
      %1015 = vmatpush1.bf16.msra.mxu0 0
      %1016 = vmatprep.subr.bf16.mxu0 0
      %1017 = vmatpush1.bf16.msra.mxu0 0
      %1018 = vmatprep.mubr.bf16.mxu0 0
      %1019 = vmatmul.mubr.bf16.gmra.mrb[0].mxu0 %v984
      %v1020 = vpop.f32.mrb[0].mxu0
      %v1021 = vadd.f32 %v978, %v1020
      %v1022 = vpop.f32.mrb[0].mxu0
      %v1023 = vpop.f32.mrb[0].mxu0
      %v1024 = vpop.f32.mrb[0].mxu0
      %1025 = vdwg.mxu0
      %s1026 = scalar_lea.vmem %s9, 64
      %v1027 = vld [vmem:[%s1026] sm:$0xff]
      %v1028 = vld [vmem:[%s1026 + $0x8] sm:$0xff]
      %v1029 = vld [vmem:[%s1026 + $0x10] sm:$0xff]
      %v1030 = vld [vmem:[%s1026 + $0x18] sm:$0xff]
      %v1031 = vpack.c.bf16 %v924, %v924
      %v1032 = vpack.c.bf16 %v1028, %v1027
      %v1033 = vpack.c.bf16 %v1030, %v1029
      %v1035 = vsel %vm539, %v1031, 0
      %1037 = vmatprep.subr.bf16.mxu0 0
      %1038 = vmatpush1.bf16.msra.mxu0 %v1032
      %1039 = vmatprep.subr.bf16.mxu0 0
      %1040 = vmatpush1.bf16.msra.mxu0 %v1033
      %1041 = vmatprep.subr.bf16.mxu0 0
      %1042 = vmatpush1.bf16.msra.mxu0 0
      %1043 = vmatprep.subr.bf16.mxu0 0
      %1044 = vmatpush1.bf16.msra.mxu0 0
      %1045 = vmatprep.subr.bf16.mxu0 0
      %1046 = vmatpush1.bf16.msra.mxu0 0
      %1047 = vmatprep.subr.bf16.mxu0 0
      %1048 = vmatpush1.bf16.msra.mxu0 0
      %1049 = vmatprep.subr.bf16.mxu0 0
      %1050 = vmatpush1.bf16.msra.mxu0 0
      %1051 = vmatprep.subr.bf16.mxu0 0
      %1052 = vmatpush1.bf16.msra.mxu0 0
      %1053 = vmatprep.subr.bf16.mxu0 0
      %1054 = vmatpush1.bf16.msra.mxu0 0
      %1055 = vmatprep.subr.bf16.mxu0 0
      %1056 = vmatpush1.bf16.msra.mxu0 0
      %1057 = vmatprep.subr.bf16.mxu0 0
      %1058 = vmatpush1.bf16.msra.mxu0 0
      %1059 = vmatprep.subr.bf16.mxu0 0
      %1060 = vmatpush1.bf16.msra.mxu0 0
      %1061 = vmatprep.subr.bf16.mxu0 0
      %1062 = vmatpush1.bf16.msra.mxu0 0
      %1063 = vmatprep.subr.bf16.mxu0 0
      %1064 = vmatpush1.bf16.msra.mxu0 0
      %1065 = vmatprep.subr.bf16.mxu0 0
      %1066 = vmatpush1.bf16.msra.mxu0 0
      %1067 = vmatprep.subr.bf16.mxu0 0
      %1068 = vmatpush1.bf16.msra.mxu0 0
      %1069 = vmatprep.mubr.bf16.mxu0 0
      %1070 = vmatmul.mubr.bf16.gmra.mrb[0].mxu0 %v1035
      %v1071 = vpop.f32.mrb[0].mxu0
      %v1072 = vadd.f32 0.0, %v1071
      %v1073 = vpop.f32.mrb[0].mxu0
      %v1074 = vpop.f32.mrb[0].mxu0
      %v1075 = vpop.f32.mrb[0].mxu0
      %1076 = vdwg.mxu0
      %v1077 = vadd.f32 %v1021, %v1072
      %v1079 = vlaneseq
      %v1080 = vshrl.u32 %v1079, 7
      %v1081 = vsub.s32 0, %v1080
      %v1082 = vrot.slane %v920, %v1081
      %v1084 = vadd.f32 %v1077, %v1082
      %v1085 = vmax.f32 %v1084, 0.0
      %v1086 = vld [vmem:[%s12] sm:$0x1]
      %v1087 = vrot.slane %v1085, 7
      %v1088 = vmul.f32 %v1087, %v916
      %v1089 = vrot.slane %v1085, 1
      %v1090 = vmul.f32 %v1089, %v919
      %v1091 = vld [vmem:[%s11] sm:$0xff]
      %v1092 = vld [vmem:[%s11 + $0x8] sm:$0xff]
      %v1093 = vld [vmem:[%s11 + $0x10] sm:$0xff]
      %v1094 = vld [vmem:[%s11 + $0x18] sm:$0xff]
      %v1095 = vld [vmem:[%s11 + $0x20] sm:$0xff]
      %v1096 = vld [vmem:[%s11 + $0x28] sm:$0xff]
      %v1097 = vld [vmem:[%s11 + $0x30] sm:$0xff]
      %v1098 = vld [vmem:[%s11 + $0x38] sm:$0xff]
      %v1099 = vpack.c.bf16 %v1088, %v1088
      %v1100 = vpack.c.bf16 %v1092, %v1091
      %v1101 = vpack.c.bf16 %v1094, %v1093
      %v1102 = vpack.c.bf16 %v1096, %v1095
      %v1103 = vpack.c.bf16 %v1098, %v1097
      %s1104 = scalar_lea.vmem %s11, 64
      %v1105 = vld [vmem:[%s1104] sm:$0xff]
      %v1106 = vld [vmem:[%s1104 + $0x8] sm:$0xff]
      %v1107 = vld [vmem:[%s1104 + $0x10] sm:$0xff]
      %v1108 = vld [vmem:[%s1104 + $0x18] sm:$0xff]
      %v1109 = vld [vmem:[%s1104 + $0x20] sm:$0xff]
      %v1110 = vld [vmem:[%s1104 + $0x28] sm:$0xff]
      %v1111 = vld [vmem:[%s1104 + $0x30] sm:$0xff]
      %v1112 = vld [vmem:[%s1104 + $0x38] sm:$0xff]
      %v1113 = vpack.c.bf16 %v1085, %v1085
      %v1114 = vpack.c.bf16 %v1106, %v1105
      %v1115 = vpack.c.bf16 %v1108, %v1107
      %v1116 = vpack.c.bf16 %v1110, %v1109
      %v1117 = vpack.c.bf16 %v1112, %v1111
      %vm1118 = vcmask 523264
      %v1120 = vsel %vm1118, %v1113, 0
      %1122 = vmatprep.subr.bf16.mxu0 0
      %1123 = vmatpush1.bf16.msra.mxu0 %v1114
      %1124 = vmatprep.subr.bf16.mxu0 0
      %1125 = vmatpush1.bf16.msra.mxu0 %v1115
      %1126 = vmatprep.subr.bf16.mxu0 0
      %1127 = vmatpush1.bf16.msra.mxu0 %v1116
      %1128 = vmatprep.subr.bf16.mxu0 0
      %1129 = vmatpush1.bf16.msra.mxu0 %v1117
      %1130 = vmatprep.subr.bf16.mxu0 0
      %1131 = vmatpush1.bf16.msra.mxu0 0
      %1132 = vmatprep.subr.bf16.mxu0 0
      %1133 = vmatpush1.bf16.msra.mxu0 0
      %1134 = vmatprep.subr.bf16.mxu0 0
      %1135 = vmatpush1.bf16.msra.mxu0 0
      %1136 = vmatprep.subr.bf16.mxu0 0
      %1137 = vmatpush1.bf16.msra.mxu0 0
      %1138 = vmatprep.subr.bf16.mxu0 0
      %1139 = vmatpush1.bf16.msra.mxu0 0
      %1140 = vmatprep.subr.bf16.mxu0 0
      %1141 = vmatpush1.bf16.msra.mxu0 0
      %1142 = vmatprep.subr.bf16.mxu0 0
      %1143 = vmatpush1.bf16.msra.mxu0 0
      %1144 = vmatprep.subr.bf16.mxu0 0
      %1145 = vmatpush1.bf16.msra.mxu0 0
      %1146 = vmatprep.subr.bf16.mxu0 0
      %1147 = vmatpush1.bf16.msra.mxu0 0
      %1148 = vmatprep.subr.bf16.mxu0 0
      %1149 = vmatpush1.bf16.msra.mxu0 0
      %1150 = vmatprep.subr.bf16.mxu0 0
      %1151 = vmatpush1.bf16.msra.mxu0 0
      %1152 = vmatprep.subr.bf16.mxu0 0
      %1153 = vmatpush1.bf16.msra.mxu0 0
      %1154 = vmatprep.mubr.bf16.mxu0 0
      %1155 = vmatmul.mubr.bf16.gmra.mrb[0].mxu0 %v1120
      %v1156 = vpop.f32.mrb[0].mxu0
      %v1157 = vadd.f32 0.0, %v1156
      %v1158 = vpop.f32.mrb[0].mxu0
      %v1159 = vpop.f32.mrb[0].mxu0
      %v1160 = vpop.f32.mrb[0].mxu0
      %1161 = vdwg.mxu0
      %v1163 = vsel %vm1118, %v1099, 0
      %1165 = vmatprep.subr.bf16.mxu0 0
      %1166 = vmatpush1.bf16.msra.mxu0 %v1100
      %1167 = vmatprep.subr.bf16.mxu0 0
      %1168 = vmatpush1.bf16.msra.mxu0 %v1101
      %1169 = vmatprep.subr.bf16.mxu0 0
      %1170 = vmatpush1.bf16.msra.mxu0 %v1102
      %1171 = vmatprep.subr.bf16.mxu0 0
      %1172 = vmatpush1.bf16.msra.mxu0 %v1103
      %1173 = vmatprep.subr.bf16.mxu0 0
      %1174 = vmatpush1.bf16.msra.mxu0 0
      %1175 = vmatprep.subr.bf16.mxu0 0
      %1176 = vmatpush1.bf16.msra.mxu0 0
      %1177 = vmatprep.subr.bf16.mxu0 0
      %1178 = vmatpush1.bf16.msra.mxu0 0
      %1179 = vmatprep.subr.bf16.mxu0 0
      %1180 = vmatpush1.bf16.msra.mxu0 0
      %1181 = vmatprep.subr.bf16.mxu0 0
      %1182 = vmatpush1.bf16.msra.mxu0 0
      %1183 = vmatprep.subr.bf16.mxu0 0
      %1184 = vmatpush1.bf16.msra.mxu0 0
      %1185 = vmatprep.subr.bf16.mxu0 0
      %1186 = vmatpush1.bf16.msra.mxu0 0
      %1187 = vmatprep.subr.bf16.mxu0 0
      %1188 = vmatpush1.bf16.msra.mxu0 0
      %1189 = vmatprep.subr.bf16.mxu0 0
      %1190 = vmatpush1.bf16.msra.mxu0 0
      %1191 = vmatprep.subr.bf16.mxu0 0
      %1192 = vmatpush1.bf16.msra.mxu0 0
      %1193 = vmatprep.subr.bf16.mxu0 0
      %1194 = vmatpush1.bf16.msra.mxu0 0
      %1195 = vmatprep.subr.bf16.mxu0 0
      %1196 = vmatpush1.bf16.msra.mxu0 0
      %1197 = vmatprep.mubr.bf16.mxu0 0
      %1198 = vmatmul.mubr.bf16.gmra.mrb[0].mxu0 %v1163
      %v1199 = vpop.f32.mrb[0].mxu0
      %v1200 = vadd.f32 %v1157, %v1199
      %v1201 = vpop.f32.mrb[0].mxu0
      %v1202 = vpop.f32.mrb[0].mxu0
      %v1203 = vpop.f32.mrb[0].mxu0
      %1204 = vdwg.mxu0
      %s1205 = scalar_lea.vmem %s11, 128
      %v1206 = vld [vmem:[%s1205] sm:$0xff]
      %v1207 = vld [vmem:[%s1205 + $0x8] sm:$0xff]
      %v1208 = vld [vmem:[%s1205 + $0x10] sm:$0xff]
      %v1209 = vld [vmem:[%s1205 + $0x18] sm:$0xff]
      %v1210 = vld [vmem:[%s1205 + $0x20] sm:$0xff]
      %v1211 = vld [vmem:[%s1205 + $0x28] sm:$0xff]
      %v1212 = vld [vmem:[%s1205 + $0x30] sm:$0xff]
      %v1213 = vld [vmem:[%s1205 + $0x38] sm:$0xff]
      %v1214 = vpack.c.bf16 %v1090, %v1090
      %v1215 = vpack.c.bf16 %v1207, %v1206
      %v1216 = vpack.c.bf16 %v1209, %v1208
      %v1217 = vpack.c.bf16 %v1211, %v1210
      %v1218 = vpack.c.bf16 %v1213, %v1212
      %v1220 = vsel %vm1118, %v1214, 0
      %1222 = vmatprep.subr.bf16.mxu0 0
      %1223 = vmatpush1.bf16.msra.mxu0 %v1215
      %1224 = vmatprep.subr.bf16.mxu0 0
      %1225 = vmatpush1.bf16.msra.mxu0 %v1216
      %1226 = vmatprep.subr.bf16.mxu0 0
      %1227 = vmatpush1.bf16.msra.mxu0 %v1217
      %1228 = vmatprep.subr.bf16.mxu0 0
      %1229 = vmatpush1.bf16.msra.mxu0 %v1218
      %1230 = vmatprep.subr.bf16.mxu0 0
      %1231 = vmatpush1.bf16.msra.mxu0 0
      %1232 = vmatprep.subr.bf16.mxu0 0
      %1233 = vmatpush1.bf16.msra.mxu0 0
      %1234 = vmatprep.subr.bf16.mxu0 0
      %1235 = vmatpush1.bf16.msra.mxu0 0
      %1236 = vmatprep.subr.bf16.mxu0 0
      %1237 = vmatpush1.bf16.msra.mxu0 0
      %1238 = vmatprep.subr.bf16.mxu0 0
      %1239 = vmatpush1.bf16.msra.mxu0 0
      %1240 = vmatprep.subr.bf16.mxu0 0
      %1241 = vmatpush1.bf16.msra.mxu0 0
      %1242 = vmatprep.subr.bf16.mxu0 0
      %1243 = vmatpush1.bf16.msra.mxu0 0
      %1244 = vmatprep.subr.bf16.mxu0 0
      %1245 = vmatpush1.bf16.msra.mxu0 0
      %1246 = vmatprep.subr.bf16.mxu0 0
      %1247 = vmatpush1.bf16.msra.mxu0 0
      %1248 = vmatprep.subr.bf16.mxu0 0
      %1249 = vmatpush1.bf16.msra.mxu0 0
      %1250 = vmatprep.subr.bf16.mxu0 0
      %1251 = vmatpush1.bf16.msra.mxu0 0
      %1252 = vmatprep.subr.bf16.mxu0 0
      %1253 = vmatpush1.bf16.msra.mxu0 0
      %1254 = vmatprep.mubr.bf16.mxu0 0
      %1255 = vmatmul.mubr.bf16.gmra.mrb[0].mxu0 %v1220
      %v1256 = vpop.f32.mrb[0].mxu0
      %v1257 = vadd.f32 0.0, %v1256
      %v1258 = vpop.f32.mrb[0].mxu0
      %v1259 = vpop.f32.mrb[0].mxu0
      %v1260 = vpop.f32.mrb[0].mxu0
      %1261 = vdwg.mxu0
      %v1262 = vadd.f32 %v1200, %v1257
      %v1264 = vlaneseq
      %v1265 = vshrl.u32 %v1264, 7
      %v1266 = vsub.s32 0, %v1265
      %v1267 = vrot.slane %v1086, %v1266
      %v1269 = vadd.f32 %v1262, %v1267
      %v1270 = vadd.f32 %v1269, %v911
      %v1271 = vld [vmem:[%s13] sm:$0x1]
      %v1272 = vld [vmem:[%s14] sm:$0x1]
      %v1273 = vsel %vm539, %v1270, 0.0
      %1274 = vadd.xlane.f32.xlu0 %v1273
      %v1275 = vpop.xlane.xlu0 %1274
      %v1276 = vmul.f32 %v1275, %v881
      %v1277 = vsub.f32 %v1270, %v1276
      %v1278 = vmul.f32 %v1277, %v1277
      %v1279 = vsel %vm539, %v1278, 0.0
      %1280 = vadd.xlane.f32.xlu0 %v1279
      %v1281 = vpop.xlane.xlu0 %1280
      %v1282 = vmul.f32 %v1281, %v881
      %v1283 = vadd.f32 %v1282, 1e-05
      %v1284 = vrsqrt.pop %v1283
      %v1285 = vmul.f32 %v1277, %v1284
      %v1287 = vlaneseq
      %v1288 = vshrl.u32 %v1287, 7
      %v1289 = vsub.s32 0, %v1288
      %v1290 = vrot.slane %v1271, %v1289
      %v1292 = vmul.f32 %v1285, %v1290
      %v1294 = vlaneseq
      %v1295 = vshrl.u32 %v1294, 7
      %v1296 = vsub.s32 0, %v1295
      %v1297 = vrot.slane %v1272, %v1296
      %v1299 = vadd.f32 %v1292, %v1297
      %v1300 = vmul.f32 %v1299, %v909
      %1301 = vst.msk [vmem:[%s520] sm:$0xff] %vm539, %v1300
      %p1302 = scmp.lt.s32.totalorder %s26, 1
      %s1303 = scalar_select %p1302, %s26, 1
      %s1304 = smul.addr %s1303, 8
      %s1305 = scalar_lea.vmem %s15, %s1304
      // Predicated region
      $region81: #{fastspeech2_forward.5} parent=79 // pred_check
        %p1306 = pneg %p374
      $region82: #{fastspeech2_forward.5} parent=79 // pred_check_branch
        %1308 = sbr.rel (%p1306) target = $region84
      $region83: #{fastspeech2_forward.5} parent=79 // pred_region
        _
      $region84: #{fastspeech2_forward.5} parent=79 // pred_fallthru
        _
    $region80: #{fastspeech2_forward.5} parent=5 // pred_fallthru
      _
    %p1309 = scmp.le.s32.totalorder 2, %s21
    // Predicated region
    $region85: #{fastspeech2_forward.5} parent=5 // pred_check
      %p1310 = pneg %p1309
    $region86: #{fastspeech2_forward.5} parent=5 // pred_check_branch
      %1312 = sbr.rel (%p1310) target = $region88
    $region87: #{fastspeech2_forward.5} parent=5 // pred_region
      %s1313 = ssub.s32 %s21, 2
      // Predicated region
      $region89: #{fastspeech2_forward.5} parent=87 // pred_check
        %p1314 = pneg %p380
      $region90: #{fastspeech2_forward.5} parent=87 // pred_check_branch
        %1316 = sbr.rel (%p1314) target = $region92
      $region91: #{fastspeech2_forward.5} parent=87 // pred_region
        %p1317 = scmp.lt.s32.totalorder %s27, 1
        %s1318 = scalar_select %p1317, %s27, 1
        %s1319 = smul.addr %s1318, 8
        %s1320 = scalar_lea.vmem %s15, %s1319
      $region92: #{fastspeech2_forward.5} parent=87 // pred_fallthru
        _
    $region88: #{fastspeech2_forward.5} parent=5 // pred_fallthru
      _
  $region6: #{fastspeech2_forward.5} parent=0 // loop_footer
    %s25 = sadd.s32 1, %s21
  $region7: #{fastspeech2_forward.5} parent=0 // loop_footer_branch
    %20 = sbr.rel target = $region3
  $region8: #{fastspeech2_forward.5} parent=0 // loop_exit
    _

// kernel: fastspeech2_forward.7
$region0: #{fastspeech2_forward.7}
  #allocation0 [shape = 'u32[]', space=smem, size = 0x4, offset = 0x4, fixed_abs, tag = 'smem constant byte address 0x4 - core index']
  #allocation1 [shape = 'u32[144,128]{1,0:T(1,128)}', space=vmem, size = 0x12000, scoped, tag = 'internal scratch']
  #allocation2 [shape = 'f32[1,1]{1,0:T(1,128)S(1)}', space=vmem, size = 0x200, scoped, tag = 'scoped memory for fastspeech2_forward.7']
  %s0 = inlined_call_operand.vmem [shape: f32[2,16,32], index: 0, kind: input, shape index: {}]
  %s1 = inlined_call_operand.vmem [shape: f32[2,1,16], index: 1, kind: input, shape index: {}]
  %s2 = inlined_call_operand.vmem [shape: f32[3,32,64], index: 2, kind: input, shape index: {}]
  %s3 = inlined_call_operand.vmem [shape: f32[1,64], index: 3, kind: input, shape index: {}]
  %s4 = inlined_call_operand.vmem [shape: f32[1,64], index: 4, kind: input, shape index: {}]
  %s5 = inlined_call_operand.vmem [shape: f32[1,64], index: 5, kind: input, shape index: {}]
  %s6 = inlined_call_operand.vmem [shape: f32[3,64,64], index: 6, kind: input, shape index: {}]
  %s7 = inlined_call_operand.vmem [shape: f32[1,64], index: 7, kind: input, shape index: {}]
  %s8 = inlined_call_operand.vmem [shape: f32[1,64], index: 8, kind: input, shape index: {}]
  %s9 = inlined_call_operand.vmem [shape: f32[1,64], index: 9, kind: input, shape index: {}]
  %s10 = inlined_call_operand.vmem [shape: f32[1,64], index: 10, kind: input, shape index: {}]
  %s11 = inlined_call_operand.<no memory space> [shape: f32[1,1], index: 11, kind: input, shape index: {}]
  %s12 = inlined_call_operand.hbm [shape: f32[2,1,16], index: 12, kind: output, shape index: {}]
  %s13 = sld [smem:[#allocation0]]
  $region81: #{fastspeech2_forward.7} parent=0
    _
  %s15 = ssub.s32 1, %s13
  %s16 = scalar_select 0, %s15, %s13
  %v17 = vstv %s11
  %18 = vst [vmem:[#allocation2] sm:$0x1] %v17
  $region1: #{fastspeech2_forward.7} parent=0
    #allocation3 [shape = 'u8[1024]{0}', space=vmem, size = 0x400, scoped, tag = 'output window, operand 0']
    #allocation4 [shape = 's32[2]{0}', space=sflag, size = 0x8, scoped, tag = 'scoped memory for fastspeech2_forward.7']
    %19 = vsyncpa [#allocation4], 0
    %s20 = scalar_lea.sflag [#allocation4], 1
    %21 = vsyncpa %s20, 0
    loop: start=0, step=1, limit=4
    $region2: #{fastspeech2_forward.7} parent=1 // loop_pre_header
      _
    $region3: #{fastspeech2_forward.7} parent=1 // loop_header
      %s23 = sphi 0, %s27
      %p24 = scmp.ge.s32.totalorder %s23, 4
      %s33 = sphi 0, %s35
      %s36 = sphi 0, %s33
      %s37 = sphi 0, %s36
      %s53 = sphi 0, %s37
      %s59 = sphi 0, %s61
      %s62 = sphi 0, %s59
      %s63 = sphi 0, %s62
      %s79 = sphi 0, %s63
      %s83 = sphi 0, %s83
      %s85 = sphi 0, %s83
      %s86 = sphi 0, %s85
      %s100 = sphi 0, %s86
      %s104 = sphi 0, %s104
      %s106 = sphi 0, %s104
      %s107 = sphi 0, %s106
      %s121 = sphi 0, %s107
      %s125 = sphi 0, %s125
      %s127 = sphi 0, %s125
      %s128 = sphi 0, %s127
      %s142 = sphi 0, %s128
      %s146 = sphi 0, %s146
      %s148 = sphi 0, %s146
      %s149 = sphi 0, %s148
      %s163 = sphi 0, %s149
      %s167 = sphi 0, %s167
      %s169 = sphi 0, %s167
      %s170 = sphi 0, %s169
      %s184 = sphi 0, %s170
      %s188 = sphi 0, %s188
      %s190 = sphi 0, %s188
      %s191 = sphi 0, %s190
      %s205 = sphi 0, %s191
      %s209 = sphi 0, %s209
      %s211 = sphi 0, %s209
      %s212 = sphi 0, %s211
      %s226 = sphi 0, %s212
      %s230 = sphi 0, %s230
      %s232 = sphi 0, %s230
      %s233 = sphi 0, %s232
      %s247 = sphi 0, %s233
      %s251 = sphi 0, %s251
      %s253 = sphi 0, %s251
      %s254 = sphi 0, %s253
      %s268 = sphi 0, %s254
      %s272 = sphi 0, %s272
      %s274 = sphi 0, %s272
      %s275 = sphi 0, %s274
      %s289 = sphi 0, %s275
      %s295 = sphi 0, %s297
      %s298 = sphi 0, %s295
      %s299 = sphi 0, %s298
      %s315 = sphi 0, %s299
    $region4: #{fastspeech2_forward.7} parent=1 // loop_header_branch
      %26 = sbr.rel (%p24) target = $region8
    $region5: #{fastspeech2_forward.7} parent=1 // loop_body
      %s28 = ssub.s32 %s23, 1
      %s29 = ssub.s32 %s23, 2
      %s30 = sadd.s32 %s23, 1
      %s31 = ssub.s32 %s23, %s30
      %p32 = scmp.eq.s32.totalorder %s31, 0
      %s34 = sadd.s32 %s33, 1
      %s35 = scalar_select %p32, %s33, %s34
      %p38 = pneg %p32
      %p39 = scmp.eq.s32.totalorder %s23, 1
      %p40 = por %p38, %p39
      %p41 = scmp.ne.s32.totalorder %s33, %s36
      %p42 = scmp.eq.s32.totalorder %s23, 0
      %p43 = por %p41, %p42
      %p44 = scmp.ne.s32.totalorder %s33, %s36
      %p45 = scmp.eq.s32.totalorder %s28, 1
      %p46 = por %p44, %p45
      %p47 = scmp.ne.s32.totalorder %s36, %s37
      %p48 = scmp.eq.s32.totalorder %s28, 0
      %p49 = por %p47, %p48
      %p50 = scmp.ne.s32.totalorder %s36, %s37
      %p51 = scmp.eq.s32.totalorder %s29, 1
      %p52 = por %p50, %p51
      %p54 = scmp.ne.s32.totalorder %s37, %s53
      %p55 = scmp.eq.s32.totalorder %s29, 0
      %p56 = por %p54, %p55
      %s57 = ssub.s32 %s23, %s30
      %p58 = scmp.eq.s32.totalorder %s57, 0
      %s60 = sadd.s32 %s59, 1
      %s61 = scalar_select %p58, %s59, %s60
      %p64 = pneg %p58
      %p65 = scmp.eq.s32.totalorder %s23, 1
      %p66 = por %p64, %p65
      %p67 = scmp.ne.s32.totalorder %s59, %s62
      %p68 = scmp.eq.s32.totalorder %s23, 0
      %p69 = por %p67, %p68
      %p70 = scmp.ne.s32.totalorder %s59, %s62
      %p71 = scmp.eq.s32.totalorder %s28, 1
      %p72 = por %p70, %p71
      %p73 = scmp.ne.s32.totalorder %s62, %s63
      %p74 = scmp.eq.s32.totalorder %s28, 0
      %p75 = por %p73, %p74
      %p76 = scmp.ne.s32.totalorder %s62, %s63
      %p77 = scmp.eq.s32.totalorder %s29, 1
      %p78 = por %p76, %p77
      %p80 = scmp.ne.s32.totalorder %s63, %s79
      %p81 = scmp.eq.s32.totalorder %s29, 0
      %p82 = por %p80, %p81
      %s84 = sadd.s32 %s83, 1
      %p87 = scmp.eq.s32.totalorder %s23, 1
      %p88 = scmp.ne.s32.totalorder %s83, %s85
      %p89 = scmp.eq.s32.totalorder %s23, 0
      %p90 = por %p88, %p89
      %p91 = scmp.ne.s32.totalorder %s83, %s85
      %p92 = scmp.eq.s32.totalorder %s28, 1
      %p93 = por %p91, %p92
      %p94 = scmp.ne.s32.totalorder %s85, %s86
      %p95 = scmp.eq.s32.totalorder %s28, 0
      %p96 = por %p94, %p95
      %p97 = scmp.ne.s32.totalorder %s85, %s86
      %p98 = scmp.eq.s32.totalorder %s29, 1
      %p99 = por %p97, %p98
      %p101 = scmp.ne.s32.totalorder %s86, %s100
      %p102 = scmp.eq.s32.totalorder %s29, 0
      %p103 = por %p101, %p102
      %s105 = sadd.s32 %s104, 1
      %p108 = scmp.eq.s32.totalorder %s23, 1
      %p109 = scmp.ne.s32.totalorder %s104, %s106
      %p110 = scmp.eq.s32.totalorder %s23, 0
      %p111 = por %p109, %p110
      %p112 = scmp.ne.s32.totalorder %s104, %s106
      %p113 = scmp.eq.s32.totalorder %s28, 1
      %p114 = por %p112, %p113
      %p115 = scmp.ne.s32.totalorder %s106, %s107
      %p116 = scmp.eq.s32.totalorder %s28, 0
      %p117 = por %p115, %p116
      %p118 = scmp.ne.s32.totalorder %s106, %s107
      %p119 = scmp.eq.s32.totalorder %s29, 1
      %p120 = por %p118, %p119
      %p122 = scmp.ne.s32.totalorder %s107, %s121
      %p123 = scmp.eq.s32.totalorder %s29, 0
      %p124 = por %p122, %p123
      %s126 = sadd.s32 %s125, 1
      %p129 = scmp.eq.s32.totalorder %s23, 1
      %p130 = scmp.ne.s32.totalorder %s125, %s127
      %p131 = scmp.eq.s32.totalorder %s23, 0
      %p132 = por %p130, %p131
      %p133 = scmp.ne.s32.totalorder %s125, %s127
      %p134 = scmp.eq.s32.totalorder %s28, 1
      %p135 = por %p133, %p134
      %p136 = scmp.ne.s32.totalorder %s127, %s128
      %p137 = scmp.eq.s32.totalorder %s28, 0
      %p138 = por %p136, %p137
      %p139 = scmp.ne.s32.totalorder %s127, %s128
      %p140 = scmp.eq.s32.totalorder %s29, 1
      %p141 = por %p139, %p140
      %p143 = scmp.ne.s32.totalorder %s128, %s142
      %p144 = scmp.eq.s32.totalorder %s29, 0
      %p145 = por %p143, %p144
      %s147 = sadd.s32 %s146, 1
      %p150 = scmp.eq.s32.totalorder %s23, 1
      %p151 = scmp.ne.s32.totalorder %s146, %s148
      %p152 = scmp.eq.s32.totalorder %s23, 0
      %p153 = por %p151, %p152
      %p154 = scmp.ne.s32.totalorder %s146, %s148
      %p155 = scmp.eq.s32.totalorder %s28, 1
      %p156 = por %p154, %p155
      %p157 = scmp.ne.s32.totalorder %s148, %s149
      %p158 = scmp.eq.s32.totalorder %s28, 0
      %p159 = por %p157, %p158
      %p160 = scmp.ne.s32.totalorder %s148, %s149
      %p161 = scmp.eq.s32.totalorder %s29, 1
      %p162 = por %p160, %p161
      %p164 = scmp.ne.s32.totalorder %s149, %s163
      %p165 = scmp.eq.s32.totalorder %s29, 0
      %p166 = por %p164, %p165
      %s168 = sadd.s32 %s167, 1
      %p171 = scmp.eq.s32.totalorder %s23, 1
      %p172 = scmp.ne.s32.totalorder %s167, %s169
      %p173 = scmp.eq.s32.totalorder %s23, 0
      %p174 = por %p172, %p173
      %p175 = scmp.ne.s32.totalorder %s167, %s169
      %p176 = scmp.eq.s32.totalorder %s28, 1
      %p177 = por %p175, %p176
      %p178 = scmp.ne.s32.totalorder %s169, %s170
      %p179 = scmp.eq.s32.totalorder %s28, 0
      %p180 = por %p178, %p179
      %p181 = scmp.ne.s32.totalorder %s169, %s170
      %p182 = scmp.eq.s32.totalorder %s29, 1
      %p183 = por %p181, %p182
      %p185 = scmp.ne.s32.totalorder %s170, %s184
      %p186 = scmp.eq.s32.totalorder %s29, 0
      %p187 = por %p185, %p186
      %s189 = sadd.s32 %s188, 1
      %p192 = scmp.eq.s32.totalorder %s23, 1
      %p193 = scmp.ne.s32.totalorder %s188, %s190
      %p194 = scmp.eq.s32.totalorder %s23, 0
      %p195 = por %p193, %p194
      %p196 = scmp.ne.s32.totalorder %s188, %s190
      %p197 = scmp.eq.s32.totalorder %s28, 1
      %p198 = por %p196, %p197
      %p199 = scmp.ne.s32.totalorder %s190, %s191
      %p200 = scmp.eq.s32.totalorder %s28, 0
      %p201 = por %p199, %p200
      %p202 = scmp.ne.s32.totalorder %s190, %s191
      %p203 = scmp.eq.s32.totalorder %s29, 1
      %p204 = por %p202, %p203
      %p206 = scmp.ne.s32.totalorder %s191, %s205
      %p207 = scmp.eq.s32.totalorder %s29, 0
      %p208 = por %p206, %p207
      %s210 = sadd.s32 %s209, 1
      %p213 = scmp.eq.s32.totalorder %s23, 1
      %p214 = scmp.ne.s32.totalorder %s209, %s211
      %p215 = scmp.eq.s32.totalorder %s23, 0
      %p216 = por %p214, %p215
      %p217 = scmp.ne.s32.totalorder %s209, %s211
      %p218 = scmp.eq.s32.totalorder %s28, 1
      %p219 = por %p217, %p218
      %p220 = scmp.ne.s32.totalorder %s211, %s212
      %p221 = scmp.eq.s32.totalorder %s28, 0
      %p222 = por %p220, %p221
      %p223 = scmp.ne.s32.totalorder %s211, %s212
      %p224 = scmp.eq.s32.totalorder %s29, 1
      %p225 = por %p223, %p224
      %p227 = scmp.ne.s32.totalorder %s212, %s226
      %p228 = scmp.eq.s32.totalorder %s29, 0
      %p229 = por %p227, %p228
      %s231 = sadd.s32 %s230, 1
      %p234 = scmp.eq.s32.totalorder %s23, 1
      %p235 = scmp.ne.s32.totalorder %s230, %s232
      %p236 = scmp.eq.s32.totalorder %s23, 0
      %p237 = por %p235, %p236
      %p238 = scmp.ne.s32.totalorder %s230, %s232
      %p239 = scmp.eq.s32.totalorder %s28, 1
      %p240 = por %p238, %p239
      %p241 = scmp.ne.s32.totalorder %s232, %s233
      %p242 = scmp.eq.s32.totalorder %s28, 0
      %p243 = por %p241, %p242
      %p244 = scmp.ne.s32.totalorder %s232, %s233
      %p245 = scmp.eq.s32.totalorder %s29, 1
      %p246 = por %p244, %p245
      %p248 = scmp.ne.s32.totalorder %s233, %s247
      %p249 = scmp.eq.s32.totalorder %s29, 0
      %p250 = por %p248, %p249
      %s252 = sadd.s32 %s251, 1
      %p255 = scmp.eq.s32.totalorder %s23, 1
      %p256 = scmp.ne.s32.totalorder %s251, %s253
      %p257 = scmp.eq.s32.totalorder %s23, 0
      %p258 = por %p256, %p257
      %p259 = scmp.ne.s32.totalorder %s251, %s253
      %p260 = scmp.eq.s32.totalorder %s28, 1
      %p261 = por %p259, %p260
      %p262 = scmp.ne.s32.totalorder %s253, %s254
      %p263 = scmp.eq.s32.totalorder %s28, 0
      %p264 = por %p262, %p263
      %p265 = scmp.ne.s32.totalorder %s253, %s254
      %p266 = scmp.eq.s32.totalorder %s29, 1
      %p267 = por %p265, %p266
      %p269 = scmp.ne.s32.totalorder %s254, %s268
      %p270 = scmp.eq.s32.totalorder %s29, 0
      %p271 = por %p269, %p270
      %s273 = sadd.s32 %s272, 1
      %p276 = scmp.eq.s32.totalorder %s23, 1
      %p277 = scmp.ne.s32.totalorder %s272, %s274
      %p278 = scmp.eq.s32.totalorder %s23, 0
      %p279 = por %p277, %p278
      %p280 = scmp.ne.s32.totalorder %s272, %s274
      %p281 = scmp.eq.s32.totalorder %s28, 1
      %p282 = por %p280, %p281
      %p283 = scmp.ne.s32.totalorder %s274, %s275
      %p284 = scmp.eq.s32.totalorder %s28, 0
      %p285 = por %p283, %p284
      %p286 = scmp.ne.s32.totalorder %s274, %s275
      %p287 = scmp.eq.s32.totalorder %s29, 1
      %p288 = por %p286, %p287
      %p290 = scmp.ne.s32.totalorder %s275, %s289
      %p291 = scmp.eq.s32.totalorder %s29, 0
      %p292 = por %p290, %p291
      %s293 = ssub.s32 %s23, %s30
      %p294 = scmp.eq.s32.totalorder %s293, 0
      %s296 = sadd.s32 %s295, 1
      %s297 = scalar_select %p294, %s295, %s296
      %p300 = pneg %p294
      %p301 = scmp.eq.s32.totalorder %s23, 1
      %p302 = por %p300, %p301
      %p303 = scmp.ne.s32.totalorder %s295, %s298
      %p304 = scmp.eq.s32.totalorder %s23, 0
      %p305 = por %p303, %p304
      %p306 = scmp.ne.s32.totalorder %s295, %s298
      %p307 = scmp.eq.s32.totalorder %s28, 1
      %p308 = por %p306, %p307
      %p309 = scmp.ne.s32.totalorder %s298, %s299
      %p310 = scmp.eq.s32.totalorder %s28, 0
      %p311 = por %p309, %p310
      %p312 = scmp.ne.s32.totalorder %s298, %s299
      %p313 = scmp.eq.s32.totalorder %s29, 1
      %p314 = por %p312, %p313
      %p316 = scmp.ne.s32.totalorder %s299, %s315
      %p317 = scmp.eq.s32.totalorder %s29, 0
      %p318 = por %p316, %p317
      %p319 = scmp.le.s32.totalorder 1, %s23
      %p320 = scmp.lt.s32.totalorder %s23, 3
      %p321 = pnand %p319, %p320
      %p322 = pneg %p321
      // Predicated region
      $region9: #{fastspeech2_forward.7} parent=5 // pred_check
        _
      $region10: #{fastspeech2_forward.7} parent=5 // pred_check_branch
        %324 = sbr.rel (%p321) target = $region12
      $region11: #{fastspeech2_forward.7} parent=5 // pred_region
        %s325 = ssub.s32 %s23, 1
        // Predicated region
        $region13: #{fastspeech2_forward.7} parent=11 // pred_check
          %p326 = pneg %p96
        $region14: #{fastspeech2_forward.7} parent=11 // pred_check_branch
          %328 = sbr.rel (%p326) target = $region16
        $region15: #{fastspeech2_forward.7} parent=11 // pred_region
          _
        $region16: #{fastspeech2_forward.7} parent=11 // pred_fallthru
          _
        // Predicated region
        $region17: #{fastspeech2_forward.7} parent=11 // pred_check
          %p329 = pneg %p117
        $region18: #{fastspeech2_forward.7} parent=11 // pred_check_branch
          %331 = sbr.rel (%p329) target = $region20
        $region19: #{fastspeech2_forward.7} parent=11 // pred_region
          _
        $region20: #{fastspeech2_forward.7} parent=11 // pred_fallthru
          _
        // Predicated region
        $region21: #{fastspeech2_forward.7} parent=11 // pred_check
          %p332 = pneg %p138
        $region22: #{fastspeech2_forward.7} parent=11 // pred_check_branch
          %334 = sbr.rel (%p332) target = $region24
        $region23: #{fastspeech2_forward.7} parent=11 // pred_region
          _
        $region24: #{fastspeech2_forward.7} parent=11 // pred_fallthru
          _
        // Predicated region
        $region25: #{fastspeech2_forward.7} parent=11 // pred_check
          %p335 = pneg %p159
        $region26: #{fastspeech2_forward.7} parent=11 // pred_check_branch
          %337 = sbr.rel (%p335) target = $region28
        $region27: #{fastspeech2_forward.7} parent=11 // pred_region
          _
        $region28: #{fastspeech2_forward.7} parent=11 // pred_fallthru
          _
        // Predicated region
        $region29: #{fastspeech2_forward.7} parent=11 // pred_check
          %p338 = pneg %p180
        $region30: #{fastspeech2_forward.7} parent=11 // pred_check_branch
          %340 = sbr.rel (%p338) target = $region32
        $region31: #{fastspeech2_forward.7} parent=11 // pred_region
          _
        $region32: #{fastspeech2_forward.7} parent=11 // pred_fallthru
          _
        // Predicated region
        $region33: #{fastspeech2_forward.7} parent=11 // pred_check
          %p341 = pneg %p201
        $region34: #{fastspeech2_forward.7} parent=11 // pred_check_branch
          %343 = sbr.rel (%p341) target = $region36
        $region35: #{fastspeech2_forward.7} parent=11 // pred_region
          _
        $region36: #{fastspeech2_forward.7} parent=11 // pred_fallthru
          _
        // Predicated region
        $region37: #{fastspeech2_forward.7} parent=11 // pred_check
          %p344 = pneg %p222
        $region38: #{fastspeech2_forward.7} parent=11 // pred_check_branch
          %346 = sbr.rel (%p344) target = $region40
        $region39: #{fastspeech2_forward.7} parent=11 // pred_region
          _
        $region40: #{fastspeech2_forward.7} parent=11 // pred_fallthru
          _
        // Predicated region
        $region41: #{fastspeech2_forward.7} parent=11 // pred_check
          %p347 = pneg %p243
        $region42: #{fastspeech2_forward.7} parent=11 // pred_check_branch
          %349 = sbr.rel (%p347) target = $region44
        $region43: #{fastspeech2_forward.7} parent=11 // pred_region
          _
        $region44: #{fastspeech2_forward.7} parent=11 // pred_fallthru
          _
        // Predicated region
        $region45: #{fastspeech2_forward.7} parent=11 // pred_check
          %p350 = pneg %p264
        $region46: #{fastspeech2_forward.7} parent=11 // pred_check_branch
          %352 = sbr.rel (%p350) target = $region48
        $region47: #{fastspeech2_forward.7} parent=11 // pred_region
          _
        $region48: #{fastspeech2_forward.7} parent=11 // pred_fallthru
          _
        // Predicated region
        $region49: #{fastspeech2_forward.7} parent=11 // pred_check
          %p353 = pneg %p285
        $region50: #{fastspeech2_forward.7} parent=11 // pred_check_branch
          %355 = sbr.rel (%p353) target = $region52
        $region51: #{fastspeech2_forward.7} parent=11 // pred_region
          _
        $region52: #{fastspeech2_forward.7} parent=11 // pred_fallthru
          _
      $region12: #{fastspeech2_forward.7} parent=5 // pred_fallthru
        _
      %p356 = scmp.lt.s32.totalorder %s23, 2
      // Predicated region
      $region53: #{fastspeech2_forward.7} parent=5 // pred_check
        %p357 = pneg %p356
      $region54: #{fastspeech2_forward.7} parent=5 // pred_check_branch
        %359 = sbr.rel (%p357) target = $region56
      $region55: #{fastspeech2_forward.7} parent=5 // pred_region
        // Predicated region
        $region57: #{fastspeech2_forward.7} parent=55 // pred_check
          %p360 = pneg %p43
        $region58: #{fastspeech2_forward.7} parent=55 // pred_check_branch
          %362 = sbr.rel (%p360) target = $region60
        $region59: #{fastspeech2_forward.7} parent=55 // pred_region
          %p363 = scmp.lt.s32.totalorder %s23, 1
          %s364 = scalar_select %p363, %s23, 1
          %s365 = smul.addr %s364, 2
          %s366 = smul.addr %s365, 8
          %s367 = scalar_lea.vmem %s0, %s366
        $region60: #{fastspeech2_forward.7} parent=55 // pred_fallthru
          _
        // Predicated region
        $region61: #{fastspeech2_forward.7} parent=55 // pred_check
          %p368 = pneg %p69
        $region62: #{fastspeech2_forward.7} parent=55 // pred_check_branch
          %370 = sbr.rel (%p368) target = $region64
        $region63: #{fastspeech2_forward.7} parent=55 // pred_region
          %p371 = scmp.lt.s32.totalorder %s23, 1
          %s372 = scalar_select %p371, %s23, 1
          %s373 = scalar_lea.vmem %s1, %s372
        $region64: #{fastspeech2_forward.7} parent=55 // pred_fallthru
          _
      $region56: #{fastspeech2_forward.7} parent=5 // pred_fallthru
        _
      %p374 = scmp.le.s32.totalorder 1, %s23
      %p375 = scmp.lt.s32.totalorder %s23, 3
      %p376 = pnand %p374, %p375
      %p377 = pneg %p376
      // Predicated region
      $region65: #{fastspeech2_forward.7} parent=5 // pred_check
        _
      $region66: #{fastspeech2_forward.7} parent=5 // pred_check_branch
        %379 = sbr.rel (%p376) target = $region68
      $region67: #{fastspeech2_forward.7} parent=5 // pred_region
        %s380 = ssub.s32 %s23, 1
        %p381 = scmp.lt.s32.totalorder %s28, 1
        %s382 = scalar_select %p381, %s28, 1
        %s383 = smul.addr %s382, 2
        %s384 = smul.addr %s383, 8
        %s385 = scalar_lea.vmem %s0, %s384
        %p386 = pneg %p49
        %p387 = pneg %p46
        %p388 = scmp.lt.s32.totalorder %s28, 1
        %s389 = scalar_select %p388, %s28, 1
        %s390 = scalar_lea.vmem %s1, %s389
        %p391 = pneg %p75
        %p392 = pneg %p72
        %p393 = pneg %p96
        %p394 = pneg %p93
        %p395 = pneg %p117
        %p396 = pneg %p114
        %p397 = pneg %p138
        %p398 = pneg %p135
        %p399 = pneg %p159
        %p400 = pneg %p156
        %p401 = pneg %p180
        %p402 = pneg %p177
        %p403 = pneg %p201
        %p404 = pneg %p198
        %p405 = pneg %p222
        %p406 = pneg %p219
        %p407 = pneg %p243
        %p408 = pneg %p240
        %p409 = pneg %p264
        %p410 = pneg %p261
        %p411 = pneg %p285
        %p412 = pneg %p282
        %p413 = pneg %p311
        %p414 = pneg %p308
        %s415 = sand.u32 %s298, 1
        %s416 = scalar_lea.sflag [#allocation4], %s415
        %s417 = sand.u32 %s298, 1
        %s418 = scalar_lea.vmem [#allocation3], %s417
        %p419 = scmp.lt.s32.totalorder %s28, 1
        %s420 = scalar_select %p419, %s28, 1
        %s421 = smul.addr %s420, 2
        %s422 = smul.addr %s421, 8
        %s423 = scalar_lea.vmem %s0, %s422
        %p424 = scmp.lt.s32.totalorder %s28, 1
        %s425 = scalar_select %p424, %s28, 1
        %s426 = scalar_lea.vmem %s1, %s425
        %v428 = vld [vmem:[%s423] sm:$0xff]
        %v429 = vld [vmem:[%s423 + $0x8] sm:$0xff]
        %v430 = vlaneseq
        %v431 = vshrl.u32 %v430, 7
        %v432 = vadd.s32 %v431, 8
        %vm433 = vcmp.ne.s32.totalorder %v431, 0
        %vm434 = vcmp.ne.s32.totalorder %v432, 0
        %v435 = vsel %vm433, 1, 0
        %v436 = vsel %vm434, 1, 0
        %v437 = vcvt.s32.f32 %v435
        %v438 = vcvt.s32.f32 %v436
        %vm439 = vcmp.ne.s32.totalorder %v431, 15
        %vm440 = vcmp.ne.s32.totalorder %v432, 15
        %v441 = vsel %vm439, 1, 0
        %v442 = vsel %vm440, 1, 0
        %v443 = vcvt.s32.f32 %v441
        %v444 = vcvt.s32.f32 %v442
        %v445 = vld [vmem:[%s3] sm:$0x1]
        %v446 = vrot.slane %v428, 7
        %v447 = vrot.slane %v429, 7
        %vm448 = vcmp.lt.s32.totalorder %v431, 1
        %v449 = vsel %vm448, %v446, %v447
        %v450 = vsel %vm448, %v447, %v446
        %v451 = vmul.f32 %v450, %v437
        %v452 = vmul.f32 %v449, %v438
        %v453 = vrot.slane %v428, 1
        %v454 = vrot.slane %v429, 1
        %vm455 = vcmp.lt.s32.totalorder %v431, 7
        %v456 = vsel %vm455, %v453, %v454
        %v457 = vsel %vm455, %v454, %v453
        %v458 = vmul.f32 %v456, %v443
        %v459 = vmul.f32 %v457, %v444
        %v460 = vld [vmem:[%s2] sm:$0xff]
        %v461 = vld [vmem:[%s2 + $0x8] sm:$0xff]
        %v462 = vld [vmem:[%s2 + $0x10] sm:$0xff]
        %v463 = vld [vmem:[%s2 + $0x18] sm:$0xff]
        %v464 = vpack.c.bf16 %v452, %v451
        %v465 = vpack.c.bf16 %v461, %v460
        %v466 = vpack.c.bf16 %v463, %v462
        %s467 = scalar_lea.vmem %s2, 32
        %v468 = vld [vmem:[%s467] sm:$0xff]
        %v469 = vld [vmem:[%s467 + $0x8] sm:$0xff]
        %v470 = vld [vmem:[%s467 + $0x10] sm:$0xff]
        %v471 = vld [vmem:[%s467 + $0x18] sm:$0xff]
        %v472 = vpack.c.bf16 %v429, %v428
        %v473 = vpack.c.bf16 %v469, %v468
        %v474 = vpack.c.bf16 %v471, %v470
        %vm475 = vcmask 261120
        %v477 = vsel %vm475, %v472, 0
        %479 = vmatprep.subr.bf16.mxu0 0
        %480 = vmatpush1.bf16.msra.mxu0 %v473
        %481 = vmatprep.subr.bf16.mxu0 0
        %482 = vmatpush1.bf16.msra.mxu0 %v474
        %483 = vmatprep.subr.bf16.mxu0 0
        %484 = vmatpush1.bf16.msra.mxu0 0
        %485 = vmatprep.subr.bf16.mxu0 0
        %486 = vmatpush1.bf16.msra.mxu0 0
        %487 = vmatprep.subr.bf16.mxu0 0
        %488 = vmatpush1.bf16.msra.mxu0 0
        %489 = vmatprep.subr.bf16.mxu0 0
        %490 = vmatpush1.bf16.msra.mxu0 0
        %491 = vmatprep.subr.bf16.mxu0 0
        %492 = vmatpush1.bf16.msra.mxu0 0
        %493 = vmatprep.subr.bf16.mxu0 0
        %494 = vmatpush1.bf16.msra.mxu0 0
        %495 = vmatprep.subr.bf16.mxu0 0
        %496 = vmatpush1.bf16.msra.mxu0 0
        %497 = vmatprep.subr.bf16.mxu0 0
        %498 = vmatpush1.bf16.msra.mxu0 0
        %499 = vmatprep.subr.bf16.mxu0 0
        %500 = vmatpush1.bf16.msra.mxu0 0
        %501 = vmatprep.subr.bf16.mxu0 0
        %502 = vmatpush1.bf16.msra.mxu0 0
        %503 = vmatprep.subr.bf16.mxu0 0
        %504 = vmatpush1.bf16.msra.mxu0 0
        %505 = vmatprep.subr.bf16.mxu0 0
        %506 = vmatpush1.bf16.msra.mxu0 0
        %507 = vmatprep.subr.bf16.mxu0 0
        %508 = vmatpush1.bf16.msra.mxu0 0
        %509 = vmatprep.subr.bf16.mxu0 0
        %510 = vmatpush1.bf16.msra.mxu0 0
        %511 = vmatprep.mubr.bf16.mxu0 0
        %512 = vmatmul.mubr.bf16.gmra.mrb[0].mxu0 %v477
        %v513 = vpop.f32.mrb[0].mxu0
        %v514 = vadd.f32 0.0, %v513
        %v515 = vpop.f32.mrb[0].mxu0
        %v516 = vpop.f32.mrb[0].mxu0
        %v517 = vadd.f32 0.0, %v516
        %v518 = vpop.f32.mrb[0].mxu0
        %519 = vdwg.mxu0
        %v521 = vsel %vm475, %v464, 0
        %523 = vmatprep.subr.bf16.mxu0 0
        %524 = vmatpush1.bf16.msra.mxu0 %v465
        %525 = vmatprep.subr.bf16.mxu0 0
        %526 = vmatpush1.bf16.msra.mxu0 %v466
        %527 = vmatprep.subr.bf16.mxu0 0
        %528 = vmatpush1.bf16.msra.mxu0 0
        %529 = vmatprep.subr.bf16.mxu0 0
        %530 = vmatpush1.bf16.msra.mxu0 0
        %531 = vmatprep.subr.bf16.mxu0 0
        %532 = vmatpush1.bf16.msra.mxu0 0
        %533 = vmatprep.subr.bf16.mxu0 0
        %534 = vmatpush1.bf16.msra.mxu0 0
        %535 = vmatprep.subr.bf16.mxu0 0
        %536 = vmatpush1.bf16.msra.mxu0 0
        %537 = vmatprep.subr.bf16.mxu0 0
        %538 = vmatpush1.bf16.msra.mxu0 0
        %539 = vmatprep.subr.bf16.mxu0 0
        %540 = vmatpush1.bf16.msra.mxu0 0
        %541 = vmatprep.subr.bf16.mxu0 0
        %542 = vmatpush1.bf16.msra.mxu0 0
        %543 = vmatprep.subr.bf16.mxu0 0
        %544 = vmatpush1.bf16.msra.mxu0 0
        %545 = vmatprep.subr.bf16.mxu0 0
        %546 = vmatpush1.bf16.msra.mxu0 0
        %547 = vmatprep.subr.bf16.mxu0 0
        %548 = vmatpush1.bf16.msra.mxu0 0
        %549 = vmatprep.subr.bf16.mxu0 0
        %550 = vmatpush1.bf16.msra.mxu0 0
        %551 = vmatprep.subr.bf16.mxu0 0
        %552 = vmatpush1.bf16.msra.mxu0 0
        %553 = vmatprep.subr.bf16.mxu0 0
        %554 = vmatpush1.bf16.msra.mxu0 0
        %555 = vmatprep.mubr.bf16.mxu0 0
        %556 = vmatmul.mubr.bf16.gmra.mrb[0].mxu0 %v521
        %v557 = vpop.f32.mrb[0].mxu0
        %v558 = vadd.f32 %v514, %v557
        %v559 = vpop.f32.mrb[0].mxu0
        %v560 = vpop.f32.mrb[0].mxu0
        %v561 = vadd.f32 %v517, %v560
        %v562 = vpop.f32.mrb[0].mxu0
        %563 = vdwg.mxu0
        %s564 = scalar_lea.vmem %s2, 64
        %v565 = vld [vmem:[%s564] sm:$0xff]
        %v566 = vld [vmem:[%s564 + $0x8] sm:$0xff]
        %v567 = vld [vmem:[%s564 + $0x10] sm:$0xff]
        %v568 = vld [vmem:[%s564 + $0x18] sm:$0xff]
        %v569 = vpack.c.bf16 %v459, %v458
        %v570 = vpack.c.bf16 %v566, %v565
        %v571 = vpack.c.bf16 %v568, %v567
        %v573 = vsel %vm475, %v569, 0
        %575 = vmatprep.subr.bf16.mxu0 0
        %576 = vmatpush1.bf16.msra.mxu0 %v570
        %577 = vmatprep.subr.bf16.mxu0 0
        %578 = vmatpush1.bf16.msra.mxu0 %v571
        %579 = vmatprep.subr.bf16.mxu0 0
        %580 = vmatpush1.bf16.msra.mxu0 0
        %581 = vmatprep.subr.bf16.mxu0 0
        %582 = vmatpush1.bf16.msra.mxu0 0
        %583 = vmatprep.subr.bf16.mxu0 0
        %584 = vmatpush1.bf16.msra.mxu0 0
        %585 = vmatprep.subr.bf16.mxu0 0
        %586 = vmatpush1.bf16.msra.mxu0 0
        %587 = vmatprep.subr.bf16.mxu0 0
        %588 = vmatpush1.bf16.msra.mxu0 0
        %589 = vmatprep.subr.bf16.mxu0 0
        %590 = vmatpush1.bf16.msra.mxu0 0
        %591 = vmatprep.subr.bf16.mxu0 0
        %592 = vmatpush1.bf16.msra.mxu0 0
        %593 = vmatprep.subr.bf16.mxu0 0
        %594 = vmatpush1.bf16.msra.mxu0 0
        %595 = vmatprep.subr.bf16.mxu0 0
        %596 = vmatpush1.bf16.msra.mxu0 0
        %597 = vmatprep.subr.bf16.mxu0 0
        %598 = vmatpush1.bf16.msra.mxu0 0
        %599 = vmatprep.subr.bf16.mxu0 0
        %600 = vmatpush1.bf16.msra.mxu0 0
        %601 = vmatprep.subr.bf16.mxu0 0
        %602 = vmatpush1.bf16.msra.mxu0 0
        %603 = vmatprep.subr.bf16.mxu0 0
        %604 = vmatpush1.bf16.msra.mxu0 0
        %605 = vmatprep.subr.bf16.mxu0 0
        %606 = vmatpush1.bf16.msra.mxu0 0
        %607 = vmatprep.mubr.bf16.mxu0 0
        %608 = vmatmul.mubr.bf16.gmra.mrb[0].mxu0 %v573
        %v609 = vpop.f32.mrb[0].mxu0
        %v610 = vadd.f32 0.0, %v609
        %v611 = vpop.f32.mrb[0].mxu0
        %v612 = vpop.f32.mrb[0].mxu0
        %v613 = vadd.f32 0.0, %v612
        %v614 = vpop.f32.mrb[0].mxu0
        %615 = vdwg.mxu0
        %v616 = vadd.f32 %v558, %v610
        %v617 = vadd.f32 %v561, %v613
        %v619 = vlaneseq
        %v620 = vshrl.u32 %v619, 7
        %v621 = vsub.s32 0, %v620
        %v622 = vrot.slane %v445, %v621
        %v624 = vadd.f32 %v616, %v622
        %v625 = vadd.f32 %v617, %v622
        %v626 = vmax.f32 %v624, 0.0
        %v627 = vmax.f32 %v625, 0.0
        %v628 = vld [vmem:[%s4] sm:$0x1]
        %v629 = vld [vmem:[%s5] sm:$0x1]
        %vm630 = vcmask 523264
        %v631 = vsel %vm630, %v626, 0.0
        %632 = vadd.xlane.f32.xlu0 %v631
        %v633 = vpop.xlane.xlu0 %632
        %v634 = vsel %vm630, %v627, 0.0
        %635 = vadd.xlane.f32.xlu0 %v634
        %v636 = vpop.xlane.xlu0 %635
        %v637 = vrcp.pop 64.0
        %v638 = vmul.f32 %v633, %v637
        %v639 = vmul.f32 %v636, %v637
        %v640 = vsub.f32 %v626, %v638
        %v641 = vsub.f32 %v627, %v639
        %v642 = vmul.f32 %v640, %v640
        %v643 = vmul.f32 %v641, %v641
        %v644 = vsel %vm630, %v642, 0.0
        %645 = vadd.xlane.f32.xlu0 %v644
        %v646 = vpop.xlane.xlu0 %645
        %v647 = vsel %vm630, %v643, 0.0
        %648 = vadd.xlane.f32.xlu0 %v647
        %v649 = vpop.xlane.xlu0 %648
        %v650 = vmul.f32 %v646, %v637
        %v651 = vmul.f32 %v649, %v637
        %v652 = vadd.f32 %v650, 1e-05
        %v653 = vadd.f32 %v651, 1e-05
        %v654 = vrsqrt.pop %v652
        %v655 = vrsqrt.pop %v653
        %v656 = vmul.f32 %v640, %v654
        %v657 = vmul.f32 %v641, %v655
        %v659 = vlaneseq
        %v660 = vshrl.u32 %v659, 7
        %v661 = vsub.s32 0, %v660
        %v662 = vrot.slane %v628, %v661
        %v664 = vmul.f32 %v656, %v662
        %v665 = vmul.f32 %v657, %v662
        %v667 = vlaneseq
        %v668 = vshrl.u32 %v667, 7
        %v669 = vsub.s32 0, %v668
        %v670 = vrot.slane %v629, %v669
        %v672 = vadd.f32 %v664, %v670
        %v673 = vadd.f32 %v665, %v670
        %v674 = vld [vmem:[%s7] sm:$0x1]
        %v675 = vrot.slane %v672, 7
        %v676 = vrot.slane %v673, 7
        %v677 = vsel %vm448, %v675, %v676
        %v678 = vsel %vm448, %v676, %v675
        %v679 = vmul.f32 %v678, %v437
        %v680 = vmul.f32 %v677, %v438
        %v681 = vrot.slane %v672, 1
        %v682 = vrot.slane %v673, 1
        %v683 = vsel %vm455, %v681, %v682
        %v684 = vsel %vm455, %v682, %v681
        %v685 = vmul.f32 %v683, %v443
        %v686 = vmul.f32 %v684, %v444
        %v687 = vld [vmem:[%s6] sm:$0xff]
        %v688 = vld [vmem:[%s6 + $0x8] sm:$0xff]
        %v689 = vld [vmem:[%s6 + $0x10] sm:$0xff]
        %v690 = vld [vmem:[%s6 + $0x18] sm:$0xff]
        %v691 = vld [vmem:[%s6 + $0x20] sm:$0xff]
        %v692 = vld [vmem:[%s6 + $0x28] sm:$0xff]
        %v693 = vld [vmem:[%s6 + $0x30] sm:$0xff]
        %v694 = vld [vmem:[%s6 + $0x38] sm:$0xff]
        %v695 = vpack.c.bf16 %v680, %v679
        %v696 = vpack.c.bf16 %v688, %v687
        %v697 = vpack.c.bf16 %v690, %v689
        %v698 = vpack.c.bf16 %v692, %v691
        %v699 = vpack.c.bf16 %v694, %v693
        %s700 = scalar_lea.vmem %s6, 64
        %v701 = vld [vmem:[%s700] sm:$0xff]
        %v702 = vld [vmem:[%s700 + $0x8] sm:$0xff]
        %v703 = vld [vmem:[%s700 + $0x10] sm:$0xff]
        %v704 = vld [vmem:[%s700 + $0x18] sm:$0xff]
        %v705 = vld [vmem:[%s700 + $0x20] sm:$0xff]
        %v706 = vld [vmem:[%s700 + $0x28] sm:$0xff]
        %v707 = vld [vmem:[%s700 + $0x30] sm:$0xff]
        %v708 = vld [vmem:[%s700 + $0x38] sm:$0xff]
        %v709 = vpack.c.bf16 %v673, %v672
        %v710 = vpack.c.bf16 %v702, %v701
        %v711 = vpack.c.bf16 %v704, %v703
        %v712 = vpack.c.bf16 %v706, %v705
        %v713 = vpack.c.bf16 %v708, %v707
        %v715 = vsel %vm630, %v709, 0
        %717 = vmatprep.subr.bf16.mxu0 0
        %718 = vmatpush1.bf16.msra.mxu0 %v710
        %719 = vmatprep.subr.bf16.mxu0 0
        %720 = vmatpush1.bf16.msra.mxu0 %v711
        %721 = vmatprep.subr.bf16.mxu0 0
        %722 = vmatpush1.bf16.msra.mxu0 %v712
        %723 = vmatprep.subr.bf16.mxu0 0
        %724 = vmatpush1.bf16.msra.mxu0 %v713
        %725 = vmatprep.subr.bf16.mxu0 0
        %726 = vmatpush1.bf16.msra.mxu0 0
        %727 = vmatprep.subr.bf16.mxu0 0
        %728 = vmatpush1.bf16.msra.mxu0 0
        %729 = vmatprep.subr.bf16.mxu0 0
        %730 = vmatpush1.bf16.msra.mxu0 0
        %731 = vmatprep.subr.bf16.mxu0 0
        %732 = vmatpush1.bf16.msra.mxu0 0
        %733 = vmatprep.subr.bf16.mxu0 0
        %734 = vmatpush1.bf16.msra.mxu0 0
        %735 = vmatprep.subr.bf16.mxu0 0
        %736 = vmatpush1.bf16.msra.mxu0 0
        %737 = vmatprep.subr.bf16.mxu0 0
        %738 = vmatpush1.bf16.msra.mxu0 0
        %739 = vmatprep.subr.bf16.mxu0 0
        %740 = vmatpush1.bf16.msra.mxu0 0
        %741 = vmatprep.subr.bf16.mxu0 0
        %742 = vmatpush1.bf16.msra.mxu0 0
        %743 = vmatprep.subr.bf16.mxu0 0
        %744 = vmatpush1.bf16.msra.mxu0 0
        %745 = vmatprep.subr.bf16.mxu0 0
        %746 = vmatpush1.bf16.msra.mxu0 0
        %747 = vmatprep.subr.bf16.mxu0 0
        %748 = vmatpush1.bf16.msra.mxu0 0
        %749 = vmatprep.mubr.bf16.mxu0 0
        %750 = vmatmul.mubr.bf16.gmra.mrb[0].mxu0 %v715
        %v751 = vpop.f32.mrb[0].mxu0
        %v752 = vadd.f32 0.0, %v751
        %v753 = vpop.f32.mrb[0].mxu0
        %v754 = vpop.f32.mrb[0].mxu0
        %v755 = vadd.f32 0.0, %v754
        %v756 = vpop.f32.mrb[0].mxu0
        %757 = vdwg.mxu0
        %v759 = vsel %vm630, %v695, 0
        %761 = vmatprep.subr.bf16.mxu0 0
        %762 = vmatpush1.bf16.msra.mxu0 %v696
        %763 = vmatprep.subr.bf16.mxu0 0
        %764 = vmatpush1.bf16.msra.mxu0 %v697
        %765 = vmatprep.subr.bf16.mxu0 0
        %766 = vmatpush1.bf16.msra.mxu0 %v698
        %767 = vmatprep.subr.bf16.mxu0 0
        %768 = vmatpush1.bf16.msra.mxu0 %v699
        %769 = vmatprep.subr.bf16.mxu0 0
        %770 = vmatpush1.bf16.msra.mxu0 0
        %771 = vmatprep.subr.bf16.mxu0 0
        %772 = vmatpush1.bf16.msra.mxu0 0
        %773 = vmatprep.subr.bf16.mxu0 0
        %774 = vmatpush1.bf16.msra.mxu0 0
        %775 = vmatprep.subr.bf16.mxu0 0
        %776 = vmatpush1.bf16.msra.mxu0 0
        %777 = vmatprep.subr.bf16.mxu0 0
        %778 = vmatpush1.bf16.msra.mxu0 0
        %779 = vmatprep.subr.bf16.mxu0 0
        %780 = vmatpush1.bf16.msra.mxu0 0
        %781 = vmatprep.subr.bf16.mxu0 0
        %782 = vmatpush1.bf16.msra.mxu0 0
        %783 = vmatprep.subr.bf16.mxu0 0
        %784 = vmatpush1.bf16.msra.mxu0 0
        %785 = vmatprep.subr.bf16.mxu0 0
        %786 = vmatpush1.bf16.msra.mxu0 0
        %787 = vmatprep.subr.bf16.mxu0 0
        %788 = vmatpush1.bf16.msra.mxu0 0
        %789 = vmatprep.subr.bf16.mxu0 0
        %790 = vmatpush1.bf16.msra.mxu0 0
        %791 = vmatprep.subr.bf16.mxu0 0
        %792 = vmatpush1.bf16.msra.mxu0 0
        %793 = vmatprep.mubr.bf16.mxu0 0
        %794 = vmatmul.mubr.bf16.gmra.mrb[0].mxu0 %v759
        %v795 = vpop.f32.mrb[0].mxu0
        %v796 = vadd.f32 %v752, %v795
        %v797 = vpop.f32.mrb[0].mxu0
        %v798 = vpop.f32.mrb[0].mxu0
        %v799 = vadd.f32 %v755, %v798
        %v800 = vpop.f32.mrb[0].mxu0
        %801 = vdwg.mxu0
        %s802 = scalar_lea.vmem %s6, 128
        %v803 = vld [vmem:[%s802] sm:$0xff]
        %v804 = vld [vmem:[%s802 + $0x8] sm:$0xff]
        %v805 = vld [vmem:[%s802 + $0x10] sm:$0xff]
        %v806 = vld [vmem:[%s802 + $0x18] sm:$0xff]
        %v807 = vld [vmem:[%s802 + $0x20] sm:$0xff]
        %v808 = vld [vmem:[%s802 + $0x28] sm:$0xff]
        %v809 = vld [vmem:[%s802 + $0x30] sm:$0xff]
        %v810 = vld [vmem:[%s802 + $0x38] sm:$0xff]
        %v811 = vpack.c.bf16 %v686, %v685
        %v812 = vpack.c.bf16 %v804, %v803
        %v813 = vpack.c.bf16 %v806, %v805
        %v814 = vpack.c.bf16 %v808, %v807
        %v815 = vpack.c.bf16 %v810, %v809
        %v817 = vsel %vm630, %v811, 0
        %819 = vmatprep.subr.bf16.mxu0 0
        %820 = vmatpush1.bf16.msra.mxu0 %v812
        %821 = vmatprep.subr.bf16.mxu0 0
        %822 = vmatpush1.bf16.msra.mxu0 %v813
        %823 = vmatprep.subr.bf16.mxu0 0
        %824 = vmatpush1.bf16.msra.mxu0 %v814
        %825 = vmatprep.subr.bf16.mxu0 0
        %826 = vmatpush1.bf16.msra.mxu0 %v815
        %827 = vmatprep.subr.bf16.mxu0 0
        %828 = vmatpush1.bf16.msra.mxu0 0
        %829 = vmatprep.subr.bf16.mxu0 0
        %830 = vmatpush1.bf16.msra.mxu0 0
        %831 = vmatprep.subr.bf16.mxu0 0
        %832 = vmatpush1.bf16.msra.mxu0 0
        %833 = vmatprep.subr.bf16.mxu0 0
        %834 = vmatpush1.bf16.msra.mxu0 0
        %835 = vmatprep.subr.bf16.mxu0 0
        %836 = vmatpush1.bf16.msra.mxu0 0
        %837 = vmatprep.subr.bf16.mxu0 0
        %838 = vmatpush1.bf16.msra.mxu0 0
        %839 = vmatprep.subr.bf16.mxu0 0
        %840 = vmatpush1.bf16.msra.mxu0 0
        %841 = vmatprep.subr.bf16.mxu0 0
        %842 = vmatpush1.bf16.msra.mxu0 0
        %843 = vmatprep.subr.bf16.mxu0 0
        %844 = vmatpush1.bf16.msra.mxu0 0
        %845 = vmatprep.subr.bf16.mxu0 0
        %846 = vmatpush1.bf16.msra.mxu0 0
        %847 = vmatprep.subr.bf16.mxu0 0
        %848 = vmatpush1.bf16.msra.mxu0 0
        %849 = vmatprep.subr.bf16.mxu0 0
        %850 = vmatpush1.bf16.msra.mxu0 0
        %851 = vmatprep.mubr.bf16.mxu0 0
        %852 = vmatmul.mubr.bf16.gmra.mrb[0].mxu0 %v817
        %v853 = vpop.f32.mrb[0].mxu0
        %v854 = vadd.f32 0.0, %v853
        %v855 = vpop.f32.mrb[0].mxu0
        %v856 = vpop.f32.mrb[0].mxu0
        %v857 = vadd.f32 0.0, %v856
        %v858 = vpop.f32.mrb[0].mxu0
        %859 = vdwg.mxu0
        %v860 = vadd.f32 %v796, %v854
        %v861 = vadd.f32 %v799, %v857
        %v863 = vlaneseq
        %v864 = vshrl.u32 %v863, 7
        %v865 = vsub.s32 0, %v864
        %v866 = vrot.slane %v674, %v865
        %v868 = vadd.f32 %v860, %v866
        %v869 = vadd.f32 %v861, %v866
        %v870 = vmax.f32 %v868, 0.0
        %v871 = vmax.f32 %v869, 0.0
        %v872 = vld [vmem:[%s8] sm:$0x1]
        %v873 = vld [vmem:[%s9] sm:$0x1]
        %v874 = vsel %vm630, %v870, 0.0
        %875 = vadd.xlane.f32.xlu0 %v874
        %v876 = vpop.xlane.xlu0 %875
        %v877 = vsel %vm630, %v871, 0.0
        %878 = vadd.xlane.f32.xlu0 %v877
        %v879 = vpop.xlane.xlu0 %878
        %v880 = vmul.f32 %v876, %v637
        %v881 = vmul.f32 %v879, %v637
        %v882 = vsub.f32 %v870, %v880
        %v883 = vsub.f32 %v871, %v881
        %v884 = vmul.f32 %v882, %v882
        %v885 = vmul.f32 %v883, %v883
        %v886 = vsel %vm630, %v884, 0.0
        %887 = vadd.xlane.f32.xlu0 %v886
        %v888 = vpop.xlane.xlu0 %887
        %v889 = vsel %vm630, %v885, 0.0
        %890 = vadd.xlane.f32.xlu0 %v889
        %v891 = vpop.xlane.xlu0 %890
        %v892 = vmul.f32 %v888, %v637
        %v893 = vmul.f32 %v891, %v637
        %v894 = vadd.f32 %v892, 1e-05
        %v895 = vadd.f32 %v893, 1e-05
        %v896 = vrsqrt.pop %v894
        %v897 = vrsqrt.pop %v895
        %v898 = vmul.f32 %v882, %v896
        %v899 = vmul.f32 %v883, %v897
        %v901 = vlaneseq
        %v902 = vshrl.u32 %v901, 7
        %v903 = vsub.s32 0, %v902
        %v904 = vrot.slane %v872, %v903
        %v906 = vmul.f32 %v898, %v904
        %v907 = vmul.f32 %v899, %v904
        %v909 = vlaneseq
        %v910 = vshrl.u32 %v909, 7
        %v911 = vsub.s32 0, %v910
        %v912 = vrot.slane %v873, %v911
        %v914 = vadd.f32 %v906, %v912
        %v915 = vadd.f32 %v907, %v912
        %v916 = vld [vmem:[%s10] sm:$0x1]
        %v917 = vpack.c.bf16 %v916, %v916
        %v918 = vpack.c.bf16 %v915, %v914
        %v919 = vld [vmem:[#allocation2] sm:$0x1]
        %921 = vset.pattern.permute.xlu0 0
        %922 = vperm.xlu0 %921, %v919
        %v923 = vpop.permute.xlu0 %922
        %v925 = vlaneseq
        %v926 = vshrl.u32 %v925, 7
        %v927 = vsub.s32 0, %v926
        %v928 = vrot.slane %v923, %v927
        %v930 = vsel %vm630, %v917, 0
        %v933 = vsel %vm630, %v918, 0
        %935 = vmatprep.subr.bf16.mxu0 0
        %936 = vmatpush1.bf16.xpose.msra.mxu0 %v933
        %937 = vmatprep.subr.bf16.mxu0 0
        %938 = vmatpush1.bf16.xpose.msra.mxu0 0
        %939 = vmatprep.subr.bf16.mxu0 0
        %940 = vmatpush1.bf16.xpose.msra.mxu0 0
        %941 = vmatprep.subr.bf16.mxu0 0
        %942 = vmatpush1.bf16.xpose.msra.mxu0 0
        %943 = vmatprep.subr.bf16.mxu0 0
        %944 = vmatpush1.bf16.xpose.msra.mxu0 0
        %945 = vmatprep.subr.bf16.mxu0 0
        %946 = vmatpush1.bf16.xpose.msra.mxu0 0
        %947 = vmatprep.subr.bf16.mxu0 0
        %948 = vmatpush1.bf16.xpose.msra.mxu0 0
        %949 = vmatprep.subr.bf16.mxu0 0
        %950 = vmatpush1.bf16.xpose.msra.mxu0 0
        %951 = vmatprep.subr.bf16.mxu0 0
        %952 = vmatpush1.bf16.xpose.msra.mxu0 0
        %953 = vmatprep.subr.bf16.mxu0 0
        %954 = vmatpush1.bf16.xpose.msra.mxu0 0
        %955 = vmatprep.subr.bf16.mxu0 0
        %956 = vmatpush1.bf16.xpose.msra.mxu0 0
        %957 = vmatprep.subr.bf16.mxu0 0
        %958 = vmatpush1.bf16.xpose.msra.mxu0 0
        %959 = vmatprep.subr.bf16.mxu0 0
        %960 = vmatpush1.bf16.xpose.msra.mxu0 0
        %961 = vmatprep.subr.bf16.mxu0 0
        %962 = vmatpush1.bf16.xpose.msra.mxu0 0
        %963 = vmatprep.subr.bf16.mxu0 0
        %964 = vmatpush1.bf16.xpose.msra.mxu0 0
        %965 = vmatprep.subr.bf16.mxu0 0
        %966 = vmatpush1.bf16.xpose.msra.mxu0 0
        %967 = vmatprep.mubr.bf16.mxu0 0
        %968 = vmatmul.mubr.bf16.gmra.mrb[0].mxu0 %v930
        %v969 = vpop.f32.mrb[0].mxu0
        %v970 = vadd.f32 %v928, %v969
        %v971 = vpop.f32.mrb[0].mxu0
        %v972 = vpop.f32.mrb[0].mxu0
        %v973 = vpop.f32.mrb[0].mxu0
        %974 = vdwg.mxu0
        %v975 = vld [vmem:[%s426] sm:$0x1]
        %v976 = vmul.f32 %v970, %v975
        %vm977 = vcmask 122880
        %978 = vst.msk [vmem:[%s418] sm:$0x1] %vm977, %v976
        %s979 = sand.u32 %s298, 1
        %s980 = scalar_lea.sflag [#allocation4], %s979
        %s981 = sand.u32 %s298, 1
        %s982 = scalar_lea.vmem [#allocation3], %s981
        // Predicated region
        $region69: #{fastspeech2_forward.7} parent=67 // pred_check
          %p983 = pneg %p308
        $region70: #{fastspeech2_forward.7} parent=67 // pred_check_branch
          %985 = sbr.rel (%p983) target = $region72
        $region71: #{fastspeech2_forward.7} parent=67 // pred_region
          %s987 = ssub.s32 16, 16
          %988 = vsyncadd %s980, %s987
          %s989 = smul.addr %s28, 16
          %s990 = scalar_lea.hbm %s12, %s989
          %s992 = sshll.u32 %s982, 4
          %s993 = int_to_ptr.vmem [resolvable:$true] %s992
          %995 = dma.vmem_to_hbm [thread:$0]  %s993, 16, %s990, %s980
        $region72: #{fastspeech2_forward.7} parent=67 // pred_fallthru
          _
      $region68: #{fastspeech2_forward.7} parent=5 // pred_fallthru
        _
      %p996 = scmp.le.s32.totalorder 2, %s23
      // Predicated region
      $region73: #{fastspeech2_forward.7} parent=5 // pred_check
        %p997 = pneg %p996
      $region74: #{fastspeech2_forward.7} parent=5 // pred_check_branch
        %999 = sbr.rel (%p997) target = $region76
      $region75: #{fastspeech2_forward.7} parent=5 // pred_region
        %s1000 = ssub.s32 %s23, 2
        // Predicated region
        $region77: #{fastspeech2_forward.7} parent=75 // pred_check
          %p1001 = pneg %p314
        $region78: #{fastspeech2_forward.7} parent=75 // pred_check_branch
          %1003 = sbr.rel (%p1001) target = $region80
        $region79: #{fastspeech2_forward.7} parent=75 // pred_region
          %s1004 = sand.u32 %s299, 1
          %s1005 = scalar_lea.sflag [#allocation4], %s1004
          %s1006 = sand.u32 %s299, 1
          %s1007 = scalar_lea.vmem [#allocation3], %s1006
          %1008 = dma.done %s1005, 16
        $region80: #{fastspeech2_forward.7} parent=75 // pred_fallthru
          _
      $region76: #{fastspeech2_forward.7} parent=5 // pred_fallthru
        _
    $region6: #{fastspeech2_forward.7} parent=1 // loop_footer
      %s27 = sadd.s32 1, %s23
    $region7: #{fastspeech2_forward.7} parent=1 // loop_footer_branch
      %22 = sbr.rel target = $region3
    $region8: #{fastspeech2_forward.7} parent=1 // loop_exit
      _
    %1009 = vsyncpa [#allocation4], 1
    %s1010 = scalar_lea.sflag [#allocation4], 1
    %1011 = vsyncpa %s1010, 1

// kernel: fastspeech2_forward.6
$region0: #{fastspeech2_forward.6}
  #allocation0 [shape = 'u32[]', space=smem, size = 0x4, offset = 0x4, fixed_abs, tag = 'smem constant byte address 0x4 - core index']
  #allocation1 [shape = 'u32[144,128]{1,0:T(1,128)}', space=vmem, size = 0x12000, scoped, tag = 'internal scratch']
  #allocation2 [shape = 'f32[1,1]{1,0:T(1,128)S(1)}', space=vmem, size = 0x200, scoped, tag = 'scoped memory for fastspeech2_forward.6']
  %s0 = inlined_call_operand.vmem [shape: f32[2,8,32], index: 0, kind: input, shape index: {}]
  %s1 = inlined_call_operand.vmem [shape: f32[2,1,8], index: 1, kind: input, shape index: {}]
  %s2 = inlined_call_operand.vmem [shape: f32[3,32,64], index: 2, kind: input, shape index: {}]
  %s3 = inlined_call_operand.vmem [shape: f32[1,64], index: 3, kind: input, shape index: {}]
  %s4 = inlined_call_operand.vmem [shape: f32[1,64], index: 4, kind: input, shape index: {}]
  %s5 = inlined_call_operand.vmem [shape: f32[1,64], index: 5, kind: input, shape index: {}]
  %s6 = inlined_call_operand.vmem [shape: f32[3,64,64], index: 6, kind: input, shape index: {}]
  %s7 = inlined_call_operand.vmem [shape: f32[1,64], index: 7, kind: input, shape index: {}]
  %s8 = inlined_call_operand.vmem [shape: f32[1,64], index: 8, kind: input, shape index: {}]
  %s9 = inlined_call_operand.vmem [shape: f32[1,64], index: 9, kind: input, shape index: {}]
  %s10 = inlined_call_operand.vmem [shape: f32[1,64], index: 10, kind: input, shape index: {}]
  %s11 = inlined_call_operand.<no memory space> [shape: f32[1,1], index: 11, kind: input, shape index: {}]
  %s12 = inlined_call_operand.hbm [shape: f32[2,1,8], index: 12, kind: output, shape index: {}]
  %s13 = sld [smem:[#allocation0]]
  $region81: #{fastspeech2_forward.6} parent=0
    _
  %s15 = ssub.s32 1, %s13
  %s16 = scalar_select 0, %s15, %s13
  %v17 = vstv %s11
  %18 = vst [vmem:[#allocation2] sm:$0x1] %v17
  $region1: #{fastspeech2_forward.6} parent=0
    #allocation3 [shape = 'u8[1024]{0}', space=vmem, size = 0x400, scoped, tag = 'output window, operand 0']
    #allocation4 [shape = 's32[2]{0}', space=sflag, size = 0x8, scoped, tag = 'scoped memory for fastspeech2_forward.6']
    %19 = vsyncpa [#allocation4], 0
    %s20 = scalar_lea.sflag [#allocation4], 1
    %21 = vsyncpa %s20, 0
    loop: start=0, step=1, limit=4
    $region2: #{fastspeech2_forward.6} parent=1 // loop_pre_header
      _
    $region3: #{fastspeech2_forward.6} parent=1 // loop_header
      %s23 = sphi 0, %s27
      %p24 = scmp.ge.s32.totalorder %s23, 4
      %s33 = sphi 0, %s35
      %s36 = sphi 0, %s33
      %s37 = sphi 0, %s36
      %s53 = sphi 0, %s37
      %s59 = sphi 0, %s61
      %s62 = sphi 0, %s59
      %s63 = sphi 0, %s62
      %s79 = sphi 0, %s63
      %s83 = sphi 0, %s83
      %s85 = sphi 0, %s83
      %s86 = sphi 0, %s85
      %s100 = sphi 0, %s86
      %s104 = sphi 0, %s104
      %s106 = sphi 0, %s104
      %s107 = sphi 0, %s106
      %s121 = sphi 0, %s107
      %s125 = sphi 0, %s125
      %s127 = sphi 0, %s125
      %s128 = sphi 0, %s127
      %s142 = sphi 0, %s128
      %s146 = sphi 0, %s146
      %s148 = sphi 0, %s146
      %s149 = sphi 0, %s148
      %s163 = sphi 0, %s149
      %s167 = sphi 0, %s167
      %s169 = sphi 0, %s167
      %s170 = sphi 0, %s169
      %s184 = sphi 0, %s170
      %s188 = sphi 0, %s188
      %s190 = sphi 0, %s188
      %s191 = sphi 0, %s190
      %s205 = sphi 0, %s191
      %s209 = sphi 0, %s209
      %s211 = sphi 0, %s209
      %s212 = sphi 0, %s211
      %s226 = sphi 0, %s212
      %s230 = sphi 0, %s230
      %s232 = sphi 0, %s230
      %s233 = sphi 0, %s232
      %s247 = sphi 0, %s233
      %s251 = sphi 0, %s251
      %s253 = sphi 0, %s251
      %s254 = sphi 0, %s253
      %s268 = sphi 0, %s254
      %s272 = sphi 0, %s272
      %s274 = sphi 0, %s272
      %s275 = sphi 0, %s274
      %s289 = sphi 0, %s275
      %s295 = sphi 0, %s297
      %s298 = sphi 0, %s295
      %s299 = sphi 0, %s298
      %s315 = sphi 0, %s299
    $region4: #{fastspeech2_forward.6} parent=1 // loop_header_branch
      %26 = sbr.rel (%p24) target = $region8
    $region5: #{fastspeech2_forward.6} parent=1 // loop_body
      %s28 = ssub.s32 %s23, 1
      %s29 = ssub.s32 %s23, 2
      %s30 = sadd.s32 %s23, 1
      %s31 = ssub.s32 %s23, %s30
      %p32 = scmp.eq.s32.totalorder %s31, 0
      %s34 = sadd.s32 %s33, 1
      %s35 = scalar_select %p32, %s33, %s34
      %p38 = pneg %p32
      %p39 = scmp.eq.s32.totalorder %s23, 1
      %p40 = por %p38, %p39
      %p41 = scmp.ne.s32.totalorder %s33, %s36
      %p42 = scmp.eq.s32.totalorder %s23, 0
      %p43 = por %p41, %p42
      %p44 = scmp.ne.s32.totalorder %s33, %s36
      %p45 = scmp.eq.s32.totalorder %s28, 1
      %p46 = por %p44, %p45
      %p47 = scmp.ne.s32.totalorder %s36, %s37
      %p48 = scmp.eq.s32.totalorder %s28, 0
      %p49 = por %p47, %p48
      %p50 = scmp.ne.s32.totalorder %s36, %s37
      %p51 = scmp.eq.s32.totalorder %s29, 1
      %p52 = por %p50, %p51
      %p54 = scmp.ne.s32.totalorder %s37, %s53
      %p55 = scmp.eq.s32.totalorder %s29, 0
      %p56 = por %p54, %p55
      %s57 = ssub.s32 %s23, %s30
      %p58 = scmp.eq.s32.totalorder %s57, 0
      %s60 = sadd.s32 %s59, 1
      %s61 = scalar_select %p58, %s59, %s60
      %p64 = pneg %p58
      %p65 = scmp.eq.s32.totalorder %s23, 1
      %p66 = por %p64, %p65
      %p67 = scmp.ne.s32.totalorder %s59, %s62
      %p68 = scmp.eq.s32.totalorder %s23, 0
      %p69 = por %p67, %p68
      %p70 = scmp.ne.s32.totalorder %s59, %s62
      %p71 = scmp.eq.s32.totalorder %s28, 1
      %p72 = por %p70, %p71
      %p73 = scmp.ne.s32.totalorder %s62, %s63
      %p74 = scmp.eq.s32.totalorder %s28, 0
      %p75 = por %p73, %p74
      %p76 = scmp.ne.s32.totalorder %s62, %s63
      %p77 = scmp.eq.s32.totalorder %s29, 1
      %p78 = por %p76, %p77
      %p80 = scmp.ne.s32.totalorder %s63, %s79
      %p81 = scmp.eq.s32.totalorder %s29, 0
      %p82 = por %p80, %p81
      %s84 = sadd.s32 %s83, 1
      %p87 = scmp.eq.s32.totalorder %s23, 1
      %p88 = scmp.ne.s32.totalorder %s83, %s85
      %p89 = scmp.eq.s32.totalorder %s23, 0
      %p90 = por %p88, %p89
      %p91 = scmp.ne.s32.totalorder %s83, %s85
      %p92 = scmp.eq.s32.totalorder %s28, 1
      %p93 = por %p91, %p92
      %p94 = scmp.ne.s32.totalorder %s85, %s86
      %p95 = scmp.eq.s32.totalorder %s28, 0
      %p96 = por %p94, %p95
      %p97 = scmp.ne.s32.totalorder %s85, %s86
      %p98 = scmp.eq.s32.totalorder %s29, 1
      %p99 = por %p97, %p98
      %p101 = scmp.ne.s32.totalorder %s86, %s100
      %p102 = scmp.eq.s32.totalorder %s29, 0
      %p103 = por %p101, %p102
      %s105 = sadd.s32 %s104, 1
      %p108 = scmp.eq.s32.totalorder %s23, 1
      %p109 = scmp.ne.s32.totalorder %s104, %s106
      %p110 = scmp.eq.s32.totalorder %s23, 0
      %p111 = por %p109, %p110
      %p112 = scmp.ne.s32.totalorder %s104, %s106
      %p113 = scmp.eq.s32.totalorder %s28, 1
      %p114 = por %p112, %p113
      %p115 = scmp.ne.s32.totalorder %s106, %s107
      %p116 = scmp.eq.s32.totalorder %s28, 0
      %p117 = por %p115, %p116
      %p118 = scmp.ne.s32.totalorder %s106, %s107
      %p119 = scmp.eq.s32.totalorder %s29, 1
      %p120 = por %p118, %p119
      %p122 = scmp.ne.s32.totalorder %s107, %s121
      %p123 = scmp.eq.s32.totalorder %s29, 0
      %p124 = por %p122, %p123
      %s126 = sadd.s32 %s125, 1
      %p129 = scmp.eq.s32.totalorder %s23, 1
      %p130 = scmp.ne.s32.totalorder %s125, %s127
      %p131 = scmp.eq.s32.totalorder %s23, 0
      %p132 = por %p130, %p131
      %p133 = scmp.ne.s32.totalorder %s125, %s127
      %p134 = scmp.eq.s32.totalorder %s28, 1
      %p135 = por %p133, %p134
      %p136 = scmp.ne.s32.totalorder %s127, %s128
      %p137 = scmp.eq.s32.totalorder %s28, 0
      %p138 = por %p136, %p137
      %p139 = scmp.ne.s32.totalorder %s127, %s128
      %p140 = scmp.eq.s32.totalorder %s29, 1
      %p141 = por %p139, %p140
      %p143 = scmp.ne.s32.totalorder %s128, %s142
      %p144 = scmp.eq.s32.totalorder %s29, 0
      %p145 = por %p143, %p144
      %s147 = sadd.s32 %s146, 1
      %p150 = scmp.eq.s32.totalorder %s23, 1
      %p151 = scmp.ne.s32.totalorder %s146, %s148
      %p152 = scmp.eq.s32.totalorder %s23, 0
      %p153 = por %p151, %p152
      %p154 = scmp.ne.s32.totalorder %s146, %s148
      %p155 = scmp.eq.s32.totalorder %s28, 1
      %p156 = por %p154, %p155
      %p157 = scmp.ne.s32.totalorder %s148, %s149
      %p158 = scmp.eq.s32.totalorder %s28, 0
      %p159 = por %p157, %p158
      %p160 = scmp.ne.s32.totalorder %s148, %s149
      %p161 = scmp.eq.s32.totalorder %s29, 1
      %p162 = por %p160, %p161
      %p164 = scmp.ne.s32.totalorder %s149, %s163
      %p165 = scmp.eq.s32.totalorder %s29, 0
      %p166 = por %p164, %p165
      %s168 = sadd.s32 %s167, 1
      %p171 = scmp.eq.s32.totalorder %s23, 1
      %p172 = scmp.ne.s32.totalorder %s167, %s169
      %p173 = scmp.eq.s32.totalorder %s23, 0
      %p174 = por %p172, %p173
      %p175 = scmp.ne.s32.totalorder %s167, %s169
      %p176 = scmp.eq.s32.totalorder %s28, 1
      %p177 = por %p175, %p176
      %p178 = scmp.ne.s32.totalorder %s169, %s170
      %p179 = scmp.eq.s32.totalorder %s28, 0
      %p180 = por %p178, %p179
      %p181 = scmp.ne.s32.totalorder %s169, %s170
      %p182 = scmp.eq.s32.totalorder %s29, 1
      %p183 = por %p181, %p182
      %p185 = scmp.ne.s32.totalorder %s170, %s184
      %p186 = scmp.eq.s32.totalorder %s29, 0
      %p187 = por %p185, %p186
      %s189 = sadd.s32 %s188, 1
      %p192 = scmp.eq.s32.totalorder %s23, 1
      %p193 = scmp.ne.s32.totalorder %s188, %s190
      %p194 = scmp.eq.s32.totalorder %s23, 0
      %p195 = por %p193, %p194
      %p196 = scmp.ne.s32.totalorder %s188, %s190
      %p197 = scmp.eq.s32.totalorder %s28, 1
      %p198 = por %p196, %p197
      %p199 = scmp.ne.s32.totalorder %s190, %s191
      %p200 = scmp.eq.s32.totalorder %s28, 0
      %p201 = por %p199, %p200
      %p202 = scmp.ne.s32.totalorder %s190, %s191
      %p203 = scmp.eq.s32.totalorder %s29, 1
      %p204 = por %p202, %p203
      %p206 = scmp.ne.s32.totalorder %s191, %s205
      %p207 = scmp.eq.s32.totalorder %s29, 0
      %p208 = por %p206, %p207
      %s210 = sadd.s32 %s209, 1
      %p213 = scmp.eq.s32.totalorder %s23, 1
      %p214 = scmp.ne.s32.totalorder %s209, %s211
      %p215 = scmp.eq.s32.totalorder %s23, 0
      %p216 = por %p214, %p215
      %p217 = scmp.ne.s32.totalorder %s209, %s211
      %p218 = scmp.eq.s32.totalorder %s28, 1
      %p219 = por %p217, %p218
      %p220 = scmp.ne.s32.totalorder %s211, %s212
      %p221 = scmp.eq.s32.totalorder %s28, 0
      %p222 = por %p220, %p221
      %p223 = scmp.ne.s32.totalorder %s211, %s212
      %p224 = scmp.eq.s32.totalorder %s29, 1
      %p225 = por %p223, %p224
      %p227 = scmp.ne.s32.totalorder %s212, %s226
      %p228 = scmp.eq.s32.totalorder %s29, 0
      %p229 = por %p227, %p228
      %s231 = sadd.s32 %s230, 1
      %p234 = scmp.eq.s32.totalorder %s23, 1
      %p235 = scmp.ne.s32.totalorder %s230, %s232
      %p236 = scmp.eq.s32.totalorder %s23, 0
      %p237 = por %p235, %p236
      %p238 = scmp.ne.s32.totalorder %s230, %s232
      %p239 = scmp.eq.s32.totalorder %s28, 1
      %p240 = por %p238, %p239
      %p241 = scmp.ne.s32.totalorder %s232, %s233
      %p242 = scmp.eq.s32.totalorder %s28, 0
      %p243 = por %p241, %p242
      %p244 = scmp.ne.s32.totalorder %s232, %s233
      %p245 = scmp.eq.s32.totalorder %s29, 1
      %p246 = por %p244, %p245
      %p248 = scmp.ne.s32.totalorder %s233, %s247
      %p249 = scmp.eq.s32.totalorder %s29, 0
      %p250 = por %p248, %p249
      %s252 = sadd.s32 %s251, 1
      %p255 = scmp.eq.s32.totalorder %s23, 1
      %p256 = scmp.ne.s32.totalorder %s251, %s253
      %p257 = scmp.eq.s32.totalorder %s23, 0
      %p258 = por %p256, %p257
      %p259 = scmp.ne.s32.totalorder %s251, %s253
      %p260 = scmp.eq.s32.totalorder %s28, 1
      %p261 = por %p259, %p260
      %p262 = scmp.ne.s32.totalorder %s253, %s254
      %p263 = scmp.eq.s32.totalorder %s28, 0
      %p264 = por %p262, %p263
      %p265 = scmp.ne.s32.totalorder %s253, %s254
      %p266 = scmp.eq.s32.totalorder %s29, 1
      %p267 = por %p265, %p266
      %p269 = scmp.ne.s32.totalorder %s254, %s268
      %p270 = scmp.eq.s32.totalorder %s29, 0
      %p271 = por %p269, %p270
      %s273 = sadd.s32 %s272, 1
      %p276 = scmp.eq.s32.totalorder %s23, 1
      %p277 = scmp.ne.s32.totalorder %s272, %s274
      %p278 = scmp.eq.s32.totalorder %s23, 0
      %p279 = por %p277, %p278
      %p280 = scmp.ne.s32.totalorder %s272, %s274
      %p281 = scmp.eq.s32.totalorder %s28, 1
      %p282 = por %p280, %p281
      %p283 = scmp.ne.s32.totalorder %s274, %s275
      %p284 = scmp.eq.s32.totalorder %s28, 0
      %p285 = por %p283, %p284
      %p286 = scmp.ne.s32.totalorder %s274, %s275
      %p287 = scmp.eq.s32.totalorder %s29, 1
      %p288 = por %p286, %p287
      %p290 = scmp.ne.s32.totalorder %s275, %s289
      %p291 = scmp.eq.s32.totalorder %s29, 0
      %p292 = por %p290, %p291
      %s293 = ssub.s32 %s23, %s30
      %p294 = scmp.eq.s32.totalorder %s293, 0
      %s296 = sadd.s32 %s295, 1
      %s297 = scalar_select %p294, %s295, %s296
      %p300 = pneg %p294
      %p301 = scmp.eq.s32.totalorder %s23, 1
      %p302 = por %p300, %p301
      %p303 = scmp.ne.s32.totalorder %s295, %s298
      %p304 = scmp.eq.s32.totalorder %s23, 0
      %p305 = por %p303, %p304
      %p306 = scmp.ne.s32.totalorder %s295, %s298
      %p307 = scmp.eq.s32.totalorder %s28, 1
      %p308 = por %p306, %p307
      %p309 = scmp.ne.s32.totalorder %s298, %s299
      %p310 = scmp.eq.s32.totalorder %s28, 0
      %p311 = por %p309, %p310
      %p312 = scmp.ne.s32.totalorder %s298, %s299
      %p313 = scmp.eq.s32.totalorder %s29, 1
      %p314 = por %p312, %p313
      %p316 = scmp.ne.s32.totalorder %s299, %s315
      %p317 = scmp.eq.s32.totalorder %s29, 0
      %p318 = por %p316, %p317
      %p319 = scmp.le.s32.totalorder 1, %s23
      %p320 = scmp.lt.s32.totalorder %s23, 3
      %p321 = pnand %p319, %p320
      %p322 = pneg %p321
      // Predicated region
      $region9: #{fastspeech2_forward.6} parent=5 // pred_check
        _
      $region10: #{fastspeech2_forward.6} parent=5 // pred_check_branch
        %324 = sbr.rel (%p321) target = $region12
      $region11: #{fastspeech2_forward.6} parent=5 // pred_region
        %s325 = ssub.s32 %s23, 1
        // Predicated region
        $region13: #{fastspeech2_forward.6} parent=11 // pred_check
          %p326 = pneg %p96
        $region14: #{fastspeech2_forward.6} parent=11 // pred_check_branch
          %328 = sbr.rel (%p326) target = $region16
        $region15: #{fastspeech2_forward.6} parent=11 // pred_region
          _
        $region16: #{fastspeech2_forward.6} parent=11 // pred_fallthru
          _
        // Predicated region
        $region17: #{fastspeech2_forward.6} parent=11 // pred_check
          %p329 = pneg %p117
        $region18: #{fastspeech2_forward.6} parent=11 // pred_check_branch
          %331 = sbr.rel (%p329) target = $region20
        $region19: #{fastspeech2_forward.6} parent=11 // pred_region
          _
        $region20: #{fastspeech2_forward.6} parent=11 // pred_fallthru
          _
        // Predicated region
        $region21: #{fastspeech2_forward.6} parent=11 // pred_check
          %p332 = pneg %p138
        $region22: #{fastspeech2_forward.6} parent=11 // pred_check_branch
          %334 = sbr.rel (%p332) target = $region24
        $region23: #{fastspeech2_forward.6} parent=11 // pred_region
          _
        $region24: #{fastspeech2_forward.6} parent=11 // pred_fallthru
          _
        // Predicated region
        $region25: #{fastspeech2_forward.6} parent=11 // pred_check
          %p335 = pneg %p159
        $region26: #{fastspeech2_forward.6} parent=11 // pred_check_branch
          %337 = sbr.rel (%p335) target = $region28
        $region27: #{fastspeech2_forward.6} parent=11 // pred_region
          _
        $region28: #{fastspeech2_forward.6} parent=11 // pred_fallthru
          _
        // Predicated region
        $region29: #{fastspeech2_forward.6} parent=11 // pred_check
          %p338 = pneg %p180
        $region30: #{fastspeech2_forward.6} parent=11 // pred_check_branch
          %340 = sbr.rel (%p338) target = $region32
        $region31: #{fastspeech2_forward.6} parent=11 // pred_region
          _
        $region32: #{fastspeech2_forward.6} parent=11 // pred_fallthru
          _
        // Predicated region
        $region33: #{fastspeech2_forward.6} parent=11 // pred_check
          %p341 = pneg %p201
        $region34: #{fastspeech2_forward.6} parent=11 // pred_check_branch
          %343 = sbr.rel (%p341) target = $region36
        $region35: #{fastspeech2_forward.6} parent=11 // pred_region
          _
        $region36: #{fastspeech2_forward.6} parent=11 // pred_fallthru
          _
        // Predicated region
        $region37: #{fastspeech2_forward.6} parent=11 // pred_check
          %p344 = pneg %p222
        $region38: #{fastspeech2_forward.6} parent=11 // pred_check_branch
          %346 = sbr.rel (%p344) target = $region40
        $region39: #{fastspeech2_forward.6} parent=11 // pred_region
          _
        $region40: #{fastspeech2_forward.6} parent=11 // pred_fallthru
          _
        // Predicated region
        $region41: #{fastspeech2_forward.6} parent=11 // pred_check
          %p347 = pneg %p243
        $region42: #{fastspeech2_forward.6} parent=11 // pred_check_branch
          %349 = sbr.rel (%p347) target = $region44
        $region43: #{fastspeech2_forward.6} parent=11 // pred_region
          _
        $region44: #{fastspeech2_forward.6} parent=11 // pred_fallthru
          _
        // Predicated region
        $region45: #{fastspeech2_forward.6} parent=11 // pred_check
          %p350 = pneg %p264
        $region46: #{fastspeech2_forward.6} parent=11 // pred_check_branch
          %352 = sbr.rel (%p350) target = $region48
        $region47: #{fastspeech2_forward.6} parent=11 // pred_region
          _
        $region48: #{fastspeech2_forward.6} parent=11 // pred_fallthru
          _
        // Predicated region
        $region49: #{fastspeech2_forward.6} parent=11 // pred_check
          %p353 = pneg %p285
        $region50: #{fastspeech2_forward.6} parent=11 // pred_check_branch
          %355 = sbr.rel (%p353) target = $region52
        $region51: #{fastspeech2_forward.6} parent=11 // pred_region
          _
        $region52: #{fastspeech2_forward.6} parent=11 // pred_fallthru
          _
      $region12: #{fastspeech2_forward.6} parent=5 // pred_fallthru
        _
      %p356 = scmp.lt.s32.totalorder %s23, 2
      // Predicated region
      $region53: #{fastspeech2_forward.6} parent=5 // pred_check
        %p357 = pneg %p356
      $region54: #{fastspeech2_forward.6} parent=5 // pred_check_branch
        %359 = sbr.rel (%p357) target = $region56
      $region55: #{fastspeech2_forward.6} parent=5 // pred_region
        // Predicated region
        $region57: #{fastspeech2_forward.6} parent=55 // pred_check
          %p360 = pneg %p43
        $region58: #{fastspeech2_forward.6} parent=55 // pred_check_branch
          %362 = sbr.rel (%p360) target = $region60
        $region59: #{fastspeech2_forward.6} parent=55 // pred_region
          %p363 = scmp.lt.s32.totalorder %s23, 1
          %s364 = scalar_select %p363, %s23, 1
          %s365 = smul.addr %s364, 8
          %s366 = scalar_lea.vmem %s0, %s365
        $region60: #{fastspeech2_forward.6} parent=55 // pred_fallthru
          _
        // Predicated region
        $region61: #{fastspeech2_forward.6} parent=55 // pred_check
          %p367 = pneg %p69
        $region62: #{fastspeech2_forward.6} parent=55 // pred_check_branch
          %369 = sbr.rel (%p367) target = $region64
        $region63: #{fastspeech2_forward.6} parent=55 // pred_region
          %p370 = scmp.lt.s32.totalorder %s23, 1
          %s371 = scalar_select %p370, %s23, 1
          %s372 = scalar_lea.vmem %s1, %s371
        $region64: #{fastspeech2_forward.6} parent=55 // pred_fallthru
          _
      $region56: #{fastspeech2_forward.6} parent=5 // pred_fallthru
        _
      %p373 = scmp.le.s32.totalorder 1, %s23
      %p374 = scmp.lt.s32.totalorder %s23, 3
      %p375 = pnand %p373, %p374
      %p376 = pneg %p375
      // Predicated region
      $region65: #{fastspeech2_forward.6} parent=5 // pred_check
        _
      $region66: #{fastspeech2_forward.6} parent=5 // pred_check_branch
        %378 = sbr.rel (%p375) target = $region68
      $region67: #{fastspeech2_forward.6} parent=5 // pred_region
        %s379 = ssub.s32 %s23, 1
        %p380 = scmp.lt.s32.totalorder %s28, 1
        %s381 = scalar_select %p380, %s28, 1
        %s382 = smul.addr %s381, 8
        %s383 = scalar_lea.vmem %s0, %s382
        %p384 = pneg %p49
        %p385 = pneg %p46
        %p386 = scmp.lt.s32.totalorder %s28, 1
        %s387 = scalar_select %p386, %s28, 1
        %s388 = scalar_lea.vmem %s1, %s387
        %p389 = pneg %p75
        %p390 = pneg %p72
        %p391 = pneg %p96
        %p392 = pneg %p93
        %p393 = pneg %p117
        %p394 = pneg %p114
        %p395 = pneg %p138
        %p396 = pneg %p135
        %p397 = pneg %p159
        %p398 = pneg %p156
        %p399 = pneg %p180
        %p400 = pneg %p177
        %p401 = pneg %p201
        %p402 = pneg %p198
        %p403 = pneg %p222
        %p404 = pneg %p219
        %p405 = pneg %p243
        %p406 = pneg %p240
        %p407 = pneg %p264
        %p408 = pneg %p261
        %p409 = pneg %p285
        %p410 = pneg %p282
        %p411 = pneg %p311
        %p412 = pneg %p308
        %s413 = sand.u32 %s298, 1
        %s414 = scalar_lea.sflag [#allocation4], %s413
        %s415 = sand.u32 %s298, 1
        %s416 = scalar_lea.vmem [#allocation3], %s415
        %p417 = scmp.lt.s32.totalorder %s28, 1
        %s418 = scalar_select %p417, %s28, 1
        %s419 = smul.addr %s418, 8
        %s420 = scalar_lea.vmem %s0, %s419
        %p421 = scmp.lt.s32.totalorder %s28, 1
        %s422 = scalar_select %p421, %s28, 1
        %s423 = scalar_lea.vmem %s1, %s422
        %v425 = vld [vmem:[%s420] sm:$0xff]
        %v426 = vlaneseq
        %v427 = vshrl.u32 %v426, 7
        %vm428 = vcmp.ne.s32.totalorder %v427, 0
        %v429 = vsel %vm428, 1, 0
        %v430 = vcvt.s32.f32 %v429
        %vm431 = vcmp.ne.s32.totalorder %v427, 7
        %v432 = vsel %vm431, 1, 0
        %v433 = vcvt.s32.f32 %v432
        %v434 = vld [vmem:[%s3] sm:$0x1]
        %v435 = vrot.slane %v425, 7
        %v436 = vmul.f32 %v435, %v430
        %v437 = vrot.slane %v425, 1
        %v438 = vmul.f32 %v437, %v433
        %v439 = vld [vmem:[%s2] sm:$0xff]
        %v440 = vld [vmem:[%s2 + $0x8] sm:$0xff]
        %v441 = vld [vmem:[%s2 + $0x10] sm:$0xff]
        %v442 = vld [vmem:[%s2 + $0x18] sm:$0xff]
        %v443 = vpack.c.bf16 %v436, %v436
        %v444 = vpack.c.bf16 %v440, %v439
        %v445 = vpack.c.bf16 %v442, %v441
        %s446 = scalar_lea.vmem %s2, 32
        %v447 = vld [vmem:[%s446] sm:$0xff]
        %v448 = vld [vmem:[%s446 + $0x8] sm:$0xff]
        %v449 = vld [vmem:[%s446 + $0x10] sm:$0xff]
        %v450 = vld [vmem:[%s446 + $0x18] sm:$0xff]
        %v451 = vpack.c.bf16 %v425, %v425
        %v452 = vpack.c.bf16 %v448, %v447
        %v453 = vpack.c.bf16 %v450, %v449
        %vm454 = vcmask 261120
        %v456 = vsel %vm454, %v451, 0
        %458 = vmatprep.subr.bf16.mxu0 0
        %459 = vmatpush1.bf16.msra.mxu0 %v452
        %460 = vmatprep.subr.bf16.mxu0 0
        %461 = vmatpush1.bf16.msra.mxu0 %v453
        %462 = vmatprep.subr.bf16.mxu0 0
        %463 = vmatpush1.bf16.msra.mxu0 0
        %464 = vmatprep.subr.bf16.mxu0 0
        %465 = vmatpush1.bf16.msra.mxu0 0
        %466 = vmatprep.subr.bf16.mxu0 0
        %467 = vmatpush1.bf16.msra.mxu0 0
        %468 = vmatprep.subr.bf16.mxu0 0
        %469 = vmatpush1.bf16.msra.mxu0 0
        %470 = vmatprep.subr.bf16.mxu0 0
        %471 = vmatpush1.bf16.msra.mxu0 0
        %472 = vmatprep.subr.bf16.mxu0 0
        %473 = vmatpush1.bf16.msra.mxu0 0
        %474 = vmatprep.subr.bf16.mxu0 0
        %475 = vmatpush1.bf16.msra.mxu0 0
        %476 = vmatprep.subr.bf16.mxu0 0
        %477 = vmatpush1.bf16.msra.mxu0 0
        %478 = vmatprep.subr.bf16.mxu0 0
        %479 = vmatpush1.bf16.msra.mxu0 0
        %480 = vmatprep.subr.bf16.mxu0 0
        %481 = vmatpush1.bf16.msra.mxu0 0
        %482 = vmatprep.subr.bf16.mxu0 0
        %483 = vmatpush1.bf16.msra.mxu0 0
        %484 = vmatprep.subr.bf16.mxu0 0
        %485 = vmatpush1.bf16.msra.mxu0 0
        %486 = vmatprep.subr.bf16.mxu0 0
        %487 = vmatpush1.bf16.msra.mxu0 0
        %488 = vmatprep.subr.bf16.mxu0 0
        %489 = vmatpush1.bf16.msra.mxu0 0
        %490 = vmatprep.mubr.bf16.mxu0 0
        %491 = vmatmul.mubr.bf16.gmra.mrb[0].mxu0 %v456
        %v492 = vpop.f32.mrb[0].mxu0
        %v493 = vadd.f32 0.0, %v492
        %v494 = vpop.f32.mrb[0].mxu0
        %v495 = vpop.f32.mrb[0].mxu0
        %v496 = vpop.f32.mrb[0].mxu0
        %497 = vdwg.mxu0
        %v499 = vsel %vm454, %v443, 0
        %501 = vmatprep.subr.bf16.mxu0 0
        %502 = vmatpush1.bf16.msra.mxu0 %v444
        %503 = vmatprep.subr.bf16.mxu0 0
        %504 = vmatpush1.bf16.msra.mxu0 %v445
        %505 = vmatprep.subr.bf16.mxu0 0
        %506 = vmatpush1.bf16.msra.mxu0 0
        %507 = vmatprep.subr.bf16.mxu0 0
        %508 = vmatpush1.bf16.msra.mxu0 0
        %509 = vmatprep.subr.bf16.mxu0 0
        %510 = vmatpush1.bf16.msra.mxu0 0
        %511 = vmatprep.subr.bf16.mxu0 0
        %512 = vmatpush1.bf16.msra.mxu0 0
        %513 = vmatprep.subr.bf16.mxu0 0
        %514 = vmatpush1.bf16.msra.mxu0 0
        %515 = vmatprep.subr.bf16.mxu0 0
        %516 = vmatpush1.bf16.msra.mxu0 0
        %517 = vmatprep.subr.bf16.mxu0 0
        %518 = vmatpush1.bf16.msra.mxu0 0
        %519 = vmatprep.subr.bf16.mxu0 0
        %520 = vmatpush1.bf16.msra.mxu0 0
        %521 = vmatprep.subr.bf16.mxu0 0
        %522 = vmatpush1.bf16.msra.mxu0 0
        %523 = vmatprep.subr.bf16.mxu0 0
        %524 = vmatpush1.bf16.msra.mxu0 0
        %525 = vmatprep.subr.bf16.mxu0 0
        %526 = vmatpush1.bf16.msra.mxu0 0
        %527 = vmatprep.subr.bf16.mxu0 0
        %528 = vmatpush1.bf16.msra.mxu0 0
        %529 = vmatprep.subr.bf16.mxu0 0
        %530 = vmatpush1.bf16.msra.mxu0 0
        %531 = vmatprep.subr.bf16.mxu0 0
        %532 = vmatpush1.bf16.msra.mxu0 0
        %533 = vmatprep.mubr.bf16.mxu0 0
        %534 = vmatmul.mubr.bf16.gmra.mrb[0].mxu0 %v499
        %v535 = vpop.f32.mrb[0].mxu0
        %v536 = vadd.f32 %v493, %v535
        %v537 = vpop.f32.mrb[0].mxu0
        %v538 = vpop.f32.mrb[0].mxu0
        %v539 = vpop.f32.mrb[0].mxu0
        %540 = vdwg.mxu0
        %s541 = scalar_lea.vmem %s2, 64
        %v542 = vld [vmem:[%s541] sm:$0xff]
        %v543 = vld [vmem:[%s541 + $0x8] sm:$0xff]
        %v544 = vld [vmem:[%s541 + $0x10] sm:$0xff]
        %v545 = vld [vmem:[%s541 + $0x18] sm:$0xff]
        %v546 = vpack.c.bf16 %v438, %v438
        %v547 = vpack.c.bf16 %v543, %v542
        %v548 = vpack.c.bf16 %v545, %v544
        %v550 = vsel %vm454, %v546, 0
        %552 = vmatprep.subr.bf16.mxu0 0
        %553 = vmatpush1.bf16.msra.mxu0 %v547
        %554 = vmatprep.subr.bf16.mxu0 0
        %555 = vmatpush1.bf16.msra.mxu0 %v548
        %556 = vmatprep.subr.bf16.mxu0 0
        %557 = vmatpush1.bf16.msra.mxu0 0
        %558 = vmatprep.subr.bf16.mxu0 0
        %559 = vmatpush1.bf16.msra.mxu0 0
        %560 = vmatprep.subr.bf16.mxu0 0
        %561 = vmatpush1.bf16.msra.mxu0 0
        %562 = vmatprep.subr.bf16.mxu0 0
        %563 = vmatpush1.bf16.msra.mxu0 0
        %564 = vmatprep.subr.bf16.mxu0 0
        %565 = vmatpush1.bf16.msra.mxu0 0
        %566 = vmatprep.subr.bf16.mxu0 0
        %567 = vmatpush1.bf16.msra.mxu0 0
        %568 = vmatprep.subr.bf16.mxu0 0
        %569 = vmatpush1.bf16.msra.mxu0 0
        %570 = vmatprep.subr.bf16.mxu0 0
        %571 = vmatpush1.bf16.msra.mxu0 0
        %572 = vmatprep.subr.bf16.mxu0 0
        %573 = vmatpush1.bf16.msra.mxu0 0
        %574 = vmatprep.subr.bf16.mxu0 0
        %575 = vmatpush1.bf16.msra.mxu0 0
        %576 = vmatprep.subr.bf16.mxu0 0
        %577 = vmatpush1.bf16.msra.mxu0 0
        %578 = vmatprep.subr.bf16.mxu0 0
        %579 = vmatpush1.bf16.msra.mxu0 0
        %580 = vmatprep.subr.bf16.mxu0 0
        %581 = vmatpush1.bf16.msra.mxu0 0
        %582 = vmatprep.subr.bf16.mxu0 0
        %583 = vmatpush1.bf16.msra.mxu0 0
        %584 = vmatprep.mubr.bf16.mxu0 0
        %585 = vmatmul.mubr.bf16.gmra.mrb[0].mxu0 %v550
        %v586 = vpop.f32.mrb[0].mxu0
        %v587 = vadd.f32 0.0, %v586
        %v588 = vpop.f32.mrb[0].mxu0
        %v589 = vpop.f32.mrb[0].mxu0
        %v590 = vpop.f32.mrb[0].mxu0
        %591 = vdwg.mxu0
        %v592 = vadd.f32 %v536, %v587
        %v594 = vlaneseq
        %v595 = vshrl.u32 %v594, 7
        %v596 = vsub.s32 0, %v595
        %v597 = vrot.slane %v434, %v596
        %v599 = vadd.f32 %v592, %v597
        %v600 = vmax.f32 %v599, 0.0
        %v601 = vld [vmem:[%s4] sm:$0x1]
        %v602 = vld [vmem:[%s5] sm:$0x1]
        %vm603 = vcmask 523264
        %v604 = vsel %vm603, %v600, 0.0
        %605 = vadd.xlane.f32.xlu0 %v604
        %v606 = vpop.xlane.xlu0 %605
        %v607 = vrcp.pop 64.0
        %v608 = vmul.f32 %v606, %v607
        %v609 = vsub.f32 %v600, %v608
        %v610 = vmul.f32 %v609, %v609
        %v611 = vsel %vm603, %v610, 0.0
        %612 = vadd.xlane.f32.xlu0 %v611
        %v613 = vpop.xlane.xlu0 %612
        %v614 = vmul.f32 %v613, %v607
        %v615 = vadd.f32 %v614, 1e-05
        %v616 = vrsqrt.pop %v615
        %v617 = vmul.f32 %v609, %v616
        %v619 = vlaneseq
        %v620 = vshrl.u32 %v619, 7
        %v621 = vsub.s32 0, %v620
        %v622 = vrot.slane %v601, %v621
        %v624 = vmul.f32 %v617, %v622
        %v626 = vlaneseq
        %v627 = vshrl.u32 %v626, 7
        %v628 = vsub.s32 0, %v627
        %v629 = vrot.slane %v602, %v628
        %v631 = vadd.f32 %v624, %v629
        %v632 = vld [vmem:[%s7] sm:$0x1]
        %v633 = vrot.slane %v631, 7
        %v634 = vmul.f32 %v633, %v430
        %v635 = vrot.slane %v631, 1
        %v636 = vmul.f32 %v635, %v433
        %v637 = vld [vmem:[%s6] sm:$0xff]
        %v638 = vld [vmem:[%s6 + $0x8] sm:$0xff]
        %v639 = vld [vmem:[%s6 + $0x10] sm:$0xff]
        %v640 = vld [vmem:[%s6 + $0x18] sm:$0xff]
        %v641 = vld [vmem:[%s6 + $0x20] sm:$0xff]
        %v642 = vld [vmem:[%s6 + $0x28] sm:$0xff]
        %v643 = vld [vmem:[%s6 + $0x30] sm:$0xff]
        %v644 = vld [vmem:[%s6 + $0x38] sm:$0xff]
        %v645 = vpack.c.bf16 %v634, %v634
        %v646 = vpack.c.bf16 %v638, %v637
        %v647 = vpack.c.bf16 %v640, %v639
        %v648 = vpack.c.bf16 %v642, %v641
        %v649 = vpack.c.bf16 %v644, %v643
        %s650 = scalar_lea.vmem %s6, 64
        %v651 = vld [vmem:[%s650] sm:$0xff]
        %v652 = vld [vmem:[%s650 + $0x8] sm:$0xff]
        %v653 = vld [vmem:[%s650 + $0x10] sm:$0xff]
        %v654 = vld [vmem:[%s650 + $0x18] sm:$0xff]
        %v655 = vld [vmem:[%s650 + $0x20] sm:$0xff]
        %v656 = vld [vmem:[%s650 + $0x28] sm:$0xff]
        %v657 = vld [vmem:[%s650 + $0x30] sm:$0xff]
        %v658 = vld [vmem:[%s650 + $0x38] sm:$0xff]
        %v659 = vpack.c.bf16 %v631, %v631
        %v660 = vpack.c.bf16 %v652, %v651
        %v661 = vpack.c.bf16 %v654, %v653
        %v662 = vpack.c.bf16 %v656, %v655
        %v663 = vpack.c.bf16 %v658, %v657
        %v665 = vsel %vm603, %v659, 0
        %667 = vmatprep.subr.bf16.mxu0 0
        %668 = vmatpush1.bf16.msra.mxu0 %v660
        %669 = vmatprep.subr.bf16.mxu0 0
        %670 = vmatpush1.bf16.msra.mxu0 %v661
        %671 = vmatprep.subr.bf16.mxu0 0
        %672 = vmatpush1.bf16.msra.mxu0 %v662
        %673 = vmatprep.subr.bf16.mxu0 0
        %674 = vmatpush1.bf16.msra.mxu0 %v663
        %675 = vmatprep.subr.bf16.mxu0 0
        %676 = vmatpush1.bf16.msra.mxu0 0
        %677 = vmatprep.subr.bf16.mxu0 0
        %678 = vmatpush1.bf16.msra.mxu0 0
        %679 = vmatprep.subr.bf16.mxu0 0
        %680 = vmatpush1.bf16.msra.mxu0 0
        %681 = vmatprep.subr.bf16.mxu0 0
        %682 = vmatpush1.bf16.msra.mxu0 0
        %683 = vmatprep.subr.bf16.mxu0 0
        %684 = vmatpush1.bf16.msra.mxu0 0
        %685 = vmatprep.subr.bf16.mxu0 0
        %686 = vmatpush1.bf16.msra.mxu0 0
        %687 = vmatprep.subr.bf16.mxu0 0
        %688 = vmatpush1.bf16.msra.mxu0 0
        %689 = vmatprep.subr.bf16.mxu0 0
        %690 = vmatpush1.bf16.msra.mxu0 0
        %691 = vmatprep.subr.bf16.mxu0 0
        %692 = vmatpush1.bf16.msra.mxu0 0
        %693 = vmatprep.subr.bf16.mxu0 0
        %694 = vmatpush1.bf16.msra.mxu0 0
        %695 = vmatprep.subr.bf16.mxu0 0
        %696 = vmatpush1.bf16.msra.mxu0 0
        %697 = vmatprep.subr.bf16.mxu0 0
        %698 = vmatpush1.bf16.msra.mxu0 0
        %699 = vmatprep.mubr.bf16.mxu0 0
        %700 = vmatmul.mubr.bf16.gmra.mrb[0].mxu0 %v665
        %v701 = vpop.f32.mrb[0].mxu0
        %v702 = vadd.f32 0.0, %v701
        %v703 = vpop.f32.mrb[0].mxu0
        %v704 = vpop.f32.mrb[0].mxu0
        %v705 = vpop.f32.mrb[0].mxu0
        %706 = vdwg.mxu0
        %v708 = vsel %vm603, %v645, 0
        %710 = vmatprep.subr.bf16.mxu0 0
        %711 = vmatpush1.bf16.msra.mxu0 %v646
        %712 = vmatprep.subr.bf16.mxu0 0
        %713 = vmatpush1.bf16.msra.mxu0 %v647
        %714 = vmatprep.subr.bf16.mxu0 0
        %715 = vmatpush1.bf16.msra.mxu0 %v648
        %716 = vmatprep.subr.bf16.mxu0 0
        %717 = vmatpush1.bf16.msra.mxu0 %v649
        %718 = vmatprep.subr.bf16.mxu0 0
        %719 = vmatpush1.bf16.msra.mxu0 0
        %720 = vmatprep.subr.bf16.mxu0 0
        %721 = vmatpush1.bf16.msra.mxu0 0
        %722 = vmatprep.subr.bf16.mxu0 0
        %723 = vmatpush1.bf16.msra.mxu0 0
        %724 = vmatprep.subr.bf16.mxu0 0
        %725 = vmatpush1.bf16.msra.mxu0 0
        %726 = vmatprep.subr.bf16.mxu0 0
        %727 = vmatpush1.bf16.msra.mxu0 0
        %728 = vmatprep.subr.bf16.mxu0 0
        %729 = vmatpush1.bf16.msra.mxu0 0
        %730 = vmatprep.subr.bf16.mxu0 0
        %731 = vmatpush1.bf16.msra.mxu0 0
        %732 = vmatprep.subr.bf16.mxu0 0
        %733 = vmatpush1.bf16.msra.mxu0 0
        %734 = vmatprep.subr.bf16.mxu0 0
        %735 = vmatpush1.bf16.msra.mxu0 0
        %736 = vmatprep.subr.bf16.mxu0 0
        %737 = vmatpush1.bf16.msra.mxu0 0
        %738 = vmatprep.subr.bf16.mxu0 0
        %739 = vmatpush1.bf16.msra.mxu0 0
        %740 = vmatprep.subr.bf16.mxu0 0
        %741 = vmatpush1.bf16.msra.mxu0 0
        %742 = vmatprep.mubr.bf16.mxu0 0
        %743 = vmatmul.mubr.bf16.gmra.mrb[0].mxu0 %v708
        %v744 = vpop.f32.mrb[0].mxu0
        %v745 = vadd.f32 %v702, %v744
        %v746 = vpop.f32.mrb[0].mxu0
        %v747 = vpop.f32.mrb[0].mxu0
        %v748 = vpop.f32.mrb[0].mxu0
        %749 = vdwg.mxu0
        %s750 = scalar_lea.vmem %s6, 128
        %v751 = vld [vmem:[%s750] sm:$0xff]
        %v752 = vld [vmem:[%s750 + $0x8] sm:$0xff]
        %v753 = vld [vmem:[%s750 + $0x10] sm:$0xff]
        %v754 = vld [vmem:[%s750 + $0x18] sm:$0xff]
        %v755 = vld [vmem:[%s750 + $0x20] sm:$0xff]
        %v756 = vld [vmem:[%s750 + $0x28] sm:$0xff]
        %v757 = vld [vmem:[%s750 + $0x30] sm:$0xff]
        %v758 = vld [vmem:[%s750 + $0x38] sm:$0xff]
        %v759 = vpack.c.bf16 %v636, %v636
        %v760 = vpack.c.bf16 %v752, %v751
        %v761 = vpack.c.bf16 %v754, %v753
        %v762 = vpack.c.bf16 %v756, %v755
        %v763 = vpack.c.bf16 %v758, %v757
        %v765 = vsel %vm603, %v759, 0
        %767 = vmatprep.subr.bf16.mxu0 0
        %768 = vmatpush1.bf16.msra.mxu0 %v760
        %769 = vmatprep.subr.bf16.mxu0 0
        %770 = vmatpush1.bf16.msra.mxu0 %v761
        %771 = vmatprep.subr.bf16.mxu0 0
        %772 = vmatpush1.bf16.msra.mxu0 %v762
        %773 = vmatprep.subr.bf16.mxu0 0
        %774 = vmatpush1.bf16.msra.mxu0 %v763
        %775 = vmatprep.subr.bf16.mxu0 0
        %776 = vmatpush1.bf16.msra.mxu0 0
        %777 = vmatprep.subr.bf16.mxu0 0
        %778 = vmatpush1.bf16.msra.mxu0 0
        %779 = vmatprep.subr.bf16.mxu0 0
        %780 = vmatpush1.bf16.msra.mxu0 0
        %781 = vmatprep.subr.bf16.mxu0 0
        %782 = vmatpush1.bf16.msra.mxu0 0
        %783 = vmatprep.subr.bf16.mxu0 0
        %784 = vmatpush1.bf16.msra.mxu0 0
        %785 = vmatprep.subr.bf16.mxu0 0
        %786 = vmatpush1.bf16.msra.mxu0 0
        %787 = vmatprep.subr.bf16.mxu0 0
        %788 = vmatpush1.bf16.msra.mxu0 0
        %789 = vmatprep.subr.bf16.mxu0 0
        %790 = vmatpush1.bf16.msra.mxu0 0
        %791 = vmatprep.subr.bf16.mxu0 0
        %792 = vmatpush1.bf16.msra.mxu0 0
        %793 = vmatprep.subr.bf16.mxu0 0
        %794 = vmatpush1.bf16.msra.mxu0 0
        %795 = vmatprep.subr.bf16.mxu0 0
        %796 = vmatpush1.bf16.msra.mxu0 0
        %797 = vmatprep.subr.bf16.mxu0 0
        %798 = vmatpush1.bf16.msra.mxu0 0
        %799 = vmatprep.mubr.bf16.mxu0 0
        %800 = vmatmul.mubr.bf16.gmra.mrb[0].mxu0 %v765
        %v801 = vpop.f32.mrb[0].mxu0
        %v802 = vadd.f32 0.0, %v801
        %v803 = vpop.f32.mrb[0].mxu0
        %v804 = vpop.f32.mrb[0].mxu0
        %v805 = vpop.f32.mrb[0].mxu0
        %806 = vdwg.mxu0
        %v807 = vadd.f32 %v745, %v802
        %v809 = vlaneseq
        %v810 = vshrl.u32 %v809, 7
        %v811 = vsub.s32 0, %v810
        %v812 = vrot.slane %v632, %v811
        %v814 = vadd.f32 %v807, %v812
        %v815 = vmax.f32 %v814, 0.0
        %v816 = vld [vmem:[%s8] sm:$0x1]
        %v817 = vld [vmem:[%s9] sm:$0x1]
        %v818 = vsel %vm603, %v815, 0.0
        %819 = vadd.xlane.f32.xlu0 %v818
        %v820 = vpop.xlane.xlu0 %819
        %v821 = vmul.f32 %v820, %v607
        %v822 = vsub.f32 %v815, %v821
        %v823 = vmul.f32 %v822, %v822
        %v824 = vsel %vm603, %v823, 0.0
        %825 = vadd.xlane.f32.xlu0 %v824
        %v826 = vpop.xlane.xlu0 %825
        %v827 = vmul.f32 %v826, %v607
        %v828 = vadd.f32 %v827, 1e-05
        %v829 = vrsqrt.pop %v828
        %v830 = vmul.f32 %v822, %v829
        %v832 = vlaneseq
        %v833 = vshrl.u32 %v832, 7
        %v834 = vsub.s32 0, %v833
        %v835 = vrot.slane %v816, %v834
        %v837 = vmul.f32 %v830, %v835
        %v839 = vlaneseq
        %v840 = vshrl.u32 %v839, 7
        %v841 = vsub.s32 0, %v840
        %v842 = vrot.slane %v817, %v841
        %v844 = vadd.f32 %v837, %v842
        %v845 = vld [vmem:[%s10] sm:$0x1]
        %v846 = vpack.c.bf16 %v845, %v845
        %v847 = vpack.c.bf16 %v844, %v844
        %v848 = vld [vmem:[#allocation2] sm:$0x1]
        %850 = vset.pattern.permute.xlu0 0
        %851 = vperm.xlu0 %850, %v848
        %v852 = vpop.permute.xlu0 %851
        %v854 = vlaneseq
        %v855 = vshrl.u32 %v854, 7
        %v856 = vsub.s32 0, %v855
        %v857 = vrot.slane %v852, %v856
        %v859 = vsel %vm603, %v846, 0
        %v862 = vsel %vm603, %v847, 0
        %864 = vmatprep.subr.bf16.mxu0 0
        %865 = vmatpush1.bf16.xpose.msra.mxu0 %v862
        %866 = vmatprep.subr.bf16.mxu0 0
        %867 = vmatpush1.bf16.xpose.msra.mxu0 0
        %868 = vmatprep.subr.bf16.mxu0 0
        %869 = vmatpush1.bf16.xpose.msra.mxu0 0
        %870 = vmatprep.subr.bf16.mxu0 0
        %871 = vmatpush1.bf16.xpose.msra.mxu0 0
        %872 = vmatprep.subr.bf16.mxu0 0
        %873 = vmatpush1.bf16.xpose.msra.mxu0 0
        %874 = vmatprep.subr.bf16.mxu0 0
        %875 = vmatpush1.bf16.xpose.msra.mxu0 0
        %876 = vmatprep.subr.bf16.mxu0 0
        %877 = vmatpush1.bf16.xpose.msra.mxu0 0
        %878 = vmatprep.subr.bf16.mxu0 0
        %879 = vmatpush1.bf16.xpose.msra.mxu0 0
        %880 = vmatprep.subr.bf16.mxu0 0
        %881 = vmatpush1.bf16.xpose.msra.mxu0 0
        %882 = vmatprep.subr.bf16.mxu0 0
        %883 = vmatpush1.bf16.xpose.msra.mxu0 0
        %884 = vmatprep.subr.bf16.mxu0 0
        %885 = vmatpush1.bf16.xpose.msra.mxu0 0
        %886 = vmatprep.subr.bf16.mxu0 0
        %887 = vmatpush1.bf16.xpose.msra.mxu0 0
        %888 = vmatprep.subr.bf16.mxu0 0
        %889 = vmatpush1.bf16.xpose.msra.mxu0 0
        %890 = vmatprep.subr.bf16.mxu0 0
        %891 = vmatpush1.bf16.xpose.msra.mxu0 0
        %892 = vmatprep.subr.bf16.mxu0 0
        %893 = vmatpush1.bf16.xpose.msra.mxu0 0
        %894 = vmatprep.subr.bf16.mxu0 0
        %895 = vmatpush1.bf16.xpose.msra.mxu0 0
        %896 = vmatprep.mubr.bf16.mxu0 0
        %897 = vmatmul.mubr.bf16.gmra.mrb[0].mxu0 %v859
        %v898 = vpop.f32.mrb[0].mxu0
        %v899 = vadd.f32 %v857, %v898
        %v900 = vpop.f32.mrb[0].mxu0
        %v901 = vpop.f32.mrb[0].mxu0
        %v902 = vpop.f32.mrb[0].mxu0
        %903 = vdwg.mxu0
        %v904 = vld [vmem:[%s423] sm:$0x1]
        %v905 = vmul.f32 %v899, %v904
        %vm906 = vcmask 57344
        %907 = vst.msk [vmem:[%s416] sm:$0x1] %vm906, %v905
        %s908 = sand.u32 %s298, 1
        %s909 = scalar_lea.sflag [#allocation4], %s908
        %s910 = sand.u32 %s298, 1
        %s911 = scalar_lea.vmem [#allocation3], %s910
        // Predicated region
        $region69: #{fastspeech2_forward.6} parent=67 // pred_check
          %p912 = pneg %p308
        $region70: #{fastspeech2_forward.6} parent=67 // pred_check_branch
          %914 = sbr.rel (%p912) target = $region72
        $region71: #{fastspeech2_forward.6} parent=67 // pred_region
          %s916 = ssub.s32 16, 16
          %917 = vsyncadd %s909, %s916
          %s918 = smul.addr %s28, 16
          %s919 = scalar_lea.hbm %s12, %s918
          %s921 = sshll.u32 %s911, 4
          %s922 = int_to_ptr.vmem [resolvable:$true] %s921
          %924 = dma.vmem_to_hbm [thread:$0]  %s922, 16, %s919, %s909
        $region72: #{fastspeech2_forward.6} parent=67 // pred_fallthru
          _
      $region68: #{fastspeech2_forward.6} parent=5 // pred_fallthru
        _
      %p925 = scmp.le.s32.totalorder 2, %s23
      // Predicated region
      $region73: #{fastspeech2_forward.6} parent=5 // pred_check
        %p926 = pneg %p925
      $region74: #{fastspeech2_forward.6} parent=5 // pred_check_branch
        %928 = sbr.rel (%p926) target = $region76
      $region75: #{fastspeech2_forward.6} parent=5 // pred_region
        %s929 = ssub.s32 %s23, 2
        // Predicated region
        $region77: #{fastspeech2_forward.6} parent=75 // pred_check
          %p930 = pneg %p314
        $region78: #{fastspeech2_forward.6} parent=75 // pred_check_branch
          %932 = sbr.rel (%p930) target = $region80
        $region79: #{fastspeech2_forward.6} parent=75 // pred_region
          %s933 = sand.u32 %s299, 1
          %s934 = scalar_lea.sflag [#allocation4], %s933
          %s935 = sand.u32 %s299, 1
          %s936 = scalar_lea.vmem [#allocation3], %s935
          %937 = dma.done %s934, 16
        $region80: #{fastspeech2_forward.6} parent=75 // pred_fallthru
          _
      $region76: #{fastspeech2_forward.6} parent=5 // pred_fallthru
        _
    $region6: #{fastspeech2_forward.6} parent=1 // loop_footer
      %s27 = sadd.s32 1, %s23
    $region7: #{fastspeech2_forward.6} parent=1 // loop_footer_branch
      %22 = sbr.rel target = $region3
    $region8: #{fastspeech2_forward.6} parent=1 // loop_exit
      _
    %938 = vsyncpa [#allocation4], 1
    %s939 = scalar_lea.sflag [#allocation4], 1
    %940 = vsyncpa %s939, 1

// kernel: fastspeech2_forward.9
$region0: #{fastspeech2_forward.9}
  #allocation0 [shape = 'u32[]', space=smem, size = 0x4, offset = 0x4, fixed_abs, tag = 'smem constant byte address 0x4 - core index']
  #allocation1 [shape = 'u32[144,128]{1,0:T(1,128)}', space=vmem, size = 0x12000, scoped, tag = 'internal scratch']
  %s0 = inlined_call_operand.vmem [shape: f32[2,16,32], index: 0, kind: input, shape index: {}]
  %s1 = inlined_call_operand.vmem [shape: f32[2,1,16], index: 1, kind: input, shape index: {}]
  %s2 = inlined_call_operand.vmem [shape: f32[2,16,1], index: 2, kind: input, shape index: {}]
  %s3 = inlined_call_operand.vmem [shape: f32[2,16,1], index: 3, kind: input, shape index: {}]
  %s4 = inlined_call_operand.vmem [shape: f32[32,96], index: 4, kind: input, shape index: {}]
  %s5 = inlined_call_operand.vmem [shape: f32[1,96], index: 5, kind: input, shape index: {}]
  %s6 = inlined_call_operand.vmem [shape: f32[32,32], index: 6, kind: input, shape index: {}]
  %s7 = inlined_call_operand.vmem [shape: f32[1,32], index: 7, kind: input, shape index: {}]
  %s8 = inlined_call_operand.vmem [shape: f32[1,32], index: 8, kind: input, shape index: {}]
  %s9 = inlined_call_operand.vmem [shape: f32[1,32], index: 9, kind: input, shape index: {}]
  %s10 = inlined_call_operand.vmem [shape: f32[3,32,64], index: 10, kind: input, shape index: {}]
  %s11 = inlined_call_operand.vmem [shape: f32[1,64], index: 11, kind: input, shape index: {}]
  %s12 = inlined_call_operand.vmem [shape: f32[3,64,32], index: 12, kind: input, shape index: {}]
  %s13 = inlined_call_operand.vmem [shape: f32[1,32], index: 13, kind: input, shape index: {}]
  %s14 = inlined_call_operand.vmem [shape: f32[1,32], index: 14, kind: input, shape index: {}]
  %s15 = inlined_call_operand.vmem [shape: f32[1,32], index: 15, kind: input, shape index: {}]
  %s16 = inlined_call_operand.vmem [shape: f32[32,16], index: 16, kind: input, shape index: {}]
  %s17 = inlined_call_operand.vmem [shape: f32[1,16], index: 17, kind: input, shape index: {}]
  %s18 = inlined_call_operand.hbm [shape: f32[2,16,16], index: 18, kind: output, shape index: {}]
  %s19 = sld [smem:[#allocation0]]
  $region105: #{fastspeech2_forward.9} parent=0
    _
  %s21 = ssub.s32 1, %s19
  %s22 = scalar_select 0, %s21, %s19
  $region1: #{fastspeech2_forward.9} parent=0
    #allocation2 [shape = 'u8[16384]{0}', space=vmem, size = 0x4000, scoped, tag = 'output window, operand 0']
    #allocation3 [shape = 's32[2]{0}', space=sflag, size = 0x8, scoped, tag = 'scoped memory for fastspeech2_forward.9']
    %23 = vsyncpa [#allocation3], 0
    %s24 = scalar_lea.sflag [#allocation3], 1
    %25 = vsyncpa %s24, 0
    loop: start=0, step=1, limit=4
    $region2: #{fastspeech2_forward.9} parent=1 // loop_pre_header
      _
    $region3: #{fastspeech2_forward.9} parent=1 // loop_header
      %s27 = sphi 0, %s31
      %p28 = scmp.ge.s32.totalorder %s27, 4
      %s37 = sphi 0, %s39
      %s40 = sphi 0, %s37
      %s41 = sphi 0, %s40
      %s57 = sphi 0, %s41
      %s63 = sphi 0, %s65
      %s66 = sphi 0, %s63
      %s67 = sphi 0, %s66
      %s83 = sphi 0, %s67
      %s89 = sphi 0, %s91
      %s92 = sphi 0, %s89
      %s93 = sphi 0, %s92
      %s109 = sphi 0, %s93
      %s115 = sphi 0, %s117
      %s118 = sphi 0, %s115
      %s119 = sphi 0, %s118
      %s135 = sphi 0, %s119
      %s139 = sphi 0, %s139
      %s141 = sphi 0, %s139
      %s142 = sphi 0, %s141
      %s156 = sphi 0, %s142
      %s160 = sphi 0, %s160
      %s162 = sphi 0, %s160
      %s163 = sphi 0, %s162
      %s177 = sphi 0, %s163
      %s181 = sphi 0, %s181
      %s183 = sphi 0, %s181
      %s184 = sphi 0, %s183
      %s198 = sphi 0, %s184
      %s202 = sphi 0, %s202
      %s204 = sphi 0, %s202
      %s205 = sphi 0, %s204
      %s219 = sphi 0, %s205
      %s223 = sphi 0, %s223
      %s225 = sphi 0, %s223
      %s226 = sphi 0, %s225
      %s240 = sphi 0, %s226
      %s244 = sphi 0, %s244
      %s246 = sphi 0, %s244
      %s247 = sphi 0, %s246
      %s261 = sphi 0, %s247
      %s265 = sphi 0, %s265
      %s267 = sphi 0, %s265
      %s268 = sphi 0, %s267
      %s282 = sphi 0, %s268
      %s286 = sphi 0, %s286
      %s288 = sphi 0, %s286
      %s289 = sphi 0, %s288
      %s303 = sphi 0, %s289
      %s307 = sphi 0, %s307
      %s309 = sphi 0, %s307
      %s310 = sphi 0, %s309
      %s324 = sphi 0, %s310
      %s328 = sphi 0, %s328
      %s330 = sphi 0, %s328
      %s331 = sphi 0, %s330
      %s345 = sphi 0, %s331
      %s349 = sphi 0, %s349
      %s351 = sphi 0, %s349
      %s352 = sphi 0, %s351
      %s366 = sphi 0, %s352
      %s370 = sphi 0, %s370
      %s372 = sphi 0, %s370
      %s373 = sphi 0, %s372
      %s387 = sphi 0, %s373
      %s391 = sphi 0, %s391
      %s393 = sphi 0, %s391
      %s394 = sphi 0, %s393
      %s408 = sphi 0, %s394
      %s412 = sphi 0, %s412
      %s414 = sphi 0, %s412
      %s415 = sphi 0, %s414
      %s429 = sphi 0, %s415
      %s435 = sphi 0, %s437
      %s438 = sphi 0, %s435
      %s439 = sphi 0, %s438
      %s455 = sphi 0, %s439
    $region4: #{fastspeech2_forward.9} parent=1 // loop_header_branch
      %30 = sbr.rel (%p28) target = $region8
    $region5: #{fastspeech2_forward.9} parent=1 // loop_body
      %s32 = ssub.s32 %s27, 1
      %s33 = ssub.s32 %s27, 2
      %s34 = sadd.s32 %s27, 1
      %s35 = ssub.s32 %s27, %s34
      %p36 = scmp.eq.s32.totalorder %s35, 0
      %s38 = sadd.s32 %s37, 1
      %s39 = scalar_select %p36, %s37, %s38
      %p42 = pneg %p36
      %p43 = scmp.eq.s32.totalorder %s27, 1
      %p44 = por %p42, %p43
      %p45 = scmp.ne.s32.totalorder %s37, %s40
      %p46 = scmp.eq.s32.totalorder %s27, 0
      %p47 = por %p45, %p46
      %p48 = scmp.ne.s32.totalorder %s37, %s40
      %p49 = scmp.eq.s32.totalorder %s32, 1
      %p50 = por %p48, %p49
      %p51 = scmp.ne.s32.totalorder %s40, %s41
      %p52 = scmp.eq.s32.totalorder %s32, 0
      %p53 = por %p51, %p52
      %p54 = scmp.ne.s32.totalorder %s40, %s41
      %p55 = scmp.eq.s32.totalorder %s33, 1
      %p56 = por %p54, %p55
      %p58 = scmp.ne.s32.totalorder %s41, %s57
      %p59 = scmp.eq.s32.totalorder %s33, 0
      %p60 = por %p58, %p59
      %s61 = ssub.s32 %s27, %s34
      %p62 = scmp.eq.s32.totalorder %s61, 0
      %s64 = sadd.s32 %s63, 1
      %s65 = scalar_select %p62, %s63, %s64
      %p68 = pneg %p62
      %p69 = scmp.eq.s32.totalorder %s27, 1
      %p70 = por %p68, %p69
      %p71 = scmp.ne.s32.totalorder %s63, %s66
      %p72 = scmp.eq.s32.totalorder %s27, 0
      %p73 = por %p71, %p72
      %p74 = scmp.ne.s32.totalorder %s63, %s66
      %p75 = scmp.eq.s32.totalorder %s32, 1
      %p76 = por %p74, %p75
      %p77 = scmp.ne.s32.totalorder %s66, %s67
      %p78 = scmp.eq.s32.totalorder %s32, 0
      %p79 = por %p77, %p78
      %p80 = scmp.ne.s32.totalorder %s66, %s67
      %p81 = scmp.eq.s32.totalorder %s33, 1
      %p82 = por %p80, %p81
      %p84 = scmp.ne.s32.totalorder %s67, %s83
      %p85 = scmp.eq.s32.totalorder %s33, 0
      %p86 = por %p84, %p85
      %s87 = ssub.s32 %s27, %s34
      %p88 = scmp.eq.s32.totalorder %s87, 0
      %s90 = sadd.s32 %s89, 1
      %s91 = scalar_select %p88, %s89, %s90
      %p94 = pneg %p88
      %p95 = scmp.eq.s32.totalorder %s27, 1
      %p96 = por %p94, %p95
      %p97 = scmp.ne.s32.totalorder %s89, %s92
      %p98 = scmp.eq.s32.totalorder %s27, 0
      %p99 = por %p97, %p98
      %p100 = scmp.ne.s32.totalorder %s89, %s92
      %p101 = scmp.eq.s32.totalorder %s32, 1
      %p102 = por %p100, %p101
      %p103 = scmp.ne.s32.totalorder %s92, %s93
      %p104 = scmp.eq.s32.totalorder %s32, 0
      %p105 = por %p103, %p104
      %p106 = scmp.ne.s32.totalorder %s92, %s93
      %p107 = scmp.eq.s32.totalorder %s33, 1
      %p108 = por %p106, %p107
      %p110 = scmp.ne.s32.totalorder %s93, %s109
      %p111 = scmp.eq.s32.totalorder %s33, 0
      %p112 = por %p110, %p111
      %s113 = ssub.s32 %s27, %s34
      %p114 = scmp.eq.s32.totalorder %s113, 0
      %s116 = sadd.s32 %s115, 1
      %s117 = scalar_select %p114, %s115, %s116
      %p120 = pneg %p114
      %p121 = scmp.eq.s32.totalorder %s27, 1
      %p122 = por %p120, %p121
      %p123 = scmp.ne.s32.totalorder %s115, %s118
      %p124 = scmp.eq.s32.totalorder %s27, 0
      %p125 = por %p123, %p124
      %p126 = scmp.ne.s32.totalorder %s115, %s118
      %p127 = scmp.eq.s32.totalorder %s32, 1
      %p128 = por %p126, %p127
      %p129 = scmp.ne.s32.totalorder %s118, %s119
      %p130 = scmp.eq.s32.totalorder %s32, 0
      %p131 = por %p129, %p130
      %p132 = scmp.ne.s32.totalorder %s118, %s119
      %p133 = scmp.eq.s32.totalorder %s33, 1
      %p134 = por %p132, %p133
      %p136 = scmp.ne.s32.totalorder %s119, %s135
      %p137 = scmp.eq.s32.totalorder %s33, 0
      %p138 = por %p136, %p137
      %s140 = sadd.s32 %s139, 1
      %p143 = scmp.eq.s32.totalorder %s27, 1
      %p144 = scmp.ne.s32.totalorder %s139, %s141
      %p145 = scmp.eq.s32.totalorder %s27, 0
      %p146 = por %p144, %p145
      %p147 = scmp.ne.s32.totalorder %s139, %s141
      %p148 = scmp.eq.s32.totalorder %s32, 1
      %p149 = por %p147, %p148
      %p150 = scmp.ne.s32.totalorder %s141, %s142
      %p151 = scmp.eq.s32.totalorder %s32, 0
      %p152 = por %p150, %p151
      %p153 = scmp.ne.s32.totalorder %s141, %s142
      %p154 = scmp.eq.s32.totalorder %s33, 1
      %p155 = por %p153, %p154
      %p157 = scmp.ne.s32.totalorder %s142, %s156
      %p158 = scmp.eq.s32.totalorder %s33, 0
      %p159 = por %p157, %p158
      %s161 = sadd.s32 %s160, 1
      %p164 = scmp.eq.s32.totalorder %s27, 1
      %p165 = scmp.ne.s32.totalorder %s160, %s162
      %p166 = scmp.eq.s32.totalorder %s27, 0
      %p167 = por %p165, %p166
      %p168 = scmp.ne.s32.totalorder %s160, %s162
      %p169 = scmp.eq.s32.totalorder %s32, 1
      %p170 = por %p168, %p169
      %p171 = scmp.ne.s32.totalorder %s162, %s163
      %p172 = scmp.eq.s32.totalorder %s32, 0
      %p173 = por %p171, %p172
      %p174 = scmp.ne.s32.totalorder %s162, %s163
      %p175 = scmp.eq.s32.totalorder %s33, 1
      %p176 = por %p174, %p175
      %p178 = scmp.ne.s32.totalorder %s163, %s177
      %p179 = scmp.eq.s32.totalorder %s33, 0
      %p180 = por %p178, %p179
      %s182 = sadd.s32 %s181, 1
      %p185 = scmp.eq.s32.totalorder %s27, 1
      %p186 = scmp.ne.s32.totalorder %s181, %s183
      %p187 = scmp.eq.s32.totalorder %s27, 0
      %p188 = por %p186, %p187
      %p189 = scmp.ne.s32.totalorder %s181, %s183
      %p190 = scmp.eq.s32.totalorder %s32, 1
      %p191 = por %p189, %p190
      %p192 = scmp.ne.s32.totalorder %s183, %s184
      %p193 = scmp.eq.s32.totalorder %s32, 0
      %p194 = por %p192, %p193
      %p195 = scmp.ne.s32.totalorder %s183, %s184
      %p196 = scmp.eq.s32.totalorder %s33, 1
      %p197 = por %p195, %p196
      %p199 = scmp.ne.s32.totalorder %s184, %s198
      %p200 = scmp.eq.s32.totalorder %s33, 0
      %p201 = por %p199, %p200
      %s203 = sadd.s32 %s202, 1
      %p206 = scmp.eq.s32.totalorder %s27, 1
      %p207 = scmp.ne.s32.totalorder %s202, %s204
      %p208 = scmp.eq.s32.totalorder %s27, 0
      %p209 = por %p207, %p208
      %p210 = scmp.ne.s32.totalorder %s202, %s204
      %p211 = scmp.eq.s32.totalorder %s32, 1
      %p212 = por %p210, %p211
      %p213 = scmp.ne.s32.totalorder %s204, %s205
      %p214 = scmp.eq.s32.totalorder %s32, 0
      %p215 = por %p213, %p214
      %p216 = scmp.ne.s32.totalorder %s204, %s205
      %p217 = scmp.eq.s32.totalorder %s33, 1
      %p218 = por %p216, %p217
      %p220 = scmp.ne.s32.totalorder %s205, %s219
      %p221 = scmp.eq.s32.totalorder %s33, 0
      %p222 = por %p220, %p221
      %s224 = sadd.s32 %s223, 1
      %p227 = scmp.eq.s32.totalorder %s27, 1
      %p228 = scmp.ne.s32.totalorder %s223, %s225
      %p229 = scmp.eq.s32.totalorder %s27, 0
      %p230 = por %p228, %p229
      %p231 = scmp.ne.s32.totalorder %s223, %s225
      %p232 = scmp.eq.s32.totalorder %s32, 1
      %p233 = por %p231, %p232
      %p234 = scmp.ne.s32.totalorder %s225, %s226
      %p235 = scmp.eq.s32.totalorder %s32, 0
      %p236 = por %p234, %p235
      %p237 = scmp.ne.s32.totalorder %s225, %s226
      %p238 = scmp.eq.s32.totalorder %s33, 1
      %p239 = por %p237, %p238
      %p241 = scmp.ne.s32.totalorder %s226, %s240
      %p242 = scmp.eq.s32.totalorder %s33, 0
      %p243 = por %p241, %p242
      %s245 = sadd.s32 %s244, 1
      %p248 = scmp.eq.s32.totalorder %s27, 1
      %p249 = scmp.ne.s32.totalorder %s244, %s246
      %p250 = scmp.eq.s32.totalorder %s27, 0
      %p251 = por %p249, %p250
      %p252 = scmp.ne.s32.totalorder %s244, %s246
      %p253 = scmp.eq.s32.totalorder %s32, 1
      %p254 = por %p252, %p253
      %p255 = scmp.ne.s32.totalorder %s246, %s247
      %p256 = scmp.eq.s32.totalorder %s32, 0
      %p257 = por %p255, %p256
      %p258 = scmp.ne.s32.totalorder %s246, %s247
      %p259 = scmp.eq.s32.totalorder %s33, 1
      %p260 = por %p258, %p259
      %p262 = scmp.ne.s32.totalorder %s247, %s261
      %p263 = scmp.eq.s32.totalorder %s33, 0
      %p264 = por %p262, %p263
      %s266 = sadd.s32 %s265, 1
      %p269 = scmp.eq.s32.totalorder %s27, 1
      %p270 = scmp.ne.s32.totalorder %s265, %s267
      %p271 = scmp.eq.s32.totalorder %s27, 0
      %p272 = por %p270, %p271
      %p273 = scmp.ne.s32.totalorder %s265, %s267
      %p274 = scmp.eq.s32.totalorder %s32, 1
      %p275 = por %p273, %p274
      %p276 = scmp.ne.s32.totalorder %s267, %s268
      %p277 = scmp.eq.s32.totalorder %s32, 0
      %p278 = por %p276, %p277
      %p279 = scmp.ne.s32.totalorder %s267, %s268
      %p280 = scmp.eq.s32.totalorder %s33, 1
      %p281 = por %p279, %p280
      %p283 = scmp.ne.s32.totalorder %s268, %s282
      %p284 = scmp.eq.s32.totalorder %s33, 0
      %p285 = por %p283, %p284
      %s287 = sadd.s32 %s286, 1
      %p290 = scmp.eq.s32.totalorder %s27, 1
      %p291 = scmp.ne.s32.totalorder %s286, %s288
      %p292 = scmp.eq.s32.totalorder %s27, 0
      %p293 = por %p291, %p292
      %p294 = scmp.ne.s32.totalorder %s286, %s288
      %p295 = scmp.eq.s32.totalorder %s32, 1
      %p296 = por %p294, %p295
      %p297 = scmp.ne.s32.totalorder %s288, %s289
      %p298 = scmp.eq.s32.totalorder %s32, 0
      %p299 = por %p297, %p298
      %p300 = scmp.ne.s32.totalorder %s288, %s289
      %p301 = scmp.eq.s32.totalorder %s33, 1
      %p302 = por %p300, %p301
      %p304 = scmp.ne.s32.totalorder %s289, %s303
      %p305 = scmp.eq.s32.totalorder %s33, 0
      %p306 = por %p304, %p305
      %s308 = sadd.s32 %s307, 1
      %p311 = scmp.eq.s32.totalorder %s27, 1
      %p312 = scmp.ne.s32.totalorder %s307, %s309
      %p313 = scmp.eq.s32.totalorder %s27, 0
      %p314 = por %p312, %p313
      %p315 = scmp.ne.s32.totalorder %s307, %s309
      %p316 = scmp.eq.s32.totalorder %s32, 1
      %p317 = por %p315, %p316
      %p318 = scmp.ne.s32.totalorder %s309, %s310
      %p319 = scmp.eq.s32.totalorder %s32, 0
      %p320 = por %p318, %p319
      %p321 = scmp.ne.s32.totalorder %s309, %s310
      %p322 = scmp.eq.s32.totalorder %s33, 1
      %p323 = por %p321, %p322
      %p325 = scmp.ne.s32.totalorder %s310, %s324
      %p326 = scmp.eq.s32.totalorder %s33, 0
      %p327 = por %p325, %p326
      %s329 = sadd.s32 %s328, 1
      %p332 = scmp.eq.s32.totalorder %s27, 1
      %p333 = scmp.ne.s32.totalorder %s328, %s330
      %p334 = scmp.eq.s32.totalorder %s27, 0
      %p335 = por %p333, %p334
      %p336 = scmp.ne.s32.totalorder %s328, %s330
      %p337 = scmp.eq.s32.totalorder %s32, 1
      %p338 = por %p336, %p337
      %p339 = scmp.ne.s32.totalorder %s330, %s331
      %p340 = scmp.eq.s32.totalorder %s32, 0
      %p341 = por %p339, %p340
      %p342 = scmp.ne.s32.totalorder %s330, %s331
      %p343 = scmp.eq.s32.totalorder %s33, 1
      %p344 = por %p342, %p343
      %p346 = scmp.ne.s32.totalorder %s331, %s345
      %p347 = scmp.eq.s32.totalorder %s33, 0
      %p348 = por %p346, %p347
      %s350 = sadd.s32 %s349, 1
      %p353 = scmp.eq.s32.totalorder %s27, 1
      %p354 = scmp.ne.s32.totalorder %s349, %s351
      %p355 = scmp.eq.s32.totalorder %s27, 0
      %p356 = por %p354, %p355
      %p357 = scmp.ne.s32.totalorder %s349, %s351
      %p358 = scmp.eq.s32.totalorder %s32, 1
      %p359 = por %p357, %p358
      %p360 = scmp.ne.s32.totalorder %s351, %s352
      %p361 = scmp.eq.s32.totalorder %s32, 0
      %p362 = por %p360, %p361
      %p363 = scmp.ne.s32.totalorder %s351, %s352
      %p364 = scmp.eq.s32.totalorder %s33, 1
      %p365 = por %p363, %p364
      %p367 = scmp.ne.s32.totalorder %s352, %s366
      %p368 = scmp.eq.s32.totalorder %s33, 0
      %p369 = por %p367, %p368
      %s371 = sadd.s32 %s370, 1
      %p374 = scmp.eq.s32.totalorder %s27, 1
      %p375 = scmp.ne.s32.totalorder %s370, %s372
      %p376 = scmp.eq.s32.totalorder %s27, 0
      %p377 = por %p375, %p376
      %p378 = scmp.ne.s32.totalorder %s370, %s372
      %p379 = scmp.eq.s32.totalorder %s32, 1
      %p380 = por %p378, %p379
      %p381 = scmp.ne.s32.totalorder %s372, %s373
      %p382 = scmp.eq.s32.totalorder %s32, 0
      %p383 = por %p381, %p382
      %p384 = scmp.ne.s32.totalorder %s372, %s373
      %p385 = scmp.eq.s32.totalorder %s33, 1
      %p386 = por %p384, %p385
      %p388 = scmp.ne.s32.totalorder %s373, %s387
      %p389 = scmp.eq.s32.totalorder %s33, 0
      %p390 = por %p388, %p389
      %s392 = sadd.s32 %s391, 1
      %p395 = scmp.eq.s32.totalorder %s27, 1
      %p396 = scmp.ne.s32.totalorder %s391, %s393
      %p397 = scmp.eq.s32.totalorder %s27, 0
      %p398 = por %p396, %p397
      %p399 = scmp.ne.s32.totalorder %s391, %s393
      %p400 = scmp.eq.s32.totalorder %s32, 1
      %p401 = por %p399, %p400
      %p402 = scmp.ne.s32.totalorder %s393, %s394
      %p403 = scmp.eq.s32.totalorder %s32, 0
      %p404 = por %p402, %p403
      %p405 = scmp.ne.s32.totalorder %s393, %s394
      %p406 = scmp.eq.s32.totalorder %s33, 1
      %p407 = por %p405, %p406
      %p409 = scmp.ne.s32.totalorder %s394, %s408
      %p410 = scmp.eq.s32.totalorder %s33, 0
      %p411 = por %p409, %p410
      %s413 = sadd.s32 %s412, 1
      %p416 = scmp.eq.s32.totalorder %s27, 1
      %p417 = scmp.ne.s32.totalorder %s412, %s414
      %p418 = scmp.eq.s32.totalorder %s27, 0
      %p419 = por %p417, %p418
      %p420 = scmp.ne.s32.totalorder %s412, %s414
      %p421 = scmp.eq.s32.totalorder %s32, 1
      %p422 = por %p420, %p421
      %p423 = scmp.ne.s32.totalorder %s414, %s415
      %p424 = scmp.eq.s32.totalorder %s32, 0
      %p425 = por %p423, %p424
      %p426 = scmp.ne.s32.totalorder %s414, %s415
      %p427 = scmp.eq.s32.totalorder %s33, 1
      %p428 = por %p426, %p427
      %p430 = scmp.ne.s32.totalorder %s415, %s429
      %p431 = scmp.eq.s32.totalorder %s33, 0
      %p432 = por %p430, %p431
      %s433 = ssub.s32 %s27, %s34
      %p434 = scmp.eq.s32.totalorder %s433, 0
      %s436 = sadd.s32 %s435, 1
      %s437 = scalar_select %p434, %s435, %s436
      %p440 = pneg %p434
      %p441 = scmp.eq.s32.totalorder %s27, 1
      %p442 = por %p440, %p441
      %p443 = scmp.ne.s32.totalorder %s435, %s438
      %p444 = scmp.eq.s32.totalorder %s27, 0
      %p445 = por %p443, %p444
      %p446 = scmp.ne.s32.totalorder %s435, %s438
      %p447 = scmp.eq.s32.totalorder %s32, 1
      %p448 = por %p446, %p447
      %p449 = scmp.ne.s32.totalorder %s438, %s439
      %p450 = scmp.eq.s32.totalorder %s32, 0
      %p451 = por %p449, %p450
      %p452 = scmp.ne.s32.totalorder %s438, %s439
      %p453 = scmp.eq.s32.totalorder %s33, 1
      %p454 = por %p452, %p453
      %p456 = scmp.ne.s32.totalorder %s439, %s455
      %p457 = scmp.eq.s32.totalorder %s33, 0
      %p458 = por %p456, %p457
      %p459 = scmp.le.s32.totalorder 1, %s27
      %p460 = scmp.lt.s32.totalorder %s27, 3
      %p461 = pnand %p459, %p460
      %p462 = pneg %p461
      // Predicated region
      $region9: #{fastspeech2_forward.9} parent=5 // pred_check
        _
      $region10: #{fastspeech2_forward.9} parent=5 // pred_check_branch
        %464 = sbr.rel (%p461) target = $region12
      $region11: #{fastspeech2_forward.9} parent=5 // pred_region
        %s465 = ssub.s32 %s27, 1
        // Predicated region
        $region13: #{fastspeech2_forward.9} parent=11 // pred_check
          %p466 = pneg %p152
        $region14: #{fastspeech2_forward.9} parent=11 // pred_check_branch
          %468 = sbr.rel (%p466) target = $region16
        $region15: #{fastspeech2_forward.9} parent=11 // pred_region
          _
        $region16: #{fastspeech2_forward.9} parent=11 // pred_fallthru
          _
        // Predicated region
        $region17: #{fastspeech2_forward.9} parent=11 // pred_check
          %p469 = pneg %p173
        $region18: #{fastspeech2_forward.9} parent=11 // pred_check_branch
          %471 = sbr.rel (%p469) target = $region20
        $region19: #{fastspeech2_forward.9} parent=11 // pred_region
          _
        $region20: #{fastspeech2_forward.9} parent=11 // pred_fallthru
          _
        // Predicated region
        $region21: #{fastspeech2_forward.9} parent=11 // pred_check
          %p472 = pneg %p194
        $region22: #{fastspeech2_forward.9} parent=11 // pred_check_branch
          %474 = sbr.rel (%p472) target = $region24
        $region23: #{fastspeech2_forward.9} parent=11 // pred_region
          _
        $region24: #{fastspeech2_forward.9} parent=11 // pred_fallthru
          _
        // Predicated region
        $region25: #{fastspeech2_forward.9} parent=11 // pred_check
          %p475 = pneg %p215
        $region26: #{fastspeech2_forward.9} parent=11 // pred_check_branch
          %477 = sbr.rel (%p475) target = $region28
        $region27: #{fastspeech2_forward.9} parent=11 // pred_region
          _
        $region28: #{fastspeech2_forward.9} parent=11 // pred_fallthru
          _
        // Predicated region
        $region29: #{fastspeech2_forward.9} parent=11 // pred_check
          %p478 = pneg %p236
        $region30: #{fastspeech2_forward.9} parent=11 // pred_check_branch
          %480 = sbr.rel (%p478) target = $region32
        $region31: #{fastspeech2_forward.9} parent=11 // pred_region
          _
        $region32: #{fastspeech2_forward.9} parent=11 // pred_fallthru
          _
        // Predicated region
        $region33: #{fastspeech2_forward.9} parent=11 // pred_check
          %p481 = pneg %p257
        $region34: #{fastspeech2_forward.9} parent=11 // pred_check_branch
          %483 = sbr.rel (%p481) target = $region36
        $region35: #{fastspeech2_forward.9} parent=11 // pred_region
          _
        $region36: #{fastspeech2_forward.9} parent=11 // pred_fallthru
          _
        // Predicated region
        $region37: #{fastspeech2_forward.9} parent=11 // pred_check
          %p484 = pneg %p278
        $region38: #{fastspeech2_forward.9} parent=11 // pred_check_branch
          %486 = sbr.rel (%p484) target = $region40
        $region39: #{fastspeech2_forward.9} parent=11 // pred_region
          _
        $region40: #{fastspeech2_forward.9} parent=11 // pred_fallthru
          _
        // Predicated region
        $region41: #{fastspeech2_forward.9} parent=11 // pred_check
          %p487 = pneg %p299
        $region42: #{fastspeech2_forward.9} parent=11 // pred_check_branch
          %489 = sbr.rel (%p487) target = $region44
        $region43: #{fastspeech2_forward.9} parent=11 // pred_region
          _
        $region44: #{fastspeech2_forward.9} parent=11 // pred_fallthru
          _
        // Predicated region
        $region45: #{fastspeech2_forward.9} parent=11 // pred_check
          %p490 = pneg %p320
        $region46: #{fastspeech2_forward.9} parent=11 // pred_check_branch
          %492 = sbr.rel (%p490) target = $region48
        $region47: #{fastspeech2_forward.9} parent=11 // pred_region
          _
        $region48: #{fastspeech2_forward.9} parent=11 // pred_fallthru
          _
        // Predicated region
        $region49: #{fastspeech2_forward.9} parent=11 // pred_check
          %p493 = pneg %p341
        $region50: #{fastspeech2_forward.9} parent=11 // pred_check_branch
          %495 = sbr.rel (%p493) target = $region52
        $region51: #{fastspeech2_forward.9} parent=11 // pred_region
          _
        $region52: #{fastspeech2_forward.9} parent=11 // pred_fallthru
          _
        // Predicated region
        $region53: #{fastspeech2_forward.9} parent=11 // pred_check
          %p496 = pneg %p362
        $region54: #{fastspeech2_forward.9} parent=11 // pred_check_branch
          %498 = sbr.rel (%p496) target = $region56
        $region55: #{fastspeech2_forward.9} parent=11 // pred_region
          _
        $region56: #{fastspeech2_forward.9} parent=11 // pred_fallthru
          _
        // Predicated region
        $region57: #{fastspeech2_forward.9} parent=11 // pred_check
          %p499 = pneg %p383
        $region58: #{fastspeech2_forward.9} parent=11 // pred_check_branch
          %501 = sbr.rel (%p499) target = $region60
        $region59: #{fastspeech2_forward.9} parent=11 // pred_region
          _
        $region60: #{fastspeech2_forward.9} parent=11 // pred_fallthru
          _
        // Predicated region
        $region61: #{fastspeech2_forward.9} parent=11 // pred_check
          %p502 = pneg %p404
        $region62: #{fastspeech2_forward.9} parent=11 // pred_check_branch
          %504 = sbr.rel (%p502) target = $region64
        $region63: #{fastspeech2_forward.9} parent=11 // pred_region
          _
        $region64: #{fastspeech2_forward.9} parent=11 // pred_fallthru
          _
        // Predicated region
        $region65: #{fastspeech2_forward.9} parent=11 // pred_check
          %p505 = pneg %p425
        $region66: #{fastspeech2_forward.9} parent=11 // pred_check_branch
          %507 = sbr.rel (%p505) target = $region68
        $region67: #{fastspeech2_forward.9} parent=11 // pred_region
          _
        $region68: #{fastspeech2_forward.9} parent=11 // pred_fallthru
          _
      $region12: #{fastspeech2_forward.9} parent=5 // pred_fallthru
        _
      %p508 = scmp.lt.s32.totalorder %s27, 2
      // Predicated region
      $region69: #{fastspeech2_forward.9} parent=5 // pred_check
        %p509 = pneg %p508
      $region70: #{fastspeech2_forward.9} parent=5 // pred_check_branch
        %511 = sbr.rel (%p509) target = $region72
      $region71: #{fastspeech2_forward.9} parent=5 // pred_region
        // Predicated region
        $region73: #{fastspeech2_forward.9} parent=71 // pred_check
          %p512 = pneg %p47
        $region74: #{fastspeech2_forward.9} parent=71 // pred_check_branch
          %514 = sbr.rel (%p512) target = $region76
        $region75: #{fastspeech2_forward.9} parent=71 // pred_region
          %p515 = scmp.lt.s32.totalorder %s27, 1
          %s516 = scalar_select %p515, %s27, 1
          %s517 = smul.addr %s516, 2
          %s518 = smul.addr %s517, 8
          %s519 = scalar_lea.vmem %s0, %s518
        $region76: #{fastspeech2_forward.9} parent=71 // pred_fallthru
          _
        // Predicated region
        $region77: #{fastspeech2_forward.9} parent=71 // pred_check
          %p520 = pneg %p73
        $region78: #{fastspeech2_forward.9} parent=71 // pred_check_branch
          %522 = sbr.rel (%p520) target = $region80
        $region79: #{fastspeech2_forward.9} parent=71 // pred_region
          %p523 = scmp.lt.s32.totalorder %s27, 1
          %s524 = scalar_select %p523, %s27, 1
          %s525 = scalar_lea.vmem %s1, %s524
        $region80: #{fastspeech2_forward.9} parent=71 // pred_fallthru
          _
        // Predicated region
        $region81: #{fastspeech2_forward.9} parent=71 // pred_check
          %p526 = pneg %p99
        $region82: #{fastspeech2_forward.9} parent=71 // pred_check_branch
          %528 = sbr.rel (%p526) target = $region84
        $region83: #{fastspeech2_forward.9} parent=71 // pred_region
          %p529 = scmp.lt.s32.totalorder %s27, 1
          %s530 = scalar_select %p529, %s27, 1
          %s531 = smul.addr %s530, 2
          %s532 = smul.addr %s531, 8
          %s533 = scalar_lea.vmem %s2, %s532
        $region84: #{fastspeech2_forward.9} parent=71 // pred_fallthru
          _
        // Predicated region
        $region85: #{fastspeech2_forward.9} parent=71 // pred_check
          %p534 = pneg %p125
        $region86: #{fastspeech2_forward.9} parent=71 // pred_check_branch
          %536 = sbr.rel (%p534) target = $region88
        $region87: #{fastspeech2_forward.9} parent=71 // pred_region
          %p537 = scmp.lt.s32.totalorder %s27, 1
          %s538 = scalar_select %p537, %s27, 1
          %s539 = smul.addr %s538, 2
          %s540 = smul.addr %s539, 8
          %s541 = scalar_lea.vmem %s3, %s540
        $region88: #{fastspeech2_forward.9} parent=71 // pred_fallthru
          _
      $region72: #{fastspeech2_forward.9} parent=5 // pred_fallthru
        _
      %p542 = scmp.le.s32.totalorder 1, %s27
      %p543 = scmp.lt.s32.totalorder %s27, 3
      %p544 = pnand %p542, %p543
      %p545 = pneg %p544
      // Predicated region
      $region89: #{fastspeech2_forward.9} parent=5 // pred_check
        _
      $region90: #{fastspeech2_forward.9} parent=5 // pred_check_branch
        %547 = sbr.rel (%p544) target = $region92
      $region91: #{fastspeech2_forward.9} parent=5 // pred_region
        %s548 = ssub.s32 %s27, 1
        %p549 = scmp.lt.s32.totalorder %s32, 1
        %s550 = scalar_select %p549, %s32, 1
        %s551 = smul.addr %s550, 2
        %s552 = smul.addr %s551, 8
        %s553 = scalar_lea.vmem %s0, %s552
        %p554 = pneg %p53
        %p555 = pneg %p50
        %p556 = scmp.lt.s32.totalorder %s32, 1
        %s557 = scalar_select %p556, %s32, 1
        %s558 = scalar_lea.vmem %s1, %s557
        %p559 = pneg %p79
        %p560 = pneg %p76
        %p561 = scmp.lt.s32.totalorder %s32, 1
        %s562 = scalar_select %p561, %s32, 1
        %s563 = smul.addr %s562, 2
        %s564 = smul.addr %s563, 8
        %s565 = scalar_lea.vmem %s2, %s564
        %p566 = pneg %p105
        %p567 = pneg %p102
        %p568 = scmp.lt.s32.totalorder %s32, 1
        %s569 = scalar_select %p568, %s32, 1
        %s570 = smul.addr %s569, 2
        %s571 = smul.addr %s570, 8
        %s572 = scalar_lea.vmem %s3, %s571
        %p573 = pneg %p131
        %p574 = pneg %p128
        %p575 = pneg %p152
        %p576 = pneg %p149
        %p577 = pneg %p173
        %p578 = pneg %p170
        %p579 = pneg %p194
        %p580 = pneg %p191
        %p581 = pneg %p215
        %p582 = pneg %p212
        %p583 = pneg %p236
        %p584 = pneg %p233
        %p585 = pneg %p257
        %p586 = pneg %p254
        %p587 = pneg %p278
        %p588 = pneg %p275
        %p589 = pneg %p299
        %p590 = pneg %p296
        %p591 = pneg %p320
        %p592 = pneg %p317
        %p593 = pneg %p341
        %p594 = pneg %p338
        %p595 = pneg %p362
        %p596 = pneg %p359
        %p597 = pneg %p383
        %p598 = pneg %p380
        %p599 = pneg %p404
        %p600 = pneg %p401
        %p601 = pneg %p425
        %p602 = pneg %p422
        %p603 = pneg %p451
        %p604 = pneg %p448
        %s605 = sand.u32 %s438, 1
        %s606 = scalar_lea.sflag [#allocation3], %s605
        %s607 = sand.u32 %s438, 1
        %s608 = smul.addr %s607, 16
        %s609 = scalar_lea.vmem [#allocation2], %s608
        %p610 = scmp.lt.s32.totalorder %s32, 1
        %s611 = scalar_select %p610, %s32, 1
        %s612 = smul.addr %s611, 2
        %s613 = smul.addr %s612, 8
        %s614 = scalar_lea.vmem %s0, %s613
        %p615 = scmp.lt.s32.totalorder %s32, 1
        %s616 = scalar_select %p615, %s32, 1
        %s617 = scalar_lea.vmem %s1, %s616
        %p618 = scmp.lt.s32.totalorder %s32, 1
        %s619 = scalar_select %p618, %s32, 1
        %s620 = smul.addr %s619, 2
        %s621 = smul.addr %s620, 8
        %s622 = scalar_lea.vmem %s2, %s621
        %p623 = scmp.lt.s32.totalorder %s32, 1
        %s624 = scalar_select %p623, %s32, 1
        %s625 = smul.addr %s624, 2
        %s626 = smul.addr %s625, 8
        %s627 = scalar_lea.vmem %s3, %s626
        %v629 = vld [vmem:[%s614] sm:$0xff]
        %v630 = vld [vmem:[%s614 + $0x8] sm:$0xff]
        %v631 = vld [vmem:[%s617] sm:$0x1]
        %v632 = vld [vmem:[%s622] sm:$0xff]
        %v633 = vld [vmem:[%s622 + $0x8] sm:$0xff]
        %v634 = vld [vmem:[%s4] sm:$0xff]
        %v635 = vld [vmem:[%s4 + $0x8] sm:$0xff]
        %v636 = vld [vmem:[%s4 + $0x10] sm:$0xff]
        %v637 = vld [vmem:[%s4 + $0x18] sm:$0xff]
        %v638 = vpack.c.bf16 %v630, %v629
        %v639 = vpack.c.bf16 %v635, %v634
        %v640 = vpack.c.bf16 %v637, %v636
        %v641 = vld [vmem:[%s5] sm:$0x1]
        %v643 = vlaneseq
        %v644 = vshrl.u32 %v643, 7
        %v645 = vsub.s32 0, %v644
        %v646 = vrot.slane %v641, %v645
        %vm648 = vcmask 261120
        %v650 = vsel %vm648, %v638, 0
        %652 = vmatprep.subr.bf16.mxu0 0
        %653 = vmatpush1.bf16.msra.mxu0 %v639
        %654 = vmatprep.subr.bf16.mxu0 0
        %655 = vmatpush1.bf16.msra.mxu0 %v640
        %656 = vmatprep.subr.bf16.mxu0 0
        %657 = vmatpush1.bf16.msra.mxu0 0
        %658 = vmatprep.subr.bf16.mxu0 0
        %659 = vmatpush1.bf16.msra.mxu0 0
        %660 = vmatprep.subr.bf16.mxu0 0
        %661 = vmatpush1.bf16.msra.mxu0 0
        %662 = vmatprep.subr.bf16.mxu0 0
        %663 = vmatpush1.bf16.msra.mxu0 0
        %664 = vmatprep.subr.bf16.mxu0 0
        %665 = vmatpush1.bf16.msra.mxu0 0
        %666 = vmatprep.subr.bf16.mxu0 0
        %667 = vmatpush1.bf16.msra.mxu0 0
        %668 = vmatprep.subr.bf16.mxu0 0
        %669 = vmatpush1.bf16.msra.mxu0 0
        %670 = vmatprep.subr.bf16.mxu0 0
        %671 = vmatpush1.bf16.msra.mxu0 0
        %672 = vmatprep.subr.bf16.mxu0 0
        %673 = vmatpush1.bf16.msra.mxu0 0
        %674 = vmatprep.subr.bf16.mxu0 0
        %675 = vmatpush1.bf16.msra.mxu0 0
        %676 = vmatprep.subr.bf16.mxu0 0
        %677 = vmatpush1.bf16.msra.mxu0 0
        %678 = vmatprep.subr.bf16.mxu0 0
        %679 = vmatpush1.bf16.msra.mxu0 0
        %680 = vmatprep.subr.bf16.mxu0 0
        %681 = vmatpush1.bf16.msra.mxu0 0
        %682 = vmatprep.subr.bf16.mxu0 0
        %683 = vmatpush1.bf16.msra.mxu0 0
        %684 = vmatprep.mubr.bf16.mxu0 0
        %685 = vmatmul.mubr.bf16.gmra.mrb[0].mxu0 %v650
        %v686 = vpop.f32.mrb[0].mxu0
        %v687 = vadd.f32 %v646, %v686
        %v688 = vpop.f32.mrb[0].mxu0
        %v689 = vpop.f32.mrb[0].mxu0
        %v690 = vadd.f32 %v646, %v689
        %v691 = vpop.f32.mrb[0].mxu0
        %692 = vdwg.mxu0
        %v693 = vmul.f32 %v631, -1e+09
        %v695 = vlaneseq
        %v696 = vshrl.u32 %v695, 7
        %v697 = vsub.s32 0, %v696
        %v698 = vrot.slane %v693, %v697
        %v700 = vpack.c.bf16 %v690, %v687
        %702 = vrot.lane.b32.xlu0 %v700, 96
        %v703 = vpop.permute.xlu0 %702
        %vm704 = vcmask 130048
        %v706 = vsel %vm704, %v700, 0
        %v709 = vsel %vm704, %v703, 0
        %711 = vmatprep.subr.bf16.mxu0 0
        %712 = vmatpush1.bf16.xpose.msra.mxu0 %v709
        %713 = vmatprep.subr.bf16.mxu0 0
        %714 = vmatpush1.bf16.xpose.msra.mxu0 0
        %715 = vmatprep.subr.bf16.mxu0 0
        %716 = vmatpush1.bf16.xpose.msra.mxu0 0
        %717 = vmatprep.subr.bf16.mxu0 0
        %718 = vmatpush1.bf16.xpose.msra.mxu0 0
        %719 = vmatprep.subr.bf16.mxu0 0
        %720 = vmatpush1.bf16.xpose.msra.mxu0 0
        %721 = vmatprep.subr.bf16.mxu0 0
        %722 = vmatpush1.bf16.xpose.msra.mxu0 0
        %723 = vmatprep.subr.bf16.mxu0 0
        %724 = vmatpush1.bf16.xpose.msra.mxu0 0
        %725 = vmatprep.subr.bf16.mxu0 0
        %726 = vmatpush1.bf16.xpose.msra.mxu0 0
        %727 = vmatprep.subr.bf16.mxu0 0
        %728 = vmatpush1.bf16.xpose.msra.mxu0 0
        %729 = vmatprep.subr.bf16.mxu0 0
        %730 = vmatpush1.bf16.xpose.msra.mxu0 0
        %731 = vmatprep.subr.bf16.mxu0 0
        %732 = vmatpush1.bf16.xpose.msra.mxu0 0
        %733 = vmatprep.subr.bf16.mxu0 0
        %734 = vmatpush1.bf16.xpose.msra.mxu0 0
        %735 = vmatprep.subr.bf16.mxu0 0
        %736 = vmatpush1.bf16.xpose.msra.mxu0 0
        %737 = vmatprep.subr.bf16.mxu0 0
        %738 = vmatpush1.bf16.xpose.msra.mxu0 0
        %739 = vmatprep.subr.bf16.mxu0 0
        %740 = vmatpush1.bf16.xpose.msra.mxu0 0
        %741 = vmatprep.subr.bf16.mxu0 0
        %742 = vmatpush1.bf16.xpose.msra.mxu0 0
        %743 = vmatprep.mubr.bf16.mxu0 0
        %744 = vmatmul.mubr.bf16.gmra.mrb[0].mxu0 %v706
        %v745 = vpop.f32.mrb[0].mxu0
        %v746 = vadd.f32 %v698, %v745
        %v747 = vpop.f32.mrb[0].mxu0
        %v748 = vpop.f32.mrb[0].mxu0
        %v749 = vadd.f32 %v698, %v748
        %v750 = vpop.f32.mrb[0].mxu0
        %751 = vdwg.mxu0
        %v752 = vsel %vm704, %v746, -inf
        %753 = vmax.xlane.f32.xlu0 %v752
        %v754 = vpop.xlane.xlu0 %753
        %v755 = vsel %vm704, %v749, -inf
        %756 = vmax.xlane.f32.xlu0 %v755
        %v757 = vpop.xlane.xlu0 %756
        %v758 = vsub.f32 %v746, %v754
        %v759 = vsub.f32 %v749, %v757
        %v760 = vmul.f32 %v758, 1.442695
        %v761 = vpow.pop %v760
        %v762 = vmul.f32 %v759, 1.442695
        %v763 = vpow.pop %v762
        %v764 = vsel %vm704, %v761, 0.0
        %765 = vadd.xlane.f32.xlu0 %v764
        %v766 = vpop.xlane.xlu0 %765
        %v767 = vsel %vm704, %v763, 0.0
        %768 = vadd.xlane.f32.xlu0 %v767
        %v769 = vpop.xlane.xlu0 %768
        %v770 = vrcp.pop %v766
        %v771 = vrcp.pop %v769
        %v772 = vmul.f32 %v761, %v770
        %v773 = vmul.f32 %v763, %v771
        %v774 = vpack.c.bf16 %v773, %v772
        %775 = vrot.lane.b32.xlu0 %v700, 64
        %v776 = vpop.permute.xlu0 %775
        %v779 = vsel %vm704, %v774, 0
        %781 = vmatprep.subr.bf16.mxu0 0
        %782 = vmatpush1.bf16.msra.mxu0 %v776
        %783 = vmatprep.subr.bf16.mxu0 0
        %784 = vmatpush1.bf16.msra.mxu0 0
        %785 = vmatprep.subr.bf16.mxu0 0
        %786 = vmatpush1.bf16.msra.mxu0 0
        %787 = vmatprep.subr.bf16.mxu0 0
        %788 = vmatpush1.bf16.msra.mxu0 0
        %789 = vmatprep.subr.bf16.mxu0 0
        %790 = vmatpush1.bf16.msra.mxu0 0
        %791 = vmatprep.subr.bf16.mxu0 0
        %792 = vmatpush1.bf16.msra.mxu0 0
        %793 = vmatprep.subr.bf16.mxu0 0
        %794 = vmatpush1.bf16.msra.mxu0 0
        %795 = vmatprep.subr.bf16.mxu0 0
        %796 = vmatpush1.bf16.msra.mxu0 0
        %797 = vmatprep.subr.bf16.mxu0 0
        %798 = vmatpush1.bf16.msra.mxu0 0
        %799 = vmatprep.subr.bf16.mxu0 0
        %800 = vmatpush1.bf16.msra.mxu0 0
        %801 = vmatprep.subr.bf16.mxu0 0
        %802 = vmatpush1.bf16.msra.mxu0 0
        %803 = vmatprep.subr.bf16.mxu0 0
        %804 = vmatpush1.bf16.msra.mxu0 0
        %805 = vmatprep.subr.bf16.mxu0 0
        %806 = vmatpush1.bf16.msra.mxu0 0
        %807 = vmatprep.subr.bf16.mxu0 0
        %808 = vmatpush1.bf16.msra.mxu0 0
        %809 = vmatprep.subr.bf16.mxu0 0
        %810 = vmatpush1.bf16.msra.mxu0 0
        %811 = vmatprep.subr.bf16.mxu0 0
        %812 = vmatpush1.bf16.msra.mxu0 0
        %813 = vmatprep.mubr.bf16.mxu0 0
        %814 = vmatmul.mubr.bf16.gmra.mrb[0].mxu0 %v779
        %v815 = vpop.f32.mrb[0].mxu0
        %v816 = vadd.f32 0.0, %v815
        %v817 = vpop.f32.mrb[0].mxu0
        %v818 = vpop.f32.mrb[0].mxu0
        %v819 = vadd.f32 0.0, %v818
        %v820 = vpop.f32.mrb[0].mxu0
        %821 = vdwg.mxu0
        %822 = vrot.lane.b32.xlu0 %v700, 112
        %v823 = vpop.permute.xlu0 %822
        %824 = vrot.lane.b32.xlu0 %v700, 80
        %v825 = vpop.permute.xlu0 %824
        %v827 = vsel %vm704, %v823, 0
        %v830 = vsel %vm704, %v825, 0
        %832 = vmatprep.subr.bf16.mxu0 0
        %833 = vmatpush1.bf16.xpose.msra.mxu0 %v830
        %834 = vmatprep.subr.bf16.mxu0 0
        %835 = vmatpush1.bf16.xpose.msra.mxu0 0
        %836 = vmatprep.subr.bf16.mxu0 0
        %837 = vmatpush1.bf16.xpose.msra.mxu0 0
        %838 = vmatprep.subr.bf16.mxu0 0
        %839 = vmatpush1.bf16.xpose.msra.mxu0 0
        %840 = vmatprep.subr.bf16.mxu0 0
        %841 = vmatpush1.bf16.xpose.msra.mxu0 0
        %842 = vmatprep.subr.bf16.mxu0 0
        %843 = vmatpush1.bf16.xpose.msra.mxu0 0
        %844 = vmatprep.subr.bf16.mxu0 0
        %845 = vmatpush1.bf16.xpose.msra.mxu0 0
        %846 = vmatprep.subr.bf16.mxu0 0
        %847 = vmatpush1.bf16.xpose.msra.mxu0 0
        %848 = vmatprep.subr.bf16.mxu0 0
        %849 = vmatpush1.bf16.xpose.msra.mxu0 0
        %850 = vmatprep.subr.bf16.mxu0 0
        %851 = vmatpush1.bf16.xpose.msra.mxu0 0
        %852 = vmatprep.subr.bf16.mxu0 0
        %853 = vmatpush1.bf16.xpose.msra.mxu0 0
        %854 = vmatprep.subr.bf16.mxu0 0
        %855 = vmatpush1.bf16.xpose.msra.mxu0 0
        %856 = vmatprep.subr.bf16.mxu0 0
        %857 = vmatpush1.bf16.xpose.msra.mxu0 0
        %858 = vmatprep.subr.bf16.mxu0 0
        %859 = vmatpush1.bf16.xpose.msra.mxu0 0
        %860 = vmatprep.subr.bf16.mxu0 0
        %861 = vmatpush1.bf16.xpose.msra.mxu0 0
        %862 = vmatprep.subr.bf16.mxu0 0
        %863 = vmatpush1.bf16.xpose.msra.mxu0 0
        %864 = vmatprep.mubr.bf16.mxu0 0
        %865 = vmatmul.mubr.bf16.gmra.mrb[0].mxu0 %v827
        %v866 = vpop.f32.mrb[0].mxu0
        %v867 = vadd.f32 %v698, %v866
        %v868 = vpop.f32.mrb[0].mxu0
        %v869 = vpop.f32.mrb[0].mxu0
        %v870 = vadd.f32 %v698, %v869
        %v871 = vpop.f32.mrb[0].mxu0
        %872 = vdwg.mxu0
        %v873 = vsel %vm704, %v867, -inf
        %874 = vmax.xlane.f32.xlu0 %v873
        %v875 = vpop.xlane.xlu0 %874
        %v876 = vsel %vm704, %v870, -inf
        %877 = vmax.xlane.f32.xlu0 %v876
        %v878 = vpop.xlane.xlu0 %877
        %v879 = vsub.f32 %v867, %v875
        %v880 = vsub.f32 %v870, %v878
        %v881 = vmul.f32 %v879, 1.442695
        %v882 = vpow.pop %v881
        %v883 = vmul.f32 %v880, 1.442695
        %v884 = vpow.pop %v883
        %v885 = vsel %vm704, %v882, 0.0
        %886 = vadd.xlane.f32.xlu0 %v885
        %v887 = vpop.xlane.xlu0 %886
        %v888 = vsel %vm704, %v884, 0.0
        %889 = vadd.xlane.f32.xlu0 %v888
        %v890 = vpop.xlane.xlu0 %889
        %v891 = vrcp.pop %v887
        %v892 = vrcp.pop %v890
        %v893 = vmul.f32 %v882, %v891
        %v894 = vmul.f32 %v884, %v892
        %v895 = vpack.c.bf16 %v894, %v893
        %896 = vrot.lane.b32.xlu0 %v700, 48
        %v897 = vpop.permute.xlu0 %896
        %v900 = vsel %vm704, %v895, 0
        %902 = vmatprep.subr.bf16.mxu0 0
        %903 = vmatpush1.bf16.msra.mxu0 %v897
        %904 = vmatprep.subr.bf16.mxu0 0
        %905 = vmatpush1.bf16.msra.mxu0 0
        %906 = vmatprep.subr.bf16.mxu0 0
        %907 = vmatpush1.bf16.msra.mxu0 0
        %908 = vmatprep.subr.bf16.mxu0 0
        %909 = vmatpush1.bf16.msra.mxu0 0
        %910 = vmatprep.subr.bf16.mxu0 0
        %911 = vmatpush1.bf16.msra.mxu0 0
        %912 = vmatprep.subr.bf16.mxu0 0
        %913 = vmatpush1.bf16.msra.mxu0 0
        %914 = vmatprep.subr.bf16.mxu0 0
        %915 = vmatpush1.bf16.msra.mxu0 0
        %916 = vmatprep.subr.bf16.mxu0 0
        %917 = vmatpush1.bf16.msra.mxu0 0
        %918 = vmatprep.subr.bf16.mxu0 0
        %919 = vmatpush1.bf16.msra.mxu0 0
        %920 = vmatprep.subr.bf16.mxu0 0
        %921 = vmatpush1.bf16.msra.mxu0 0
        %922 = vmatprep.subr.bf16.mxu0 0
        %923 = vmatpush1.bf16.msra.mxu0 0
        %924 = vmatprep.subr.bf16.mxu0 0
        %925 = vmatpush1.bf16.msra.mxu0 0
        %926 = vmatprep.subr.bf16.mxu0 0
        %927 = vmatpush1.bf16.msra.mxu0 0
        %928 = vmatprep.subr.bf16.mxu0 0
        %929 = vmatpush1.bf16.msra.mxu0 0
        %930 = vmatprep.subr.bf16.mxu0 0
        %931 = vmatpush1.bf16.msra.mxu0 0
        %932 = vmatprep.subr.bf16.mxu0 0
        %933 = vmatpush1.bf16.msra.mxu0 0
        %934 = vmatprep.mubr.bf16.mxu0 0
        %935 = vmatmul.mubr.bf16.gmra.mrb[0].mxu0 %v900
        %v936 = vpop.f32.mrb[0].mxu0
        %v937 = vadd.f32 0.0, %v936
        %v938 = vpop.f32.mrb[0].mxu0
        %v939 = vpop.f32.mrb[0].mxu0
        %v940 = vadd.f32 0.0, %v939
        %v941 = vpop.f32.mrb[0].mxu0
        %942 = vdwg.mxu0
        %945 = vrot.lane.b32.xlu0 %v937, 16
        %v946 = vpop.permute.xlu0 %945
        %947 = vrot.lane.b32.xlu0 %v940, 16
        %v948 = vpop.permute.xlu0 %947
        %v951 = vsel %vm704, %v816, %v946
        %v952 = vsel %vm704, %v819, %v948
        %v953 = vld [vmem:[%s6] sm:$0xff]
        %v954 = vld [vmem:[%s6 + $0x8] sm:$0xff]
        %v955 = vld [vmem:[%s6 + $0x10] sm:$0xff]
        %v956 = vld [vmem:[%s6 + $0x18] sm:$0xff]
        %v957 = vpack.c.bf16 %v952, %v951
        %v958 = vpack.c.bf16 %v954, %v953
        %v959 = vpack.c.bf16 %v956, %v955
        %v960 = vld [vmem:[%s7] sm:$0x1]
        %v962 = vlaneseq
        %v963 = vshrl.u32 %v962, 7
        %v964 = vsub.s32 0, %v963
        %v965 = vrot.slane %v960, %v964
        %v968 = vsel %vm648, %v957, 0
        %970 = vmatprep.subr.bf16.mxu0 0
        %971 = vmatpush1.bf16.msra.mxu0 %v958
        %972 = vmatprep.subr.bf16.mxu0 0
        %973 = vmatpush1.bf16.msra.mxu0 %v959
        %974 = vmatprep.subr.bf16.mxu0 0
        %975 = vmatpush1.bf16.msra.mxu0 0
        %976 = vmatprep.subr.bf16.mxu0 0
        %977 = vmatpush1.bf16.msra.mxu0 0
        %978 = vmatprep.subr.bf16.mxu0 0
        %979 = vmatpush1.bf16.msra.mxu0 0
        %980 = vmatprep.subr.bf16.mxu0 0
        %981 = vmatpush1.bf16.msra.mxu0 0
        %982 = vmatprep.subr.bf16.mxu0 0
        %983 = vmatpush1.bf16.msra.mxu0 0
        %984 = vmatprep.subr.bf16.mxu0 0
        %985 = vmatpush1.bf16.msra.mxu0 0
        %986 = vmatprep.subr.bf16.mxu0 0
        %987 = vmatpush1.bf16.msra.mxu0 0
        %988 = vmatprep.subr.bf16.mxu0 0
        %989 = vmatpush1.bf16.msra.mxu0 0
        %990 = vmatprep.subr.bf16.mxu0 0
        %991 = vmatpush1.bf16.msra.mxu0 0
        %992 = vmatprep.subr.bf16.mxu0 0
        %993 = vmatpush1.bf16.msra.mxu0 0
        %994 = vmatprep.subr.bf16.mxu0 0
        %995 = vmatpush1.bf16.msra.mxu0 0
        %996 = vmatprep.subr.bf16.mxu0 0
        %997 = vmatpush1.bf16.msra.mxu0 0
        %998 = vmatprep.subr.bf16.mxu0 0
        %999 = vmatpush1.bf16.msra.mxu0 0
        %1000 = vmatprep.subr.bf16.mxu0 0
        %1001 = vmatpush1.bf16.msra.mxu0 0
        %1002 = vmatprep.mubr.bf16.mxu0 0
        %1003 = vmatmul.mubr.bf16.gmra.mrb[0].mxu0 %v968
        %v1004 = vpop.f32.mrb[0].mxu0
        %v1005 = vadd.f32 %v965, %v1004
        %v1006 = vpop.f32.mrb[0].mxu0
        %v1007 = vpop.f32.mrb[0].mxu0
        %v1008 = vadd.f32 %v965, %v1007
        %v1009 = vpop.f32.mrb[0].mxu0
        %1010 = vdwg.mxu0
        %v1011 = vadd.f32 %v1005, %v629
        %v1012 = vadd.f32 %v1008, %v630
        %v1013 = vld [vmem:[%s8] sm:$0x1]
        %v1014 = vld [vmem:[%s9] sm:$0x1]
        %v1015 = vsel %vm648, %v1011, 0.0
        %1016 = vadd.xlane.f32.xlu0 %v1015
        %v1017 = vpop.xlane.xlu0 %1016
        %v1018 = vsel %vm648, %v1012, 0.0
        %1019 = vadd.xlane.f32.xlu0 %v1018
        %v1020 = vpop.xlane.xlu0 %1019
        %v1021 = vrcp.pop 32.0
        %v1022 = vmul.f32 %v1017, %v1021
        %v1023 = vmul.f32 %v1020, %v1021
        %v1024 = vsub.f32 %v1011, %v1022
        %v1025 = vsub.f32 %v1012, %v1023
        %v1026 = vmul.f32 %v1024, %v1024
        %v1027 = vmul.f32 %v1025, %v1025
        %v1028 = vsel %vm648, %v1026, 0.0
        %1029 = vadd.xlane.f32.xlu0 %v1028
        %v1030 = vpop.xlane.xlu0 %1029
        %v1031 = vsel %vm648, %v1027, 0.0
        %1032 = vadd.xlane.f32.xlu0 %v1031
        %v1033 = vpop.xlane.xlu0 %1032
        %v1034 = vmul.f32 %v1030, %v1021
        %v1035 = vmul.f32 %v1033, %v1021
        %v1036 = vadd.f32 %v1034, 1e-05
        %v1037 = vadd.f32 %v1035, 1e-05
        %v1038 = vrsqrt.pop %v1036
        %v1039 = vrsqrt.pop %v1037
        %v1040 = vmul.f32 %v1024, %v1038
        %v1041 = vmul.f32 %v1025, %v1039
        %v1043 = vlaneseq
        %v1044 = vshrl.u32 %v1043, 7
        %v1045 = vsub.s32 0, %v1044
        %v1046 = vrot.slane %v1013, %v1045
        %v1048 = vmul.f32 %v1040, %v1046
        %v1049 = vmul.f32 %v1041, %v1046
        %v1051 = vlaneseq
        %v1052 = vshrl.u32 %v1051, 7
        %v1053 = vsub.s32 0, %v1052
        %v1054 = vrot.slane %v1014, %v1053
        %v1056 = vadd.f32 %v1048, %v1054
        %v1057 = vadd.f32 %v1049, %v1054
        %1059 = vset.pattern.permute.xlu0 0
        %1060 = vperm.xlu0 %1059, %v632
        %v1061 = vpop.permute.xlu0 %1060
        %1064 = vset.pattern.permute.xlu0 0
        %1065 = vperm.xlu0 %1064, %v633
        %v1066 = vpop.permute.xlu0 %1065
        %v1068 = vmul.f32 %v1056, %v1061
        %v1069 = vmul.f32 %v1057, %v1066
        %v1070 = vlaneseq
        %v1071 = vshrl.u32 %v1070, 7
        %v1072 = vadd.s32 %v1071, 8
        %vm1073 = vcmp.ne.s32.totalorder %v1071, 0
        %vm1074 = vcmp.ne.s32.totalorder %v1072, 0
        %v1075 = vsel %vm1073, 1, 0
        %v1076 = vsel %vm1074, 1, 0
        %v1077 = vcvt.s32.f32 %v1075
        %v1078 = vcvt.s32.f32 %v1076
        %vm1079 = vcmp.ne.s32.totalorder %v1071, 15
        %vm1080 = vcmp.ne.s32.totalorder %v1072, 15
        %v1081 = vsel %vm1079, 1, 0
        %v1082 = vsel %vm1080, 1, 0
        %v1083 = vcvt.s32.f32 %v1081
        %v1084 = vcvt.s32.f32 %v1082
        %v1085 = vld [vmem:[%s11] sm:$0x1]
        %v1086 = vrot.slane %v1068, 7
        %v1087 = vrot.slane %v1069, 7
        %vm1088 = vcmp.lt.s32.totalorder %v1071, 1
        %v1089 = vsel %vm1088, %v1086, %v1087
        %v1090 = vsel %vm1088, %v1087, %v1086
        %v1091 = vmul.f32 %v1090, %v1077
        %v1092 = vmul.f32 %v1089, %v1078
        %v1093 = vrot.slane %v1068, 1
        %v1094 = vrot.slane %v1069, 1
        %vm1095 = vcmp.lt.s32.totalorder %v1071, 7
        %v1096 = vsel %vm1095, %v1093, %v1094
        %v1097 = vsel %vm1095, %v1094, %v1093
        %v1098 = vmul.f32 %v1096, %v1083
        %v1099 = vmul.f32 %v1097, %v1084
        %v1100 = vld [vmem:[%s10] sm:$0xff]
        %v1101 = vld [vmem:[%s10 + $0x8] sm:$0xff]
        %v1102 = vld [vmem:[%s10 + $0x10] sm:$0xff]
        %v1103 = vld [vmem:[%s10 + $0x18] sm:$0xff]
        %v1104 = vpack.c.bf16 %v1092, %v1091
        %v1105 = vpack.c.bf16 %v1101, %v1100
        %v1106 = vpack.c.bf16 %v1103, %v1102
        %s1107 = scalar_lea.vmem %s10, 32
        %v1108 = vld [vmem:[%s1107] sm:$0xff]
        %v1109 = vld [vmem:[%s1107 + $0x8] sm:$0xff]
        %v1110 = vld [vmem:[%s1107 + $0x10] sm:$0xff]
        %v1111 = vld [vmem:[%s1107 + $0x18] sm:$0xff]
        %v1112 = vpack.c.bf16 %v1069, %v1068
        %v1113 = vpack.c.bf16 %v1109, %v1108
        %v1114 = vpack.c.bf16 %v1111, %v1110
        %v1116 = vsel %vm648, %v1112, 0
        %1118 = vmatprep.subr.bf16.mxu0 0
        %1119 = vmatpush1.bf16.msra.mxu0 %v1113
        %1120 = vmatprep.subr.bf16.mxu0 0
        %1121 = vmatpush1.bf16.msra.mxu0 %v1114
        %1122 = vmatprep.subr.bf16.mxu0 0
        %1123 = vmatpush1.bf16.msra.mxu0 0
        %1124 = vmatprep.subr.bf16.mxu0 0
        %1125 = vmatpush1.bf16.msra.mxu0 0
        %1126 = vmatprep.subr.bf16.mxu0 0
        %1127 = vmatpush1.bf16.msra.mxu0 0
        %1128 = vmatprep.subr.bf16.mxu0 0
        %1129 = vmatpush1.bf16.msra.mxu0 0
        %1130 = vmatprep.subr.bf16.mxu0 0
        %1131 = vmatpush1.bf16.msra.mxu0 0
        %1132 = vmatprep.subr.bf16.mxu0 0
        %1133 = vmatpush1.bf16.msra.mxu0 0
        %1134 = vmatprep.subr.bf16.mxu0 0
        %1135 = vmatpush1.bf16.msra.mxu0 0
        %1136 = vmatprep.subr.bf16.mxu0 0
        %1137 = vmatpush1.bf16.msra.mxu0 0
        %1138 = vmatprep.subr.bf16.mxu0 0
        %1139 = vmatpush1.bf16.msra.mxu0 0
        %1140 = vmatprep.subr.bf16.mxu0 0
        %1141 = vmatpush1.bf16.msra.mxu0 0
        %1142 = vmatprep.subr.bf16.mxu0 0
        %1143 = vmatpush1.bf16.msra.mxu0 0
        %1144 = vmatprep.subr.bf16.mxu0 0
        %1145 = vmatpush1.bf16.msra.mxu0 0
        %1146 = vmatprep.subr.bf16.mxu0 0
        %1147 = vmatpush1.bf16.msra.mxu0 0
        %1148 = vmatprep.subr.bf16.mxu0 0
        %1149 = vmatpush1.bf16.msra.mxu0 0
        %1150 = vmatprep.mubr.bf16.mxu0 0
        %1151 = vmatmul.mubr.bf16.gmra.mrb[0].mxu0 %v1116
        %v1152 = vpop.f32.mrb[0].mxu0
        %v1153 = vadd.f32 0.0, %v1152
        %v1154 = vpop.f32.mrb[0].mxu0
        %v1155 = vpop.f32.mrb[0].mxu0
        %v1156 = vadd.f32 0.0, %v1155
        %v1157 = vpop.f32.mrb[0].mxu0
        %1158 = vdwg.mxu0
        %v1160 = vsel %vm648, %v1104, 0
        %1162 = vmatprep.subr.bf16.mxu0 0
        %1163 = vmatpush1.bf16.msra.mxu0 %v1105
        %1164 = vmatprep.subr.bf16.mxu0 0
        %1165 = vmatpush1.bf16.msra.mxu0 %v1106
        %1166 = vmatprep.subr.bf16.mxu0 0
        %1167 = vmatpush1.bf16.msra.mxu0 0
        %1168 = vmatprep.subr.bf16.mxu0 0
        %1169 = vmatpush1.bf16.msra.mxu0 0
        %1170 = vmatprep.subr.bf16.mxu0 0
        %1171 = vmatpush1.bf16.msra.mxu0 0
        %1172 = vmatprep.subr.bf16.mxu0 0
        %1173 = vmatpush1.bf16.msra.mxu0 0
        %1174 = vmatprep.subr.bf16.mxu0 0
        %1175 = vmatpush1.bf16.msra.mxu0 0
        %1176 = vmatprep.subr.bf16.mxu0 0
        %1177 = vmatpush1.bf16.msra.mxu0 0
        %1178 = vmatprep.subr.bf16.mxu0 0
        %1179 = vmatpush1.bf16.msra.mxu0 0
        %1180 = vmatprep.subr.bf16.mxu0 0
        %1181 = vmatpush1.bf16.msra.mxu0 0
        %1182 = vmatprep.subr.bf16.mxu0 0
        %1183 = vmatpush1.bf16.msra.mxu0 0
        %1184 = vmatprep.subr.bf16.mxu0 0
        %1185 = vmatpush1.bf16.msra.mxu0 0
        %1186 = vmatprep.subr.bf16.mxu0 0
        %1187 = vmatpush1.bf16.msra.mxu0 0
        %1188 = vmatprep.subr.bf16.mxu0 0
        %1189 = vmatpush1.bf16.msra.mxu0 0
        %1190 = vmatprep.subr.bf16.mxu0 0
        %1191 = vmatpush1.bf16.msra.mxu0 0
        %1192 = vmatprep.subr.bf16.mxu0 0
        %1193 = vmatpush1.bf16.msra.mxu0 0
        %1194 = vmatprep.mubr.bf16.mxu0 0
        %1195 = vmatmul.mubr.bf16.gmra.mrb[0].mxu0 %v1160
        %v1196 = vpop.f32.mrb[0].mxu0
        %v1197 = vadd.f32 %v1153, %v1196
        %v1198 = vpop.f32.mrb[0].mxu0
        %v1199 = vpop.f32.mrb[0].mxu0
        %v1200 = vadd.f32 %v1156, %v1199
        %v1201 = vpop.f32.mrb[0].mxu0
        %1202 = vdwg.mxu0
        %s1203 = scalar_lea.vmem %s10, 64
        %v1204 = vld [vmem:[%s1203] sm:$0xff]
        %v1205 = vld [vmem:[%s1203 + $0x8] sm:$0xff]
        %v1206 = vld [vmem:[%s1203 + $0x10] sm:$0xff]
        %v1207 = vld [vmem:[%s1203 + $0x18] sm:$0xff]
        %v1208 = vpack.c.bf16 %v1099, %v1098
        %v1209 = vpack.c.bf16 %v1205, %v1204
        %v1210 = vpack.c.bf16 %v1207, %v1206
        %v1212 = vsel %vm648, %v1208, 0
        %1214 = vmatprep.subr.bf16.mxu0 0
        %1215 = vmatpush1.bf16.msra.mxu0 %v1209
        %1216 = vmatprep.subr.bf16.mxu0 0
        %1217 = vmatpush1.bf16.msra.mxu0 %v1210
        %1218 = vmatprep.subr.bf16.mxu0 0
        %1219 = vmatpush1.bf16.msra.mxu0 0
        %1220 = vmatprep.subr.bf16.mxu0 0
        %1221 = vmatpush1.bf16.msra.mxu0 0
        %1222 = vmatprep.subr.bf16.mxu0 0
        %1223 = vmatpush1.bf16.msra.mxu0 0
        %1224 = vmatprep.subr.bf16.mxu0 0
        %1225 = vmatpush1.bf16.msra.mxu0 0
        %1226 = vmatprep.subr.bf16.mxu0 0
        %1227 = vmatpush1.bf16.msra.mxu0 0
        %1228 = vmatprep.subr.bf16.mxu0 0
        %1229 = vmatpush1.bf16.msra.mxu0 0
        %1230 = vmatprep.subr.bf16.mxu0 0
        %1231 = vmatpush1.bf16.msra.mxu0 0
        %1232 = vmatprep.subr.bf16.mxu0 0
        %1233 = vmatpush1.bf16.msra.mxu0 0
        %1234 = vmatprep.subr.bf16.mxu0 0
        %1235 = vmatpush1.bf16.msra.mxu0 0
        %1236 = vmatprep.subr.bf16.mxu0 0
        %1237 = vmatpush1.bf16.msra.mxu0 0
        %1238 = vmatprep.subr.bf16.mxu0 0
        %1239 = vmatpush1.bf16.msra.mxu0 0
        %1240 = vmatprep.subr.bf16.mxu0 0
        %1241 = vmatpush1.bf16.msra.mxu0 0
        %1242 = vmatprep.subr.bf16.mxu0 0
        %1243 = vmatpush1.bf16.msra.mxu0 0
        %1244 = vmatprep.subr.bf16.mxu0 0
        %1245 = vmatpush1.bf16.msra.mxu0 0
        %1246 = vmatprep.mubr.bf16.mxu0 0
        %1247 = vmatmul.mubr.bf16.gmra.mrb[0].mxu0 %v1212
        %v1248 = vpop.f32.mrb[0].mxu0
        %v1249 = vadd.f32 0.0, %v1248
        %v1250 = vpop.f32.mrb[0].mxu0
        %v1251 = vpop.f32.mrb[0].mxu0
        %v1252 = vadd.f32 0.0, %v1251
        %v1253 = vpop.f32.mrb[0].mxu0
        %1254 = vdwg.mxu0
        %v1255 = vadd.f32 %v1197, %v1249
        %v1256 = vadd.f32 %v1200, %v1252
        %v1258 = vlaneseq
        %v1259 = vshrl.u32 %v1258, 7
        %v1260 = vsub.s32 0, %v1259
        %v1261 = vrot.slane %v1085, %v1260
        %v1263 = vadd.f32 %v1255, %v1261
        %v1264 = vadd.f32 %v1256, %v1261
        %v1265 = vmax.f32 %v1263, 0.0
        %v1266 = vmax.f32 %v1264, 0.0
        %v1267 = vld [vmem:[%s13] sm:$0x1]
        %v1268 = vrot.slane %v1265, 7
        %v1269 = vrot.slane %v1266, 7
        %v1270 = vsel %vm1088, %v1268, %v1269
        %v1271 = vsel %vm1088, %v1269, %v1268
        %v1272 = vmul.f32 %v1271, %v1077
        %v1273 = vmul.f32 %v1270, %v1078
        %v1274 = vrot.slane %v1265, 1
        %v1275 = vrot.slane %v1266, 1
        %v1276 = vsel %vm1095, %v1274, %v1275
        %v1277 = vsel %vm1095, %v1275, %v1274
        %v1278 = vmul.f32 %v1276, %v1083
        %v1279 = vmul.f32 %v1277, %v1084
        %v1280 = vld [vmem:[%s12] sm:$0xff]
        %v1281 = vld [vmem:[%s12 + $0x8] sm:$0xff]
        %v1282 = vld [vmem:[%s12 + $0x10] sm:$0xff]
        %v1283 = vld [vmem:[%s12 + $0x18] sm:$0xff]
        %v1284 = vld [vmem:[%s12 + $0x20] sm:$0xff]
        %v1285 = vld [vmem:[%s12 + $0x28] sm:$0xff]
        %v1286 = vld [vmem:[%s12 + $0x30] sm:$0xff]
        %v1287 = vld [vmem:[%s12 + $0x38] sm:$0xff]
        %v1288 = vpack.c.bf16 %v1273, %v1272
        %v1289 = vpack.c.bf16 %v1281, %v1280
        %v1290 = vpack.c.bf16 %v1283, %v1282
        %v1291 = vpack.c.bf16 %v1285, %v1284
        %v1292 = vpack.c.bf16 %v1287, %v1286
        %s1293 = scalar_lea.vmem %s12, 64
        %v1294 = vld [vmem:[%s1293] sm:$0xff]
        %v1295 = vld [vmem:[%s1293 + $0x8] sm:$0xff]
        %v1296 = vld [vmem:[%s1293 + $0x10] sm:$0xff]
        %v1297 = vld [vmem:[%s1293 + $0x18] sm:$0xff]
        %v1298 = vld [vmem:[%s1293 + $0x20] sm:$0xff]
        %v1299 = vld [vmem:[%s1293 + $0x28] sm:$0xff]
        %v1300 = vld [vmem:[%s1293 + $0x30] sm:$0xff]
        %v1301 = vld [vmem:[%s1293 + $0x38] sm:$0xff]
        %v1302 = vpack.c.bf16 %v1266, %v1265
        %v1303 = vpack.c.bf16 %v1295, %v1294
        %v1304 = vpack.c.bf16 %v1297, %v1296
        %v1305 = vpack.c.bf16 %v1299, %v1298
        %v1306 = vpack.c.bf16 %v1301, %v1300
        %vm1307 = vcmask 523264
        %v1309 = vsel %vm1307, %v1302, 0
        %1311 = vmatprep.subr.bf16.mxu0 0
        %1312 = vmatpush1.bf16.msra.mxu0 %v1303
        %1313 = vmatprep.subr.bf16.mxu0 0
        %1314 = vmatpush1.bf16.msra.mxu0 %v1304
        %1315 = vmatprep.subr.bf16.mxu0 0
        %1316 = vmatpush1.bf16.msra.mxu0 %v1305
        %1317 = vmatprep.subr.bf16.mxu0 0
        %1318 = vmatpush1.bf16.msra.mxu0 %v1306
        %1319 = vmatprep.subr.bf16.mxu0 0
        %1320 = vmatpush1.bf16.msra.mxu0 0
        %1321 = vmatprep.subr.bf16.mxu0 0
        %1322 = vmatpush1.bf16.msra.mxu0 0
        %1323 = vmatprep.subr.bf16.mxu0 0
        %1324 = vmatpush1.bf16.msra.mxu0 0
        %1325 = vmatprep.subr.bf16.mxu0 0
        %1326 = vmatpush1.bf16.msra.mxu0 0
        %1327 = vmatprep.subr.bf16.mxu0 0
        %1328 = vmatpush1.bf16.msra.mxu0 0
        %1329 = vmatprep.subr.bf16.mxu0 0
        %1330 = vmatpush1.bf16.msra.mxu0 0
        %1331 = vmatprep.subr.bf16.mxu0 0
        %1332 = vmatpush1.bf16.msra.mxu0 0
        %1333 = vmatprep.subr.bf16.mxu0 0
        %1334 = vmatpush1.bf16.msra.mxu0 0
        %1335 = vmatprep.subr.bf16.mxu0 0
        %1336 = vmatpush1.bf16.msra.mxu0 0
        %1337 = vmatprep.subr.bf16.mxu0 0
        %1338 = vmatpush1.bf16.msra.mxu0 0
        %1339 = vmatprep.subr.bf16.mxu0 0
        %1340 = vmatpush1.bf16.msra.mxu0 0
        %1341 = vmatprep.subr.bf16.mxu0 0
        %1342 = vmatpush1.bf16.msra.mxu0 0
        %1343 = vmatprep.mubr.bf16.mxu0 0
        %1344 = vmatmul.mubr.bf16.gmra.mrb[0].mxu0 %v1309
        %v1345 = vpop.f32.mrb[0].mxu0
        %v1346 = vadd.f32 0.0, %v1345
        %v1347 = vpop.f32.mrb[0].mxu0
        %v1348 = vpop.f32.mrb[0].mxu0
        %v1349 = vadd.f32 0.0, %v1348
        %v1350 = vpop.f32.mrb[0].mxu0
        %1351 = vdwg.mxu0
        %v1353 = vsel %vm1307, %v1288, 0
        %1355 = vmatprep.subr.bf16.mxu0 0
        %1356 = vmatpush1.bf16.msra.mxu0 %v1289
        %1357 = vmatprep.subr.bf16.mxu0 0
        %1358 = vmatpush1.bf16.msra.mxu0 %v1290
        %1359 = vmatprep.subr.bf16.mxu0 0
        %1360 = vmatpush1.bf16.msra.mxu0 %v1291
        %1361 = vmatprep.subr.bf16.mxu0 0
        %1362 = vmatpush1.bf16.msra.mxu0 %v1292
        %1363 = vmatprep.subr.bf16.mxu0 0
        %1364 = vmatpush1.bf16.msra.mxu0 0
        %1365 = vmatprep.subr.bf16.mxu0 0
        %1366 = vmatpush1.bf16.msra.mxu0 0
        %1367 = vmatprep.subr.bf16.mxu0 0
        %1368 = vmatpush1.bf16.msra.mxu0 0
        %1369 = vmatprep.subr.bf16.mxu0 0
        %1370 = vmatpush1.bf16.msra.mxu0 0
        %1371 = vmatprep.subr.bf16.mxu0 0
        %1372 = vmatpush1.bf16.msra.mxu0 0
        %1373 = vmatprep.subr.bf16.mxu0 0
        %1374 = vmatpush1.bf16.msra.mxu0 0
        %1375 = vmatprep.subr.bf16.mxu0 0
        %1376 = vmatpush1.bf16.msra.mxu0 0
        %1377 = vmatprep.subr.bf16.mxu0 0
        %1378 = vmatpush1.bf16.msra.mxu0 0
        %1379 = vmatprep.subr.bf16.mxu0 0
        %1380 = vmatpush1.bf16.msra.mxu0 0
        %1381 = vmatprep.subr.bf16.mxu0 0
        %1382 = vmatpush1.bf16.msra.mxu0 0
        %1383 = vmatprep.subr.bf16.mxu0 0
        %1384 = vmatpush1.bf16.msra.mxu0 0
        %1385 = vmatprep.subr.bf16.mxu0 0
        %1386 = vmatpush1.bf16.msra.mxu0 0
        %1387 = vmatprep.mubr.bf16.mxu0 0
        %1388 = vmatmul.mubr.bf16.gmra.mrb[0].mxu0 %v1353
        %v1389 = vpop.f32.mrb[0].mxu0
        %v1390 = vadd.f32 %v1346, %v1389
        %v1391 = vpop.f32.mrb[0].mxu0
        %v1392 = vpop.f32.mrb[0].mxu0
        %v1393 = vadd.f32 %v1349, %v1392
        %v1394 = vpop.f32.mrb[0].mxu0
        %1395 = vdwg.mxu0
        %s1396 = scalar_lea.vmem %s12, 128
        %v1397 = vld [vmem:[%s1396] sm:$0xff]
        %v1398 = vld [vmem:[%s1396 + $0x8] sm:$0xff]
        %v1399 = vld [vmem:[%s1396 + $0x10] sm:$0xff]
        %v1400 = vld [vmem:[%s1396 + $0x18] sm:$0xff]
        %v1401 = vld [vmem:[%s1396 + $0x20] sm:$0xff]
        %v1402 = vld [vmem:[%s1396 + $0x28] sm:$0xff]
        %v1403 = vld [vmem:[%s1396 + $0x30] sm:$0xff]
        %v1404 = vld [vmem:[%s1396 + $0x38] sm:$0xff]
        %v1405 = vpack.c.bf16 %v1279, %v1278
        %v1406 = vpack.c.bf16 %v1398, %v1397
        %v1407 = vpack.c.bf16 %v1400, %v1399
        %v1408 = vpack.c.bf16 %v1402, %v1401
        %v1409 = vpack.c.bf16 %v1404, %v1403
        %v1411 = vsel %vm1307, %v1405, 0
        %1413 = vmatprep.subr.bf16.mxu0 0
        %1414 = vmatpush1.bf16.msra.mxu0 %v1406
        %1415 = vmatprep.subr.bf16.mxu0 0
        %1416 = vmatpush1.bf16.msra.mxu0 %v1407
        %1417 = vmatprep.subr.bf16.mxu0 0
        %1418 = vmatpush1.bf16.msra.mxu0 %v1408
        %1419 = vmatprep.subr.bf16.mxu0 0
        %1420 = vmatpush1.bf16.msra.mxu0 %v1409
        %1421 = vmatprep.subr.bf16.mxu0 0
        %1422 = vmatpush1.bf16.msra.mxu0 0
        %1423 = vmatprep.subr.bf16.mxu0 0
        %1424 = vmatpush1.bf16.msra.mxu0 0
        %1425 = vmatprep.subr.bf16.mxu0 0
        %1426 = vmatpush1.bf16.msra.mxu0 0
        %1427 = vmatprep.subr.bf16.mxu0 0
        %1428 = vmatpush1.bf16.msra.mxu0 0
        %1429 = vmatprep.subr.bf16.mxu0 0
        %1430 = vmatpush1.bf16.msra.mxu0 0
        %1431 = vmatprep.subr.bf16.mxu0 0
        %1432 = vmatpush1.bf16.msra.mxu0 0
        %1433 = vmatprep.subr.bf16.mxu0 0
        %1434 = vmatpush1.bf16.msra.mxu0 0
        %1435 = vmatprep.subr.bf16.mxu0 0
        %1436 = vmatpush1.bf16.msra.mxu0 0
        %1437 = vmatprep.subr.bf16.mxu0 0
        %1438 = vmatpush1.bf16.msra.mxu0 0
        %1439 = vmatprep.subr.bf16.mxu0 0
        %1440 = vmatpush1.bf16.msra.mxu0 0
        %1441 = vmatprep.subr.bf16.mxu0 0
        %1442 = vmatpush1.bf16.msra.mxu0 0
        %1443 = vmatprep.subr.bf16.mxu0 0
        %1444 = vmatpush1.bf16.msra.mxu0 0
        %1445 = vmatprep.mubr.bf16.mxu0 0
        %1446 = vmatmul.mubr.bf16.gmra.mrb[0].mxu0 %v1411
        %v1447 = vpop.f32.mrb[0].mxu0
        %v1448 = vadd.f32 0.0, %v1447
        %v1449 = vpop.f32.mrb[0].mxu0
        %v1450 = vpop.f32.mrb[0].mxu0
        %v1451 = vadd.f32 0.0, %v1450
        %v1452 = vpop.f32.mrb[0].mxu0
        %1453 = vdwg.mxu0
        %v1454 = vadd.f32 %v1390, %v1448
        %v1455 = vadd.f32 %v1393, %v1451
        %v1457 = vlaneseq
        %v1458 = vshrl.u32 %v1457, 7
        %v1459 = vsub.s32 0, %v1458
        %v1460 = vrot.slane %v1267, %v1459
        %v1462 = vadd.f32 %v1454, %v1460
        %v1463 = vadd.f32 %v1455, %v1460
        %v1464 = vadd.f32 %v1462, %v1068
        %v1465 = vadd.f32 %v1463, %v1069
        %v1466 = vld [vmem:[%s14] sm:$0x1]
        %v1467 = vld [vmem:[%s15] sm:$0x1]
        %v1468 = vsel %vm648, %v1464, 0.0
        %1469 = vadd.xlane.f32.xlu0 %v1468
        %v1470 = vpop.xlane.xlu0 %1469
        %v1471 = vsel %vm648, %v1465, 0.0
        %1472 = vadd.xlane.f32.xlu0 %v1471
        %v1473 = vpop.xlane.xlu0 %1472
        %v1474 = vmul.f32 %v1470, %v1021
        %v1475 = vmul.f32 %v1473, %v1021
        %v1476 = vsub.f32 %v1464, %v1474
        %v1477 = vsub.f32 %v1465, %v1475
        %v1478 = vmul.f32 %v1476, %v1476
        %v1479 = vmul.f32 %v1477, %v1477
        %v1480 = vsel %vm648, %v1478, 0.0
        %1481 = vadd.xlane.f32.xlu0 %v1480
        %v1482 = vpop.xlane.xlu0 %1481
        %v1483 = vsel %vm648, %v1479, 0.0
        %1484 = vadd.xlane.f32.xlu0 %v1483
        %v1485 = vpop.xlane.xlu0 %1484
        %v1486 = vmul.f32 %v1482, %v1021
        %v1487 = vmul.f32 %v1485, %v1021
        %v1488 = vadd.f32 %v1486, 1e-05
        %v1489 = vadd.f32 %v1487, 1e-05
        %v1490 = vrsqrt.pop %v1488
        %v1491 = vrsqrt.pop %v1489
        %v1492 = vmul.f32 %v1476, %v1490
        %v1493 = vmul.f32 %v1477, %v1491
        %v1495 = vlaneseq
        %v1496 = vshrl.u32 %v1495, 7
        %v1497 = vsub.s32 0, %v1496
        %v1498 = vrot.slane %v1466, %v1497
        %v1500 = vmul.f32 %v1492, %v1498
        %v1501 = vmul.f32 %v1493, %v1498
        %v1503 = vlaneseq
        %v1504 = vshrl.u32 %v1503, 7
        %v1505 = vsub.s32 0, %v1504
        %v1506 = vrot.slane %v1467, %v1505
        %v1508 = vadd.f32 %v1500, %v1506
        %v1509 = vadd.f32 %v1501, %v1506
        %v1510 = vmul.f32 %v1508, %v1061
        %v1511 = vmul.f32 %v1509, %v1066
        %v1512 = vld [vmem:[%s16] sm:$0xff]
        %v1513 = vld [vmem:[%s16 + $0x8] sm:$0xff]
        %v1514 = vld [vmem:[%s16 + $0x10] sm:$0xff]
        %v1515 = vld [vmem:[%s16 + $0x18] sm:$0xff]
        %v1516 = vpack.c.bf16 %v1511, %v1510
        %v1517 = vpack.c.bf16 %v1513, %v1512
        %v1518 = vpack.c.bf16 %v1515, %v1514
        %v1519 = vld [vmem:[%s17] sm:$0x1]
        %v1521 = vlaneseq
        %v1522 = vshrl.u32 %v1521, 7
        %v1523 = vsub.s32 0, %v1522
        %v1524 = vrot.slane %v1519, %v1523
        %v1527 = vsel %vm648, %v1516, 0
        %1529 = vmatprep.subr.bf16.mxu0 0
        %1530 = vmatpush1.bf16.msra.mxu0 %v1517
        %1531 = vmatprep.subr.bf16.mxu0 0
        %1532 = vmatpush1.bf16.msra.mxu0 %v1518
        %1533 = vmatprep.subr.bf16.mxu0 0
        %1534 = vmatpush1.bf16.msra.mxu0 0
        %1535 = vmatprep.subr.bf16.mxu0 0
        %1536 = vmatpush1.bf16.msra.mxu0 0
        %1537 = vmatprep.subr.bf16.mxu0 0
        %1538 = vmatpush1.bf16.msra.mxu0 0
        %1539 = vmatprep.subr.bf16.mxu0 0
        %1540 = vmatpush1.bf16.msra.mxu0 0
        %1541 = vmatprep.subr.bf16.mxu0 0
        %1542 = vmatpush1.bf16.msra.mxu0 0
        %1543 = vmatprep.subr.bf16.mxu0 0
        %1544 = vmatpush1.bf16.msra.mxu0 0
        %1545 = vmatprep.subr.bf16.mxu0 0
        %1546 = vmatpush1.bf16.msra.mxu0 0
        %1547 = vmatprep.subr.bf16.mxu0 0
        %1548 = vmatpush1.bf16.msra.mxu0 0
        %1549 = vmatprep.subr.bf16.mxu0 0
        %1550 = vmatpush1.bf16.msra.mxu0 0
        %1551 = vmatprep.subr.bf16.mxu0 0
        %1552 = vmatpush1.bf16.msra.mxu0 0
        %1553 = vmatprep.subr.bf16.mxu0 0
        %1554 = vmatpush1.bf16.msra.mxu0 0
        %1555 = vmatprep.subr.bf16.mxu0 0
        %1556 = vmatpush1.bf16.msra.mxu0 0
        %1557 = vmatprep.subr.bf16.mxu0 0
        %1558 = vmatpush1.bf16.msra.mxu0 0
        %1559 = vmatprep.subr.bf16.mxu0 0
        %1560 = vmatpush1.bf16.msra.mxu0 0
        %1561 = vmatprep.mubr.bf16.mxu0 0
        %1562 = vmatmul.mubr.bf16.gmra.mrb[0].mxu0 %v1527
        %v1563 = vpop.f32.mrb[0].mxu0
        %v1564 = vadd.f32 %v1524, %v1563
        %v1565 = vpop.f32.mrb[0].mxu0
        %v1566 = vpop.f32.mrb[0].mxu0
        %v1567 = vadd.f32 %v1524, %v1566
        %v1568 = vpop.f32.mrb[0].mxu0
        %1569 = vdwg.mxu0
        %v1570 = vld [vmem:[%s627] sm:$0xff]
        %v1571 = vld [vmem:[%s627 + $0x8] sm:$0xff]
        %1573 = vset.pattern.permute.xlu0 0
        %1574 = vperm.xlu0 %1573, %v1570
        %v1575 = vpop.permute.xlu0 %1574
        %1578 = vset.pattern.permute.xlu0 0
        %1579 = vperm.xlu0 %1578, %v1571
        %v1580 = vpop.permute.xlu0 %1579
        %v1582 = vmul.f32 %v1564, %v1575
        %v1583 = vmul.f32 %v1567, %v1580
        %1584 = vst.msk [vmem:[%s609] sm:$0xff] %vm704, %v1582
        %1585 = vst.msk [vmem:[%s609 + $0x8] sm:$0xff] %vm704, %v1583
        %s1586 = sand.u32 %s438, 1
        %s1587 = scalar_lea.sflag [#allocation3], %s1586
        %s1588 = sand.u32 %s438, 1
        %s1589 = smul.addr %s1588, 16
        %s1590 = scalar_lea.vmem [#allocation2], %s1589
        // Predicated region
        $region93: #{fastspeech2_forward.9} parent=91 // pred_check
          %p1591 = pneg %p448
        $region94: #{fastspeech2_forward.9} parent=91 // pred_check_branch
          %1593 = sbr.rel (%p1591) target = $region96
        $region95: #{fastspeech2_forward.9} parent=91 // pred_region
          %s1595 = ssub.s32 256, 256
          %1596 = vsyncadd %s1587, %s1595
          %s1597 = smul.addr %s32, 2
          %s1598 = smul.addr %s1597, 128
          %s1599 = scalar_lea.hbm %s18, %s1598
          %s1600 = sshll.u32 %s1590, 4
          %s1601 = int_to_ptr.vmem [resolvable:$true] %s1600
          %1606 = dma.vmem_to_hbm [thread:$0]  %s1601, 256, %s1599, %s1587, 128, 128, 8
        $region96: #{fastspeech2_forward.9} parent=91 // pred_fallthru
          _
      $region92: #{fastspeech2_forward.9} parent=5 // pred_fallthru
        _
      %p1607 = scmp.le.s32.totalorder 2, %s27
      // Predicated region
      $region97: #{fastspeech2_forward.9} parent=5 // pred_check
        %p1608 = pneg %p1607
      $region98: #{fastspeech2_forward.9} parent=5 // pred_check_branch
        %1610 = sbr.rel (%p1608) target = $region100
      $region99: #{fastspeech2_forward.9} parent=5 // pred_region
        %s1611 = ssub.s32 %s27, 2
        // Predicated region
        $region101: #{fastspeech2_forward.9} parent=99 // pred_check
          %p1612 = pneg %p454
        $region102: #{fastspeech2_forward.9} parent=99 // pred_check_branch
          %1614 = sbr.rel (%p1612) target = $region104
        $region103: #{fastspeech2_forward.9} parent=99 // pred_region
          %s1615 = sand.u32 %s439, 1
          %s1616 = scalar_lea.sflag [#allocation3], %s1615
          %s1617 = sand.u32 %s439, 1
          %s1618 = smul.addr %s1617, 16
          %s1619 = scalar_lea.vmem [#allocation2], %s1618
          %1620 = dma.done %s1616, 256
        $region104: #{fastspeech2_forward.9} parent=99 // pred_fallthru
          _
      $region100: #{fastspeech2_forward.9} parent=5 // pred_fallthru
        _
    $region6: #{fastspeech2_forward.9} parent=1 // loop_footer
      %s31 = sadd.s32 1, %s27
    $region7: #{fastspeech2_forward.9} parent=1 // loop_footer_branch
      %26 = sbr.rel target = $region3
    $region8: #{fastspeech2_forward.9} parent=1 // loop_exit
      _
    %1621 = vsyncpa [#allocation3], 1
    %s1622 = scalar_lea.sflag [#allocation3], 1
    %1623 = vsyncpa %s1622, 1

</llo_original>
